<compile_context>
chip_gen: v7x
topology: tpu7x:2x2x1
jax: 0.10.0
libtpu: 0.0.40
codegen_flags: <defaults>
</compile_context>

<pallas_src>
import functools

import jax
import jax.numpy as jnp
from jax.experimental import pallas as pl

# ---------------- small synthetic Phi-3 config ----------------
VOCAB = 256
HIDDEN = 64
N_HEADS = 4
HEAD_DIM = HIDDEN // N_HEADS
N_KV_HEADS = N_HEADS      # Phi-3-mini: num_key_value_heads == num_attention_heads
INTERMEDIATE = 128
N_LAYERS = 2
RMS_EPS = 1e-5
ROPE_THETA = 10000.0


# ---------------- fused whole-forward Pallas kernel ----------------
def _phi3_forward_kernel(
    h_ref, cos_ref, sin_ref,
    ln1_ref, wq_ref, wk_ref, wv_ref, wo_ref,
    ln2_ref, gu_ref, down_ref,
    fln_ref, lm_ref,
    out_ref,
    *, batch, seq, n_layers, n_heads, head_dim, intermediate, eps,
):
    # Single grid step: everything below stays in VMEM / vregs.
    x = h_ref[...].astype(jnp.float32)            # (B*S, HIDDEN)
    cos = cos_ref[...]                            # (B*S, head_dim), per-batch tiled
    sin = sin_ref[...]
    half = head_dim // 2
    bs = batch * seq
    hidden = x.shape[-1]

    def rms(v, w):                                # v: (rows, H), w: (1, H)
        var = jnp.mean(v * v, axis=-1, keepdims=True)
        return v * jax.lax.rsqrt(var + eps) * w

    def rope(t):                                  # t: (n_heads, B*S, head_dim)
        rot = jnp.concatenate([-t[..., half:], t[..., :half]], axis=-1)
        return t * cos + rot * sin                # cos/sin broadcast over heads

    # causal mask computed once, reused by every layer / head / sequence
    row = jax.lax.broadcasted_iota(jnp.int32, (seq, seq), 0)
    col = jax.lax.broadcasted_iota(jnp.int32, (seq, seq), 1)
    causal = col <= row                           # (S, S)

    for li in range(n_layers):                    # static, fully unrolled
        # ---------------- self-attention block ----------------
        resid = x
        xn = rms(x, ln1_ref[li])
        # head-leading batched projections (leading batch dim in both operands,
        # same pattern as the flash-attention reference kernel)
        xn_h = jnp.broadcast_to(xn[None], (n_heads, bs, hidden))
        q = jnp.einsum('hsk,hkd->hsd', xn_h, wq_ref[li],
                       preferred_element_type=jnp.float32)   # (h, B*S, d), pre-scaled
        k = jnp.einsum('hsk,hkd->hsd', xn_h, wk_ref[li],
                       preferred_element_type=jnp.float32)
        v = jnp.einsum('hsk,hkd->hsd', xn_h, wv_ref[li],
                       preferred_element_type=jnp.float32)
        q = rope(q)
        k = rope(k)

        attn = []
        for b in range(batch):                    # per-sequence causal attention
            sl = slice(b * seq, (b + 1) * seq)    # aligned 8-row sublane slice
            qb, kb, vb = q[:, sl], k[:, sl], v[:, sl]      # (h, S, d)
            # NT-form contraction over head_dim: no k transpose materialized
            s = jnp.einsum('hqd,hkd->hqk', qb, kb,
                           preferred_element_type=jnp.float32)
            s = jnp.where(causal, s, -1e30)
            m = jnp.max(s, axis=-1, keepdims=True)
            p = jnp.exp(s - m)
            l = jnp.sum(p, axis=-1, keepdims=True)
            p = p * pl.reciprocal(l, approx=True)           # EUP, not a divide
            pv = jnp.einsum('hqk,hkd->hqd', p, vb,
                            preferred_element_type=jnp.float32)   # (h, S, d)
            # o-proj batched over heads then reduced: avoids (h,q,d)->(q,h*d)
            # transpose / lane concat entirely
            ob = jnp.einsum('hqd,hdo->hqo', pv, wo_ref[li],
                            preferred_element_type=jnp.float32)   # (h, S, HIDDEN)
            attn.append(jnp.sum(ob, axis=0))                # (S, HIDDEN)
        x = resid + jnp.concatenate(attn, axis=0)           # (B*S, HIDDEN)

        # ---------------- MLP block: gate_up -> SwiGLU -> down ----------------
        resid = x
        xn = rms(x, ln2_ref[li])
        gu = jnp.dot(xn, gu_ref[li], preferred_element_type=jnp.float32)
        gate = gu[:, :intermediate]               # slice at lane 128: vreg-aligned
        up = gu[:, intermediate:]
        act = up * gate * jax.nn.sigmoid(gate)    # SiLU gating (EUP path)
        x = resid + jnp.dot(act, down_ref[li], preferred_element_type=jnp.float32)

    # ---------- final norm + lm_head on the LAST token of each sequence ----------
    lasts = jnp.concatenate(
        [x[b * seq + seq - 1:b * seq + seq] for b in range(batch)], axis=0)  # (B, H)
    lastn = rms(lasts, fln_ref[...])
    logits = jnp.dot(lastn, lm_ref[...], preferred_element_type=jnp.float32)
    out_ref[...] = logits.astype(out_ref.dtype)   # (B, 256): lane-dense store


# ---------------- parameters & glue ----------------
def init_params(key):
    keys = jax.random.split(key, 6)

    def w(k, shape):
        return 0.02 * jax.random.normal(k, shape, dtype=jnp.float32)

    qkv_out = (N_HEADS + 2 * N_KV_HEADS) * HEAD_DIM
    return {
        "embed": w(keys[0], (VOCAB, HIDDEN)),
        "final_ln": jnp.ones((1, HIDDEN), jnp.float32),
        "lm_head": w(keys[1], (HIDDEN, VOCAB)),
        "input_ln": jnp.ones((N_LAYERS, 1, HIDDEN), jnp.float32),
        "post_ln": jnp.ones((N_LAYERS, 1, HIDDEN), jnp.float32),
        "qkv": w(keys[2], (N_LAYERS, HIDDEN, qkv_out)),           # fused q|k|v
        "o": w(keys[3], (N_LAYERS, N_HEADS * HEAD_DIM, HIDDEN)),
        "gate_up": w(keys[4], (N_LAYERS, HIDDEN, 2 * INTERMEDIATE)),
        "down": w(keys[5], (N_LAYERS, INTERMEDIATE, HIDDEN)),
    }


def rope_cos_sin(seq_len, dim, theta=ROPE_THETA):
    inv_freq = 1.0 / (theta ** (jnp.arange(0, dim, 2, dtype=jnp.float32) / dim))
    pos = jnp.arange(seq_len, dtype=jnp.float32)
    freqs = pos[:, None] * inv_freq[None, :]          # (S, dim/2)
    emb = jnp.concatenate([freqs, freqs], axis=-1)    # (S, dim)
    return jnp.cos(emb), jnp.sin(emb)


def phi3_forward(params, input_ids):
    B, S = input_ids.shape
    # Embedding gather stays as one XLA take (single HBM pass); everything
    # after it runs inside one fused Pallas kernel on the flattened batch.
    h = jnp.take(params["embed"], input_ids, axis=0).reshape(B * S, HIDDEN)
    cos, sin = rope_cos_sin(S, HEAD_DIM)
    cos_bs = jnp.tile(cos, (B, 1))                    # (B*S, head_dim)
    sin_bs = jnp.tile(sin, (B, 1))

    # Wrapper-side weight re-layout (once, under jit): split fused qkv per head
    # so the kernel never slices the 192-wide activation at lane offsets 64/128,
    # and pre-shape o_proj as (heads, head_dim, HIDDEN) for the batched merge.
    q_sz = N_HEADS * HEAD_DIM
    qkv = params["qkv"]                               # (L, H, 3*q_sz)

    def per_head(wflat):                              # (L, H, h*d) -> (L, h, H, d)
        return wflat.reshape(N_LAYERS, HIDDEN, N_HEADS, HEAD_DIM).transpose(0, 2, 1, 3)

    # 1/sqrt(head_dim) folded into the Q weight (RoPE is linear, so this is
    # exactly equivalent to scaling the scores).
    wq = per_head(qkv[:, :, :q_sz]) * (1.0 / (HEAD_DIM ** 0.5))
    wk = per_head(qkv[:, :, q_sz:2 * q_sz])
    wv = per_head(qkv[:, :, 2 * q_sz:])
    wo = params["o"].reshape(N_LAYERS, N_HEADS, HEAD_DIM, HIDDEN)

    kernel = functools.partial(
        _phi3_forward_kernel,
        batch=B, seq=S, n_layers=N_LAYERS, n_heads=N_HEADS, head_dim=HEAD_DIM,
        intermediate=INTERMEDIATE, eps=RMS_EPS,
    )

    # Single grid step, full-array blocks in VMEM (all weights < 1 MiB):
    # no per-step grid overhead, no pipeline prologue/epilogue, no per-TC
    # weight re-DMA.  Output is (B, VOCAB) = lane-dense 256-wide store.
    logits = pl.pallas_call(
        kernel,
        out_shape=jax.ShapeDtypeStruct((B, VOCAB), jnp.float32),
    )(h, cos_bs, sin_bs,
      params["input_ln"], wq, wk, wv, wo,
      params["post_ln"], params["gate_up"], params["down"],
      params["final_ln"], params["lm_head"])
    return logits                                      # (B, VOCAB)


if __name__ == "__main__":
    key = jax.random.PRNGKey(0)
    pkey, ikey = jax.random.split(key)
    params = init_params(pkey)
    input_ids = jax.random.randint(ikey, (2, 8), 0, VOCAB, dtype=jnp.int32)

    logits = jax.jit(phi3_forward)(params, input_ids)
    jax.block_until_ready(logits)
    assert logits.shape == (2, VOCAB), logits.shape
    assert logits.dtype == jnp.float32
    print("KERNEL_OK")
</pallas_src>

<mosaic_0001>
module attributes {stable_mosaic.version = 11 : i64} {
  func.func @_phi3_forward_kernel(%arg0: memref<16x64xf32, #tpu.memory_space<vmem>>, %arg1: memref<16x16xf32, #tpu.memory_space<vmem>>, %arg2: memref<16x16xf32, #tpu.memory_space<vmem>>, %arg3: memref<2x1x64xf32, #tpu.memory_space<vmem>>, %arg4: memref<2x4x64x16xf32, #tpu.memory_space<vmem>>, %arg5: memref<2x4x64x16xf32, #tpu.memory_space<vmem>>, %arg6: memref<2x4x64x16xf32, #tpu.memory_space<vmem>>, %arg7: memref<2x4x16x64xf32, #tpu.memory_space<vmem>>, %arg8: memref<2x1x64xf32, #tpu.memory_space<vmem>>, %arg9: memref<2x64x256xf32, #tpu.memory_space<vmem>>, %arg10: memref<2x128x64xf32, #tpu.memory_space<vmem>>, %arg11: memref<1x64xf32, #tpu.memory_space<vmem>>, %arg12: memref<64x256xf32, #tpu.memory_space<vmem>>, %arg13: memref<2x256xf32, #tpu.memory_space<vmem>>) attributes {dimension_semantics = [], scalar_prefetch = 0 : i64, scratch_operands = 0 : i64, tpu.core_type = #tpu.core_type<tc>} {
    %c0 = arith.constant 0 : index
    %c0_0 = arith.constant 0 : index
    %0 = vector.load %arg0[%c0, %c0_0] : memref<16x64xf32, #tpu.memory_space<vmem>>, vector<16x64xf32>
    %c0_1 = arith.constant 0 : index
    %c0_2 = arith.constant 0 : index
    %1 = vector.load %arg1[%c0_1, %c0_2] : memref<16x16xf32, #tpu.memory_space<vmem>>, vector<16x16xf32>
    %c0_3 = arith.constant 0 : index
    %c0_4 = arith.constant 0 : index
    %2 = vector.load %arg2[%c0_3, %c0_4] : memref<16x16xf32, #tpu.memory_space<vmem>>, vector<16x16xf32>
    %3 = tpu.iota {dimensions = array<i32: 0>} : vector<8x8xi32>
    %4 = tpu.iota {dimensions = array<i32: 1>} : vector<8x8xi32>
    %5 = arith.cmpi sle, %4, %3 : vector<8x8xi32>
    %c0_5 = arith.constant 0 : index
    %c0_6 = arith.constant 0 : index
    %c0_7 = arith.constant 0 : index
    %6 = vector.load %arg3[%c0_5, %c0_6, %c0_7] : memref<2x1x64xf32, #tpu.memory_space<vmem>>, vector<1x1x64xf32>
    %7 = vector.shape_cast %6 : vector<1x1x64xf32> to vector<1x64xf32>
    %8 = arith.mulf %0, %0 : vector<16x64xf32>
    %cst = arith.constant dense<0.000000e+00> : vector<16xf32>
    %9 = vector.multi_reduction <add>, %8, %cst [1] : vector<16x64xf32> to vector<16xf32>
    %10 = vector.shape_cast %9 : vector<16xf32> to vector<16x1xf32>
    %cst_8 = arith.constant 6.400000e+01 : f32
    %11 = vector.broadcast %cst_8 : f32 to vector<16x1xf32>
    %12 = arith.divf %10, %11 : vector<16x1xf32>
    %cst_9 = arith.constant 9.99999974E-6 : f32
    %13 = vector.broadcast %cst_9 : f32 to vector<16x1xf32>
    %14 = arith.addf %12, %13 : vector<16x1xf32>
    %15 = math.rsqrt %14 : vector<16x1xf32>
    %16 = vector.broadcast %15 : vector<16x1xf32> to vector<16x64xf32>
    %17 = arith.mulf %0, %16 : vector<16x64xf32>
    %18 = vector.broadcast %7 : vector<1x64xf32> to vector<16x64xf32>
    %19 = arith.mulf %17, %18 : vector<16x64xf32>
    %20 = vector.shape_cast %19 : vector<16x64xf32> to vector<1x16x64xf32>
    %21 = vector.shape_cast %20 : vector<1x16x64xf32> to vector<1x16x64xf32>
    %22 = vector.broadcast %21 : vector<1x16x64xf32> to vector<4x16x64xf32>
    %c0_10 = arith.constant 0 : index
    %c0_11 = arith.constant 0 : index
    %c0_12 = arith.constant 0 : index
    %c0_13 = arith.constant 0 : index
    %23 = vector.load %arg4[%c0_10, %c0_11, %c0_12, %c0_13] : memref<2x4x64x16xf32, #tpu.memory_space<vmem>>, vector<1x4x64x16xf32>
    %24 = vector.shape_cast %23 : vector<1x4x64x16xf32> to vector<4x64x16xf32>
    "tpu.trace_start"() <{level = 10 : i32, message = "hsk,hkd->hsd"}> : () -> ()
    %cst_14 = arith.constant dense<0.000000e+00> : vector<4x16x16xf32>
    %25 = tpu.matmul %22, %24, %cst_14 {dimension_numbers = #tpu.dot_dimension_numbers<[2], [1], [1], [2], [0, 0, 0, 1, 1, 2], [0], [0]>} : vector<4x16x64xf32>, vector<4x64x16xf32>, vector<4x16x16xf32> -> vector<4x16x16xf32>
    "tpu.trace_stop"() : () -> ()
    %c0_15 = arith.constant 0 : index
    %c0_16 = arith.constant 0 : index
    %c0_17 = arith.constant 0 : index
    %c0_18 = arith.constant 0 : index
    %26 = vector.load %arg5[%c0_15, %c0_16, %c0_17, %c0_18] : memref<2x4x64x16xf32, #tpu.memory_space<vmem>>, vector<1x4x64x16xf32>
    %27 = vector.shape_cast %26 : vector<1x4x64x16xf32> to vector<4x64x16xf32>
    "tpu.trace_start"() <{level = 10 : i32, message = "hsk,hkd->hsd"}> : () -> ()
    %cst_19 = arith.constant dense<0.000000e+00> : vector<4x16x16xf32>
    %28 = tpu.matmul %22, %27, %cst_19 {dimension_numbers = #tpu.dot_dimension_numbers<[2], [1], [1], [2], [0, 0, 0, 1, 1, 2], [0], [0]>} : vector<4x16x64xf32>, vector<4x64x16xf32>, vector<4x16x16xf32> -> vector<4x16x16xf32>
    "tpu.trace_stop"() : () -> ()
    %c0_20 = arith.constant 0 : index
    %c0_21 = arith.constant 0 : index
    %c0_22 = arith.constant 0 : index
    %c0_23 = arith.constant 0 : index
    %29 = vector.load %arg6[%c0_20, %c0_21, %c0_22, %c0_23] : memref<2x4x64x16xf32, #tpu.memory_space<vmem>>, vector<1x4x64x16xf32>
    %30 = vector.shape_cast %29 : vector<1x4x64x16xf32> to vector<4x64x16xf32>
    "tpu.trace_start"() <{level = 10 : i32, message = "hsk,hkd->hsd"}> : () -> ()
    %cst_24 = arith.constant dense<0.000000e+00> : vector<4x16x16xf32>
    %31 = tpu.matmul %22, %30, %cst_24 {dimension_numbers = #tpu.dot_dimension_numbers<[2], [1], [1], [2], [0, 0, 0, 1, 1, 2], [0], [0]>} : vector<4x16x64xf32>, vector<4x64x16xf32>, vector<4x16x16xf32> -> vector<4x16x16xf32>
    "tpu.trace_stop"() : () -> ()
    %32 = vector.extract_strided_slice %25 {offsets = [0, 0, 8], sizes = [4, 16, 8], strides = [1, 1, 1]} : vector<4x16x16xf32> to vector<4x16x8xf32>
    %cst_25 = arith.constant 0.000000e+00 : f32
    %33 = vector.broadcast %cst_25 : f32 to vector<4x16x8xf32>
    %34 = arith.subf %33, %32 : vector<4x16x8xf32>
    %35 = vector.extract_strided_slice %25 {offsets = [0, 0, 0], sizes = [4, 16, 8], strides = [1, 1, 1]} : vector<4x16x16xf32> to vector<4x16x8xf32>
    %36 = tpu.concatenate %34, %35 in 2 : vector<4x16x8xf32>, vector<4x16x8xf32> -> vector<4x16x16xf32>
    %37 = vector.shape_cast %1 : vector<16x16xf32> to vector<1x16x16xf32>
    %38 = vector.broadcast %37 : vector<1x16x16xf32> to vector<4x16x16xf32>
    %39 = arith.mulf %25, %38 : vector<4x16x16xf32>
    %40 = vector.shape_cast %2 : vector<16x16xf32> to vector<1x16x16xf32>
    %41 = vector.broadcast %40 : vector<1x16x16xf32> to vector<4x16x16xf32>
    %42 = arith.mulf %36, %41 : vector<4x16x16xf32>
    %43 = arith.addf %39, %42 : vector<4x16x16xf32>
    %44 = vector.extract_strided_slice %28 {offsets = [0, 0, 8], sizes = [4, 16, 8], strides = [1, 1, 1]} : vector<4x16x16xf32> to vector<4x16x8xf32>
    %cst_26 = arith.constant 0.000000e+00 : f32
    %45 = vector.broadcast %cst_26 : f32 to vector<4x16x8xf32>
    %46 = arith.subf %45, %44 : vector<4x16x8xf32>
    %47 = vector.extract_strided_slice %28 {offsets = [0, 0, 0], sizes = [4, 16, 8], strides = [1, 1, 1]} : vector<4x16x16xf32> to vector<4x16x8xf32>
    %48 = tpu.concatenate %46, %47 in 2 : vector<4x16x8xf32>, vector<4x16x8xf32> -> vector<4x16x16xf32>
    %49 = vector.shape_cast %1 : vector<16x16xf32> to vector<1x16x16xf32>
    %50 = vector.broadcast %49 : vector<1x16x16xf32> to vector<4x16x16xf32>
    %51 = arith.mulf %28, %50 : vector<4x16x16xf32>
    %52 = vector.shape_cast %2 : vector<16x16xf32> to vector<1x16x16xf32>
    %53 = vector.broadcast %52 : vector<1x16x16xf32> to vector<4x16x16xf32>
    %54 = arith.mulf %48, %53 : vector<4x16x16xf32>
    %55 = arith.addf %51, %54 : vector<4x16x16xf32>
    %56 = vector.extract_strided_slice %43 {offsets = [0, 0, 0], sizes = [4, 8, 16], strides = [1, 1, 1]} : vector<4x16x16xf32> to vector<4x8x16xf32>
    %57 = vector.extract_strided_slice %55 {offsets = [0, 0, 0], sizes = [4, 8, 16], strides = [1, 1, 1]} : vector<4x16x16xf32> to vector<4x8x16xf32>
    %58 = vector.extract_strided_slice %31 {offsets = [0, 0, 0], sizes = [4, 8, 16], strides = [1, 1, 1]} : vector<4x16x16xf32> to vector<4x8x16xf32>
    "tpu.trace_start"() <{level = 10 : i32, message = "hqd,hkd->hqk"}> : () -> ()
    %cst_27 = arith.constant dense<0.000000e+00> : vector<4x8x8xf32>
    %59 = tpu.matmul %56, %57, %cst_27 {dimension_numbers = #tpu.dot_dimension_numbers<[2], [2], [1], [1], [0, 0, 0, 1, 1, 1], [0], [0]>} : vector<4x8x16xf32>, vector<4x8x16xf32>, vector<4x8x8xf32> -> vector<4x8x8xf32>
    %cst_28 = arith.constant -1.000000e+30 : f32
    "tpu.trace_stop"() : () -> ()
    %60 = vector.shape_cast %5 : vector<8x8xi1> to vector<1x8x8xi1>
    %61 = vector.broadcast %60 : vector<1x8x8xi1> to vector<4x8x8xi1>
    %62 = vector.broadcast %cst_28 : f32 to vector<4x8x8xf32>
    %63 = arith.select %61, %59, %62 : vector<4x8x8xi1>, vector<4x8x8xf32>
    %cst_29 = arith.constant dense<0xFF800000> : vector<4x8xf32>
    %64 = vector.multi_reduction <maximumf>, %63, %cst_29 [2] : vector<4x8x8xf32> to vector<4x8xf32>
    %65 = vector.shape_cast %64 : vector<4x8xf32> to vector<4x8x1xf32>
    %66 = vector.broadcast %65 : vector<4x8x1xf32> to vector<4x8x8xf32>
    %67 = arith.subf %63, %66 : vector<4x8x8xf32>
    %68 = math.exp %67 : vector<4x8x8xf32>
    %cst_30 = arith.constant dense<0.000000e+00> : vector<4x8xf32>
    %69 = vector.multi_reduction <add>, %68, %cst_30 [2] : vector<4x8x8xf32> to vector<4x8xf32>
    %70 = vector.shape_cast %69 : vector<4x8xf32> to vector<4x8x1xf32>
    %71 = tpu.reciprocal %70 {approx = true} : vector<4x8x1xf32> -> vector<4x8x1xf32>
    %72 = vector.broadcast %71 : vector<4x8x1xf32> to vector<4x8x8xf32>
    %73 = arith.mulf %68, %72 : vector<4x8x8xf32>
    "tpu.trace_start"() <{level = 10 : i32, message = "hqk,hkd->hqd"}> : () -> ()
    %cst_31 = arith.constant dense<0.000000e+00> : vector<4x8x16xf32>
    %74 = tpu.matmul %73, %58, %cst_31 {dimension_numbers = #tpu.dot_dimension_numbers<[2], [1], [1], [2], [0, 0, 0, 1, 1, 2], [0], [0]>} : vector<4x8x8xf32>, vector<4x8x16xf32>, vector<4x8x16xf32> -> vector<4x8x16xf32>
    "tpu.trace_stop"() : () -> ()
    %c0_32 = arith.constant 0 : index
    %c0_33 = arith.constant 0 : index
    %c0_34 = arith.constant 0 : index
    %c0_35 = arith.constant 0 : index
    %75 = vector.load %arg7[%c0_32, %c0_33, %c0_34, %c0_35] : memref<2x4x16x64xf32, #tpu.memory_space<vmem>>, vector<1x4x16x64xf32>
    %76 = vector.shape_cast %75 : vector<1x4x16x64xf32> to vector<4x16x64xf32>
    "tpu.trace_start"() <{level = 10 : i32, message = "hqd,hdo->hqo"}> : () -> ()
    %cst_36 = arith.constant dense<0.000000e+00> : vector<4x8x64xf32>
    %77 = tpu.matmul %74, %76, %cst_36 {dimension_numbers = #tpu.dot_dimension_numbers<[2], [1], [1], [2], [0, 0, 0, 1, 1, 2], [0], [0]>} : vector<4x8x16xf32>, vector<4x16x64xf32>, vector<4x8x64xf32> -> vector<4x8x64xf32>
    "tpu.trace_stop"() : () -> ()
    %cst_37 = arith.constant dense<0.000000e+00> : vector<8x64xf32>
    %78 = vector.multi_reduction <add>, %77, %cst_37 [0] : vector<4x8x64xf32> to vector<8x64xf32>
    %79 = vector.extract_strided_slice %43 {offsets = [0, 8, 0], sizes = [4, 8, 16], strides = [1, 1, 1]} : vector<4x16x16xf32> to vector<4x8x16xf32>
    %80 = vector.extract_strided_slice %55 {offsets = [0, 8, 0], sizes = [4, 8, 16], strides = [1, 1, 1]} : vector<4x16x16xf32> to vector<4x8x16xf32>
    %81 = vector.extract_strided_slice %31 {offsets = [0, 8, 0], sizes = [4, 8, 16], strides = [1, 1, 1]} : vector<4x16x16xf32> to vector<4x8x16xf32>
    "tpu.trace_start"() <{level = 10 : i32, message = "hqd,hkd->hqk"}> : () -> ()
    %cst_38 = arith.constant dense<0.000000e+00> : vector<4x8x8xf32>
    %82 = tpu.matmul %79, %80, %cst_38 {dimension_numbers = #tpu.dot_dimension_numbers<[2], [2], [1], [1], [0, 0, 0, 1, 1, 1], [0], [0]>} : vector<4x8x16xf32>, vector<4x8x16xf32>, vector<4x8x8xf32> -> vector<4x8x8xf32>
    %cst_39 = arith.constant -1.000000e+30 : f32
    "tpu.trace_stop"() : () -> ()
    %83 = vector.shape_cast %5 : vector<8x8xi1> to vector<1x8x8xi1>
    %84 = vector.broadcast %83 : vector<1x8x8xi1> to vector<4x8x8xi1>
    %85 = vector.broadcast %cst_39 : f32 to vector<4x8x8xf32>
    %86 = arith.select %84, %82, %85 : vector<4x8x8xi1>, vector<4x8x8xf32>
    %cst_40 = arith.constant dense<0xFF800000> : vector<4x8xf32>
    %87 = vector.multi_reduction <maximumf>, %86, %cst_40 [2] : vector<4x8x8xf32> to vector<4x8xf32>
    %88 = vector.shape_cast %87 : vector<4x8xf32> to vector<4x8x1xf32>
    %89 = vector.broadcast %88 : vector<4x8x1xf32> to vector<4x8x8xf32>
    %90 = arith.subf %86, %89 : vector<4x8x8xf32>
    %91 = math.exp %90 : vector<4x8x8xf32>
    %cst_41 = arith.constant dense<0.000000e+00> : vector<4x8xf32>
    %92 = vector.multi_reduction <add>, %91, %cst_41 [2] : vector<4x8x8xf32> to vector<4x8xf32>
    %93 = vector.shape_cast %92 : vector<4x8xf32> to vector<4x8x1xf32>
    %94 = tpu.reciprocal %93 {approx = true} : vector<4x8x1xf32> -> vector<4x8x1xf32>
    %95 = vector.broadcast %94 : vector<4x8x1xf32> to vector<4x8x8xf32>
    %96 = arith.mulf %91, %95 : vector<4x8x8xf32>
    "tpu.trace_start"() <{level = 10 : i32, message = "hqk,hkd->hqd"}> : () -> ()
    %cst_42 = arith.constant dense<0.000000e+00> : vector<4x8x16xf32>
    %97 = tpu.matmul %96, %81, %cst_42 {dimension_numbers = #tpu.dot_dimension_numbers<[2], [1], [1], [2], [0, 0, 0, 1, 1, 2], [0], [0]>} : vector<4x8x8xf32>, vector<4x8x16xf32>, vector<4x8x16xf32> -> vector<4x8x16xf32>
    "tpu.trace_stop"() : () -> ()
    %c0_43 = arith.constant 0 : index
    %c0_44 = arith.constant 0 : index
    %c0_45 = arith.constant 0 : index
    %c0_46 = arith.constant 0 : index
    %98 = vector.load %arg7[%c0_43, %c0_44, %c0_45, %c0_46] : memref<2x4x16x64xf32, #tpu.memory_space<vmem>>, vector<1x4x16x64xf32>
    %99 = vector.shape_cast %98 : vector<1x4x16x64xf32> to vector<4x16x64xf32>
    "tpu.trace_start"() <{level = 10 : i32, message = "hqd,hdo->hqo"}> : () -> ()
    %cst_47 = arith.constant dense<0.000000e+00> : vector<4x8x64xf32>
    %100 = tpu.matmul %97, %99, %cst_47 {dimension_numbers = #tpu.dot_dimension_numbers<[2], [1], [1], [2], [0, 0, 0, 1, 1, 2], [0], [0]>} : vector<4x8x16xf32>, vector<4x16x64xf32>, vector<4x8x64xf32> -> vector<4x8x64xf32>
    "tpu.trace_stop"() : () -> ()
    %cst_48 = arith.constant dense<0.000000e+00> : vector<8x64xf32>
    %101 = vector.multi_reduction <add>, %100, %cst_48 [0] : vector<4x8x64xf32> to vector<8x64xf32>
    %102 = tpu.concatenate %78, %101 in 0 : vector<8x64xf32>, vector<8x64xf32> -> vector<16x64xf32>
    %103 = arith.addf %0, %102 : vector<16x64xf32>
    %c0_49 = arith.constant 0 : index
    %c0_50 = arith.constant 0 : index
    %c0_51 = arith.constant 0 : index
    %104 = vector.load %arg8[%c0_49, %c0_50, %c0_51] : memref<2x1x64xf32, #tpu.memory_space<vmem>>, vector<1x1x64xf32>
    %105 = vector.shape_cast %104 : vector<1x1x64xf32> to vector<1x64xf32>
    %106 = arith.mulf %103, %103 : vector<16x64xf32>
    %cst_52 = arith.constant dense<0.000000e+00> : vector<16xf32>
    %107 = vector.multi_reduction <add>, %106, %cst_52 [1] : vector<16x64xf32> to vector<16xf32>
    %108 = vector.shape_cast %107 : vector<16xf32> to vector<16x1xf32>
    %cst_53 = arith.constant 6.400000e+01 : f32
    %109 = vector.broadcast %cst_53 : f32 to vector<16x1xf32>
    %110 = arith.divf %108, %109 : vector<16x1xf32>
    %cst_54 = arith.constant 9.99999974E-6 : f32
    %111 = vector.broadcast %cst_54 : f32 to vector<16x1xf32>
    %112 = arith.addf %110, %111 : vector<16x1xf32>
    %113 = math.rsqrt %112 : vector<16x1xf32>
    %114 = vector.broadcast %113 : vector<16x1xf32> to vector<16x64xf32>
    %115 = arith.mulf %103, %114 : vector<16x64xf32>
    %116 = vector.broadcast %105 : vector<1x64xf32> to vector<16x64xf32>
    %117 = arith.mulf %115, %116 : vector<16x64xf32>
    %c0_55 = arith.constant 0 : index
    %c0_56 = arith.constant 0 : index
    %c0_57 = arith.constant 0 : index
    %118 = vector.load %arg9[%c0_55, %c0_56, %c0_57] : memref<2x64x256xf32, #tpu.memory_space<vmem>>, vector<1x64x256xf32>
    %119 = vector.shape_cast %118 : vector<1x64x256xf32> to vector<64x256xf32>
    %cst_58 = arith.constant dense<0.000000e+00> : vector<16x256xf32>
    %120 = tpu.matmul %117, %119, %cst_58 {dimension_numbers = #tpu.dot_dimension_numbers<[1], [0], [0], [1], [0, 0, 1, 1], [], []>} : vector<16x64xf32>, vector<64x256xf32>, vector<16x256xf32> -> vector<16x256xf32>
    %121 = vector.extract_strided_slice %120 {offsets = [0, 0], sizes = [16, 128], strides = [1, 1]} : vector<16x256xf32> to vector<16x128xf32>
    %122 = vector.extract_strided_slice %120 {offsets = [0, 128], sizes = [16, 128], strides = [1, 1]} : vector<16x256xf32> to vector<16x128xf32>
    %123 = arith.mulf %122, %121 : vector<16x128xf32>
    %124 = arith.negf %121 : vector<16x128xf32>
    %125 = math.exp %124 : vector<16x128xf32>
    %cst_59 = arith.constant 1.000000e+00 : f32
    %126 = vector.broadcast %cst_59 : f32 to vector<16x128xf32>
    %127 = arith.addf %126, %125 : vector<16x128xf32>
    %128 = arith.divf %126, %127 : vector<16x128xf32>
    %129 = arith.mulf %123, %128 : vector<16x128xf32>
    %c0_60 = arith.constant 0 : index
    %c0_61 = arith.constant 0 : index
    %c0_62 = arith.constant 0 : index
    %130 = vector.load %arg10[%c0_60, %c0_61, %c0_62] : memref<2x128x64xf32, #tpu.memory_space<vmem>>, vector<1x128x64xf32>
    %131 = vector.shape_cast %130 : vector<1x128x64xf32> to vector<128x64xf32>
    %cst_63 = arith.constant dense<0.000000e+00> : vector<16x64xf32>
    %132 = tpu.matmul %129, %131, %cst_63 {dimension_numbers = #tpu.dot_dimension_numbers<[1], [0], [0], [1], [0, 0, 1, 1], [], []>} : vector<16x128xf32>, vector<128x64xf32>, vector<16x64xf32> -> vector<16x64xf32>
    %133 = arith.addf %103, %132 : vector<16x64xf32>
    %c1 = arith.constant 1 : index
    %c0_64 = arith.constant 0 : index
    %c0_65 = arith.constant 0 : index
    %134 = vector.load %arg3[%c1, %c0_64, %c0_65] : memref<2x1x64xf32, #tpu.memory_space<vmem>>, vector<1x1x64xf32>
    %135 = vector.shape_cast %134 : vector<1x1x64xf32> to vector<1x64xf32>
    %136 = arith.mulf %133, %133 : vector<16x64xf32>
    %cst_66 = arith.constant dense<0.000000e+00> : vector<16xf32>
    %137 = vector.multi_reduction <add>, %136, %cst_66 [1] : vector<16x64xf32> to vector<16xf32>
    %138 = vector.shape_cast %137 : vector<16xf32> to vector<16x1xf32>
    %cst_67 = arith.constant 6.400000e+01 : f32
    %139 = vector.broadcast %cst_67 : f32 to vector<16x1xf32>
    %140 = arith.divf %138, %139 : vector<16x1xf32>
    %cst_68 = arith.constant 9.99999974E-6 : f32
    %141 = vector.broadcast %cst_68 : f32 to vector<16x1xf32>
    %142 = arith.addf %140, %141 : vector<16x1xf32>
    %143 = math.rsqrt %142 : vector<16x1xf32>
    %144 = vector.broadcast %143 : vector<16x1xf32> to vector<16x64xf32>
    %145 = arith.mulf %133, %144 : vector<16x64xf32>
    %146 = vector.broadcast %135 : vector<1x64xf32> to vector<16x64xf32>
    %147 = arith.mulf %145, %146 : vector<16x64xf32>
    %148 = vector.shape_cast %147 : vector<16x64xf32> to vector<1x16x64xf32>
    %149 = vector.shape_cast %148 : vector<1x16x64xf32> to vector<1x16x64xf32>
    %150 = vector.broadcast %149 : vector<1x16x64xf32> to vector<4x16x64xf32>
    %c1_69 = arith.constant 1 : index
    %c0_70 = arith.constant 0 : index
    %c0_71 = arith.constant 0 : index
    %c0_72 = arith.constant 0 : index
    %151 = vector.load %arg4[%c1_69, %c0_70, %c0_71, %c0_72] : memref<2x4x64x16xf32, #tpu.memory_space<vmem>>, vector<1x4x64x16xf32>
    %152 = vector.shape_cast %151 : vector<1x4x64x16xf32> to vector<4x64x16xf32>
    "tpu.trace_start"() <{level = 10 : i32, message = "hsk,hkd->hsd"}> : () -> ()
    %cst_73 = arith.constant dense<0.000000e+00> : vector<4x16x16xf32>
    %153 = tpu.matmul %150, %152, %cst_73 {dimension_numbers = #tpu.dot_dimension_numbers<[2], [1], [1], [2], [0, 0, 0, 1, 1, 2], [0], [0]>} : vector<4x16x64xf32>, vector<4x64x16xf32>, vector<4x16x16xf32> -> vector<4x16x16xf32>
    "tpu.trace_stop"() : () -> ()
    %c1_74 = arith.constant 1 : index
    %c0_75 = arith.constant 0 : index
    %c0_76 = arith.constant 0 : index
    %c0_77 = arith.constant 0 : index
    %154 = vector.load %arg5[%c1_74, %c0_75, %c0_76, %c0_77] : memref<2x4x64x16xf32, #tpu.memory_space<vmem>>, vector<1x4x64x16xf32>
    %155 = vector.shape_cast %154 : vector<1x4x64x16xf32> to vector<4x64x16xf32>
    "tpu.trace_start"() <{level = 10 : i32, message = "hsk,hkd->hsd"}> : () -> ()
    %cst_78 = arith.constant dense<0.000000e+00> : vector<4x16x16xf32>
    %156 = tpu.matmul %150, %155, %cst_78 {dimension_numbers = #tpu.dot_dimension_numbers<[2], [1], [1], [2], [0, 0, 0, 1, 1, 2], [0], [0]>} : vector<4x16x64xf32>, vector<4x64x16xf32>, vector<4x16x16xf32> -> vector<4x16x16xf32>
    "tpu.trace_stop"() : () -> ()
    %c1_79 = arith.constant 1 : index
    %c0_80 = arith.constant 0 : index
    %c0_81 = arith.constant 0 : index
    %c0_82 = arith.constant 0 : index
    %157 = vector.load %arg6[%c1_79, %c0_80, %c0_81, %c0_82] : memref<2x4x64x16xf32, #tpu.memory_space<vmem>>, vector<1x4x64x16xf32>
    %158 = vector.shape_cast %157 : vector<1x4x64x16xf32> to vector<4x64x16xf32>
    "tpu.trace_start"() <{level = 10 : i32, message = "hsk,hkd->hsd"}> : () -> ()
    %cst_83 = arith.constant dense<0.000000e+00> : vector<4x16x16xf32>
    %159 = tpu.matmul %150, %158, %cst_83 {dimension_numbers = #tpu.dot_dimension_numbers<[2], [1], [1], [2], [0, 0, 0, 1, 1, 2], [0], [0]>} : vector<4x16x64xf32>, vector<4x64x16xf32>, vector<4x16x16xf32> -> vector<4x16x16xf32>
    "tpu.trace_stop"() : () -> ()
    %160 = vector.extract_strided_slice %153 {offsets = [0, 0, 8], sizes = [4, 16, 8], strides = [1, 1, 1]} : vector<4x16x16xf32> to vector<4x16x8xf32>
    %cst_84 = arith.constant 0.000000e+00 : f32
    %161 = vector.broadcast %cst_84 : f32 to vector<4x16x8xf32>
    %162 = arith.subf %161, %160 : vector<4x16x8xf32>
    %163 = vector.extract_strided_slice %153 {offsets = [0, 0, 0], sizes = [4, 16, 8], strides = [1, 1, 1]} : vector<4x16x16xf32> to vector<4x16x8xf32>
    %164 = tpu.concatenate %162, %163 in 2 : vector<4x16x8xf32>, vector<4x16x8xf32> -> vector<4x16x16xf32>
    %165 = vector.shape_cast %1 : vector<16x16xf32> to vector<1x16x16xf32>
    %166 = vector.broadcast %165 : vector<1x16x16xf32> to vector<4x16x16xf32>
    %167 = arith.mulf %153, %166 : vector<4x16x16xf32>
    %168 = vector.shape_cast %2 : vector<16x16xf32> to vector<1x16x16xf32>
    %169 = vector.broadcast %168 : vector<1x16x16xf32> to vector<4x16x16xf32>
    %170 = arith.mulf %164, %169 : vector<4x16x16xf32>
    %171 = arith.addf %167, %170 : vector<4x16x16xf32>
    %172 = vector.extract_strided_slice %156 {offsets = [0, 0, 8], sizes = [4, 16, 8], strides = [1, 1, 1]} : vector<4x16x16xf32> to vector<4x16x8xf32>
    %cst_85 = arith.constant 0.000000e+00 : f32
    %173 = vector.broadcast %cst_85 : f32 to vector<4x16x8xf32>
    %174 = arith.subf %173, %172 : vector<4x16x8xf32>
    %175 = vector.extract_strided_slice %156 {offsets = [0, 0, 0], sizes = [4, 16, 8], strides = [1, 1, 1]} : vector<4x16x16xf32> to vector<4x16x8xf32>
    %176 = tpu.concatenate %174, %175 in 2 : vector<4x16x8xf32>, vector<4x16x8xf32> -> vector<4x16x16xf32>
    %177 = vector.shape_cast %1 : vector<16x16xf32> to vector<1x16x16xf32>
    %178 = vector.broadcast %177 : vector<1x16x16xf32> to vector<4x16x16xf32>
    %179 = arith.mulf %156, %178 : vector<4x16x16xf32>
    %180 = vector.shape_cast %2 : vector<16x16xf32> to vector<1x16x16xf32>
    %181 = vector.broadcast %180 : vector<1x16x16xf32> to vector<4x16x16xf32>
    %182 = arith.mulf %176, %181 : vector<4x16x16xf32>
    %183 = arith.addf %179, %182 : vector<4x16x16xf32>
    %184 = vector.extract_strided_slice %171 {offsets = [0, 0, 0], sizes = [4, 8, 16], strides = [1, 1, 1]} : vector<4x16x16xf32> to vector<4x8x16xf32>
    %185 = vector.extract_strided_slice %183 {offsets = [0, 0, 0], sizes = [4, 8, 16], strides = [1, 1, 1]} : vector<4x16x16xf32> to vector<4x8x16xf32>
    %186 = vector.extract_strided_slice %159 {offsets = [0, 0, 0], sizes = [4, 8, 16], strides = [1, 1, 1]} : vector<4x16x16xf32> to vector<4x8x16xf32>
    "tpu.trace_start"() <{level = 10 : i32, message = "hqd,hkd->hqk"}> : () -> ()
    %cst_86 = arith.constant dense<0.000000e+00> : vector<4x8x8xf32>
    %187 = tpu.matmul %184, %185, %cst_86 {dimension_numbers = #tpu.dot_dimension_numbers<[2], [2], [1], [1], [0, 0, 0, 1, 1, 1], [0], [0]>} : vector<4x8x16xf32>, vector<4x8x16xf32>, vector<4x8x8xf32> -> vector<4x8x8xf32>
    %cst_87 = arith.constant -1.000000e+30 : f32
    "tpu.trace_stop"() : () -> ()
    %188 = vector.shape_cast %5 : vector<8x8xi1> to vector<1x8x8xi1>
    %189 = vector.broadcast %188 : vector<1x8x8xi1> to vector<4x8x8xi1>
    %190 = vector.broadcast %cst_87 : f32 to vector<4x8x8xf32>
    %191 = arith.select %189, %187, %190 : vector<4x8x8xi1>, vector<4x8x8xf32>
    %cst_88 = arith.constant dense<0xFF800000> : vector<4x8xf32>
    %192 = vector.multi_reduction <maximumf>, %191, %cst_88 [2] : vector<4x8x8xf32> to vector<4x8xf32>
    %193 = vector.shape_cast %192 : vector<4x8xf32> to vector<4x8x1xf32>
    %194 = vector.broadcast %193 : vector<4x8x1xf32> to vector<4x8x8xf32>
    %195 = arith.subf %191, %194 : vector<4x8x8xf32>
    %196 = math.exp %195 : vector<4x8x8xf32>
    %cst_89 = arith.constant dense<0.000000e+00> : vector<4x8xf32>
    %197 = vector.multi_reduction <add>, %196, %cst_89 [2] : vector<4x8x8xf32> to vector<4x8xf32>
    %198 = vector.shape_cast %197 : vector<4x8xf32> to vector<4x8x1xf32>
    %199 = tpu.reciprocal %198 {approx = true} : vector<4x8x1xf32> -> vector<4x8x1xf32>
    %200 = vector.broadcast %199 : vector<4x8x1xf32> to vector<4x8x8xf32>
    %201 = arith.mulf %196, %200 : vector<4x8x8xf32>
    "tpu.trace_start"() <{level = 10 : i32, message = "hqk,hkd->hqd"}> : () -> ()
    %cst_90 = arith.constant dense<0.000000e+00> : vector<4x8x16xf32>
    %202 = tpu.matmul %201, %186, %cst_90 {dimension_numbers = #tpu.dot_dimension_numbers<[2], [1], [1], [2], [0, 0, 0, 1, 1, 2], [0], [0]>} : vector<4x8x8xf32>, vector<4x8x16xf32>, vector<4x8x16xf32> -> vector<4x8x16xf32>
    "tpu.trace_stop"() : () -> ()
    %c1_91 = arith.constant 1 : index
    %c0_92 = arith.constant 0 : index
    %c0_93 = arith.constant 0 : index
    %c0_94 = arith.constant 0 : index
    %203 = vector.load %arg7[%c1_91, %c0_92, %c0_93, %c0_94] : memref<2x4x16x64xf32, #tpu.memory_space<vmem>>, vector<1x4x16x64xf32>
    %204 = vector.shape_cast %203 : vector<1x4x16x64xf32> to vector<4x16x64xf32>
    "tpu.trace_start"() <{level = 10 : i32, message = "hqd,hdo->hqo"}> : () -> ()
    %cst_95 = arith.constant dense<0.000000e+00> : vector<4x8x64xf32>
    %205 = tpu.matmul %202, %204, %cst_95 {dimension_numbers = #tpu.dot_dimension_numbers<[2], [1], [1], [2], [0, 0, 0, 1, 1, 2], [0], [0]>} : vector<4x8x16xf32>, vector<4x16x64xf32>, vector<4x8x64xf32> -> vector<4x8x64xf32>
    "tpu.trace_stop"() : () -> ()
    %cst_96 = arith.constant dense<0.000000e+00> : vector<8x64xf32>
    %206 = vector.multi_reduction <add>, %205, %cst_96 [0] : vector<4x8x64xf32> to vector<8x64xf32>
    %207 = vector.extract_strided_slice %171 {offsets = [0, 8, 0], sizes = [4, 8, 16], strides = [1, 1, 1]} : vector<4x16x16xf32> to vector<4x8x16xf32>
    %208 = vector.extract_strided_slice %183 {offsets = [0, 8, 0], sizes = [4, 8, 16], strides = [1, 1, 1]} : vector<4x16x16xf32> to vector<4x8x16xf32>
    %209 = vector.extract_strided_slice %159 {offsets = [0, 8, 0], sizes = [4, 8, 16], strides = [1, 1, 1]} : vector<4x16x16xf32> to vector<4x8x16xf32>
    "tpu.trace_start"() <{level = 10 : i32, message = "hqd,hkd->hqk"}> : () -> ()
    %cst_97 = arith.constant dense<0.000000e+00> : vector<4x8x8xf32>
    %210 = tpu.matmul %207, %208, %cst_97 {dimension_numbers = #tpu.dot_dimension_numbers<[2], [2], [1], [1], [0, 0, 0, 1, 1, 1], [0], [0]>} : vector<4x8x16xf32>, vector<4x8x16xf32>, vector<4x8x8xf32> -> vector<4x8x8xf32>
    %cst_98 = arith.constant -1.000000e+30 : f32
    "tpu.trace_stop"() : () -> ()
    %211 = vector.shape_cast %5 : vector<8x8xi1> to vector<1x8x8xi1>
    %212 = vector.broadcast %211 : vector<1x8x8xi1> to vector<4x8x8xi1>
    %213 = vector.broadcast %cst_98 : f32 to vector<4x8x8xf32>
    %214 = arith.select %212, %210, %213 : vector<4x8x8xi1>, vector<4x8x8xf32>
    %cst_99 = arith.constant dense<0xFF800000> : vector<4x8xf32>
    %215 = vector.multi_reduction <maximumf>, %214, %cst_99 [2] : vector<4x8x8xf32> to vector<4x8xf32>
    %216 = vector.shape_cast %215 : vector<4x8xf32> to vector<4x8x1xf32>
    %217 = vector.broadcast %216 : vector<4x8x1xf32> to vector<4x8x8xf32>
    %218 = arith.subf %214, %217 : vector<4x8x8xf32>
    %219 = math.exp %218 : vector<4x8x8xf32>
    %cst_100 = arith.constant dense<0.000000e+00> : vector<4x8xf32>
    %220 = vector.multi_reduction <add>, %219, %cst_100 [2] : vector<4x8x8xf32> to vector<4x8xf32>
    %221 = vector.shape_cast %220 : vector<4x8xf32> to vector<4x8x1xf32>
    %222 = tpu.reciprocal %221 {approx = true} : vector<4x8x1xf32> -> vector<4x8x1xf32>
    %223 = vector.broadcast %222 : vector<4x8x1xf32> to vector<4x8x8xf32>
    %224 = arith.mulf %219, %223 : vector<4x8x8xf32>
    "tpu.trace_start"() <{level = 10 : i32, message = "hqk,hkd->hqd"}> : () -> ()
    %cst_101 = arith.constant dense<0.000000e+00> : vector<4x8x16xf32>
    %225 = tpu.matmul %224, %209, %cst_101 {dimension_numbers = #tpu.dot_dimension_numbers<[2], [1], [1], [2], [0, 0, 0, 1, 1, 2], [0], [0]>} : vector<4x8x8xf32>, vector<4x8x16xf32>, vector<4x8x16xf32> -> vector<4x8x16xf32>
    "tpu.trace_stop"() : () -> ()
    %c1_102 = arith.constant 1 : index
    %c0_103 = arith.constant 0 : index
    %c0_104 = arith.constant 0 : index
    %c0_105 = arith.constant 0 : index
    %226 = vector.load %arg7[%c1_102, %c0_103, %c0_104, %c0_105] : memref<2x4x16x64xf32, #tpu.memory_space<vmem>>, vector<1x4x16x64xf32>
    %227 = vector.shape_cast %226 : vector<1x4x16x64xf32> to vector<4x16x64xf32>
    "tpu.trace_start"() <{level = 10 : i32, message = "hqd,hdo->hqo"}> : () -> ()
    %cst_106 = arith.constant dense<0.000000e+00> : vector<4x8x64xf32>
    %228 = tpu.matmul %225, %227, %cst_106 {dimension_numbers = #tpu.dot_dimension_numbers<[2], [1], [1], [2], [0, 0, 0, 1, 1, 2], [0], [0]>} : vector<4x8x16xf32>, vector<4x16x64xf32>, vector<4x8x64xf32> -> vector<4x8x64xf32>
    "tpu.trace_stop"() : () -> ()
    %cst_107 = arith.constant dense<0.000000e+00> : vector<8x64xf32>
    %229 = vector.multi_reduction <add>, %228, %cst_107 [0] : vector<4x8x64xf32> to vector<8x64xf32>
    %230 = tpu.concatenate %206, %229 in 0 : vector<8x64xf32>, vector<8x64xf32> -> vector<16x64xf32>
    %231 = arith.addf %133, %230 : vector<16x64xf32>
    %c1_108 = arith.constant 1 : index
    %c0_109 = arith.constant 0 : index
    %c0_110 = arith.constant 0 : index
    %232 = vector.load %arg8[%c1_108, %c0_109, %c0_110] : memref<2x1x64xf32, #tpu.memory_space<vmem>>, vector<1x1x64xf32>
    %233 = vector.shape_cast %232 : vector<1x1x64xf32> to vector<1x64xf32>
    %234 = arith.mulf %231, %231 : vector<16x64xf32>
    %cst_111 = arith.constant dense<0.000000e+00> : vector<16xf32>
    %235 = vector.multi_reduction <add>, %234, %cst_111 [1] : vector<16x64xf32> to vector<16xf32>
    %236 = vector.shape_cast %235 : vector<16xf32> to vector<16x1xf32>
    %cst_112 = arith.constant 6.400000e+01 : f32
    %237 = vector.broadcast %cst_112 : f32 to vector<16x1xf32>
    %238 = arith.divf %236, %237 : vector<16x1xf32>
    %cst_113 = arith.constant 9.99999974E-6 : f32
    %239 = vector.broadcast %cst_113 : f32 to vector<16x1xf32>
    %240 = arith.addf %238, %239 : vector<16x1xf32>
    %241 = math.rsqrt %240 : vector<16x1xf32>
    %242 = vector.broadcast %241 : vector<16x1xf32> to vector<16x64xf32>
    %243 = arith.mulf %231, %242 : vector<16x64xf32>
    %244 = vector.broadcast %233 : vector<1x64xf32> to vector<16x64xf32>
    %245 = arith.mulf %243, %244 : vector<16x64xf32>
    %c1_114 = arith.constant 1 : index
    %c0_115 = arith.constant 0 : index
    %c0_116 = arith.constant 0 : index
    %246 = vector.load %arg9[%c1_114, %c0_115, %c0_116] : memref<2x64x256xf32, #tpu.memory_space<vmem>>, vector<1x64x256xf32>
    %247 = vector.shape_cast %246 : vector<1x64x256xf32> to vector<64x256xf32>
    %cst_117 = arith.constant dense<0.000000e+00> : vector<16x256xf32>
    %248 = tpu.matmul %245, %247, %cst_117 {dimension_numbers = #tpu.dot_dimension_numbers<[1], [0], [0], [1], [0, 0, 1, 1], [], []>} : vector<16x64xf32>, vector<64x256xf32>, vector<16x256xf32> -> vector<16x256xf32>
    %249 = vector.extract_strided_slice %248 {offsets = [0, 0], sizes = [16, 128], strides = [1, 1]} : vector<16x256xf32> to vector<16x128xf32>
    %250 = vector.extract_strided_slice %248 {offsets = [0, 128], sizes = [16, 128], strides = [1, 1]} : vector<16x256xf32> to vector<16x128xf32>
    %251 = arith.mulf %250, %249 : vector<16x128xf32>
    %252 = arith.negf %249 : vector<16x128xf32>
    %253 = math.exp %252 : vector<16x128xf32>
    %cst_118 = arith.constant 1.000000e+00 : f32
    %254 = vector.broadcast %cst_118 : f32 to vector<16x128xf32>
    %255 = arith.addf %254, %253 : vector<16x128xf32>
    %256 = arith.divf %254, %255 : vector<16x128xf32>
    %257 = arith.mulf %251, %256 : vector<16x128xf32>
    %c1_119 = arith.constant 1 : index
    %c0_120 = arith.constant 0 : index
    %c0_121 = arith.constant 0 : index
    %258 = vector.load %arg10[%c1_119, %c0_120, %c0_121] : memref<2x128x64xf32, #tpu.memory_space<vmem>>, vector<1x128x64xf32>
    %259 = vector.shape_cast %258 : vector<1x128x64xf32> to vector<128x64xf32>
    %cst_122 = arith.constant dense<0.000000e+00> : vector<16x64xf32>
    %260 = tpu.matmul %257, %259, %cst_122 {dimension_numbers = #tpu.dot_dimension_numbers<[1], [0], [0], [1], [0, 0, 1, 1], [], []>} : vector<16x128xf32>, vector<128x64xf32>, vector<16x64xf32> -> vector<16x64xf32>
    %261 = arith.addf %231, %260 : vector<16x64xf32>
    %262 = vector.extract_strided_slice %261 {offsets = [7, 0], sizes = [1, 64], strides = [1, 1]} : vector<16x64xf32> to vector<1x64xf32>
    %263 = vector.extract_strided_slice %261 {offsets = [15, 0], sizes = [1, 64], strides = [1, 1]} : vector<16x64xf32> to vector<1x64xf32>
    %264 = tpu.concatenate %262, %263 in 0 : vector<1x64xf32>, vector<1x64xf32> -> vector<2x64xf32>
    %c0_123 = arith.constant 0 : index
    %c0_124 = arith.constant 0 : index
    %265 = vector.load %arg11[%c0_123, %c0_124] : memref<1x64xf32, #tpu.memory_space<vmem>>, vector<1x64xf32>
    %266 = arith.mulf %264, %264 : vector<2x64xf32>
    %cst_125 = arith.constant dense<0.000000e+00> : vector<2xf32>
    %267 = vector.multi_reduction <add>, %266, %cst_125 [1] : vector<2x64xf32> to vector<2xf32>
    %268 = vector.shape_cast %267 : vector<2xf32> to vector<2x1xf32>
    %cst_126 = arith.constant 6.400000e+01 : f32
    %269 = vector.broadcast %cst_126 : f32 to vector<2x1xf32>
    %270 = arith.divf %268, %269 : vector<2x1xf32>
    %cst_127 = arith.constant 9.99999974E-6 : f32
    %271 = vector.broadcast %cst_127 : f32 to vector<2x1xf32>
    %272 = arith.addf %270, %271 : vector<2x1xf32>
    %273 = math.rsqrt %272 : vector<2x1xf32>
    %274 = vector.broadcast %273 : vector<2x1xf32> to vector<2x64xf32>
    %275 = arith.mulf %264, %274 : vector<2x64xf32>
    %276 = vector.broadcast %265 : vector<1x64xf32> to vector<2x64xf32>
    %277 = arith.mulf %275, %276 : vector<2x64xf32>
    %c0_128 = arith.constant 0 : index
    %c0_129 = arith.constant 0 : index
    %278 = vector.load %arg12[%c0_128, %c0_129] : memref<64x256xf32, #tpu.memory_space<vmem>>, vector<64x256xf32>
    %cst_130 = arith.constant dense<0.000000e+00> : vector<2x256xf32>
    %279 = tpu.matmul %277, %278, %cst_130 {dimension_numbers = #tpu.dot_dimension_numbers<[1], [0], [0], [1], [0, 0, 1, 1], [], []>} : vector<2x64xf32>, vector<64x256xf32>, vector<2x256xf32> -> vector<2x256xf32>
    %c0_131 = arith.constant 0 : index
    %c0_132 = arith.constant 0 : index
    %280 = vector.load %arg13[%c0_131, %c0_132] : memref<2x256xf32, #tpu.memory_space<vmem>>, vector<2x256xf32>
    tpu.vector_store %arg13[%c0_131, %c0_132], %279 {strides = array<i32>} : memref<2x256xf32, #tpu.memory_space<vmem>>, vector<2x256xf32>,
    return
  }
}

</mosaic_0001>

<llo_original>
// kernel: phi3_forward.1
$region0: #{phi3_forward.1}
  #allocation0 [shape = 'u32[]', space=smem, size = 0x4, offset = 0x4, fixed_abs, tag = 'smem constant byte address 0x4 - core index']
  #allocation1 [shape = 'u32[144,128]{1,0:T(1,128)}', space=vmem, size = 0x12000, scoped, tag = 'internal scratch']
  %s0 = inlined_call_operand.vmem [shape: f32[16,64], index: 0, kind: input, shape index: {}]
  %s1 = inlined_call_operand.vmem [shape: f32[16,16], index: 1, kind: input, shape index: {}]
  %s2 = inlined_call_operand.vmem [shape: f32[16,16], index: 2, kind: input, shape index: {}]
  %s3 = inlined_call_operand.vmem [shape: f32[2,1,64], index: 3, kind: input, shape index: {}]
  %s4 = inlined_call_operand.vmem [shape: f32[2,4,64,16], index: 4, kind: input, shape index: {}]
  %s5 = inlined_call_operand.vmem [shape: f32[2,4,64,16], index: 5, kind: input, shape index: {}]
  %s6 = inlined_call_operand.vmem [shape: f32[2,4,64,16], index: 6, kind: input, shape index: {}]
  %s7 = inlined_call_operand.vmem [shape: f32[2,4,16,64], index: 7, kind: input, shape index: {}]
  %s8 = inlined_call_operand.vmem [shape: f32[2,1,64], index: 8, kind: input, shape index: {}]
  %s9 = inlined_call_operand.vmem [shape: f32[2,64,256], index: 9, kind: input, shape index: {}]
  %s10 = inlined_call_operand.vmem [shape: f32[2,128,64], index: 10, kind: input, shape index: {}]
  %s11 = inlined_call_operand.vmem [shape: f32[1,64], index: 11, kind: input, shape index: {}]
  %s12 = inlined_call_operand.vmem [shape: f32[64,256], index: 12, kind: input, shape index: {}]
  %s13 = inlined_call_operand.hbm [shape: f32[2,256], index: 13, kind: output, shape index: {}]
  %s14 = sld [smem:[#allocation0]]
  $region62: #{phi3_forward.1} parent=0
    _
  %s16 = ssub.s32 1, %s14
  %s17 = scalar_select 0, %s16, %s14
  $region1: #{phi3_forward.1} parent=0
    #allocation2 [shape = 'u8[2048]{0}', space=vmem, size = 0x800, scoped, tag = 'output window, operand 0, single buffered']
    #allocation3 [shape = 's32[1]{0}', space=sflag, size = 0x4, scoped, tag = 'scoped memory for phi3_forward.1']
    %18 = vsyncpa [#allocation3], 0
    // Predicated region
    $region2: #{phi3_forward.1} parent=1 // pred_check
      _
    $region3: #{phi3_forward.1} parent=1 // pred_check_branch
      %20 = sbr.rel (0) target = $region5
    $region4: #{phi3_forward.1} parent=1 // pred_region
      _
    $region5: #{phi3_forward.1} parent=1 // pred_fallthru
      _
    // Predicated region
    $region6: #{phi3_forward.1} parent=1 // pred_check
      _
    $region7: #{phi3_forward.1} parent=1 // pred_check_branch
      %22 = sbr.rel (0) target = $region9
    $region8: #{phi3_forward.1} parent=1 // pred_region
      _
    $region9: #{phi3_forward.1} parent=1 // pred_fallthru
      _
    // Predicated region
    $region10: #{phi3_forward.1} parent=1 // pred_check
      _
    $region11: #{phi3_forward.1} parent=1 // pred_check_branch
      %24 = sbr.rel (0) target = $region13
    $region12: #{phi3_forward.1} parent=1 // pred_region
      _
    $region13: #{phi3_forward.1} parent=1 // pred_fallthru
      _
    // Predicated region
    $region14: #{phi3_forward.1} parent=1 // pred_check
      _
    $region15: #{phi3_forward.1} parent=1 // pred_check_branch
      %26 = sbr.rel (0) target = $region17
    $region16: #{phi3_forward.1} parent=1 // pred_region
      _
    $region17: #{phi3_forward.1} parent=1 // pred_fallthru
      _
    // Predicated region
    $region18: #{phi3_forward.1} parent=1 // pred_check
      _
    $region19: #{phi3_forward.1} parent=1 // pred_check_branch
      %28 = sbr.rel (0) target = $region21
    $region20: #{phi3_forward.1} parent=1 // pred_region
      _
    $region21: #{phi3_forward.1} parent=1 // pred_fallthru
      _
    // Predicated region
    $region22: #{phi3_forward.1} parent=1 // pred_check
      _
    $region23: #{phi3_forward.1} parent=1 // pred_check_branch
      %30 = sbr.rel (0) target = $region25
    $region24: #{phi3_forward.1} parent=1 // pred_region
      _
    $region25: #{phi3_forward.1} parent=1 // pred_fallthru
      _
    // Predicated region
    $region26: #{phi3_forward.1} parent=1 // pred_check
      _
    $region27: #{phi3_forward.1} parent=1 // pred_check_branch
      %32 = sbr.rel (0) target = $region29
    $region28: #{phi3_forward.1} parent=1 // pred_region
      _
    $region29: #{phi3_forward.1} parent=1 // pred_fallthru
      _
    // Predicated region
    $region30: #{phi3_forward.1} parent=1 // pred_check
      _
    $region31: #{phi3_forward.1} parent=1 // pred_check_branch
      %34 = sbr.rel (0) target = $region33
    $region32: #{phi3_forward.1} parent=1 // pred_region
      _
    $region33: #{phi3_forward.1} parent=1 // pred_fallthru
      _
    // Predicated region
    $region34: #{phi3_forward.1} parent=1 // pred_check
      _
    $region35: #{phi3_forward.1} parent=1 // pred_check_branch
      %36 = sbr.rel (0) target = $region37
    $region36: #{phi3_forward.1} parent=1 // pred_region
      _
    $region37: #{phi3_forward.1} parent=1 // pred_fallthru
      _
    // Predicated region
    $region38: #{phi3_forward.1} parent=1 // pred_check
      _
    $region39: #{phi3_forward.1} parent=1 // pred_check_branch
      %38 = sbr.rel (0) target = $region41
    $region40: #{phi3_forward.1} parent=1 // pred_region
      _
    $region41: #{phi3_forward.1} parent=1 // pred_fallthru
      _
    // Predicated region
    $region42: #{phi3_forward.1} parent=1 // pred_check
      _
    $region43: #{phi3_forward.1} parent=1 // pred_check_branch
      %40 = sbr.rel (0) target = $region45
    $region44: #{phi3_forward.1} parent=1 // pred_region
      _
    $region45: #{phi3_forward.1} parent=1 // pred_fallthru
      _
    // Predicated region
    $region46: #{phi3_forward.1} parent=1 // pred_check
      _
    $region47: #{phi3_forward.1} parent=1 // pred_check_branch
      %42 = sbr.rel (0) target = $region49
    $region48: #{phi3_forward.1} parent=1 // pred_region
      _
    $region49: #{phi3_forward.1} parent=1 // pred_fallthru
      _
    // Predicated region
    $region50: #{phi3_forward.1} parent=1 // pred_check
      _
    $region51: #{phi3_forward.1} parent=1 // pred_check_branch
      %44 = sbr.rel (0) target = $region53
    $region52: #{phi3_forward.1} parent=1 // pred_region
      _
    $region53: #{phi3_forward.1} parent=1 // pred_fallthru
      _
    %v45 = vld [vmem:[%s0] sm:$0xff]
    %v46 = vld [vmem:[%s0 + $0x8] sm:$0xff]
    %v47 = vld [vmem:[%s1] sm:$0xff]
    %v48 = vld [vmem:[%s1 + $0x8] sm:$0xff]
    %v49 = vld [vmem:[%s2] sm:$0xff]
    %v50 = vld [vmem:[%s2 + $0x8] sm:$0xff]
    %v51 = vlaneseq
    %v52 = vshrl.u32 %v51, 7
    %v53 = vlaneseq
    %v54 = vand.u32 %v53, 127
    %vm55 = vcmp.le.s32.totalorder %v54, %v52
    %v56 = vld [vmem:[%s3] sm:$0x1]
    %v57 = vmul.f32 %v45, %v45
    %v58 = vmul.f32 %v46, %v46
    %vm59 = vcmask 523264
    %v60 = vsel %vm59, %v57, 0.0
    %61 = vadd.xlane.f32.xlu0 %v60
    %v62 = vpop.xlane.xlu0 %61
    %v63 = vsel %vm59, %v58, 0.0
    %64 = vadd.xlane.f32.xlu0 %v63
    %v65 = vpop.xlane.xlu0 %64
    %v66 = vrcp.pop 64.0
    %v67 = vmul.f32 %v62, %v66
    %v68 = vmul.f32 %v65, %v66
    %v69 = vadd.f32 %v67, 1e-05
    %v70 = vadd.f32 %v68, 1e-05
    %v71 = vrsqrt.pop %v69
    %v72 = vrsqrt.pop %v70
    %v73 = vmul.f32 %v45, %v71
    %v74 = vmul.f32 %v46, %v72
    %v76 = vlaneseq
    %v77 = vshrl.u32 %v76, 7
    %v78 = vsub.s32 0, %v77
    %v79 = vrot.slane %v56, %v78
    %v81 = vmul.f32 %v73, %v79
    %v82 = vmul.f32 %v74, %v79
    %v83 = vld [vmem:[%s4] sm:$0xff]
    %v84 = vld [vmem:[%s4 + $0x8] sm:$0xff]
    %v85 = vld [vmem:[%s4 + $0x10] sm:$0xff]
    %v86 = vld [vmem:[%s4 + $0x18] sm:$0xff]
    %v87 = vld [vmem:[%s4 + $0x20] sm:$0xff]
    %v88 = vld [vmem:[%s4 + $0x28] sm:$0xff]
    %v89 = vld [vmem:[%s4 + $0x30] sm:$0xff]
    %v90 = vld [vmem:[%s4 + $0x38] sm:$0xff]
    %v91 = vld [vmem:[%s4 + $0x40] sm:$0xff]
    %v92 = vld [vmem:[%s4 + $0x48] sm:$0xff]
    %v93 = vld [vmem:[%s4 + $0x50] sm:$0xff]
    %v94 = vld [vmem:[%s4 + $0x58] sm:$0xff]
    %v95 = vld [vmem:[%s4 + $0x60] sm:$0xff]
    %v96 = vld [vmem:[%s4 + $0x68] sm:$0xff]
    %v97 = vld [vmem:[%s4 + $0x70] sm:$0xff]
    %v98 = vld [vmem:[%s4 + $0x78] sm:$0xff]
    %v99 = vld [vmem:[%s4 + $0x80] sm:$0xff]
    %v100 = vld [vmem:[%s4 + $0x88] sm:$0xff]
    %v101 = vld [vmem:[%s4 + $0x90] sm:$0xff]
    %v102 = vld [vmem:[%s4 + $0x98] sm:$0xff]
    %v103 = vld [vmem:[%s4 + $0xa0] sm:$0xff]
    %v104 = vld [vmem:[%s4 + $0xa8] sm:$0xff]
    %v105 = vld [vmem:[%s4 + $0xb0] sm:$0xff]
    %v106 = vld [vmem:[%s4 + $0xb8] sm:$0xff]
    %v107 = vld [vmem:[%s4 + $0xc0] sm:$0xff]
    %v108 = vld [vmem:[%s4 + $0xc8] sm:$0xff]
    %v109 = vld [vmem:[%s4 + $0xd0] sm:$0xff]
    %v110 = vld [vmem:[%s4 + $0xd8] sm:$0xff]
    %v111 = vld [vmem:[%s4 + $0xe0] sm:$0xff]
    %v112 = vld [vmem:[%s4 + $0xe8] sm:$0xff]
    %v113 = vld [vmem:[%s4 + $0xf0] sm:$0xff]
    %v114 = vld [vmem:[%s4 + $0xf8] sm:$0xff]
    %v116 = vsel %vm59, %v81, 0
    %v119 = vsel %vm59, %v82, 0
    %121 = vmatprep.subr.mxu0 0.0
    %122 = vmatpush1.msra.mxu0 %v83
    %123 = vmatprep.subr.mxu0 0.0
    %124 = vmatpush1.msra.mxu0 %v84
    %125 = vmatprep.subr.mxu0 0.0
    %126 = vmatpush1.msra.mxu0 %v85
    %127 = vmatprep.subr.mxu0 0.0
    %128 = vmatpush1.msra.mxu0 %v86
    %129 = vmatprep.subr.mxu0 0.0
    %130 = vmatpush1.msra.mxu0 %v87
    %131 = vmatprep.subr.mxu0 0.0
    %132 = vmatpush1.msra.mxu0 %v88
    %133 = vmatprep.subr.mxu0 0.0
    %134 = vmatpush1.msra.mxu0 %v89
    %135 = vmatprep.subr.mxu0 0.0
    %136 = vmatpush1.msra.mxu0 %v90
    %137 = vmatprep.subr.mxu0 0.0
    %138 = vmatpush1.msra.mxu0 0.0
    %139 = vmatprep.subr.mxu0 0.0
    %140 = vmatpush1.msra.mxu0 0.0
    %141 = vmatprep.subr.mxu0 0.0
    %142 = vmatpush1.msra.mxu0 0.0
    %143 = vmatprep.subr.mxu0 0.0
    %144 = vmatpush1.msra.mxu0 0.0
    %145 = vmatprep.subr.mxu0 0.0
    %146 = vmatpush1.msra.mxu0 0.0
    %147 = vmatprep.subr.mxu0 0.0
    %148 = vmatpush1.msra.mxu0 0.0
    %149 = vmatprep.subr.mxu0 0.0
    %150 = vmatpush1.msra.mxu0 0.0
    %151 = vmatprep.subr.mxu0 0.0
    %152 = vmatpush1.msra.mxu0 0.0
    %153 = vmatprep.subr.mxu0 0.0
    %154 = vmatpush1.msra.mxu0 0.0
    %155 = vmatprep.subr.mxu0 0.0
    %156 = vmatpush1.msra.mxu0 0.0
    %157 = vmatprep.subr.mxu0 0.0
    %158 = vmatpush1.msra.mxu0 0.0
    %159 = vmatprep.subr.mxu0 0.0
    %160 = vmatpush1.msra.mxu0 0.0
    %161 = vmatprep.subr.mxu0 0.0
    %162 = vmatpush1.msra.mxu0 0.0
    %163 = vmatprep.subr.mxu0 0.0
    %164 = vmatpush1.msra.mxu0 0.0
    %165 = vmatprep.subr.mxu0 0.0
    %166 = vmatpush1.msra.mxu0 0.0
    %167 = vmatprep.subr.mxu0 0.0
    %168 = vmatpush1.msra.mxu0 0.0
    %169 = vmatprep.subr.mxu0 0.0
    %170 = vmatpush1.msra.mxu0 0.0
    %171 = vmatprep.subr.mxu0 0.0
    %172 = vmatpush1.msra.mxu0 0.0
    %173 = vmatprep.subr.mxu0 0.0
    %174 = vmatpush1.msra.mxu0 0.0
    %175 = vmatprep.subr.mxu0 0.0
    %176 = vmatpush1.msra.mxu0 0.0
    %177 = vmatprep.subr.mxu0 0.0
    %178 = vmatpush1.msra.mxu0 0.0
    %179 = vmatprep.subr.mxu0 0.0
    %180 = vmatpush1.msra.mxu0 0.0
    %181 = vmatprep.subr.mxu0 0.0
    %182 = vmatpush1.msra.mxu0 0.0
    %183 = vmatprep.subr.mxu0 0.0
    %184 = vmatpush1.msra.mxu0 0.0
    %185 = vmatprep.mubr.f32.mxu0 0.0
    %186 = vmatmul.mubr.f32.gmra.mrb[0].mxu0 %v116
    %v187 = vpop.f32.mrb[0].mxu0
    %v188 = vadd.f32 0.0, %v187
    %v189 = vpop.f32.mrb[0].mxu0
    %190 = vmatprep.mubr.f32.mxu0 0.0
    %191 = vmatmul.mubr.f32.gmra.mrb[0].mxu0 %v119
    %v192 = vpop.f32.mrb[0].mxu0
    %v193 = vadd.f32 0.0, %v192
    %v194 = vpop.f32.mrb[0].mxu0
    %195 = vdwg.mxu0
    %196 = vmatprep.subr.mxu0 0.0
    %197 = vmatpush1.msra.mxu0 %v91
    %198 = vmatprep.subr.mxu0 0.0
    %199 = vmatpush1.msra.mxu0 %v92
    %200 = vmatprep.subr.mxu0 0.0
    %201 = vmatpush1.msra.mxu0 %v93
    %202 = vmatprep.subr.mxu0 0.0
    %203 = vmatpush1.msra.mxu0 %v94
    %204 = vmatprep.subr.mxu0 0.0
    %205 = vmatpush1.msra.mxu0 %v95
    %206 = vmatprep.subr.mxu0 0.0
    %207 = vmatpush1.msra.mxu0 %v96
    %208 = vmatprep.subr.mxu0 0.0
    %209 = vmatpush1.msra.mxu0 %v97
    %210 = vmatprep.subr.mxu0 0.0
    %211 = vmatpush1.msra.mxu0 %v98
    %212 = vmatprep.subr.mxu0 0.0
    %213 = vmatpush1.msra.mxu0 0.0
    %214 = vmatprep.subr.mxu0 0.0
    %215 = vmatpush1.msra.mxu0 0.0
    %216 = vmatprep.subr.mxu0 0.0
    %217 = vmatpush1.msra.mxu0 0.0
    %218 = vmatprep.subr.mxu0 0.0
    %219 = vmatpush1.msra.mxu0 0.0
    %220 = vmatprep.subr.mxu0 0.0
    %221 = vmatpush1.msra.mxu0 0.0
    %222 = vmatprep.subr.mxu0 0.0
    %223 = vmatpush1.msra.mxu0 0.0
    %224 = vmatprep.subr.mxu0 0.0
    %225 = vmatpush1.msra.mxu0 0.0
    %226 = vmatprep.subr.mxu0 0.0
    %227 = vmatpush1.msra.mxu0 0.0
    %228 = vmatprep.subr.mxu0 0.0
    %229 = vmatpush1.msra.mxu0 0.0
    %230 = vmatprep.subr.mxu0 0.0
    %231 = vmatpush1.msra.mxu0 0.0
    %232 = vmatprep.subr.mxu0 0.0
    %233 = vmatpush1.msra.mxu0 0.0
    %234 = vmatprep.subr.mxu0 0.0
    %235 = vmatpush1.msra.mxu0 0.0
    %236 = vmatprep.subr.mxu0 0.0
    %237 = vmatpush1.msra.mxu0 0.0
    %238 = vmatprep.subr.mxu0 0.0
    %239 = vmatpush1.msra.mxu0 0.0
    %240 = vmatprep.subr.mxu0 0.0
    %241 = vmatpush1.msra.mxu0 0.0
    %242 = vmatprep.subr.mxu0 0.0
    %243 = vmatpush1.msra.mxu0 0.0
    %244 = vmatprep.subr.mxu0 0.0
    %245 = vmatpush1.msra.mxu0 0.0
    %246 = vmatprep.subr.mxu0 0.0
    %247 = vmatpush1.msra.mxu0 0.0
    %248 = vmatprep.subr.mxu0 0.0
    %249 = vmatpush1.msra.mxu0 0.0
    %250 = vmatprep.subr.mxu0 0.0
    %251 = vmatpush1.msra.mxu0 0.0
    %252 = vmatprep.subr.mxu0 0.0
    %253 = vmatpush1.msra.mxu0 0.0
    %254 = vmatprep.subr.mxu0 0.0
    %255 = vmatpush1.msra.mxu0 0.0
    %256 = vmatprep.subr.mxu0 0.0
    %257 = vmatpush1.msra.mxu0 0.0
    %258 = vmatprep.subr.mxu0 0.0
    %259 = vmatpush1.msra.mxu0 0.0
    %260 = vmatprep.mubr.f32.mxu0 0.0
    %261 = vmatmul.mubr.f32.gmra.mrb[0].mxu0 %v116
    %v262 = vpop.f32.mrb[0].mxu0
    %v263 = vadd.f32 0.0, %v262
    %v264 = vpop.f32.mrb[0].mxu0
    %265 = vmatprep.mubr.f32.mxu0 0.0
    %266 = vmatmul.mubr.f32.gmra.mrb[0].mxu0 %v119
    %v267 = vpop.f32.mrb[0].mxu0
    %v268 = vadd.f32 0.0, %v267
    %v269 = vpop.f32.mrb[0].mxu0
    %270 = vdwg.mxu0
    %271 = vmatprep.subr.mxu0 0.0
    %272 = vmatpush1.msra.mxu0 %v99
    %273 = vmatprep.subr.mxu0 0.0
    %274 = vmatpush1.msra.mxu0 %v100
    %275 = vmatprep.subr.mxu0 0.0
    %276 = vmatpush1.msra.mxu0 %v101
    %277 = vmatprep.subr.mxu0 0.0
    %278 = vmatpush1.msra.mxu0 %v102
    %279 = vmatprep.subr.mxu0 0.0
    %280 = vmatpush1.msra.mxu0 %v103
    %281 = vmatprep.subr.mxu0 0.0
    %282 = vmatpush1.msra.mxu0 %v104
    %283 = vmatprep.subr.mxu0 0.0
    %284 = vmatpush1.msra.mxu0 %v105
    %285 = vmatprep.subr.mxu0 0.0
    %286 = vmatpush1.msra.mxu0 %v106
    %287 = vmatprep.subr.mxu0 0.0
    %288 = vmatpush1.msra.mxu0 0.0
    %289 = vmatprep.subr.mxu0 0.0
    %290 = vmatpush1.msra.mxu0 0.0
    %291 = vmatprep.subr.mxu0 0.0
    %292 = vmatpush1.msra.mxu0 0.0
    %293 = vmatprep.subr.mxu0 0.0
    %294 = vmatpush1.msra.mxu0 0.0
    %295 = vmatprep.subr.mxu0 0.0
    %296 = vmatpush1.msra.mxu0 0.0
    %297 = vmatprep.subr.mxu0 0.0
    %298 = vmatpush1.msra.mxu0 0.0
    %299 = vmatprep.subr.mxu0 0.0
    %300 = vmatpush1.msra.mxu0 0.0
    %301 = vmatprep.subr.mxu0 0.0
    %302 = vmatpush1.msra.mxu0 0.0
    %303 = vmatprep.subr.mxu0 0.0
    %304 = vmatpush1.msra.mxu0 0.0
    %305 = vmatprep.subr.mxu0 0.0
    %306 = vmatpush1.msra.mxu0 0.0
    %307 = vmatprep.subr.mxu0 0.0
    %308 = vmatpush1.msra.mxu0 0.0
    %309 = vmatprep.subr.mxu0 0.0
    %310 = vmatpush1.msra.mxu0 0.0
    %311 = vmatprep.subr.mxu0 0.0
    %312 = vmatpush1.msra.mxu0 0.0
    %313 = vmatprep.subr.mxu0 0.0
    %314 = vmatpush1.msra.mxu0 0.0
    %315 = vmatprep.subr.mxu0 0.0
    %316 = vmatpush1.msra.mxu0 0.0
    %317 = vmatprep.subr.mxu0 0.0
    %318 = vmatpush1.msra.mxu0 0.0
    %319 = vmatprep.subr.mxu0 0.0
    %320 = vmatpush1.msra.mxu0 0.0
    %321 = vmatprep.subr.mxu0 0.0
    %322 = vmatpush1.msra.mxu0 0.0
    %323 = vmatprep.subr.mxu0 0.0
    %324 = vmatpush1.msra.mxu0 0.0
    %325 = vmatprep.subr.mxu0 0.0
    %326 = vmatpush1.msra.mxu0 0.0
    %327 = vmatprep.subr.mxu0 0.0
    %328 = vmatpush1.msra.mxu0 0.0
    %329 = vmatprep.subr.mxu0 0.0
    %330 = vmatpush1.msra.mxu0 0.0
    %331 = vmatprep.subr.mxu0 0.0
    %332 = vmatpush1.msra.mxu0 0.0
    %333 = vmatprep.subr.mxu0 0.0
    %334 = vmatpush1.msra.mxu0 0.0
    %335 = vmatprep.mubr.f32.mxu0 0.0
    %336 = vmatmul.mubr.f32.gmra.mrb[0].mxu0 %v116
    %v337 = vpop.f32.mrb[0].mxu0
    %v338 = vadd.f32 0.0, %v337
    %v339 = vpop.f32.mrb[0].mxu0
    %340 = vmatprep.mubr.f32.mxu0 0.0
    %341 = vmatmul.mubr.f32.gmra.mrb[0].mxu0 %v119
    %v342 = vpop.f32.mrb[0].mxu0
    %v343 = vadd.f32 0.0, %v342
    %v344 = vpop.f32.mrb[0].mxu0
    %345 = vdwg.mxu0
    %346 = vmatprep.subr.mxu0 0.0
    %347 = vmatpush1.msra.mxu0 %v107
    %348 = vmatprep.subr.mxu0 0.0
    %349 = vmatpush1.msra.mxu0 %v108
    %350 = vmatprep.subr.mxu0 0.0
    %351 = vmatpush1.msra.mxu0 %v109
    %352 = vmatprep.subr.mxu0 0.0
    %353 = vmatpush1.msra.mxu0 %v110
    %354 = vmatprep.subr.mxu0 0.0
    %355 = vmatpush1.msra.mxu0 %v111
    %356 = vmatprep.subr.mxu0 0.0
    %357 = vmatpush1.msra.mxu0 %v112
    %358 = vmatprep.subr.mxu0 0.0
    %359 = vmatpush1.msra.mxu0 %v113
    %360 = vmatprep.subr.mxu0 0.0
    %361 = vmatpush1.msra.mxu0 %v114
    %362 = vmatprep.subr.mxu0 0.0
    %363 = vmatpush1.msra.mxu0 0.0
    %364 = vmatprep.subr.mxu0 0.0
    %365 = vmatpush1.msra.mxu0 0.0
    %366 = vmatprep.subr.mxu0 0.0
    %367 = vmatpush1.msra.mxu0 0.0
    %368 = vmatprep.subr.mxu0 0.0
    %369 = vmatpush1.msra.mxu0 0.0
    %370 = vmatprep.subr.mxu0 0.0
    %371 = vmatpush1.msra.mxu0 0.0
    %372 = vmatprep.subr.mxu0 0.0
    %373 = vmatpush1.msra.mxu0 0.0
    %374 = vmatprep.subr.mxu0 0.0
    %375 = vmatpush1.msra.mxu0 0.0
    %376 = vmatprep.subr.mxu0 0.0
    %377 = vmatpush1.msra.mxu0 0.0
    %378 = vmatprep.subr.mxu0 0.0
    %379 = vmatpush1.msra.mxu0 0.0
    %380 = vmatprep.subr.mxu0 0.0
    %381 = vmatpush1.msra.mxu0 0.0
    %382 = vmatprep.subr.mxu0 0.0
    %383 = vmatpush1.msra.mxu0 0.0
    %384 = vmatprep.subr.mxu0 0.0
    %385 = vmatpush1.msra.mxu0 0.0
    %386 = vmatprep.subr.mxu0 0.0
    %387 = vmatpush1.msra.mxu0 0.0
    %388 = vmatprep.subr.mxu0 0.0
    %389 = vmatpush1.msra.mxu0 0.0
    %390 = vmatprep.subr.mxu0 0.0
    %391 = vmatpush1.msra.mxu0 0.0
    %392 = vmatprep.subr.mxu0 0.0
    %393 = vmatpush1.msra.mxu0 0.0
    %394 = vmatprep.subr.mxu0 0.0
    %395 = vmatpush1.msra.mxu0 0.0
    %396 = vmatprep.subr.mxu0 0.0
    %397 = vmatpush1.msra.mxu0 0.0
    %398 = vmatprep.subr.mxu0 0.0
    %399 = vmatpush1.msra.mxu0 0.0
    %400 = vmatprep.subr.mxu0 0.0
    %401 = vmatpush1.msra.mxu0 0.0
    %402 = vmatprep.subr.mxu0 0.0
    %403 = vmatpush1.msra.mxu0 0.0
    %404 = vmatprep.subr.mxu0 0.0
    %405 = vmatpush1.msra.mxu0 0.0
    %406 = vmatprep.subr.mxu0 0.0
    %407 = vmatpush1.msra.mxu0 0.0
    %408 = vmatprep.subr.mxu0 0.0
    %409 = vmatpush1.msra.mxu0 0.0
    %410 = vmatprep.mubr.f32.mxu0 0.0
    %411 = vmatmul.mubr.f32.gmra.mrb[0].mxu0 %v116
    %v412 = vpop.f32.mrb[0].mxu0
    %v413 = vadd.f32 0.0, %v412
    %v414 = vpop.f32.mrb[0].mxu0
    %415 = vmatprep.mubr.f32.mxu0 0.0
    %416 = vmatmul.mubr.f32.gmra.mrb[0].mxu0 %v119
    %v417 = vpop.f32.mrb[0].mxu0
    %v418 = vadd.f32 0.0, %v417
    %v419 = vpop.f32.mrb[0].mxu0
    %420 = vdwg.mxu0
    %v421 = vld [vmem:[%s5] sm:$0xff]
    %v422 = vld [vmem:[%s5 + $0x8] sm:$0xff]
    %v423 = vld [vmem:[%s5 + $0x10] sm:$0xff]
    %v424 = vld [vmem:[%s5 + $0x18] sm:$0xff]
    %v425 = vld [vmem:[%s5 + $0x20] sm:$0xff]
    %v426 = vld [vmem:[%s5 + $0x28] sm:$0xff]
    %v427 = vld [vmem:[%s5 + $0x30] sm:$0xff]
    %v428 = vld [vmem:[%s5 + $0x38] sm:$0xff]
    %v429 = vld [vmem:[%s5 + $0x40] sm:$0xff]
    %v430 = vld [vmem:[%s5 + $0x48] sm:$0xff]
    %v431 = vld [vmem:[%s5 + $0x50] sm:$0xff]
    %v432 = vld [vmem:[%s5 + $0x58] sm:$0xff]
    %v433 = vld [vmem:[%s5 + $0x60] sm:$0xff]
    %v434 = vld [vmem:[%s5 + $0x68] sm:$0xff]
    %v435 = vld [vmem:[%s5 + $0x70] sm:$0xff]
    %v436 = vld [vmem:[%s5 + $0x78] sm:$0xff]
    %v437 = vld [vmem:[%s5 + $0x80] sm:$0xff]
    %v438 = vld [vmem:[%s5 + $0x88] sm:$0xff]
    %v439 = vld [vmem:[%s5 + $0x90] sm:$0xff]
    %v440 = vld [vmem:[%s5 + $0x98] sm:$0xff]
    %v441 = vld [vmem:[%s5 + $0xa0] sm:$0xff]
    %v442 = vld [vmem:[%s5 + $0xa8] sm:$0xff]
    %v443 = vld [vmem:[%s5 + $0xb0] sm:$0xff]
    %v444 = vld [vmem:[%s5 + $0xb8] sm:$0xff]
    %v445 = vld [vmem:[%s5 + $0xc0] sm:$0xff]
    %v446 = vld [vmem:[%s5 + $0xc8] sm:$0xff]
    %v447 = vld [vmem:[%s5 + $0xd0] sm:$0xff]
    %v448 = vld [vmem:[%s5 + $0xd8] sm:$0xff]
    %v449 = vld [vmem:[%s5 + $0xe0] sm:$0xff]
    %v450 = vld [vmem:[%s5 + $0xe8] sm:$0xff]
    %v451 = vld [vmem:[%s5 + $0xf0] sm:$0xff]
    %v452 = vld [vmem:[%s5 + $0xf8] sm:$0xff]
    %453 = vmatprep.subr.mxu0 0.0
    %454 = vmatpush1.msra.mxu0 %v421
    %455 = vmatprep.subr.mxu0 0.0
    %456 = vmatpush1.msra.mxu0 %v422
    %457 = vmatprep.subr.mxu0 0.0
    %458 = vmatpush1.msra.mxu0 %v423
    %459 = vmatprep.subr.mxu0 0.0
    %460 = vmatpush1.msra.mxu0 %v424
    %461 = vmatprep.subr.mxu0 0.0
    %462 = vmatpush1.msra.mxu0 %v425
    %463 = vmatprep.subr.mxu0 0.0
    %464 = vmatpush1.msra.mxu0 %v426
    %465 = vmatprep.subr.mxu0 0.0
    %466 = vmatpush1.msra.mxu0 %v427
    %467 = vmatprep.subr.mxu0 0.0
    %468 = vmatpush1.msra.mxu0 %v428
    %469 = vmatprep.subr.mxu0 0.0
    %470 = vmatpush1.msra.mxu0 0.0
    %471 = vmatprep.subr.mxu0 0.0
    %472 = vmatpush1.msra.mxu0 0.0
    %473 = vmatprep.subr.mxu0 0.0
    %474 = vmatpush1.msra.mxu0 0.0
    %475 = vmatprep.subr.mxu0 0.0
    %476 = vmatpush1.msra.mxu0 0.0
    %477 = vmatprep.subr.mxu0 0.0
    %478 = vmatpush1.msra.mxu0 0.0
    %479 = vmatprep.subr.mxu0 0.0
    %480 = vmatpush1.msra.mxu0 0.0
    %481 = vmatprep.subr.mxu0 0.0
    %482 = vmatpush1.msra.mxu0 0.0
    %483 = vmatprep.subr.mxu0 0.0
    %484 = vmatpush1.msra.mxu0 0.0
    %485 = vmatprep.subr.mxu0 0.0
    %486 = vmatpush1.msra.mxu0 0.0
    %487 = vmatprep.subr.mxu0 0.0
    %488 = vmatpush1.msra.mxu0 0.0
    %489 = vmatprep.subr.mxu0 0.0
    %490 = vmatpush1.msra.mxu0 0.0
    %491 = vmatprep.subr.mxu0 0.0
    %492 = vmatpush1.msra.mxu0 0.0
    %493 = vmatprep.subr.mxu0 0.0
    %494 = vmatpush1.msra.mxu0 0.0
    %495 = vmatprep.subr.mxu0 0.0
    %496 = vmatpush1.msra.mxu0 0.0
    %497 = vmatprep.subr.mxu0 0.0
    %498 = vmatpush1.msra.mxu0 0.0
    %499 = vmatprep.subr.mxu0 0.0
    %500 = vmatpush1.msra.mxu0 0.0
    %501 = vmatprep.subr.mxu0 0.0
    %502 = vmatpush1.msra.mxu0 0.0
    %503 = vmatprep.subr.mxu0 0.0
    %504 = vmatpush1.msra.mxu0 0.0
    %505 = vmatprep.subr.mxu0 0.0
    %506 = vmatpush1.msra.mxu0 0.0
    %507 = vmatprep.subr.mxu0 0.0
    %508 = vmatpush1.msra.mxu0 0.0
    %509 = vmatprep.subr.mxu0 0.0
    %510 = vmatpush1.msra.mxu0 0.0
    %511 = vmatprep.subr.mxu0 0.0
    %512 = vmatpush1.msra.mxu0 0.0
    %513 = vmatprep.subr.mxu0 0.0
    %514 = vmatpush1.msra.mxu0 0.0
    %515 = vmatprep.subr.mxu0 0.0
    %516 = vmatpush1.msra.mxu0 0.0
    %517 = vmatprep.mubr.f32.mxu0 0.0
    %518 = vmatmul.mubr.f32.gmra.mrb[0].mxu0 %v116
    %v519 = vpop.f32.mrb[0].mxu0
    %v520 = vadd.f32 0.0, %v519
    %v521 = vpop.f32.mrb[0].mxu0
    %522 = vmatprep.mubr.f32.mxu0 0.0
    %523 = vmatmul.mubr.f32.gmra.mrb[0].mxu0 %v119
    %v524 = vpop.f32.mrb[0].mxu0
    %v525 = vadd.f32 0.0, %v524
    %v526 = vpop.f32.mrb[0].mxu0
    %527 = vdwg.mxu0
    %528 = vmatprep.subr.mxu0 0.0
    %529 = vmatpush1.msra.mxu0 %v429
    %530 = vmatprep.subr.mxu0 0.0
    %531 = vmatpush1.msra.mxu0 %v430
    %532 = vmatprep.subr.mxu0 0.0
    %533 = vmatpush1.msra.mxu0 %v431
    %534 = vmatprep.subr.mxu0 0.0
    %535 = vmatpush1.msra.mxu0 %v432
    %536 = vmatprep.subr.mxu0 0.0
    %537 = vmatpush1.msra.mxu0 %v433
    %538 = vmatprep.subr.mxu0 0.0
    %539 = vmatpush1.msra.mxu0 %v434
    %540 = vmatprep.subr.mxu0 0.0
    %541 = vmatpush1.msra.mxu0 %v435
    %542 = vmatprep.subr.mxu0 0.0
    %543 = vmatpush1.msra.mxu0 %v436
    %544 = vmatprep.subr.mxu0 0.0
    %545 = vmatpush1.msra.mxu0 0.0
    %546 = vmatprep.subr.mxu0 0.0
    %547 = vmatpush1.msra.mxu0 0.0
    %548 = vmatprep.subr.mxu0 0.0
    %549 = vmatpush1.msra.mxu0 0.0
    %550 = vmatprep.subr.mxu0 0.0
    %551 = vmatpush1.msra.mxu0 0.0
    %552 = vmatprep.subr.mxu0 0.0
    %553 = vmatpush1.msra.mxu0 0.0
    %554 = vmatprep.subr.mxu0 0.0
    %555 = vmatpush1.msra.mxu0 0.0
    %556 = vmatprep.subr.mxu0 0.0
    %557 = vmatpush1.msra.mxu0 0.0
    %558 = vmatprep.subr.mxu0 0.0
    %559 = vmatpush1.msra.mxu0 0.0
    %560 = vmatprep.subr.mxu0 0.0
    %561 = vmatpush1.msra.mxu0 0.0
    %562 = vmatprep.subr.mxu0 0.0
    %563 = vmatpush1.msra.mxu0 0.0
    %564 = vmatprep.subr.mxu0 0.0
    %565 = vmatpush1.msra.mxu0 0.0
    %566 = vmatprep.subr.mxu0 0.0
    %567 = vmatpush1.msra.mxu0 0.0
    %568 = vmatprep.subr.mxu0 0.0
    %569 = vmatpush1.msra.mxu0 0.0
    %570 = vmatprep.subr.mxu0 0.0
    %571 = vmatpush1.msra.mxu0 0.0
    %572 = vmatprep.subr.mxu0 0.0
    %573 = vmatpush1.msra.mxu0 0.0
    %574 = vmatprep.subr.mxu0 0.0
    %575 = vmatpush1.msra.mxu0 0.0
    %576 = vmatprep.subr.mxu0 0.0
    %577 = vmatpush1.msra.mxu0 0.0
    %578 = vmatprep.subr.mxu0 0.0
    %579 = vmatpush1.msra.mxu0 0.0
    %580 = vmatprep.subr.mxu0 0.0
    %581 = vmatpush1.msra.mxu0 0.0
    %582 = vmatprep.subr.mxu0 0.0
    %583 = vmatpush1.msra.mxu0 0.0
    %584 = vmatprep.subr.mxu0 0.0
    %585 = vmatpush1.msra.mxu0 0.0
    %586 = vmatprep.subr.mxu0 0.0
    %587 = vmatpush1.msra.mxu0 0.0
    %588 = vmatprep.subr.mxu0 0.0
    %589 = vmatpush1.msra.mxu0 0.0
    %590 = vmatprep.subr.mxu0 0.0
    %591 = vmatpush1.msra.mxu0 0.0
    %592 = vmatprep.mubr.f32.mxu0 0.0
    %593 = vmatmul.mubr.f32.gmra.mrb[0].mxu0 %v116
    %v594 = vpop.f32.mrb[0].mxu0
    %v595 = vadd.f32 0.0, %v594
    %v596 = vpop.f32.mrb[0].mxu0
    %597 = vmatprep.mubr.f32.mxu0 0.0
    %598 = vmatmul.mubr.f32.gmra.mrb[0].mxu0 %v119
    %v599 = vpop.f32.mrb[0].mxu0
    %v600 = vadd.f32 0.0, %v599
    %v601 = vpop.f32.mrb[0].mxu0
    %602 = vdwg.mxu0
    %603 = vmatprep.subr.mxu0 0.0
    %604 = vmatpush1.msra.mxu0 %v437
    %605 = vmatprep.subr.mxu0 0.0
    %606 = vmatpush1.msra.mxu0 %v438
    %607 = vmatprep.subr.mxu0 0.0
    %608 = vmatpush1.msra.mxu0 %v439
    %609 = vmatprep.subr.mxu0 0.0
    %610 = vmatpush1.msra.mxu0 %v440
    %611 = vmatprep.subr.mxu0 0.0
    %612 = vmatpush1.msra.mxu0 %v441
    %613 = vmatprep.subr.mxu0 0.0
    %614 = vmatpush1.msra.mxu0 %v442
    %615 = vmatprep.subr.mxu0 0.0
    %616 = vmatpush1.msra.mxu0 %v443
    %617 = vmatprep.subr.mxu0 0.0
    %618 = vmatpush1.msra.mxu0 %v444
    %619 = vmatprep.subr.mxu0 0.0
    %620 = vmatpush1.msra.mxu0 0.0
    %621 = vmatprep.subr.mxu0 0.0
    %622 = vmatpush1.msra.mxu0 0.0
    %623 = vmatprep.subr.mxu0 0.0
    %624 = vmatpush1.msra.mxu0 0.0
    %625 = vmatprep.subr.mxu0 0.0
    %626 = vmatpush1.msra.mxu0 0.0
    %627 = vmatprep.subr.mxu0 0.0
    %628 = vmatpush1.msra.mxu0 0.0
    %629 = vmatprep.subr.mxu0 0.0
    %630 = vmatpush1.msra.mxu0 0.0
    %631 = vmatprep.subr.mxu0 0.0
    %632 = vmatpush1.msra.mxu0 0.0
    %633 = vmatprep.subr.mxu0 0.0
    %634 = vmatpush1.msra.mxu0 0.0
    %635 = vmatprep.subr.mxu0 0.0
    %636 = vmatpush1.msra.mxu0 0.0
    %637 = vmatprep.subr.mxu0 0.0
    %638 = vmatpush1.msra.mxu0 0.0
    %639 = vmatprep.subr.mxu0 0.0
    %640 = vmatpush1.msra.mxu0 0.0
    %641 = vmatprep.subr.mxu0 0.0
    %642 = vmatpush1.msra.mxu0 0.0
    %643 = vmatprep.subr.mxu0 0.0
    %644 = vmatpush1.msra.mxu0 0.0
    %645 = vmatprep.subr.mxu0 0.0
    %646 = vmatpush1.msra.mxu0 0.0
    %647 = vmatprep.subr.mxu0 0.0
    %648 = vmatpush1.msra.mxu0 0.0
    %649 = vmatprep.subr.mxu0 0.0
    %650 = vmatpush1.msra.mxu0 0.0
    %651 = vmatprep.subr.mxu0 0.0
    %652 = vmatpush1.msra.mxu0 0.0
    %653 = vmatprep.subr.mxu0 0.0
    %654 = vmatpush1.msra.mxu0 0.0
    %655 = vmatprep.subr.mxu0 0.0
    %656 = vmatpush1.msra.mxu0 0.0
    %657 = vmatprep.subr.mxu0 0.0
    %658 = vmatpush1.msra.mxu0 0.0
    %659 = vmatprep.subr.mxu0 0.0
    %660 = vmatpush1.msra.mxu0 0.0
    %661 = vmatprep.subr.mxu0 0.0
    %662 = vmatpush1.msra.mxu0 0.0
    %663 = vmatprep.subr.mxu0 0.0
    %664 = vmatpush1.msra.mxu0 0.0
    %665 = vmatprep.subr.mxu0 0.0
    %666 = vmatpush1.msra.mxu0 0.0
    %667 = vmatprep.mubr.f32.mxu0 0.0
    %668 = vmatmul.mubr.f32.gmra.mrb[0].mxu0 %v116
    %v669 = vpop.f32.mrb[0].mxu0
    %v670 = vadd.f32 0.0, %v669
    %v671 = vpop.f32.mrb[0].mxu0
    %672 = vmatprep.mubr.f32.mxu0 0.0
    %673 = vmatmul.mubr.f32.gmra.mrb[0].mxu0 %v119
    %v674 = vpop.f32.mrb[0].mxu0
    %v675 = vadd.f32 0.0, %v674
    %v676 = vpop.f32.mrb[0].mxu0
    %677 = vdwg.mxu0
    %678 = vmatprep.subr.mxu0 0.0
    %679 = vmatpush1.msra.mxu0 %v445
    %680 = vmatprep.subr.mxu0 0.0
    %681 = vmatpush1.msra.mxu0 %v446
    %682 = vmatprep.subr.mxu0 0.0
    %683 = vmatpush1.msra.mxu0 %v447
    %684 = vmatprep.subr.mxu0 0.0
    %685 = vmatpush1.msra.mxu0 %v448
    %686 = vmatprep.subr.mxu0 0.0
    %687 = vmatpush1.msra.mxu0 %v449
    %688 = vmatprep.subr.mxu0 0.0
    %689 = vmatpush1.msra.mxu0 %v450
    %690 = vmatprep.subr.mxu0 0.0
    %691 = vmatpush1.msra.mxu0 %v451
    %692 = vmatprep.subr.mxu0 0.0
    %693 = vmatpush1.msra.mxu0 %v452
    %694 = vmatprep.subr.mxu0 0.0
    %695 = vmatpush1.msra.mxu0 0.0
    %696 = vmatprep.subr.mxu0 0.0
    %697 = vmatpush1.msra.mxu0 0.0
    %698 = vmatprep.subr.mxu0 0.0
    %699 = vmatpush1.msra.mxu0 0.0
    %700 = vmatprep.subr.mxu0 0.0
    %701 = vmatpush1.msra.mxu0 0.0
    %702 = vmatprep.subr.mxu0 0.0
    %703 = vmatpush1.msra.mxu0 0.0
    %704 = vmatprep.subr.mxu0 0.0
    %705 = vmatpush1.msra.mxu0 0.0
    %706 = vmatprep.subr.mxu0 0.0
    %707 = vmatpush1.msra.mxu0 0.0
    %708 = vmatprep.subr.mxu0 0.0
    %709 = vmatpush1.msra.mxu0 0.0
    %710 = vmatprep.subr.mxu0 0.0
    %711 = vmatpush1.msra.mxu0 0.0
    %712 = vmatprep.subr.mxu0 0.0
    %713 = vmatpush1.msra.mxu0 0.0
    %714 = vmatprep.subr.mxu0 0.0
    %715 = vmatpush1.msra.mxu0 0.0
    %716 = vmatprep.subr.mxu0 0.0
    %717 = vmatpush1.msra.mxu0 0.0
    %718 = vmatprep.subr.mxu0 0.0
    %719 = vmatpush1.msra.mxu0 0.0
    %720 = vmatprep.subr.mxu0 0.0
    %721 = vmatpush1.msra.mxu0 0.0
    %722 = vmatprep.subr.mxu0 0.0
    %723 = vmatpush1.msra.mxu0 0.0
    %724 = vmatprep.subr.mxu0 0.0
    %725 = vmatpush1.msra.mxu0 0.0
    %726 = vmatprep.subr.mxu0 0.0
    %727 = vmatpush1.msra.mxu0 0.0
    %728 = vmatprep.subr.mxu0 0.0
    %729 = vmatpush1.msra.mxu0 0.0
    %730 = vmatprep.subr.mxu0 0.0
    %731 = vmatpush1.msra.mxu0 0.0
    %732 = vmatprep.subr.mxu0 0.0
    %733 = vmatpush1.msra.mxu0 0.0
    %734 = vmatprep.subr.mxu0 0.0
    %735 = vmatpush1.msra.mxu0 0.0
    %736 = vmatprep.subr.mxu0 0.0
    %737 = vmatpush1.msra.mxu0 0.0
    %738 = vmatprep.subr.mxu0 0.0
    %739 = vmatpush1.msra.mxu0 0.0
    %740 = vmatprep.subr.mxu0 0.0
    %741 = vmatpush1.msra.mxu0 0.0
    %742 = vmatprep.mubr.f32.mxu0 0.0
    %743 = vmatmul.mubr.f32.gmra.mrb[0].mxu0 %v116
    %v744 = vpop.f32.mrb[0].mxu0
    %v745 = vadd.f32 0.0, %v744
    %v746 = vpop.f32.mrb[0].mxu0
    %747 = vmatprep.mubr.f32.mxu0 0.0
    %748 = vmatmul.mubr.f32.gmra.mrb[0].mxu0 %v119
    %v749 = vpop.f32.mrb[0].mxu0
    %v750 = vadd.f32 0.0, %v749
    %v751 = vpop.f32.mrb[0].mxu0
    %752 = vdwg.mxu0
    %v753 = vld [vmem:[%s6] sm:$0xff]
    %v754 = vld [vmem:[%s6 + $0x8] sm:$0xff]
    %v755 = vld [vmem:[%s6 + $0x10] sm:$0xff]
    %v756 = vld [vmem:[%s6 + $0x18] sm:$0xff]
    %v757 = vld [vmem:[%s6 + $0x20] sm:$0xff]
    %v758 = vld [vmem:[%s6 + $0x28] sm:$0xff]
    %v759 = vld [vmem:[%s6 + $0x30] sm:$0xff]
    %v760 = vld [vmem:[%s6 + $0x38] sm:$0xff]
    %v761 = vld [vmem:[%s6 + $0x40] sm:$0xff]
    %v762 = vld [vmem:[%s6 + $0x48] sm:$0xff]
    %v763 = vld [vmem:[%s6 + $0x50] sm:$0xff]
    %v764 = vld [vmem:[%s6 + $0x58] sm:$0xff]
    %v765 = vld [vmem:[%s6 + $0x60] sm:$0xff]
    %v766 = vld [vmem:[%s6 + $0x68] sm:$0xff]
    %v767 = vld [vmem:[%s6 + $0x70] sm:$0xff]
    %v768 = vld [vmem:[%s6 + $0x78] sm:$0xff]
    %v769 = vld [vmem:[%s6 + $0x80] sm:$0xff]
    %v770 = vld [vmem:[%s6 + $0x88] sm:$0xff]
    %v771 = vld [vmem:[%s6 + $0x90] sm:$0xff]
    %v772 = vld [vmem:[%s6 + $0x98] sm:$0xff]
    %v773 = vld [vmem:[%s6 + $0xa0] sm:$0xff]
    %v774 = vld [vmem:[%s6 + $0xa8] sm:$0xff]
    %v775 = vld [vmem:[%s6 + $0xb0] sm:$0xff]
    %v776 = vld [vmem:[%s6 + $0xb8] sm:$0xff]
    %v777 = vld [vmem:[%s6 + $0xc0] sm:$0xff]
    %v778 = vld [vmem:[%s6 + $0xc8] sm:$0xff]
    %v779 = vld [vmem:[%s6 + $0xd0] sm:$0xff]
    %v780 = vld [vmem:[%s6 + $0xd8] sm:$0xff]
    %v781 = vld [vmem:[%s6 + $0xe0] sm:$0xff]
    %v782 = vld [vmem:[%s6 + $0xe8] sm:$0xff]
    %v783 = vld [vmem:[%s6 + $0xf0] sm:$0xff]
    %v784 = vld [vmem:[%s6 + $0xf8] sm:$0xff]
    %785 = vmatprep.subr.mxu0 0.0
    %786 = vmatpush1.msra.mxu0 %v753
    %787 = vmatprep.subr.mxu0 0.0
    %788 = vmatpush1.msra.mxu0 %v754
    %789 = vmatprep.subr.mxu0 0.0
    %790 = vmatpush1.msra.mxu0 %v755
    %791 = vmatprep.subr.mxu0 0.0
    %792 = vmatpush1.msra.mxu0 %v756
    %793 = vmatprep.subr.mxu0 0.0
    %794 = vmatpush1.msra.mxu0 %v757
    %795 = vmatprep.subr.mxu0 0.0
    %796 = vmatpush1.msra.mxu0 %v758
    %797 = vmatprep.subr.mxu0 0.0
    %798 = vmatpush1.msra.mxu0 %v759
    %799 = vmatprep.subr.mxu0 0.0
    %800 = vmatpush1.msra.mxu0 %v760
    %801 = vmatprep.subr.mxu0 0.0
    %802 = vmatpush1.msra.mxu0 0.0
    %803 = vmatprep.subr.mxu0 0.0
    %804 = vmatpush1.msra.mxu0 0.0
    %805 = vmatprep.subr.mxu0 0.0
    %806 = vmatpush1.msra.mxu0 0.0
    %807 = vmatprep.subr.mxu0 0.0
    %808 = vmatpush1.msra.mxu0 0.0
    %809 = vmatprep.subr.mxu0 0.0
    %810 = vmatpush1.msra.mxu0 0.0
    %811 = vmatprep.subr.mxu0 0.0
    %812 = vmatpush1.msra.mxu0 0.0
    %813 = vmatprep.subr.mxu0 0.0
    %814 = vmatpush1.msra.mxu0 0.0
    %815 = vmatprep.subr.mxu0 0.0
    %816 = vmatpush1.msra.mxu0 0.0
    %817 = vmatprep.subr.mxu0 0.0
    %818 = vmatpush1.msra.mxu0 0.0
    %819 = vmatprep.subr.mxu0 0.0
    %820 = vmatpush1.msra.mxu0 0.0
    %821 = vmatprep.subr.mxu0 0.0
    %822 = vmatpush1.msra.mxu0 0.0
    %823 = vmatprep.subr.mxu0 0.0
    %824 = vmatpush1.msra.mxu0 0.0
    %825 = vmatprep.subr.mxu0 0.0
    %826 = vmatpush1.msra.mxu0 0.0
    %827 = vmatprep.subr.mxu0 0.0
    %828 = vmatpush1.msra.mxu0 0.0
    %829 = vmatprep.subr.mxu0 0.0
    %830 = vmatpush1.msra.mxu0 0.0
    %831 = vmatprep.subr.mxu0 0.0
    %832 = vmatpush1.msra.mxu0 0.0
    %833 = vmatprep.subr.mxu0 0.0
    %834 = vmatpush1.msra.mxu0 0.0
    %835 = vmatprep.subr.mxu0 0.0
    %836 = vmatpush1.msra.mxu0 0.0
    %837 = vmatprep.subr.mxu0 0.0
    %838 = vmatpush1.msra.mxu0 0.0
    %839 = vmatprep.subr.mxu0 0.0
    %840 = vmatpush1.msra.mxu0 0.0
    %841 = vmatprep.subr.mxu0 0.0
    %842 = vmatpush1.msra.mxu0 0.0
    %843 = vmatprep.subr.mxu0 0.0
    %844 = vmatpush1.msra.mxu0 0.0
    %845 = vmatprep.subr.mxu0 0.0
    %846 = vmatpush1.msra.mxu0 0.0
    %847 = vmatprep.subr.mxu0 0.0
    %848 = vmatpush1.msra.mxu0 0.0
    %849 = vmatprep.mubr.f32.mxu0 0.0
    %850 = vmatmul.mubr.f32.gmra.mrb[0].mxu0 %v116
    %v851 = vpop.f32.mrb[0].mxu0
    %v852 = vadd.f32 0.0, %v851
    %v853 = vpop.f32.mrb[0].mxu0
    %854 = vmatprep.mubr.f32.mxu0 0.0
    %855 = vmatmul.mubr.f32.gmra.mrb[0].mxu0 %v119
    %v856 = vpop.f32.mrb[0].mxu0
    %v857 = vadd.f32 0.0, %v856
    %v858 = vpop.f32.mrb[0].mxu0
    %859 = vdwg.mxu0
    %860 = vmatprep.subr.mxu0 0.0
    %861 = vmatpush1.msra.mxu0 %v761
    %862 = vmatprep.subr.mxu0 0.0
    %863 = vmatpush1.msra.mxu0 %v762
    %864 = vmatprep.subr.mxu0 0.0
    %865 = vmatpush1.msra.mxu0 %v763
    %866 = vmatprep.subr.mxu0 0.0
    %867 = vmatpush1.msra.mxu0 %v764
    %868 = vmatprep.subr.mxu0 0.0
    %869 = vmatpush1.msra.mxu0 %v765
    %870 = vmatprep.subr.mxu0 0.0
    %871 = vmatpush1.msra.mxu0 %v766
    %872 = vmatprep.subr.mxu0 0.0
    %873 = vmatpush1.msra.mxu0 %v767
    %874 = vmatprep.subr.mxu0 0.0
    %875 = vmatpush1.msra.mxu0 %v768
    %876 = vmatprep.subr.mxu0 0.0
    %877 = vmatpush1.msra.mxu0 0.0
    %878 = vmatprep.subr.mxu0 0.0
    %879 = vmatpush1.msra.mxu0 0.0
    %880 = vmatprep.subr.mxu0 0.0
    %881 = vmatpush1.msra.mxu0 0.0
    %882 = vmatprep.subr.mxu0 0.0
    %883 = vmatpush1.msra.mxu0 0.0
    %884 = vmatprep.subr.mxu0 0.0
    %885 = vmatpush1.msra.mxu0 0.0
    %886 = vmatprep.subr.mxu0 0.0
    %887 = vmatpush1.msra.mxu0 0.0
    %888 = vmatprep.subr.mxu0 0.0
    %889 = vmatpush1.msra.mxu0 0.0
    %890 = vmatprep.subr.mxu0 0.0
    %891 = vmatpush1.msra.mxu0 0.0
    %892 = vmatprep.subr.mxu0 0.0
    %893 = vmatpush1.msra.mxu0 0.0
    %894 = vmatprep.subr.mxu0 0.0
    %895 = vmatpush1.msra.mxu0 0.0
    %896 = vmatprep.subr.mxu0 0.0
    %897 = vmatpush1.msra.mxu0 0.0
    %898 = vmatprep.subr.mxu0 0.0
    %899 = vmatpush1.msra.mxu0 0.0
    %900 = vmatprep.subr.mxu0 0.0
    %901 = vmatpush1.msra.mxu0 0.0
    %902 = vmatprep.subr.mxu0 0.0
    %903 = vmatpush1.msra.mxu0 0.0
    %904 = vmatprep.subr.mxu0 0.0
    %905 = vmatpush1.msra.mxu0 0.0
    %906 = vmatprep.subr.mxu0 0.0
    %907 = vmatpush1.msra.mxu0 0.0
    %908 = vmatprep.subr.mxu0 0.0
    %909 = vmatpush1.msra.mxu0 0.0
    %910 = vmatprep.subr.mxu0 0.0
    %911 = vmatpush1.msra.mxu0 0.0
    %912 = vmatprep.subr.mxu0 0.0
    %913 = vmatpush1.msra.mxu0 0.0
    %914 = vmatprep.subr.mxu0 0.0
    %915 = vmatpush1.msra.mxu0 0.0
    %916 = vmatprep.subr.mxu0 0.0
    %917 = vmatpush1.msra.mxu0 0.0
    %918 = vmatprep.subr.mxu0 0.0
    %919 = vmatpush1.msra.mxu0 0.0
    %920 = vmatprep.subr.mxu0 0.0
    %921 = vmatpush1.msra.mxu0 0.0
    %922 = vmatprep.subr.mxu0 0.0
    %923 = vmatpush1.msra.mxu0 0.0
    %924 = vmatprep.mubr.f32.mxu0 0.0
    %925 = vmatmul.mubr.f32.gmra.mrb[0].mxu0 %v116
    %v926 = vpop.f32.mrb[0].mxu0
    %v927 = vadd.f32 0.0, %v926
    %v928 = vpop.f32.mrb[0].mxu0
    %929 = vmatprep.mubr.f32.mxu0 0.0
    %930 = vmatmul.mubr.f32.gmra.mrb[0].mxu0 %v119
    %v931 = vpop.f32.mrb[0].mxu0
    %v932 = vadd.f32 0.0, %v931
    %v933 = vpop.f32.mrb[0].mxu0
    %934 = vdwg.mxu0
    %935 = vmatprep.subr.mxu0 0.0
    %936 = vmatpush1.msra.mxu0 %v769
    %937 = vmatprep.subr.mxu0 0.0
    %938 = vmatpush1.msra.mxu0 %v770
    %939 = vmatprep.subr.mxu0 0.0
    %940 = vmatpush1.msra.mxu0 %v771
    %941 = vmatprep.subr.mxu0 0.0
    %942 = vmatpush1.msra.mxu0 %v772
    %943 = vmatprep.subr.mxu0 0.0
    %944 = vmatpush1.msra.mxu0 %v773
    %945 = vmatprep.subr.mxu0 0.0
    %946 = vmatpush1.msra.mxu0 %v774
    %947 = vmatprep.subr.mxu0 0.0
    %948 = vmatpush1.msra.mxu0 %v775
    %949 = vmatprep.subr.mxu0 0.0
    %950 = vmatpush1.msra.mxu0 %v776
    %951 = vmatprep.subr.mxu0 0.0
    %952 = vmatpush1.msra.mxu0 0.0
    %953 = vmatprep.subr.mxu0 0.0
    %954 = vmatpush1.msra.mxu0 0.0
    %955 = vmatprep.subr.mxu0 0.0
    %956 = vmatpush1.msra.mxu0 0.0
    %957 = vmatprep.subr.mxu0 0.0
    %958 = vmatpush1.msra.mxu0 0.0
    %959 = vmatprep.subr.mxu0 0.0
    %960 = vmatpush1.msra.mxu0 0.0
    %961 = vmatprep.subr.mxu0 0.0
    %962 = vmatpush1.msra.mxu0 0.0
    %963 = vmatprep.subr.mxu0 0.0
    %964 = vmatpush1.msra.mxu0 0.0
    %965 = vmatprep.subr.mxu0 0.0
    %966 = vmatpush1.msra.mxu0 0.0
    %967 = vmatprep.subr.mxu0 0.0
    %968 = vmatpush1.msra.mxu0 0.0
    %969 = vmatprep.subr.mxu0 0.0
    %970 = vmatpush1.msra.mxu0 0.0
    %971 = vmatprep.subr.mxu0 0.0
    %972 = vmatpush1.msra.mxu0 0.0
    %973 = vmatprep.subr.mxu0 0.0
    %974 = vmatpush1.msra.mxu0 0.0
    %975 = vmatprep.subr.mxu0 0.0
    %976 = vmatpush1.msra.mxu0 0.0
    %977 = vmatprep.subr.mxu0 0.0
    %978 = vmatpush1.msra.mxu0 0.0
    %979 = vmatprep.subr.mxu0 0.0
    %980 = vmatpush1.msra.mxu0 0.0
    %981 = vmatprep.subr.mxu0 0.0
    %982 = vmatpush1.msra.mxu0 0.0
    %983 = vmatprep.subr.mxu0 0.0
    %984 = vmatpush1.msra.mxu0 0.0
    %985 = vmatprep.subr.mxu0 0.0
    %986 = vmatpush1.msra.mxu0 0.0
    %987 = vmatprep.subr.mxu0 0.0
    %988 = vmatpush1.msra.mxu0 0.0
    %989 = vmatprep.subr.mxu0 0.0
    %990 = vmatpush1.msra.mxu0 0.0
    %991 = vmatprep.subr.mxu0 0.0
    %992 = vmatpush1.msra.mxu0 0.0
    %993 = vmatprep.subr.mxu0 0.0
    %994 = vmatpush1.msra.mxu0 0.0
    %995 = vmatprep.subr.mxu0 0.0
    %996 = vmatpush1.msra.mxu0 0.0
    %997 = vmatprep.subr.mxu0 0.0
    %998 = vmatpush1.msra.mxu0 0.0
    %999 = vmatprep.mubr.f32.mxu0 0.0
    %1000 = vmatmul.mubr.f32.gmra.mrb[0].mxu0 %v116
    %v1001 = vpop.f32.mrb[0].mxu0
    %v1002 = vadd.f32 0.0, %v1001
    %v1003 = vpop.f32.mrb[0].mxu0
    %1004 = vmatprep.mubr.f32.mxu0 0.0
    %1005 = vmatmul.mubr.f32.gmra.mrb[0].mxu0 %v119
    %v1006 = vpop.f32.mrb[0].mxu0
    %v1007 = vadd.f32 0.0, %v1006
    %v1008 = vpop.f32.mrb[0].mxu0
    %1009 = vdwg.mxu0
    %1010 = vmatprep.subr.mxu0 0.0
    %1011 = vmatpush1.msra.mxu0 %v777
    %1012 = vmatprep.subr.mxu0 0.0
    %1013 = vmatpush1.msra.mxu0 %v778
    %1014 = vmatprep.subr.mxu0 0.0
    %1015 = vmatpush1.msra.mxu0 %v779
    %1016 = vmatprep.subr.mxu0 0.0
    %1017 = vmatpush1.msra.mxu0 %v780
    %1018 = vmatprep.subr.mxu0 0.0
    %1019 = vmatpush1.msra.mxu0 %v781
    %1020 = vmatprep.subr.mxu0 0.0
    %1021 = vmatpush1.msra.mxu0 %v782
    %1022 = vmatprep.subr.mxu0 0.0
    %1023 = vmatpush1.msra.mxu0 %v783
    %1024 = vmatprep.subr.mxu0 0.0
    %1025 = vmatpush1.msra.mxu0 %v784
    %1026 = vmatprep.subr.mxu0 0.0
    %1027 = vmatpush1.msra.mxu0 0.0
    %1028 = vmatprep.subr.mxu0 0.0
    %1029 = vmatpush1.msra.mxu0 0.0
    %1030 = vmatprep.subr.mxu0 0.0
    %1031 = vmatpush1.msra.mxu0 0.0
    %1032 = vmatprep.subr.mxu0 0.0
    %1033 = vmatpush1.msra.mxu0 0.0
    %1034 = vmatprep.subr.mxu0 0.0
    %1035 = vmatpush1.msra.mxu0 0.0
    %1036 = vmatprep.subr.mxu0 0.0
    %1037 = vmatpush1.msra.mxu0 0.0
    %1038 = vmatprep.subr.mxu0 0.0
    %1039 = vmatpush1.msra.mxu0 0.0
    %1040 = vmatprep.subr.mxu0 0.0
    %1041 = vmatpush1.msra.mxu0 0.0
    %1042 = vmatprep.subr.mxu0 0.0
    %1043 = vmatpush1.msra.mxu0 0.0
    %1044 = vmatprep.subr.mxu0 0.0
    %1045 = vmatpush1.msra.mxu0 0.0
    %1046 = vmatprep.subr.mxu0 0.0
    %1047 = vmatpush1.msra.mxu0 0.0
    %1048 = vmatprep.subr.mxu0 0.0
    %1049 = vmatpush1.msra.mxu0 0.0
    %1050 = vmatprep.subr.mxu0 0.0
    %1051 = vmatpush1.msra.mxu0 0.0
    %1052 = vmatprep.subr.mxu0 0.0
    %1053 = vmatpush1.msra.mxu0 0.0
    %1054 = vmatprep.subr.mxu0 0.0
    %1055 = vmatpush1.msra.mxu0 0.0
    %1056 = vmatprep.subr.mxu0 0.0
    %1057 = vmatpush1.msra.mxu0 0.0
    %1058 = vmatprep.subr.mxu0 0.0
    %1059 = vmatpush1.msra.mxu0 0.0
    %1060 = vmatprep.subr.mxu0 0.0
    %1061 = vmatpush1.msra.mxu0 0.0
    %1062 = vmatprep.subr.mxu0 0.0
    %1063 = vmatpush1.msra.mxu0 0.0
    %1064 = vmatprep.subr.mxu0 0.0
    %1065 = vmatpush1.msra.mxu0 0.0
    %1066 = vmatprep.subr.mxu0 0.0
    %1067 = vmatpush1.msra.mxu0 0.0
    %1068 = vmatprep.subr.mxu0 0.0
    %1069 = vmatpush1.msra.mxu0 0.0
    %1070 = vmatprep.subr.mxu0 0.0
    %1071 = vmatpush1.msra.mxu0 0.0
    %1072 = vmatprep.subr.mxu0 0.0
    %1073 = vmatpush1.msra.mxu0 0.0
    %1074 = vmatprep.mubr.f32.mxu0 0.0
    %1075 = vmatmul.mubr.f32.gmra.mrb[0].mxu0 %v116
    %v1076 = vpop.f32.mrb[0].mxu0
    %v1077 = vadd.f32 0.0, %v1076
    %v1078 = vpop.f32.mrb[0].mxu0
    %1079 = vmatprep.mubr.f32.mxu0 0.0
    %1080 = vmatmul.mubr.f32.gmra.mrb[0].mxu0 %v119
    %v1081 = vpop.f32.mrb[0].mxu0
    %v1082 = vadd.f32 0.0, %v1081
    %v1083 = vpop.f32.mrb[0].mxu0
    %1084 = vdwg.mxu0
    %v1085 = vsub.f32 0.0, %v188
    %v1086 = vsub.f32 0.0, %v193
    %v1087 = vsub.f32 0.0, %v263
    %v1088 = vsub.f32 0.0, %v268
    %v1089 = vsub.f32 0.0, %v338
    %v1090 = vsub.f32 0.0, %v343
    %v1091 = vsub.f32 0.0, %v413
    %v1092 = vsub.f32 0.0, %v418
    %1101 = vrot.lane.b32.xlu0 %v1085, 120
    %v1102 = vpop.permute.xlu0 %1101
    %1103 = vrot.lane.b32.xlu0 %v1086, 120
    %v1104 = vpop.permute.xlu0 %1103
    %1105 = vrot.lane.b32.xlu0 %v1087, 120
    %v1106 = vpop.permute.xlu0 %1105
    %1107 = vrot.lane.b32.xlu0 %v1088, 120
    %v1108 = vpop.permute.xlu0 %1107
    %1109 = vrot.lane.b32.xlu0 %v1089, 120
    %v1110 = vpop.permute.xlu0 %1109
    %1111 = vrot.lane.b32.xlu0 %v1090, 120
    %v1112 = vpop.permute.xlu0 %1111
    %1113 = vrot.lane.b32.xlu0 %v1091, 120
    %v1114 = vpop.permute.xlu0 %1113
    %1115 = vrot.lane.b32.xlu0 %v1092, 120
    %v1116 = vpop.permute.xlu0 %1115
    %1133 = vrot.lane.b32.xlu0 %v188, 8
    %v1134 = vpop.permute.xlu0 %1133
    %1135 = vrot.lane.b32.xlu0 %v193, 8
    %v1136 = vpop.permute.xlu0 %1135
    %1137 = vrot.lane.b32.xlu0 %v263, 8
    %v1138 = vpop.permute.xlu0 %1137
    %1139 = vrot.lane.b32.xlu0 %v268, 8
    %v1140 = vpop.permute.xlu0 %1139
    %1141 = vrot.lane.b32.xlu0 %v338, 8
    %v1142 = vpop.permute.xlu0 %1141
    %1143 = vrot.lane.b32.xlu0 %v343, 8
    %v1144 = vpop.permute.xlu0 %1143
    %1145 = vrot.lane.b32.xlu0 %v413, 8
    %v1146 = vpop.permute.xlu0 %1145
    %1147 = vrot.lane.b32.xlu0 %v418, 8
    %v1148 = vpop.permute.xlu0 %1147
    %vm1157 = vcmask 64512
    %v1158 = vsel %vm1157, %v1102, %v1134
    %v1159 = vsel %vm1157, %v1104, %v1136
    %v1160 = vsel %vm1157, %v1106, %v1138
    %v1161 = vsel %vm1157, %v1108, %v1140
    %v1162 = vsel %vm1157, %v1110, %v1142
    %v1163 = vsel %vm1157, %v1112, %v1144
    %v1164 = vsel %vm1157, %v1114, %v1146
    %v1165 = vsel %vm1157, %v1116, %v1148
    %v1166 = vmul.f32 %v188, %v47
    %v1167 = vmul.f32 %v193, %v48
    %v1168 = vmul.f32 %v263, %v47
    %v1169 = vmul.f32 %v268, %v48
    %v1170 = vmul.f32 %v338, %v47
    %v1171 = vmul.f32 %v343, %v48
    %v1172 = vmul.f32 %v413, %v47
    %v1173 = vmul.f32 %v418, %v48
    %v1174 = vmul.f32 %v1158, %v49
    %v1175 = vmul.f32 %v1159, %v50
    %v1176 = vmul.f32 %v1160, %v49
    %v1177 = vmul.f32 %v1161, %v50
    %v1178 = vmul.f32 %v1162, %v49
    %v1179 = vmul.f32 %v1163, %v50
    %v1180 = vmul.f32 %v1164, %v49
    %v1181 = vmul.f32 %v1165, %v50
    %v1182 = vadd.f32 %v1166, %v1174
    %v1183 = vadd.f32 %v1167, %v1175
    %v1184 = vadd.f32 %v1168, %v1176
    %v1185 = vadd.f32 %v1169, %v1177
    %v1186 = vadd.f32 %v1170, %v1178
    %v1187 = vadd.f32 %v1171, %v1179
    %v1188 = vadd.f32 %v1172, %v1180
    %v1189 = vadd.f32 %v1173, %v1181
    %v1190 = vsub.f32 0.0, %v520
    %v1191 = vsub.f32 0.0, %v525
    %v1192 = vsub.f32 0.0, %v595
    %v1193 = vsub.f32 0.0, %v600
    %v1194 = vsub.f32 0.0, %v670
    %v1195 = vsub.f32 0.0, %v675
    %v1196 = vsub.f32 0.0, %v745
    %v1197 = vsub.f32 0.0, %v750
    %1206 = vrot.lane.b32.xlu0 %v1190, 120
    %v1207 = vpop.permute.xlu0 %1206
    %1208 = vrot.lane.b32.xlu0 %v1191, 120
    %v1209 = vpop.permute.xlu0 %1208
    %1210 = vrot.lane.b32.xlu0 %v1192, 120
    %v1211 = vpop.permute.xlu0 %1210
    %1212 = vrot.lane.b32.xlu0 %v1193, 120
    %v1213 = vpop.permute.xlu0 %1212
    %1214 = vrot.lane.b32.xlu0 %v1194, 120
    %v1215 = vpop.permute.xlu0 %1214
    %1216 = vrot.lane.b32.xlu0 %v1195, 120
    %v1217 = vpop.permute.xlu0 %1216
    %1218 = vrot.lane.b32.xlu0 %v1196, 120
    %v1219 = vpop.permute.xlu0 %1218
    %1220 = vrot.lane.b32.xlu0 %v1197, 120
    %v1221 = vpop.permute.xlu0 %1220
    %1238 = vrot.lane.b32.xlu0 %v520, 8
    %v1239 = vpop.permute.xlu0 %1238
    %1240 = vrot.lane.b32.xlu0 %v525, 8
    %v1241 = vpop.permute.xlu0 %1240
    %1242 = vrot.lane.b32.xlu0 %v595, 8
    %v1243 = vpop.permute.xlu0 %1242
    %1244 = vrot.lane.b32.xlu0 %v600, 8
    %v1245 = vpop.permute.xlu0 %1244
    %1246 = vrot.lane.b32.xlu0 %v670, 8
    %v1247 = vpop.permute.xlu0 %1246
    %1248 = vrot.lane.b32.xlu0 %v675, 8
    %v1249 = vpop.permute.xlu0 %1248
    %1250 = vrot.lane.b32.xlu0 %v745, 8
    %v1251 = vpop.permute.xlu0 %1250
    %1252 = vrot.lane.b32.xlu0 %v750, 8
    %v1253 = vpop.permute.xlu0 %1252
    %v1262 = vsel %vm1157, %v1207, %v1239
    %v1263 = vsel %vm1157, %v1209, %v1241
    %v1264 = vsel %vm1157, %v1211, %v1243
    %v1265 = vsel %vm1157, %v1213, %v1245
    %v1266 = vsel %vm1157, %v1215, %v1247
    %v1267 = vsel %vm1157, %v1217, %v1249
    %v1268 = vsel %vm1157, %v1219, %v1251
    %v1269 = vsel %vm1157, %v1221, %v1253
    %v1270 = vmul.f32 %v520, %v47
    %v1271 = vmul.f32 %v525, %v48
    %v1272 = vmul.f32 %v595, %v47
    %v1273 = vmul.f32 %v600, %v48
    %v1274 = vmul.f32 %v670, %v47
    %v1275 = vmul.f32 %v675, %v48
    %v1276 = vmul.f32 %v745, %v47
    %v1277 = vmul.f32 %v750, %v48
    %v1278 = vmul.f32 %v1262, %v49
    %v1279 = vmul.f32 %v1263, %v50
    %v1280 = vmul.f32 %v1264, %v49
    %v1281 = vmul.f32 %v1265, %v50
    %v1282 = vmul.f32 %v1266, %v49
    %v1283 = vmul.f32 %v1267, %v50
    %v1284 = vmul.f32 %v1268, %v49
    %v1285 = vmul.f32 %v1269, %v50
    %v1286 = vadd.f32 %v1270, %v1278
    %v1287 = vadd.f32 %v1271, %v1279
    %v1288 = vadd.f32 %v1272, %v1280
    %v1289 = vadd.f32 %v1273, %v1281
    %v1290 = vadd.f32 %v1274, %v1282
    %v1291 = vadd.f32 %v1275, %v1283
    %v1292 = vadd.f32 %v1276, %v1284
    %v1293 = vadd.f32 %v1277, %v1285
    %vm1294 = vcmask 130048
    %v1296 = vsel %vm1294, %v1182, 0
    %v1299 = vsel %vm1294, %v1286, 0
    %1301 = vmatprep.subr.mxu0 0.0
    %1302 = vmatpush1.xpose.msra.mxu0 %v1299
    %1303 = vmatprep.subr.mxu0 0.0
    %1304 = vmatpush1.xpose.msra.mxu0 0.0
    %1305 = vmatprep.subr.mxu0 0.0
    %1306 = vmatpush1.xpose.msra.mxu0 0.0
    %1307 = vmatprep.subr.mxu0 0.0
    %1308 = vmatpush1.xpose.msra.mxu0 0.0
    %1309 = vmatprep.subr.mxu0 0.0
    %1310 = vmatpush1.xpose.msra.mxu0 0.0
    %1311 = vmatprep.subr.mxu0 0.0
    %1312 = vmatpush1.xpose.msra.mxu0 0.0
    %1313 = vmatprep.subr.mxu0 0.0
    %1314 = vmatpush1.xpose.msra.mxu0 0.0
    %1315 = vmatprep.subr.mxu0 0.0
    %1316 = vmatpush1.xpose.msra.mxu0 0.0
    %1317 = vmatprep.subr.mxu0 0.0
    %1318 = vmatpush1.xpose.msra.mxu0 0.0
    %1319 = vmatprep.subr.mxu0 0.0
    %1320 = vmatpush1.xpose.msra.mxu0 0.0
    %1321 = vmatprep.subr.mxu0 0.0
    %1322 = vmatpush1.xpose.msra.mxu0 0.0
    %1323 = vmatprep.subr.mxu0 0.0
    %1324 = vmatpush1.xpose.msra.mxu0 0.0
    %1325 = vmatprep.subr.mxu0 0.0
    %1326 = vmatpush1.xpose.msra.mxu0 0.0
    %1327 = vmatprep.subr.mxu0 0.0
    %1328 = vmatpush1.xpose.msra.mxu0 0.0
    %1329 = vmatprep.subr.mxu0 0.0
    %1330 = vmatpush1.xpose.msra.mxu0 0.0
    %1331 = vmatprep.subr.mxu0 0.0
    %1332 = vmatpush1.xpose.msra.mxu0 0.0
    %1333 = vmatprep.subr.mxu0 0.0
    %1334 = vmatpush1.xpose.msra.mxu0 0.0
    %1335 = vmatprep.subr.mxu0 0.0
    %1336 = vmatpush1.xpose.msra.mxu0 0.0
    %1337 = vmatprep.subr.mxu0 0.0
    %1338 = vmatpush1.xpose.msra.mxu0 0.0
    %1339 = vmatprep.subr.mxu0 0.0
    %1340 = vmatpush1.xpose.msra.mxu0 0.0
    %1341 = vmatprep.subr.mxu0 0.0
    %1342 = vmatpush1.xpose.msra.mxu0 0.0
    %1343 = vmatprep.subr.mxu0 0.0
    %1344 = vmatpush1.xpose.msra.mxu0 0.0
    %1345 = vmatprep.subr.mxu0 0.0
    %1346 = vmatpush1.xpose.msra.mxu0 0.0
    %1347 = vmatprep.subr.mxu0 0.0
    %1348 = vmatpush1.xpose.msra.mxu0 0.0
    %1349 = vmatprep.subr.mxu0 0.0
    %1350 = vmatpush1.xpose.msra.mxu0 0.0
    %1351 = vmatprep.subr.mxu0 0.0
    %1352 = vmatpush1.xpose.msra.mxu0 0.0
    %1353 = vmatprep.subr.mxu0 0.0
    %1354 = vmatpush1.xpose.msra.mxu0 0.0
    %1355 = vmatprep.subr.mxu0 0.0
    %1356 = vmatpush1.xpose.msra.mxu0 0.0
    %1357 = vmatprep.subr.mxu0 0.0
    %1358 = vmatpush1.xpose.msra.mxu0 0.0
    %1359 = vmatprep.subr.mxu0 0.0
    %1360 = vmatpush1.xpose.msra.mxu0 0.0
    %1361 = vmatprep.subr.mxu0 0.0
    %1362 = vmatpush1.xpose.msra.mxu0 0.0
    %1363 = vmatprep.subr.mxu0 0.0
    %1364 = vmatpush1.xpose.msra.mxu0 0.0
    %1365 = vmatprep.mubr.f32.mxu0 0.0
    %1366 = vmatmul.mubr.f32.gmra.mrb[0].mxu0 %v1296
    %v1367 = vpop.f32.mrb[0].mxu0
    %v1368 = vadd.f32 0.0, %v1367
    %v1369 = vpop.f32.mrb[0].mxu0
    %1370 = vdwg.mxu0
    %v1372 = vsel %vm1294, %v1184, 0
    %v1375 = vsel %vm1294, %v1288, 0
    %1377 = vmatprep.subr.mxu0 0.0
    %1378 = vmatpush1.xpose.msra.mxu0 %v1375
    %1379 = vmatprep.subr.mxu0 0.0
    %1380 = vmatpush1.xpose.msra.mxu0 0.0
    %1381 = vmatprep.subr.mxu0 0.0
    %1382 = vmatpush1.xpose.msra.mxu0 0.0
    %1383 = vmatprep.subr.mxu0 0.0
    %1384 = vmatpush1.xpose.msra.mxu0 0.0
    %1385 = vmatprep.subr.mxu0 0.0
    %1386 = vmatpush1.xpose.msra.mxu0 0.0
    %1387 = vmatprep.subr.mxu0 0.0
    %1388 = vmatpush1.xpose.msra.mxu0 0.0
    %1389 = vmatprep.subr.mxu0 0.0
    %1390 = vmatpush1.xpose.msra.mxu0 0.0
    %1391 = vmatprep.subr.mxu0 0.0
    %1392 = vmatpush1.xpose.msra.mxu0 0.0
    %1393 = vmatprep.subr.mxu0 0.0
    %1394 = vmatpush1.xpose.msra.mxu0 0.0
    %1395 = vmatprep.subr.mxu0 0.0
    %1396 = vmatpush1.xpose.msra.mxu0 0.0
    %1397 = vmatprep.subr.mxu0 0.0
    %1398 = vmatpush1.xpose.msra.mxu0 0.0
    %1399 = vmatprep.subr.mxu0 0.0
    %1400 = vmatpush1.xpose.msra.mxu0 0.0
    %1401 = vmatprep.subr.mxu0 0.0
    %1402 = vmatpush1.xpose.msra.mxu0 0.0
    %1403 = vmatprep.subr.mxu0 0.0
    %1404 = vmatpush1.xpose.msra.mxu0 0.0
    %1405 = vmatprep.subr.mxu0 0.0
    %1406 = vmatpush1.xpose.msra.mxu0 0.0
    %1407 = vmatprep.subr.mxu0 0.0
    %1408 = vmatpush1.xpose.msra.mxu0 0.0
    %1409 = vmatprep.subr.mxu0 0.0
    %1410 = vmatpush1.xpose.msra.mxu0 0.0
    %1411 = vmatprep.subr.mxu0 0.0
    %1412 = vmatpush1.xpose.msra.mxu0 0.0
    %1413 = vmatprep.subr.mxu0 0.0
    %1414 = vmatpush1.xpose.msra.mxu0 0.0
    %1415 = vmatprep.subr.mxu0 0.0
    %1416 = vmatpush1.xpose.msra.mxu0 0.0
    %1417 = vmatprep.subr.mxu0 0.0
    %1418 = vmatpush1.xpose.msra.mxu0 0.0
    %1419 = vmatprep.subr.mxu0 0.0
    %1420 = vmatpush1.xpose.msra.mxu0 0.0
    %1421 = vmatprep.subr.mxu0 0.0
    %1422 = vmatpush1.xpose.msra.mxu0 0.0
    %1423 = vmatprep.subr.mxu0 0.0
    %1424 = vmatpush1.xpose.msra.mxu0 0.0
    %1425 = vmatprep.subr.mxu0 0.0
    %1426 = vmatpush1.xpose.msra.mxu0 0.0
    %1427 = vmatprep.subr.mxu0 0.0
    %1428 = vmatpush1.xpose.msra.mxu0 0.0
    %1429 = vmatprep.subr.mxu0 0.0
    %1430 = vmatpush1.xpose.msra.mxu0 0.0
    %1431 = vmatprep.subr.mxu0 0.0
    %1432 = vmatpush1.xpose.msra.mxu0 0.0
    %1433 = vmatprep.subr.mxu0 0.0
    %1434 = vmatpush1.xpose.msra.mxu0 0.0
    %1435 = vmatprep.subr.mxu0 0.0
    %1436 = vmatpush1.xpose.msra.mxu0 0.0
    %1437 = vmatprep.subr.mxu0 0.0
    %1438 = vmatpush1.xpose.msra.mxu0 0.0
    %1439 = vmatprep.subr.mxu0 0.0
    %1440 = vmatpush1.xpose.msra.mxu0 0.0
    %1441 = vmatprep.mubr.f32.mxu0 0.0
    %1442 = vmatmul.mubr.f32.gmra.mrb[0].mxu0 %v1372
    %v1443 = vpop.f32.mrb[0].mxu0
    %v1444 = vadd.f32 0.0, %v1443
    %v1445 = vpop.f32.mrb[0].mxu0
    %1446 = vdwg.mxu0
    %v1448 = vsel %vm1294, %v1186, 0
    %v1451 = vsel %vm1294, %v1290, 0
    %1453 = vmatprep.subr.mxu0 0.0
    %1454 = vmatpush1.xpose.msra.mxu0 %v1451
    %1455 = vmatprep.subr.mxu0 0.0
    %1456 = vmatpush1.xpose.msra.mxu0 0.0
    %1457 = vmatprep.subr.mxu0 0.0
    %1458 = vmatpush1.xpose.msra.mxu0 0.0
    %1459 = vmatprep.subr.mxu0 0.0
    %1460 = vmatpush1.xpose.msra.mxu0 0.0
    %1461 = vmatprep.subr.mxu0 0.0
    %1462 = vmatpush1.xpose.msra.mxu0 0.0
    %1463 = vmatprep.subr.mxu0 0.0
    %1464 = vmatpush1.xpose.msra.mxu0 0.0
    %1465 = vmatprep.subr.mxu0 0.0
    %1466 = vmatpush1.xpose.msra.mxu0 0.0
    %1467 = vmatprep.subr.mxu0 0.0
    %1468 = vmatpush1.xpose.msra.mxu0 0.0
    %1469 = vmatprep.subr.mxu0 0.0
    %1470 = vmatpush1.xpose.msra.mxu0 0.0
    %1471 = vmatprep.subr.mxu0 0.0
    %1472 = vmatpush1.xpose.msra.mxu0 0.0
    %1473 = vmatprep.subr.mxu0 0.0
    %1474 = vmatpush1.xpose.msra.mxu0 0.0
    %1475 = vmatprep.subr.mxu0 0.0
    %1476 = vmatpush1.xpose.msra.mxu0 0.0
    %1477 = vmatprep.subr.mxu0 0.0
    %1478 = vmatpush1.xpose.msra.mxu0 0.0
    %1479 = vmatprep.subr.mxu0 0.0
    %1480 = vmatpush1.xpose.msra.mxu0 0.0
    %1481 = vmatprep.subr.mxu0 0.0
    %1482 = vmatpush1.xpose.msra.mxu0 0.0
    %1483 = vmatprep.subr.mxu0 0.0
    %1484 = vmatpush1.xpose.msra.mxu0 0.0
    %1485 = vmatprep.subr.mxu0 0.0
    %1486 = vmatpush1.xpose.msra.mxu0 0.0
    %1487 = vmatprep.subr.mxu0 0.0
    %1488 = vmatpush1.xpose.msra.mxu0 0.0
    %1489 = vmatprep.subr.mxu0 0.0
    %1490 = vmatpush1.xpose.msra.mxu0 0.0
    %1491 = vmatprep.subr.mxu0 0.0
    %1492 = vmatpush1.xpose.msra.mxu0 0.0
    %1493 = vmatprep.subr.mxu0 0.0
    %1494 = vmatpush1.xpose.msra.mxu0 0.0
    %1495 = vmatprep.subr.mxu0 0.0
    %1496 = vmatpush1.xpose.msra.mxu0 0.0
    %1497 = vmatprep.subr.mxu0 0.0
    %1498 = vmatpush1.xpose.msra.mxu0 0.0
    %1499 = vmatprep.subr.mxu0 0.0
    %1500 = vmatpush1.xpose.msra.mxu0 0.0
    %1501 = vmatprep.subr.mxu0 0.0
    %1502 = vmatpush1.xpose.msra.mxu0 0.0
    %1503 = vmatprep.subr.mxu0 0.0
    %1504 = vmatpush1.xpose.msra.mxu0 0.0
    %1505 = vmatprep.subr.mxu0 0.0
    %1506 = vmatpush1.xpose.msra.mxu0 0.0
    %1507 = vmatprep.subr.mxu0 0.0
    %1508 = vmatpush1.xpose.msra.mxu0 0.0
    %1509 = vmatprep.subr.mxu0 0.0
    %1510 = vmatpush1.xpose.msra.mxu0 0.0
    %1511 = vmatprep.subr.mxu0 0.0
    %1512 = vmatpush1.xpose.msra.mxu0 0.0
    %1513 = vmatprep.subr.mxu0 0.0
    %1514 = vmatpush1.xpose.msra.mxu0 0.0
    %1515 = vmatprep.subr.mxu0 0.0
    %1516 = vmatpush1.xpose.msra.mxu0 0.0
    %1517 = vmatprep.mubr.f32.mxu0 0.0
    %1518 = vmatmul.mubr.f32.gmra.mrb[0].mxu0 %v1448
    %v1519 = vpop.f32.mrb[0].mxu0
    %v1520 = vadd.f32 0.0, %v1519
    %v1521 = vpop.f32.mrb[0].mxu0
    %1522 = vdwg.mxu0
    %v1524 = vsel %vm1294, %v1188, 0
    %v1527 = vsel %vm1294, %v1292, 0
    %1529 = vmatprep.subr.mxu0 0.0
    %1530 = vmatpush1.xpose.msra.mxu0 %v1527
    %1531 = vmatprep.subr.mxu0 0.0
    %1532 = vmatpush1.xpose.msra.mxu0 0.0
    %1533 = vmatprep.subr.mxu0 0.0
    %1534 = vmatpush1.xpose.msra.mxu0 0.0
    %1535 = vmatprep.subr.mxu0 0.0
    %1536 = vmatpush1.xpose.msra.mxu0 0.0
    %1537 = vmatprep.subr.mxu0 0.0
    %1538 = vmatpush1.xpose.msra.mxu0 0.0
    %1539 = vmatprep.subr.mxu0 0.0
    %1540 = vmatpush1.xpose.msra.mxu0 0.0
    %1541 = vmatprep.subr.mxu0 0.0
    %1542 = vmatpush1.xpose.msra.mxu0 0.0
    %1543 = vmatprep.subr.mxu0 0.0
    %1544 = vmatpush1.xpose.msra.mxu0 0.0
    %1545 = vmatprep.subr.mxu0 0.0
    %1546 = vmatpush1.xpose.msra.mxu0 0.0
    %1547 = vmatprep.subr.mxu0 0.0
    %1548 = vmatpush1.xpose.msra.mxu0 0.0
    %1549 = vmatprep.subr.mxu0 0.0
    %1550 = vmatpush1.xpose.msra.mxu0 0.0
    %1551 = vmatprep.subr.mxu0 0.0
    %1552 = vmatpush1.xpose.msra.mxu0 0.0
    %1553 = vmatprep.subr.mxu0 0.0
    %1554 = vmatpush1.xpose.msra.mxu0 0.0
    %1555 = vmatprep.subr.mxu0 0.0
    %1556 = vmatpush1.xpose.msra.mxu0 0.0
    %1557 = vmatprep.subr.mxu0 0.0
    %1558 = vmatpush1.xpose.msra.mxu0 0.0
    %1559 = vmatprep.subr.mxu0 0.0
    %1560 = vmatpush1.xpose.msra.mxu0 0.0
    %1561 = vmatprep.subr.mxu0 0.0
    %1562 = vmatpush1.xpose.msra.mxu0 0.0
    %1563 = vmatprep.subr.mxu0 0.0
    %1564 = vmatpush1.xpose.msra.mxu0 0.0
    %1565 = vmatprep.subr.mxu0 0.0
    %1566 = vmatpush1.xpose.msra.mxu0 0.0
    %1567 = vmatprep.subr.mxu0 0.0
    %1568 = vmatpush1.xpose.msra.mxu0 0.0
    %1569 = vmatprep.subr.mxu0 0.0
    %1570 = vmatpush1.xpose.msra.mxu0 0.0
    %1571 = vmatprep.subr.mxu0 0.0
    %1572 = vmatpush1.xpose.msra.mxu0 0.0
    %1573 = vmatprep.subr.mxu0 0.0
    %1574 = vmatpush1.xpose.msra.mxu0 0.0
    %1575 = vmatprep.subr.mxu0 0.0
    %1576 = vmatpush1.xpose.msra.mxu0 0.0
    %1577 = vmatprep.subr.mxu0 0.0
    %1578 = vmatpush1.xpose.msra.mxu0 0.0
    %1579 = vmatprep.subr.mxu0 0.0
    %1580 = vmatpush1.xpose.msra.mxu0 0.0
    %1581 = vmatprep.subr.mxu0 0.0
    %1582 = vmatpush1.xpose.msra.mxu0 0.0
    %1583 = vmatprep.subr.mxu0 0.0
    %1584 = vmatpush1.xpose.msra.mxu0 0.0
    %1585 = vmatprep.subr.mxu0 0.0
    %1586 = vmatpush1.xpose.msra.mxu0 0.0
    %1587 = vmatprep.subr.mxu0 0.0
    %1588 = vmatpush1.xpose.msra.mxu0 0.0
    %1589 = vmatprep.subr.mxu0 0.0
    %1590 = vmatpush1.xpose.msra.mxu0 0.0
    %1591 = vmatprep.subr.mxu0 0.0
    %1592 = vmatpush1.xpose.msra.mxu0 0.0
    %1593 = vmatprep.mubr.f32.mxu0 0.0
    %1594 = vmatmul.mubr.f32.gmra.mrb[0].mxu0 %v1524
    %v1595 = vpop.f32.mrb[0].mxu0
    %v1596 = vadd.f32 0.0, %v1595
    %v1597 = vpop.f32.mrb[0].mxu0
    %1598 = vdwg.mxu0
    %v1599 = vsel %vm55, 1, 0
    %vm1600 = vcmp.eq.s32.totalorder %v1599, 1
    %v1601 = vsel %vm1600, %v1368, -1e+30
    %v1602 = vsel %vm1600, %v1444, -1e+30
    %v1603 = vsel %vm1600, %v1520, -1e+30
    %v1604 = vsel %vm1600, %v1596, -1e+30
    %v1605 = vsel %vm1157, %v1601, -inf
    %1606 = vmax.xlane.f32.xlu0 %v1605
    %v1607 = vpop.xlane.xlu0 %1606
    %v1608 = vsel %vm1157, %v1602, -inf
    %1609 = vmax.xlane.f32.xlu0 %v1608
    %v1610 = vpop.xlane.xlu0 %1609
    %v1611 = vsel %vm1157, %v1603, -inf
    %1612 = vmax.xlane.f32.xlu0 %v1611
    %v1613 = vpop.xlane.xlu0 %1612
    %v1614 = vsel %vm1157, %v1604, -inf
    %1615 = vmax.xlane.f32.xlu0 %v1614
    %v1616 = vpop.xlane.xlu0 %1615
    %v1617 = vsub.f32 %v1601, %v1607
    %v1618 = vsub.f32 %v1602, %v1610
    %v1619 = vsub.f32 %v1603, %v1613
    %v1620 = vsub.f32 %v1604, %v1616
    %v1621 = vmul.f32 %v1617, 1.442695
    %v1622 = vpow.pop %v1621
    %v1623 = vmul.f32 %v1618, 1.442695
    %v1624 = vpow.pop %v1623
    %v1625 = vmul.f32 %v1619, 1.442695
    %v1626 = vpow.pop %v1625
    %v1627 = vmul.f32 %v1620, 1.442695
    %v1628 = vpow.pop %v1627
    %v1629 = vsel %vm1157, %v1622, 0.0
    %1630 = vadd.xlane.f32.xlu0 %v1629
    %v1631 = vpop.xlane.xlu0 %1630
    %v1632 = vsel %vm1157, %v1624, 0.0
    %1633 = vadd.xlane.f32.xlu0 %v1632
    %v1634 = vpop.xlane.xlu0 %1633
    %v1635 = vsel %vm1157, %v1626, 0.0
    %1636 = vadd.xlane.f32.xlu0 %v1635
    %v1637 = vpop.xlane.xlu0 %1636
    %v1638 = vsel %vm1157, %v1628, 0.0
    %1639 = vadd.xlane.f32.xlu0 %v1638
    %v1640 = vpop.xlane.xlu0 %1639
    %v1641 = vrcp.pop %v1631
    %v1642 = vrcp.pop %v1634
    %v1643 = vrcp.pop %v1637
    %v1644 = vrcp.pop %v1640
    %v1645 = vmul.f32 %v1622, %v1641
    %v1646 = vmul.f32 %v1624, %v1642
    %v1647 = vmul.f32 %v1626, %v1643
    %v1648 = vmul.f32 %v1628, %v1644
    %v1650 = vsel %vm1157, %v1645, 0
    %1652 = vmatprep.subr.mxu0 0.0
    %1653 = vmatpush1.msra.mxu0 %v852
    %1654 = vmatprep.subr.mxu0 0.0
    %1655 = vmatpush1.msra.mxu0 0.0
    %1656 = vmatprep.subr.mxu0 0.0
    %1657 = vmatpush1.msra.mxu0 0.0
    %1658 = vmatprep.subr.mxu0 0.0
    %1659 = vmatpush1.msra.mxu0 0.0
    %1660 = vmatprep.subr.mxu0 0.0
    %1661 = vmatpush1.msra.mxu0 0.0
    %1662 = vmatprep.subr.mxu0 0.0
    %1663 = vmatpush1.msra.mxu0 0.0
    %1664 = vmatprep.subr.mxu0 0.0
    %1665 = vmatpush1.msra.mxu0 0.0
    %1666 = vmatprep.subr.mxu0 0.0
    %1667 = vmatpush1.msra.mxu0 0.0
    %1668 = vmatprep.subr.mxu0 0.0
    %1669 = vmatpush1.msra.mxu0 0.0
    %1670 = vmatprep.subr.mxu0 0.0
    %1671 = vmatpush1.msra.mxu0 0.0
    %1672 = vmatprep.subr.mxu0 0.0
    %1673 = vmatpush1.msra.mxu0 0.0
    %1674 = vmatprep.subr.mxu0 0.0
    %1675 = vmatpush1.msra.mxu0 0.0
    %1676 = vmatprep.subr.mxu0 0.0
    %1677 = vmatpush1.msra.mxu0 0.0
    %1678 = vmatprep.subr.mxu0 0.0
    %1679 = vmatpush1.msra.mxu0 0.0
    %1680 = vmatprep.subr.mxu0 0.0
    %1681 = vmatpush1.msra.mxu0 0.0
    %1682 = vmatprep.subr.mxu0 0.0
    %1683 = vmatpush1.msra.mxu0 0.0
    %1684 = vmatprep.subr.mxu0 0.0
    %1685 = vmatpush1.msra.mxu0 0.0
    %1686 = vmatprep.subr.mxu0 0.0
    %1687 = vmatpush1.msra.mxu0 0.0
    %1688 = vmatprep.subr.mxu0 0.0
    %1689 = vmatpush1.msra.mxu0 0.0
    %1690 = vmatprep.subr.mxu0 0.0
    %1691 = vmatpush1.msra.mxu0 0.0
    %1692 = vmatprep.subr.mxu0 0.0
    %1693 = vmatpush1.msra.mxu0 0.0
    %1694 = vmatprep.subr.mxu0 0.0
    %1695 = vmatpush1.msra.mxu0 0.0
    %1696 = vmatprep.subr.mxu0 0.0
    %1697 = vmatpush1.msra.mxu0 0.0
    %1698 = vmatprep.subr.mxu0 0.0
    %1699 = vmatpush1.msra.mxu0 0.0
    %1700 = vmatprep.subr.mxu0 0.0
    %1701 = vmatpush1.msra.mxu0 0.0
    %1702 = vmatprep.subr.mxu0 0.0
    %1703 = vmatpush1.msra.mxu0 0.0
    %1704 = vmatprep.subr.mxu0 0.0
    %1705 = vmatpush1.msra.mxu0 0.0
    %1706 = vmatprep.subr.mxu0 0.0
    %1707 = vmatpush1.msra.mxu0 0.0
    %1708 = vmatprep.subr.mxu0 0.0
    %1709 = vmatpush1.msra.mxu0 0.0
    %1710 = vmatprep.subr.mxu0 0.0
    %1711 = vmatpush1.msra.mxu0 0.0
    %1712 = vmatprep.subr.mxu0 0.0
    %1713 = vmatpush1.msra.mxu0 0.0
    %1714 = vmatprep.subr.mxu0 0.0
    %1715 = vmatpush1.msra.mxu0 0.0
    %1716 = vmatprep.mubr.f32.mxu0 0.0
    %1717 = vmatmul.mubr.f32.gmra.mrb[0].mxu0 %v1650
    %v1718 = vpop.f32.mrb[0].mxu0
    %v1719 = vadd.f32 0.0, %v1718
    %v1720 = vpop.f32.mrb[0].mxu0
    %1721 = vdwg.mxu0
    %v1723 = vsel %vm1157, %v1646, 0
    %1725 = vmatprep.subr.mxu0 0.0
    %1726 = vmatpush1.msra.mxu0 %v927
    %1727 = vmatprep.subr.mxu0 0.0
    %1728 = vmatpush1.msra.mxu0 0.0
    %1729 = vmatprep.subr.mxu0 0.0
    %1730 = vmatpush1.msra.mxu0 0.0
    %1731 = vmatprep.subr.mxu0 0.0
    %1732 = vmatpush1.msra.mxu0 0.0
    %1733 = vmatprep.subr.mxu0 0.0
    %1734 = vmatpush1.msra.mxu0 0.0
    %1735 = vmatprep.subr.mxu0 0.0
    %1736 = vmatpush1.msra.mxu0 0.0
    %1737 = vmatprep.subr.mxu0 0.0
    %1738 = vmatpush1.msra.mxu0 0.0
    %1739 = vmatprep.subr.mxu0 0.0
    %1740 = vmatpush1.msra.mxu0 0.0
    %1741 = vmatprep.subr.mxu0 0.0
    %1742 = vmatpush1.msra.mxu0 0.0
    %1743 = vmatprep.subr.mxu0 0.0
    %1744 = vmatpush1.msra.mxu0 0.0
    %1745 = vmatprep.subr.mxu0 0.0
    %1746 = vmatpush1.msra.mxu0 0.0
    %1747 = vmatprep.subr.mxu0 0.0
    %1748 = vmatpush1.msra.mxu0 0.0
    %1749 = vmatprep.subr.mxu0 0.0
    %1750 = vmatpush1.msra.mxu0 0.0
    %1751 = vmatprep.subr.mxu0 0.0
    %1752 = vmatpush1.msra.mxu0 0.0
    %1753 = vmatprep.subr.mxu0 0.0
    %1754 = vmatpush1.msra.mxu0 0.0
    %1755 = vmatprep.subr.mxu0 0.0
    %1756 = vmatpush1.msra.mxu0 0.0
    %1757 = vmatprep.subr.mxu0 0.0
    %1758 = vmatpush1.msra.mxu0 0.0
    %1759 = vmatprep.subr.mxu0 0.0
    %1760 = vmatpush1.msra.mxu0 0.0
    %1761 = vmatprep.subr.mxu0 0.0
    %1762 = vmatpush1.msra.mxu0 0.0
    %1763 = vmatprep.subr.mxu0 0.0
    %1764 = vmatpush1.msra.mxu0 0.0
    %1765 = vmatprep.subr.mxu0 0.0
    %1766 = vmatpush1.msra.mxu0 0.0
    %1767 = vmatprep.subr.mxu0 0.0
    %1768 = vmatpush1.msra.mxu0 0.0
    %1769 = vmatprep.subr.mxu0 0.0
    %1770 = vmatpush1.msra.mxu0 0.0
    %1771 = vmatprep.subr.mxu0 0.0
    %1772 = vmatpush1.msra.mxu0 0.0
    %1773 = vmatprep.subr.mxu0 0.0
    %1774 = vmatpush1.msra.mxu0 0.0
    %1775 = vmatprep.subr.mxu0 0.0
    %1776 = vmatpush1.msra.mxu0 0.0
    %1777 = vmatprep.subr.mxu0 0.0
    %1778 = vmatpush1.msra.mxu0 0.0
    %1779 = vmatprep.subr.mxu0 0.0
    %1780 = vmatpush1.msra.mxu0 0.0
    %1781 = vmatprep.subr.mxu0 0.0
    %1782 = vmatpush1.msra.mxu0 0.0
    %1783 = vmatprep.subr.mxu0 0.0
    %1784 = vmatpush1.msra.mxu0 0.0
    %1785 = vmatprep.subr.mxu0 0.0
    %1786 = vmatpush1.msra.mxu0 0.0
    %1787 = vmatprep.subr.mxu0 0.0
    %1788 = vmatpush1.msra.mxu0 0.0
    %1789 = vmatprep.mubr.f32.mxu0 0.0
    %1790 = vmatmul.mubr.f32.gmra.mrb[0].mxu0 %v1723
    %v1791 = vpop.f32.mrb[0].mxu0
    %v1792 = vadd.f32 0.0, %v1791
    %v1793 = vpop.f32.mrb[0].mxu0
    %1794 = vdwg.mxu0
    %v1796 = vsel %vm1157, %v1647, 0
    %1798 = vmatprep.subr.mxu0 0.0
    %1799 = vmatpush1.msra.mxu0 %v1002
    %1800 = vmatprep.subr.mxu0 0.0
    %1801 = vmatpush1.msra.mxu0 0.0
    %1802 = vmatprep.subr.mxu0 0.0
    %1803 = vmatpush1.msra.mxu0 0.0
    %1804 = vmatprep.subr.mxu0 0.0
    %1805 = vmatpush1.msra.mxu0 0.0
    %1806 = vmatprep.subr.mxu0 0.0
    %1807 = vmatpush1.msra.mxu0 0.0
    %1808 = vmatprep.subr.mxu0 0.0
    %1809 = vmatpush1.msra.mxu0 0.0
    %1810 = vmatprep.subr.mxu0 0.0
    %1811 = vmatpush1.msra.mxu0 0.0
    %1812 = vmatprep.subr.mxu0 0.0
    %1813 = vmatpush1.msra.mxu0 0.0
    %1814 = vmatprep.subr.mxu0 0.0
    %1815 = vmatpush1.msra.mxu0 0.0
    %1816 = vmatprep.subr.mxu0 0.0
    %1817 = vmatpush1.msra.mxu0 0.0
    %1818 = vmatprep.subr.mxu0 0.0
    %1819 = vmatpush1.msra.mxu0 0.0
    %1820 = vmatprep.subr.mxu0 0.0
    %1821 = vmatpush1.msra.mxu0 0.0
    %1822 = vmatprep.subr.mxu0 0.0
    %1823 = vmatpush1.msra.mxu0 0.0
    %1824 = vmatprep.subr.mxu0 0.0
    %1825 = vmatpush1.msra.mxu0 0.0
    %1826 = vmatprep.subr.mxu0 0.0
    %1827 = vmatpush1.msra.mxu0 0.0
    %1828 = vmatprep.subr.mxu0 0.0
    %1829 = vmatpush1.msra.mxu0 0.0
    %1830 = vmatprep.subr.mxu0 0.0
    %1831 = vmatpush1.msra.mxu0 0.0
    %1832 = vmatprep.subr.mxu0 0.0
    %1833 = vmatpush1.msra.mxu0 0.0
    %1834 = vmatprep.subr.mxu0 0.0
    %1835 = vmatpush1.msra.mxu0 0.0
    %1836 = vmatprep.subr.mxu0 0.0
    %1837 = vmatpush1.msra.mxu0 0.0
    %1838 = vmatprep.subr.mxu0 0.0
    %1839 = vmatpush1.msra.mxu0 0.0
    %1840 = vmatprep.subr.mxu0 0.0
    %1841 = vmatpush1.msra.mxu0 0.0
    %1842 = vmatprep.subr.mxu0 0.0
    %1843 = vmatpush1.msra.mxu0 0.0
    %1844 = vmatprep.subr.mxu0 0.0
    %1845 = vmatpush1.msra.mxu0 0.0
    %1846 = vmatprep.subr.mxu0 0.0
    %1847 = vmatpush1.msra.mxu0 0.0
    %1848 = vmatprep.subr.mxu0 0.0
    %1849 = vmatpush1.msra.mxu0 0.0
    %1850 = vmatprep.subr.mxu0 0.0
    %1851 = vmatpush1.msra.mxu0 0.0
    %1852 = vmatprep.subr.mxu0 0.0
    %1853 = vmatpush1.msra.mxu0 0.0
    %1854 = vmatprep.subr.mxu0 0.0
    %1855 = vmatpush1.msra.mxu0 0.0
    %1856 = vmatprep.subr.mxu0 0.0
    %1857 = vmatpush1.msra.mxu0 0.0
    %1858 = vmatprep.subr.mxu0 0.0
    %1859 = vmatpush1.msra.mxu0 0.0
    %1860 = vmatprep.subr.mxu0 0.0
    %1861 = vmatpush1.msra.mxu0 0.0
    %1862 = vmatprep.mubr.f32.mxu0 0.0
    %1863 = vmatmul.mubr.f32.gmra.mrb[0].mxu0 %v1796
    %v1864 = vpop.f32.mrb[0].mxu0
    %v1865 = vadd.f32 0.0, %v1864
    %v1866 = vpop.f32.mrb[0].mxu0
    %1867 = vdwg.mxu0
    %v1869 = vsel %vm1157, %v1648, 0
    %1871 = vmatprep.subr.mxu0 0.0
    %1872 = vmatpush1.msra.mxu0 %v1077
    %1873 = vmatprep.subr.mxu0 0.0
    %1874 = vmatpush1.msra.mxu0 0.0
    %1875 = vmatprep.subr.mxu0 0.0
    %1876 = vmatpush1.msra.mxu0 0.0
    %1877 = vmatprep.subr.mxu0 0.0
    %1878 = vmatpush1.msra.mxu0 0.0
    %1879 = vmatprep.subr.mxu0 0.0
    %1880 = vmatpush1.msra.mxu0 0.0
    %1881 = vmatprep.subr.mxu0 0.0
    %1882 = vmatpush1.msra.mxu0 0.0
    %1883 = vmatprep.subr.mxu0 0.0
    %1884 = vmatpush1.msra.mxu0 0.0
    %1885 = vmatprep.subr.mxu0 0.0
    %1886 = vmatpush1.msra.mxu0 0.0
    %1887 = vmatprep.subr.mxu0 0.0
    %1888 = vmatpush1.msra.mxu0 0.0
    %1889 = vmatprep.subr.mxu0 0.0
    %1890 = vmatpush1.msra.mxu0 0.0
    %1891 = vmatprep.subr.mxu0 0.0
    %1892 = vmatpush1.msra.mxu0 0.0
    %1893 = vmatprep.subr.mxu0 0.0
    %1894 = vmatpush1.msra.mxu0 0.0
    %1895 = vmatprep.subr.mxu0 0.0
    %1896 = vmatpush1.msra.mxu0 0.0
    %1897 = vmatprep.subr.mxu0 0.0
    %1898 = vmatpush1.msra.mxu0 0.0
    %1899 = vmatprep.subr.mxu0 0.0
    %1900 = vmatpush1.msra.mxu0 0.0
    %1901 = vmatprep.subr.mxu0 0.0
    %1902 = vmatpush1.msra.mxu0 0.0
    %1903 = vmatprep.subr.mxu0 0.0
    %1904 = vmatpush1.msra.mxu0 0.0
    %1905 = vmatprep.subr.mxu0 0.0
    %1906 = vmatpush1.msra.mxu0 0.0
    %1907 = vmatprep.subr.mxu0 0.0
    %1908 = vmatpush1.msra.mxu0 0.0
    %1909 = vmatprep.subr.mxu0 0.0
    %1910 = vmatpush1.msra.mxu0 0.0
    %1911 = vmatprep.subr.mxu0 0.0
    %1912 = vmatpush1.msra.mxu0 0.0
    %1913 = vmatprep.subr.mxu0 0.0
    %1914 = vmatpush1.msra.mxu0 0.0
    %1915 = vmatprep.subr.mxu0 0.0
    %1916 = vmatpush1.msra.mxu0 0.0
    %1917 = vmatprep.subr.mxu0 0.0
    %1918 = vmatpush1.msra.mxu0 0.0
    %1919 = vmatprep.subr.mxu0 0.0
    %1920 = vmatpush1.msra.mxu0 0.0
    %1921 = vmatprep.subr.mxu0 0.0
    %1922 = vmatpush1.msra.mxu0 0.0
    %1923 = vmatprep.subr.mxu0 0.0
    %1924 = vmatpush1.msra.mxu0 0.0
    %1925 = vmatprep.subr.mxu0 0.0
    %1926 = vmatpush1.msra.mxu0 0.0
    %1927 = vmatprep.subr.mxu0 0.0
    %1928 = vmatpush1.msra.mxu0 0.0
    %1929 = vmatprep.subr.mxu0 0.0
    %1930 = vmatpush1.msra.mxu0 0.0
    %1931 = vmatprep.subr.mxu0 0.0
    %1932 = vmatpush1.msra.mxu0 0.0
    %1933 = vmatprep.subr.mxu0 0.0
    %1934 = vmatpush1.msra.mxu0 0.0
    %1935 = vmatprep.mubr.f32.mxu0 0.0
    %1936 = vmatmul.mubr.f32.gmra.mrb[0].mxu0 %v1869
    %v1937 = vpop.f32.mrb[0].mxu0
    %v1938 = vadd.f32 0.0, %v1937
    %v1939 = vpop.f32.mrb[0].mxu0
    %1940 = vdwg.mxu0
    %v1941 = vld [vmem:[%s7] sm:$0xff]
    %v1942 = vld [vmem:[%s7 + $0x8] sm:$0xff]
    %v1943 = vld [vmem:[%s7 + $0x10] sm:$0xff]
    %v1944 = vld [vmem:[%s7 + $0x18] sm:$0xff]
    %v1945 = vld [vmem:[%s7 + $0x20] sm:$0xff]
    %v1946 = vld [vmem:[%s7 + $0x28] sm:$0xff]
    %v1947 = vld [vmem:[%s7 + $0x30] sm:$0xff]
    %v1948 = vld [vmem:[%s7 + $0x38] sm:$0xff]
    %v1950 = vsel %vm1294, %v1719, 0
    %1952 = vmatprep.subr.mxu0 0.0
    %1953 = vmatpush1.msra.mxu0 %v1941
    %1954 = vmatprep.subr.mxu0 0.0
    %1955 = vmatpush1.msra.mxu0 %v1942
    %1956 = vmatprep.subr.mxu0 0.0
    %1957 = vmatpush1.msra.mxu0 0.0
    %1958 = vmatprep.subr.mxu0 0.0
    %1959 = vmatpush1.msra.mxu0 0.0
    %1960 = vmatprep.subr.mxu0 0.0
    %1961 = vmatpush1.msra.mxu0 0.0
    %1962 = vmatprep.subr.mxu0 0.0
    %1963 = vmatpush1.msra.mxu0 0.0
    %1964 = vmatprep.subr.mxu0 0.0
    %1965 = vmatpush1.msra.mxu0 0.0
    %1966 = vmatprep.subr.mxu0 0.0
    %1967 = vmatpush1.msra.mxu0 0.0
    %1968 = vmatprep.subr.mxu0 0.0
    %1969 = vmatpush1.msra.mxu0 0.0
    %1970 = vmatprep.subr.mxu0 0.0
    %1971 = vmatpush1.msra.mxu0 0.0
    %1972 = vmatprep.subr.mxu0 0.0
    %1973 = vmatpush1.msra.mxu0 0.0
    %1974 = vmatprep.subr.mxu0 0.0
    %1975 = vmatpush1.msra.mxu0 0.0
    %1976 = vmatprep.subr.mxu0 0.0
    %1977 = vmatpush1.msra.mxu0 0.0
    %1978 = vmatprep.subr.mxu0 0.0
    %1979 = vmatpush1.msra.mxu0 0.0
    %1980 = vmatprep.subr.mxu0 0.0
    %1981 = vmatpush1.msra.mxu0 0.0
    %1982 = vmatprep.subr.mxu0 0.0
    %1983 = vmatpush1.msra.mxu0 0.0
    %1984 = vmatprep.subr.mxu0 0.0
    %1985 = vmatpush1.msra.mxu0 0.0
    %1986 = vmatprep.subr.mxu0 0.0
    %1987 = vmatpush1.msra.mxu0 0.0
    %1988 = vmatprep.subr.mxu0 0.0
    %1989 = vmatpush1.msra.mxu0 0.0
    %1990 = vmatprep.subr.mxu0 0.0
    %1991 = vmatpush1.msra.mxu0 0.0
    %1992 = vmatprep.subr.mxu0 0.0
    %1993 = vmatpush1.msra.mxu0 0.0
    %1994 = vmatprep.subr.mxu0 0.0
    %1995 = vmatpush1.msra.mxu0 0.0
    %1996 = vmatprep.subr.mxu0 0.0
    %1997 = vmatpush1.msra.mxu0 0.0
    %1998 = vmatprep.subr.mxu0 0.0
    %1999 = vmatpush1.msra.mxu0 0.0
    %2000 = vmatprep.subr.mxu0 0.0
    %2001 = vmatpush1.msra.mxu0 0.0
    %2002 = vmatprep.subr.mxu0 0.0
    %2003 = vmatpush1.msra.mxu0 0.0
    %2004 = vmatprep.subr.mxu0 0.0
    %2005 = vmatpush1.msra.mxu0 0.0
    %2006 = vmatprep.subr.mxu0 0.0
    %2007 = vmatpush1.msra.mxu0 0.0
    %2008 = vmatprep.subr.mxu0 0.0
    %2009 = vmatpush1.msra.mxu0 0.0
    %2010 = vmatprep.subr.mxu0 0.0
    %2011 = vmatpush1.msra.mxu0 0.0
    %2012 = vmatprep.subr.mxu0 0.0
    %2013 = vmatpush1.msra.mxu0 0.0
    %2014 = vmatprep.subr.mxu0 0.0
    %2015 = vmatpush1.msra.mxu0 0.0
    %2016 = vmatprep.mubr.f32.mxu0 0.0
    %2017 = vmatmul.mubr.f32.gmra.mrb[0].mxu0 %v1950
    %v2018 = vpop.f32.mrb[0].mxu0
    %v2019 = vadd.f32 0.0, %v2018
    %v2020 = vpop.f32.mrb[0].mxu0
    %2021 = vdwg.mxu0
    %v2023 = vsel %vm1294, %v1792, 0
    %2025 = vmatprep.subr.mxu0 0.0
    %2026 = vmatpush1.msra.mxu0 %v1943
    %2027 = vmatprep.subr.mxu0 0.0
    %2028 = vmatpush1.msra.mxu0 %v1944
    %2029 = vmatprep.subr.mxu0 0.0
    %2030 = vmatpush1.msra.mxu0 0.0
    %2031 = vmatprep.subr.mxu0 0.0
    %2032 = vmatpush1.msra.mxu0 0.0
    %2033 = vmatprep.subr.mxu0 0.0
    %2034 = vmatpush1.msra.mxu0 0.0
    %2035 = vmatprep.subr.mxu0 0.0
    %2036 = vmatpush1.msra.mxu0 0.0
    %2037 = vmatprep.subr.mxu0 0.0
    %2038 = vmatpush1.msra.mxu0 0.0
    %2039 = vmatprep.subr.mxu0 0.0
    %2040 = vmatpush1.msra.mxu0 0.0
    %2041 = vmatprep.subr.mxu0 0.0
    %2042 = vmatpush1.msra.mxu0 0.0
    %2043 = vmatprep.subr.mxu0 0.0
    %2044 = vmatpush1.msra.mxu0 0.0
    %2045 = vmatprep.subr.mxu0 0.0
    %2046 = vmatpush1.msra.mxu0 0.0
    %2047 = vmatprep.subr.mxu0 0.0
    %2048 = vmatpush1.msra.mxu0 0.0
    %2049 = vmatprep.subr.mxu0 0.0
    %2050 = vmatpush1.msra.mxu0 0.0
    %2051 = vmatprep.subr.mxu0 0.0
    %2052 = vmatpush1.msra.mxu0 0.0
    %2053 = vmatprep.subr.mxu0 0.0
    %2054 = vmatpush1.msra.mxu0 0.0
    %2055 = vmatprep.subr.mxu0 0.0
    %2056 = vmatpush1.msra.mxu0 0.0
    %2057 = vmatprep.subr.mxu0 0.0
    %2058 = vmatpush1.msra.mxu0 0.0
    %2059 = vmatprep.subr.mxu0 0.0
    %2060 = vmatpush1.msra.mxu0 0.0
    %2061 = vmatprep.subr.mxu0 0.0
    %2062 = vmatpush1.msra.mxu0 0.0
    %2063 = vmatprep.subr.mxu0 0.0
    %2064 = vmatpush1.msra.mxu0 0.0
    %2065 = vmatprep.subr.mxu0 0.0
    %2066 = vmatpush1.msra.mxu0 0.0
    %2067 = vmatprep.subr.mxu0 0.0
    %2068 = vmatpush1.msra.mxu0 0.0
    %2069 = vmatprep.subr.mxu0 0.0
    %2070 = vmatpush1.msra.mxu0 0.0
    %2071 = vmatprep.subr.mxu0 0.0
    %2072 = vmatpush1.msra.mxu0 0.0
    %2073 = vmatprep.subr.mxu0 0.0
    %2074 = vmatpush1.msra.mxu0 0.0
    %2075 = vmatprep.subr.mxu0 0.0
    %2076 = vmatpush1.msra.mxu0 0.0
    %2077 = vmatprep.subr.mxu0 0.0
    %2078 = vmatpush1.msra.mxu0 0.0
    %2079 = vmatprep.subr.mxu0 0.0
    %2080 = vmatpush1.msra.mxu0 0.0
    %2081 = vmatprep.subr.mxu0 0.0
    %2082 = vmatpush1.msra.mxu0 0.0
    %2083 = vmatprep.subr.mxu0 0.0
    %2084 = vmatpush1.msra.mxu0 0.0
    %2085 = vmatprep.subr.mxu0 0.0
    %2086 = vmatpush1.msra.mxu0 0.0
    %2087 = vmatprep.subr.mxu0 0.0
    %2088 = vmatpush1.msra.mxu0 0.0
    %2089 = vmatprep.mubr.f32.mxu0 0.0
    %2090 = vmatmul.mubr.f32.gmra.mrb[0].mxu0 %v2023
    %v2091 = vpop.f32.mrb[0].mxu0
    %v2092 = vadd.f32 0.0, %v2091
    %v2093 = vpop.f32.mrb[0].mxu0
    %2094 = vdwg.mxu0
    %v2096 = vsel %vm1294, %v1865, 0
    %2098 = vmatprep.subr.mxu0 0.0
    %2099 = vmatpush1.msra.mxu0 %v1945
    %2100 = vmatprep.subr.mxu0 0.0
    %2101 = vmatpush1.msra.mxu0 %v1946
    %2102 = vmatprep.subr.mxu0 0.0
    %2103 = vmatpush1.msra.mxu0 0.0
    %2104 = vmatprep.subr.mxu0 0.0
    %2105 = vmatpush1.msra.mxu0 0.0
    %2106 = vmatprep.subr.mxu0 0.0
    %2107 = vmatpush1.msra.mxu0 0.0
    %2108 = vmatprep.subr.mxu0 0.0
    %2109 = vmatpush1.msra.mxu0 0.0
    %2110 = vmatprep.subr.mxu0 0.0
    %2111 = vmatpush1.msra.mxu0 0.0
    %2112 = vmatprep.subr.mxu0 0.0
    %2113 = vmatpush1.msra.mxu0 0.0
    %2114 = vmatprep.subr.mxu0 0.0
    %2115 = vmatpush1.msra.mxu0 0.0
    %2116 = vmatprep.subr.mxu0 0.0
    %2117 = vmatpush1.msra.mxu0 0.0
    %2118 = vmatprep.subr.mxu0 0.0
    %2119 = vmatpush1.msra.mxu0 0.0
    %2120 = vmatprep.subr.mxu0 0.0
    %2121 = vmatpush1.msra.mxu0 0.0
    %2122 = vmatprep.subr.mxu0 0.0
    %2123 = vmatpush1.msra.mxu0 0.0
    %2124 = vmatprep.subr.mxu0 0.0
    %2125 = vmatpush1.msra.mxu0 0.0
    %2126 = vmatprep.subr.mxu0 0.0
    %2127 = vmatpush1.msra.mxu0 0.0
    %2128 = vmatprep.subr.mxu0 0.0
    %2129 = vmatpush1.msra.mxu0 0.0
    %2130 = vmatprep.subr.mxu0 0.0
    %2131 = vmatpush1.msra.mxu0 0.0
    %2132 = vmatprep.subr.mxu0 0.0
    %2133 = vmatpush1.msra.mxu0 0.0
    %2134 = vmatprep.subr.mxu0 0.0
    %2135 = vmatpush1.msra.mxu0 0.0
    %2136 = vmatprep.subr.mxu0 0.0
    %2137 = vmatpush1.msra.mxu0 0.0
    %2138 = vmatprep.subr.mxu0 0.0
    %2139 = vmatpush1.msra.mxu0 0.0
    %2140 = vmatprep.subr.mxu0 0.0
    %2141 = vmatpush1.msra.mxu0 0.0
    %2142 = vmatprep.subr.mxu0 0.0
    %2143 = vmatpush1.msra.mxu0 0.0
    %2144 = vmatprep.subr.mxu0 0.0
    %2145 = vmatpush1.msra.mxu0 0.0
    %2146 = vmatprep.subr.mxu0 0.0
    %2147 = vmatpush1.msra.mxu0 0.0
    %2148 = vmatprep.subr.mxu0 0.0
    %2149 = vmatpush1.msra.mxu0 0.0
    %2150 = vmatprep.subr.mxu0 0.0
    %2151 = vmatpush1.msra.mxu0 0.0
    %2152 = vmatprep.subr.mxu0 0.0
    %2153 = vmatpush1.msra.mxu0 0.0
    %2154 = vmatprep.subr.mxu0 0.0
    %2155 = vmatpush1.msra.mxu0 0.0
    %2156 = vmatprep.subr.mxu0 0.0
    %2157 = vmatpush1.msra.mxu0 0.0
    %2158 = vmatprep.subr.mxu0 0.0
    %2159 = vmatpush1.msra.mxu0 0.0
    %2160 = vmatprep.subr.mxu0 0.0
    %2161 = vmatpush1.msra.mxu0 0.0
    %2162 = vmatprep.mubr.f32.mxu0 0.0
    %2163 = vmatmul.mubr.f32.gmra.mrb[0].mxu0 %v2096
    %v2164 = vpop.f32.mrb[0].mxu0
    %v2165 = vadd.f32 0.0, %v2164
    %v2166 = vpop.f32.mrb[0].mxu0
    %2167 = vdwg.mxu0
    %v2169 = vsel %vm1294, %v1938, 0
    %2171 = vmatprep.subr.mxu0 0.0
    %2172 = vmatpush1.msra.mxu0 %v1947
    %2173 = vmatprep.subr.mxu0 0.0
    %2174 = vmatpush1.msra.mxu0 %v1948
    %2175 = vmatprep.subr.mxu0 0.0
    %2176 = vmatpush1.msra.mxu0 0.0
    %2177 = vmatprep.subr.mxu0 0.0
    %2178 = vmatpush1.msra.mxu0 0.0
    %2179 = vmatprep.subr.mxu0 0.0
    %2180 = vmatpush1.msra.mxu0 0.0
    %2181 = vmatprep.subr.mxu0 0.0
    %2182 = vmatpush1.msra.mxu0 0.0
    %2183 = vmatprep.subr.mxu0 0.0
    %2184 = vmatpush1.msra.mxu0 0.0
    %2185 = vmatprep.subr.mxu0 0.0
    %2186 = vmatpush1.msra.mxu0 0.0
    %2187 = vmatprep.subr.mxu0 0.0
    %2188 = vmatpush1.msra.mxu0 0.0
    %2189 = vmatprep.subr.mxu0 0.0
    %2190 = vmatpush1.msra.mxu0 0.0
    %2191 = vmatprep.subr.mxu0 0.0
    %2192 = vmatpush1.msra.mxu0 0.0
    %2193 = vmatprep.subr.mxu0 0.0
    %2194 = vmatpush1.msra.mxu0 0.0
    %2195 = vmatprep.subr.mxu0 0.0
    %2196 = vmatpush1.msra.mxu0 0.0
    %2197 = vmatprep.subr.mxu0 0.0
    %2198 = vmatpush1.msra.mxu0 0.0
    %2199 = vmatprep.subr.mxu0 0.0
    %2200 = vmatpush1.msra.mxu0 0.0
    %2201 = vmatprep.subr.mxu0 0.0
    %2202 = vmatpush1.msra.mxu0 0.0
    %2203 = vmatprep.subr.mxu0 0.0
    %2204 = vmatpush1.msra.mxu0 0.0
    %2205 = vmatprep.subr.mxu0 0.0
    %2206 = vmatpush1.msra.mxu0 0.0
    %2207 = vmatprep.subr.mxu0 0.0
    %2208 = vmatpush1.msra.mxu0 0.0
    %2209 = vmatprep.subr.mxu0 0.0
    %2210 = vmatpush1.msra.mxu0 0.0
    %2211 = vmatprep.subr.mxu0 0.0
    %2212 = vmatpush1.msra.mxu0 0.0
    %2213 = vmatprep.subr.mxu0 0.0
    %2214 = vmatpush1.msra.mxu0 0.0
    %2215 = vmatprep.subr.mxu0 0.0
    %2216 = vmatpush1.msra.mxu0 0.0
    %2217 = vmatprep.subr.mxu0 0.0
    %2218 = vmatpush1.msra.mxu0 0.0
    %2219 = vmatprep.subr.mxu0 0.0
    %2220 = vmatpush1.msra.mxu0 0.0
    %2221 = vmatprep.subr.mxu0 0.0
    %2222 = vmatpush1.msra.mxu0 0.0
    %2223 = vmatprep.subr.mxu0 0.0
    %2224 = vmatpush1.msra.mxu0 0.0
    %2225 = vmatprep.subr.mxu0 0.0
    %2226 = vmatpush1.msra.mxu0 0.0
    %2227 = vmatprep.subr.mxu0 0.0
    %2228 = vmatpush1.msra.mxu0 0.0
    %2229 = vmatprep.subr.mxu0 0.0
    %2230 = vmatpush1.msra.mxu0 0.0
    %2231 = vmatprep.subr.mxu0 0.0
    %2232 = vmatpush1.msra.mxu0 0.0
    %2233 = vmatprep.subr.mxu0 0.0
    %2234 = vmatpush1.msra.mxu0 0.0
    %2235 = vmatprep.mubr.f32.mxu0 0.0
    %2236 = vmatmul.mubr.f32.gmra.mrb[0].mxu0 %v2169
    %v2237 = vpop.f32.mrb[0].mxu0
    %v2238 = vadd.f32 0.0, %v2237
    %v2239 = vpop.f32.mrb[0].mxu0
    %2240 = vdwg.mxu0
    %v2241 = vsel %vm59, %v2019, 0.0
    %v2242 = vsel %vm59, %v2092, 0.0
    %v2243 = vadd.f32 %v2241, %v2242
    %v2244 = vsel %vm59, %v2165, 0.0
    %v2245 = vadd.f32 %v2243, %v2244
    %v2246 = vsel %vm59, %v2238, 0.0
    %v2247 = vadd.f32 %v2245, %v2246
    %v2249 = vsel %vm1294, %v1183, 0
    %v2252 = vsel %vm1294, %v1287, 0
    %2254 = vmatprep.subr.mxu0 0.0
    %2255 = vmatpush1.xpose.msra.mxu0 %v2252
    %2256 = vmatprep.subr.mxu0 0.0
    %2257 = vmatpush1.xpose.msra.mxu0 0.0
    %2258 = vmatprep.subr.mxu0 0.0
    %2259 = vmatpush1.xpose.msra.mxu0 0.0
    %2260 = vmatprep.subr.mxu0 0.0
    %2261 = vmatpush1.xpose.msra.mxu0 0.0
    %2262 = vmatprep.subr.mxu0 0.0
    %2263 = vmatpush1.xpose.msra.mxu0 0.0
    %2264 = vmatprep.subr.mxu0 0.0
    %2265 = vmatpush1.xpose.msra.mxu0 0.0
    %2266 = vmatprep.subr.mxu0 0.0
    %2267 = vmatpush1.xpose.msra.mxu0 0.0
    %2268 = vmatprep.subr.mxu0 0.0
    %2269 = vmatpush1.xpose.msra.mxu0 0.0
    %2270 = vmatprep.subr.mxu0 0.0
    %2271 = vmatpush1.xpose.msra.mxu0 0.0
    %2272 = vmatprep.subr.mxu0 0.0
    %2273 = vmatpush1.xpose.msra.mxu0 0.0
    %2274 = vmatprep.subr.mxu0 0.0
    %2275 = vmatpush1.xpose.msra.mxu0 0.0
    %2276 = vmatprep.subr.mxu0 0.0
    %2277 = vmatpush1.xpose.msra.mxu0 0.0
    %2278 = vmatprep.subr.mxu0 0.0
    %2279 = vmatpush1.xpose.msra.mxu0 0.0
    %2280 = vmatprep.subr.mxu0 0.0
    %2281 = vmatpush1.xpose.msra.mxu0 0.0
    %2282 = vmatprep.subr.mxu0 0.0
    %2283 = vmatpush1.xpose.msra.mxu0 0.0
    %2284 = vmatprep.subr.mxu0 0.0
    %2285 = vmatpush1.xpose.msra.mxu0 0.0
    %2286 = vmatprep.subr.mxu0 0.0
    %2287 = vmatpush1.xpose.msra.mxu0 0.0
    %2288 = vmatprep.subr.mxu0 0.0
    %2289 = vmatpush1.xpose.msra.mxu0 0.0
    %2290 = vmatprep.subr.mxu0 0.0
    %2291 = vmatpush1.xpose.msra.mxu0 0.0
    %2292 = vmatprep.subr.mxu0 0.0
    %2293 = vmatpush1.xpose.msra.mxu0 0.0
    %2294 = vmatprep.subr.mxu0 0.0
    %2295 = vmatpush1.xpose.msra.mxu0 0.0
    %2296 = vmatprep.subr.mxu0 0.0
    %2297 = vmatpush1.xpose.msra.mxu0 0.0
    %2298 = vmatprep.subr.mxu0 0.0
    %2299 = vmatpush1.xpose.msra.mxu0 0.0
    %2300 = vmatprep.subr.mxu0 0.0
    %2301 = vmatpush1.xpose.msra.mxu0 0.0
    %2302 = vmatprep.subr.mxu0 0.0
    %2303 = vmatpush1.xpose.msra.mxu0 0.0
    %2304 = vmatprep.subr.mxu0 0.0
    %2305 = vmatpush1.xpose.msra.mxu0 0.0
    %2306 = vmatprep.subr.mxu0 0.0
    %2307 = vmatpush1.xpose.msra.mxu0 0.0
    %2308 = vmatprep.subr.mxu0 0.0
    %2309 = vmatpush1.xpose.msra.mxu0 0.0
    %2310 = vmatprep.subr.mxu0 0.0
    %2311 = vmatpush1.xpose.msra.mxu0 0.0
    %2312 = vmatprep.subr.mxu0 0.0
    %2313 = vmatpush1.xpose.msra.mxu0 0.0
    %2314 = vmatprep.subr.mxu0 0.0
    %2315 = vmatpush1.xpose.msra.mxu0 0.0
    %2316 = vmatprep.subr.mxu0 0.0
    %2317 = vmatpush1.xpose.msra.mxu0 0.0
    %2318 = vmatprep.mubr.f32.mxu0 0.0
    %2319 = vmatmul.mubr.f32.gmra.mrb[0].mxu0 %v2249
    %v2320 = vpop.f32.mrb[0].mxu0
    %v2321 = vadd.f32 0.0, %v2320
    %v2322 = vpop.f32.mrb[0].mxu0
    %2323 = vdwg.mxu0
    %v2325 = vsel %vm1294, %v1185, 0
    %v2328 = vsel %vm1294, %v1289, 0
    %2330 = vmatprep.subr.mxu0 0.0
    %2331 = vmatpush1.xpose.msra.mxu0 %v2328
    %2332 = vmatprep.subr.mxu0 0.0
    %2333 = vmatpush1.xpose.msra.mxu0 0.0
    %2334 = vmatprep.subr.mxu0 0.0
    %2335 = vmatpush1.xpose.msra.mxu0 0.0
    %2336 = vmatprep.subr.mxu0 0.0
    %2337 = vmatpush1.xpose.msra.mxu0 0.0
    %2338 = vmatprep.subr.mxu0 0.0
    %2339 = vmatpush1.xpose.msra.mxu0 0.0
    %2340 = vmatprep.subr.mxu0 0.0
    %2341 = vmatpush1.xpose.msra.mxu0 0.0
    %2342 = vmatprep.subr.mxu0 0.0
    %2343 = vmatpush1.xpose.msra.mxu0 0.0
    %2344 = vmatprep.subr.mxu0 0.0
    %2345 = vmatpush1.xpose.msra.mxu0 0.0
    %2346 = vmatprep.subr.mxu0 0.0
    %2347 = vmatpush1.xpose.msra.mxu0 0.0
    %2348 = vmatprep.subr.mxu0 0.0
    %2349 = vmatpush1.xpose.msra.mxu0 0.0
    %2350 = vmatprep.subr.mxu0 0.0
    %2351 = vmatpush1.xpose.msra.mxu0 0.0
    %2352 = vmatprep.subr.mxu0 0.0
    %2353 = vmatpush1.xpose.msra.mxu0 0.0
    %2354 = vmatprep.subr.mxu0 0.0
    %2355 = vmatpush1.xpose.msra.mxu0 0.0
    %2356 = vmatprep.subr.mxu0 0.0
    %2357 = vmatpush1.xpose.msra.mxu0 0.0
    %2358 = vmatprep.subr.mxu0 0.0
    %2359 = vmatpush1.xpose.msra.mxu0 0.0
    %2360 = vmatprep.subr.mxu0 0.0
    %2361 = vmatpush1.xpose.msra.mxu0 0.0
    %2362 = vmatprep.subr.mxu0 0.0
    %2363 = vmatpush1.xpose.msra.mxu0 0.0
    %2364 = vmatprep.subr.mxu0 0.0
    %2365 = vmatpush1.xpose.msra.mxu0 0.0
    %2366 = vmatprep.subr.mxu0 0.0
    %2367 = vmatpush1.xpose.msra.mxu0 0.0
    %2368 = vmatprep.subr.mxu0 0.0
    %2369 = vmatpush1.xpose.msra.mxu0 0.0
    %2370 = vmatprep.subr.mxu0 0.0
    %2371 = vmatpush1.xpose.msra.mxu0 0.0
    %2372 = vmatprep.subr.mxu0 0.0
    %2373 = vmatpush1.xpose.msra.mxu0 0.0
    %2374 = vmatprep.subr.mxu0 0.0
    %2375 = vmatpush1.xpose.msra.mxu0 0.0
    %2376 = vmatprep.subr.mxu0 0.0
    %2377 = vmatpush1.xpose.msra.mxu0 0.0
    %2378 = vmatprep.subr.mxu0 0.0
    %2379 = vmatpush1.xpose.msra.mxu0 0.0
    %2380 = vmatprep.subr.mxu0 0.0
    %2381 = vmatpush1.xpose.msra.mxu0 0.0
    %2382 = vmatprep.subr.mxu0 0.0
    %2383 = vmatpush1.xpose.msra.mxu0 0.0
    %2384 = vmatprep.subr.mxu0 0.0
    %2385 = vmatpush1.xpose.msra.mxu0 0.0
    %2386 = vmatprep.subr.mxu0 0.0
    %2387 = vmatpush1.xpose.msra.mxu0 0.0
    %2388 = vmatprep.subr.mxu0 0.0
    %2389 = vmatpush1.xpose.msra.mxu0 0.0
    %2390 = vmatprep.subr.mxu0 0.0
    %2391 = vmatpush1.xpose.msra.mxu0 0.0
    %2392 = vmatprep.subr.mxu0 0.0
    %2393 = vmatpush1.xpose.msra.mxu0 0.0
    %2394 = vmatprep.mubr.f32.mxu0 0.0
    %2395 = vmatmul.mubr.f32.gmra.mrb[0].mxu0 %v2325
    %v2396 = vpop.f32.mrb[0].mxu0
    %v2397 = vadd.f32 0.0, %v2396
    %v2398 = vpop.f32.mrb[0].mxu0
    %2399 = vdwg.mxu0
    %v2401 = vsel %vm1294, %v1187, 0
    %v2404 = vsel %vm1294, %v1291, 0
    %2406 = vmatprep.subr.mxu0 0.0
    %2407 = vmatpush1.xpose.msra.mxu0 %v2404
    %2408 = vmatprep.subr.mxu0 0.0
    %2409 = vmatpush1.xpose.msra.mxu0 0.0
    %2410 = vmatprep.subr.mxu0 0.0
    %2411 = vmatpush1.xpose.msra.mxu0 0.0
    %2412 = vmatprep.subr.mxu0 0.0
    %2413 = vmatpush1.xpose.msra.mxu0 0.0
    %2414 = vmatprep.subr.mxu0 0.0
    %2415 = vmatpush1.xpose.msra.mxu0 0.0
    %2416 = vmatprep.subr.mxu0 0.0
    %2417 = vmatpush1.xpose.msra.mxu0 0.0
    %2418 = vmatprep.subr.mxu0 0.0
    %2419 = vmatpush1.xpose.msra.mxu0 0.0
    %2420 = vmatprep.subr.mxu0 0.0
    %2421 = vmatpush1.xpose.msra.mxu0 0.0
    %2422 = vmatprep.subr.mxu0 0.0
    %2423 = vmatpush1.xpose.msra.mxu0 0.0
    %2424 = vmatprep.subr.mxu0 0.0
    %2425 = vmatpush1.xpose.msra.mxu0 0.0
    %2426 = vmatprep.subr.mxu0 0.0
    %2427 = vmatpush1.xpose.msra.mxu0 0.0
    %2428 = vmatprep.subr.mxu0 0.0
    %2429 = vmatpush1.xpose.msra.mxu0 0.0
    %2430 = vmatprep.subr.mxu0 0.0
    %2431 = vmatpush1.xpose.msra.mxu0 0.0
    %2432 = vmatprep.subr.mxu0 0.0
    %2433 = vmatpush1.xpose.msra.mxu0 0.0
    %2434 = vmatprep.subr.mxu0 0.0
    %2435 = vmatpush1.xpose.msra.mxu0 0.0
    %2436 = vmatprep.subr.mxu0 0.0
    %2437 = vmatpush1.xpose.msra.mxu0 0.0
    %2438 = vmatprep.subr.mxu0 0.0
    %2439 = vmatpush1.xpose.msra.mxu0 0.0
    %2440 = vmatprep.subr.mxu0 0.0
    %2441 = vmatpush1.xpose.msra.mxu0 0.0
    %2442 = vmatprep.subr.mxu0 0.0
    %2443 = vmatpush1.xpose.msra.mxu0 0.0
    %2444 = vmatprep.subr.mxu0 0.0
    %2445 = vmatpush1.xpose.msra.mxu0 0.0
    %2446 = vmatprep.subr.mxu0 0.0
    %2447 = vmatpush1.xpose.msra.mxu0 0.0
    %2448 = vmatprep.subr.mxu0 0.0
    %2449 = vmatpush1.xpose.msra.mxu0 0.0
    %2450 = vmatprep.subr.mxu0 0.0
    %2451 = vmatpush1.xpose.msra.mxu0 0.0
    %2452 = vmatprep.subr.mxu0 0.0
    %2453 = vmatpush1.xpose.msra.mxu0 0.0
    %2454 = vmatprep.subr.mxu0 0.0
    %2455 = vmatpush1.xpose.msra.mxu0 0.0
    %2456 = vmatprep.subr.mxu0 0.0
    %2457 = vmatpush1.xpose.msra.mxu0 0.0
    %2458 = vmatprep.subr.mxu0 0.0
    %2459 = vmatpush1.xpose.msra.mxu0 0.0
    %2460 = vmatprep.subr.mxu0 0.0
    %2461 = vmatpush1.xpose.msra.mxu0 0.0
    %2462 = vmatprep.subr.mxu0 0.0
    %2463 = vmatpush1.xpose.msra.mxu0 0.0
    %2464 = vmatprep.subr.mxu0 0.0
    %2465 = vmatpush1.xpose.msra.mxu0 0.0
    %2466 = vmatprep.subr.mxu0 0.0
    %2467 = vmatpush1.xpose.msra.mxu0 0.0
    %2468 = vmatprep.subr.mxu0 0.0
    %2469 = vmatpush1.xpose.msra.mxu0 0.0
    %2470 = vmatprep.mubr.f32.mxu0 0.0
    %2471 = vmatmul.mubr.f32.gmra.mrb[0].mxu0 %v2401
    %v2472 = vpop.f32.mrb[0].mxu0
    %v2473 = vadd.f32 0.0, %v2472
    %v2474 = vpop.f32.mrb[0].mxu0
    %2475 = vdwg.mxu0
    %v2477 = vsel %vm1294, %v1189, 0
    %v2480 = vsel %vm1294, %v1293, 0
    %2482 = vmatprep.subr.mxu0 0.0
    %2483 = vmatpush1.xpose.msra.mxu0 %v2480
    %2484 = vmatprep.subr.mxu0 0.0
    %2485 = vmatpush1.xpose.msra.mxu0 0.0
    %2486 = vmatprep.subr.mxu0 0.0
    %2487 = vmatpush1.xpose.msra.mxu0 0.0
    %2488 = vmatprep.subr.mxu0 0.0
    %2489 = vmatpush1.xpose.msra.mxu0 0.0
    %2490 = vmatprep.subr.mxu0 0.0
    %2491 = vmatpush1.xpose.msra.mxu0 0.0
    %2492 = vmatprep.subr.mxu0 0.0
    %2493 = vmatpush1.xpose.msra.mxu0 0.0
    %2494 = vmatprep.subr.mxu0 0.0
    %2495 = vmatpush1.xpose.msra.mxu0 0.0
    %2496 = vmatprep.subr.mxu0 0.0
    %2497 = vmatpush1.xpose.msra.mxu0 0.0
    %2498 = vmatprep.subr.mxu0 0.0
    %2499 = vmatpush1.xpose.msra.mxu0 0.0
    %2500 = vmatprep.subr.mxu0 0.0
    %2501 = vmatpush1.xpose.msra.mxu0 0.0
    %2502 = vmatprep.subr.mxu0 0.0
    %2503 = vmatpush1.xpose.msra.mxu0 0.0
    %2504 = vmatprep.subr.mxu0 0.0
    %2505 = vmatpush1.xpose.msra.mxu0 0.0
    %2506 = vmatprep.subr.mxu0 0.0
    %2507 = vmatpush1.xpose.msra.mxu0 0.0
    %2508 = vmatprep.subr.mxu0 0.0
    %2509 = vmatpush1.xpose.msra.mxu0 0.0
    %2510 = vmatprep.subr.mxu0 0.0
    %2511 = vmatpush1.xpose.msra.mxu0 0.0
    %2512 = vmatprep.subr.mxu0 0.0
    %2513 = vmatpush1.xpose.msra.mxu0 0.0
    %2514 = vmatprep.subr.mxu0 0.0
    %2515 = vmatpush1.xpose.msra.mxu0 0.0
    %2516 = vmatprep.subr.mxu0 0.0
    %2517 = vmatpush1.xpose.msra.mxu0 0.0
    %2518 = vmatprep.subr.mxu0 0.0
    %2519 = vmatpush1.xpose.msra.mxu0 0.0
    %2520 = vmatprep.subr.mxu0 0.0
    %2521 = vmatpush1.xpose.msra.mxu0 0.0
    %2522 = vmatprep.subr.mxu0 0.0
    %2523 = vmatpush1.xpose.msra.mxu0 0.0
    %2524 = vmatprep.subr.mxu0 0.0
    %2525 = vmatpush1.xpose.msra.mxu0 0.0
    %2526 = vmatprep.subr.mxu0 0.0
    %2527 = vmatpush1.xpose.msra.mxu0 0.0
    %2528 = vmatprep.subr.mxu0 0.0
    %2529 = vmatpush1.xpose.msra.mxu0 0.0
    %2530 = vmatprep.subr.mxu0 0.0
    %2531 = vmatpush1.xpose.msra.mxu0 0.0
    %2532 = vmatprep.subr.mxu0 0.0
    %2533 = vmatpush1.xpose.msra.mxu0 0.0
    %2534 = vmatprep.subr.mxu0 0.0
    %2535 = vmatpush1.xpose.msra.mxu0 0.0
    %2536 = vmatprep.subr.mxu0 0.0
    %2537 = vmatpush1.xpose.msra.mxu0 0.0
    %2538 = vmatprep.subr.mxu0 0.0
    %2539 = vmatpush1.xpose.msra.mxu0 0.0
    %2540 = vmatprep.subr.mxu0 0.0
    %2541 = vmatpush1.xpose.msra.mxu0 0.0
    %2542 = vmatprep.subr.mxu0 0.0
    %2543 = vmatpush1.xpose.msra.mxu0 0.0
    %2544 = vmatprep.subr.mxu0 0.0
    %2545 = vmatpush1.xpose.msra.mxu0 0.0
    %2546 = vmatprep.mubr.f32.mxu0 0.0
    %2547 = vmatmul.mubr.f32.gmra.mrb[0].mxu0 %v2477
    %v2548 = vpop.f32.mrb[0].mxu0
    %v2549 = vadd.f32 0.0, %v2548
    %v2550 = vpop.f32.mrb[0].mxu0
    %2551 = vdwg.mxu0
    %v2552 = vsel %vm1600, %v2321, -1e+30
    %v2553 = vsel %vm1600, %v2397, -1e+30
    %v2554 = vsel %vm1600, %v2473, -1e+30
    %v2555 = vsel %vm1600, %v2549, -1e+30
    %v2556 = vsel %vm1157, %v2552, -inf
    %2557 = vmax.xlane.f32.xlu0 %v2556
    %v2558 = vpop.xlane.xlu0 %2557
    %v2559 = vsel %vm1157, %v2553, -inf
    %2560 = vmax.xlane.f32.xlu0 %v2559
    %v2561 = vpop.xlane.xlu0 %2560
    %v2562 = vsel %vm1157, %v2554, -inf
    %2563 = vmax.xlane.f32.xlu0 %v2562
    %v2564 = vpop.xlane.xlu0 %2563
    %v2565 = vsel %vm1157, %v2555, -inf
    %2566 = vmax.xlane.f32.xlu0 %v2565
    %v2567 = vpop.xlane.xlu0 %2566
    %v2568 = vsub.f32 %v2552, %v2558
    %v2569 = vsub.f32 %v2553, %v2561
    %v2570 = vsub.f32 %v2554, %v2564
    %v2571 = vsub.f32 %v2555, %v2567
    %v2572 = vmul.f32 %v2568, 1.442695
    %v2573 = vpow.pop %v2572
    %v2574 = vmul.f32 %v2569, 1.442695
    %v2575 = vpow.pop %v2574
    %v2576 = vmul.f32 %v2570, 1.442695
    %v2577 = vpow.pop %v2576
    %v2578 = vmul.f32 %v2571, 1.442695
    %v2579 = vpow.pop %v2578
    %v2580 = vsel %vm1157, %v2573, 0.0
    %2581 = vadd.xlane.f32.xlu0 %v2580
    %v2582 = vpop.xlane.xlu0 %2581
    %v2583 = vsel %vm1157, %v2575, 0.0
    %2584 = vadd.xlane.f32.xlu0 %v2583
    %v2585 = vpop.xlane.xlu0 %2584
    %v2586 = vsel %vm1157, %v2577, 0.0
    %2587 = vadd.xlane.f32.xlu0 %v2586
    %v2588 = vpop.xlane.xlu0 %2587
    %v2589 = vsel %vm1157, %v2579, 0.0
    %2590 = vadd.xlane.f32.xlu0 %v2589
    %v2591 = vpop.xlane.xlu0 %2590
    %v2592 = vrcp.pop %v2582
    %v2593 = vrcp.pop %v2585
    %v2594 = vrcp.pop %v2588
    %v2595 = vrcp.pop %v2591
    %v2596 = vmul.f32 %v2573, %v2592
    %v2597 = vmul.f32 %v2575, %v2593
    %v2598 = vmul.f32 %v2577, %v2594
    %v2599 = vmul.f32 %v2579, %v2595
    %v2601 = vsel %vm1157, %v2596, 0
    %2603 = vmatprep.subr.mxu0 0.0
    %2604 = vmatpush1.msra.mxu0 %v857
    %2605 = vmatprep.subr.mxu0 0.0
    %2606 = vmatpush1.msra.mxu0 0.0
    %2607 = vmatprep.subr.mxu0 0.0
    %2608 = vmatpush1.msra.mxu0 0.0
    %2609 = vmatprep.subr.mxu0 0.0
    %2610 = vmatpush1.msra.mxu0 0.0
    %2611 = vmatprep.subr.mxu0 0.0
    %2612 = vmatpush1.msra.mxu0 0.0
    %2613 = vmatprep.subr.mxu0 0.0
    %2614 = vmatpush1.msra.mxu0 0.0
    %2615 = vmatprep.subr.mxu0 0.0
    %2616 = vmatpush1.msra.mxu0 0.0
    %2617 = vmatprep.subr.mxu0 0.0
    %2618 = vmatpush1.msra.mxu0 0.0
    %2619 = vmatprep.subr.mxu0 0.0
    %2620 = vmatpush1.msra.mxu0 0.0
    %2621 = vmatprep.subr.mxu0 0.0
    %2622 = vmatpush1.msra.mxu0 0.0
    %2623 = vmatprep.subr.mxu0 0.0
    %2624 = vmatpush1.msra.mxu0 0.0
    %2625 = vmatprep.subr.mxu0 0.0
    %2626 = vmatpush1.msra.mxu0 0.0
    %2627 = vmatprep.subr.mxu0 0.0
    %2628 = vmatpush1.msra.mxu0 0.0
    %2629 = vmatprep.subr.mxu0 0.0
    %2630 = vmatpush1.msra.mxu0 0.0
    %2631 = vmatprep.subr.mxu0 0.0
    %2632 = vmatpush1.msra.mxu0 0.0
    %2633 = vmatprep.subr.mxu0 0.0
    %2634 = vmatpush1.msra.mxu0 0.0
    %2635 = vmatprep.subr.mxu0 0.0
    %2636 = vmatpush1.msra.mxu0 0.0
    %2637 = vmatprep.subr.mxu0 0.0
    %2638 = vmatpush1.msra.mxu0 0.0
    %2639 = vmatprep.subr.mxu0 0.0
    %2640 = vmatpush1.msra.mxu0 0.0
    %2641 = vmatprep.subr.mxu0 0.0
    %2642 = vmatpush1.msra.mxu0 0.0
    %2643 = vmatprep.subr.mxu0 0.0
    %2644 = vmatpush1.msra.mxu0 0.0
    %2645 = vmatprep.subr.mxu0 0.0
    %2646 = vmatpush1.msra.mxu0 0.0
    %2647 = vmatprep.subr.mxu0 0.0
    %2648 = vmatpush1.msra.mxu0 0.0
    %2649 = vmatprep.subr.mxu0 0.0
    %2650 = vmatpush1.msra.mxu0 0.0
    %2651 = vmatprep.subr.mxu0 0.0
    %2652 = vmatpush1.msra.mxu0 0.0
    %2653 = vmatprep.subr.mxu0 0.0
    %2654 = vmatpush1.msra.mxu0 0.0
    %2655 = vmatprep.subr.mxu0 0.0
    %2656 = vmatpush1.msra.mxu0 0.0
    %2657 = vmatprep.subr.mxu0 0.0
    %2658 = vmatpush1.msra.mxu0 0.0
    %2659 = vmatprep.subr.mxu0 0.0
    %2660 = vmatpush1.msra.mxu0 0.0
    %2661 = vmatprep.subr.mxu0 0.0
    %2662 = vmatpush1.msra.mxu0 0.0
    %2663 = vmatprep.subr.mxu0 0.0
    %2664 = vmatpush1.msra.mxu0 0.0
    %2665 = vmatprep.subr.mxu0 0.0
    %2666 = vmatpush1.msra.mxu0 0.0
    %2667 = vmatprep.mubr.f32.mxu0 0.0
    %2668 = vmatmul.mubr.f32.gmra.mrb[0].mxu0 %v2601
    %v2669 = vpop.f32.mrb[0].mxu0
    %v2670 = vadd.f32 0.0, %v2669
    %v2671 = vpop.f32.mrb[0].mxu0
    %2672 = vdwg.mxu0
    %v2674 = vsel %vm1157, %v2597, 0
    %2676 = vmatprep.subr.mxu0 0.0
    %2677 = vmatpush1.msra.mxu0 %v932
    %2678 = vmatprep.subr.mxu0 0.0
    %2679 = vmatpush1.msra.mxu0 0.0
    %2680 = vmatprep.subr.mxu0 0.0
    %2681 = vmatpush1.msra.mxu0 0.0
    %2682 = vmatprep.subr.mxu0 0.0
    %2683 = vmatpush1.msra.mxu0 0.0
    %2684 = vmatprep.subr.mxu0 0.0
    %2685 = vmatpush1.msra.mxu0 0.0
    %2686 = vmatprep.subr.mxu0 0.0
    %2687 = vmatpush1.msra.mxu0 0.0
    %2688 = vmatprep.subr.mxu0 0.0
    %2689 = vmatpush1.msra.mxu0 0.0
    %2690 = vmatprep.subr.mxu0 0.0
    %2691 = vmatpush1.msra.mxu0 0.0
    %2692 = vmatprep.subr.mxu0 0.0
    %2693 = vmatpush1.msra.mxu0 0.0
    %2694 = vmatprep.subr.mxu0 0.0
    %2695 = vmatpush1.msra.mxu0 0.0
    %2696 = vmatprep.subr.mxu0 0.0
    %2697 = vmatpush1.msra.mxu0 0.0
    %2698 = vmatprep.subr.mxu0 0.0
    %2699 = vmatpush1.msra.mxu0 0.0
    %2700 = vmatprep.subr.mxu0 0.0
    %2701 = vmatpush1.msra.mxu0 0.0
    %2702 = vmatprep.subr.mxu0 0.0
    %2703 = vmatpush1.msra.mxu0 0.0
    %2704 = vmatprep.subr.mxu0 0.0
    %2705 = vmatpush1.msra.mxu0 0.0
    %2706 = vmatprep.subr.mxu0 0.0
    %2707 = vmatpush1.msra.mxu0 0.0
    %2708 = vmatprep.subr.mxu0 0.0
    %2709 = vmatpush1.msra.mxu0 0.0
    %2710 = vmatprep.subr.mxu0 0.0
    %2711 = vmatpush1.msra.mxu0 0.0
    %2712 = vmatprep.subr.mxu0 0.0
    %2713 = vmatpush1.msra.mxu0 0.0
    %2714 = vmatprep.subr.mxu0 0.0
    %2715 = vmatpush1.msra.mxu0 0.0
    %2716 = vmatprep.subr.mxu0 0.0
    %2717 = vmatpush1.msra.mxu0 0.0
    %2718 = vmatprep.subr.mxu0 0.0
    %2719 = vmatpush1.msra.mxu0 0.0
    %2720 = vmatprep.subr.mxu0 0.0
    %2721 = vmatpush1.msra.mxu0 0.0
    %2722 = vmatprep.subr.mxu0 0.0
    %2723 = vmatpush1.msra.mxu0 0.0
    %2724 = vmatprep.subr.mxu0 0.0
    %2725 = vmatpush1.msra.mxu0 0.0
    %2726 = vmatprep.subr.mxu0 0.0
    %2727 = vmatpush1.msra.mxu0 0.0
    %2728 = vmatprep.subr.mxu0 0.0
    %2729 = vmatpush1.msra.mxu0 0.0
    %2730 = vmatprep.subr.mxu0 0.0
    %2731 = vmatpush1.msra.mxu0 0.0
    %2732 = vmatprep.subr.mxu0 0.0
    %2733 = vmatpush1.msra.mxu0 0.0
    %2734 = vmatprep.subr.mxu0 0.0
    %2735 = vmatpush1.msra.mxu0 0.0
    %2736 = vmatprep.subr.mxu0 0.0
    %2737 = vmatpush1.msra.mxu0 0.0
    %2738 = vmatprep.subr.mxu0 0.0
    %2739 = vmatpush1.msra.mxu0 0.0
    %2740 = vmatprep.mubr.f32.mxu0 0.0
    %2741 = vmatmul.mubr.f32.gmra.mrb[0].mxu0 %v2674
    %v2742 = vpop.f32.mrb[0].mxu0
    %v2743 = vadd.f32 0.0, %v2742
    %v2744 = vpop.f32.mrb[0].mxu0
    %2745 = vdwg.mxu0
    %v2747 = vsel %vm1157, %v2598, 0
    %2749 = vmatprep.subr.mxu0 0.0
    %2750 = vmatpush1.msra.mxu0 %v1007
    %2751 = vmatprep.subr.mxu0 0.0
    %2752 = vmatpush1.msra.mxu0 0.0
    %2753 = vmatprep.subr.mxu0 0.0
    %2754 = vmatpush1.msra.mxu0 0.0
    %2755 = vmatprep.subr.mxu0 0.0
    %2756 = vmatpush1.msra.mxu0 0.0
    %2757 = vmatprep.subr.mxu0 0.0
    %2758 = vmatpush1.msra.mxu0 0.0
    %2759 = vmatprep.subr.mxu0 0.0
    %2760 = vmatpush1.msra.mxu0 0.0
    %2761 = vmatprep.subr.mxu0 0.0
    %2762 = vmatpush1.msra.mxu0 0.0
    %2763 = vmatprep.subr.mxu0 0.0
    %2764 = vmatpush1.msra.mxu0 0.0
    %2765 = vmatprep.subr.mxu0 0.0
    %2766 = vmatpush1.msra.mxu0 0.0
    %2767 = vmatprep.subr.mxu0 0.0
    %2768 = vmatpush1.msra.mxu0 0.0
    %2769 = vmatprep.subr.mxu0 0.0
    %2770 = vmatpush1.msra.mxu0 0.0
    %2771 = vmatprep.subr.mxu0 0.0
    %2772 = vmatpush1.msra.mxu0 0.0
    %2773 = vmatprep.subr.mxu0 0.0
    %2774 = vmatpush1.msra.mxu0 0.0
    %2775 = vmatprep.subr.mxu0 0.0
    %2776 = vmatpush1.msra.mxu0 0.0
    %2777 = vmatprep.subr.mxu0 0.0
    %2778 = vmatpush1.msra.mxu0 0.0
    %2779 = vmatprep.subr.mxu0 0.0
    %2780 = vmatpush1.msra.mxu0 0.0
    %2781 = vmatprep.subr.mxu0 0.0
    %2782 = vmatpush1.msra.mxu0 0.0
    %2783 = vmatprep.subr.mxu0 0.0
    %2784 = vmatpush1.msra.mxu0 0.0
    %2785 = vmatprep.subr.mxu0 0.0
    %2786 = vmatpush1.msra.mxu0 0.0
    %2787 = vmatprep.subr.mxu0 0.0
    %2788 = vmatpush1.msra.mxu0 0.0
    %2789 = vmatprep.subr.mxu0 0.0
    %2790 = vmatpush1.msra.mxu0 0.0
    %2791 = vmatprep.subr.mxu0 0.0
    %2792 = vmatpush1.msra.mxu0 0.0
    %2793 = vmatprep.subr.mxu0 0.0
    %2794 = vmatpush1.msra.mxu0 0.0
    %2795 = vmatprep.subr.mxu0 0.0
    %2796 = vmatpush1.msra.mxu0 0.0
    %2797 = vmatprep.subr.mxu0 0.0
    %2798 = vmatpush1.msra.mxu0 0.0
    %2799 = vmatprep.subr.mxu0 0.0
    %2800 = vmatpush1.msra.mxu0 0.0
    %2801 = vmatprep.subr.mxu0 0.0
    %2802 = vmatpush1.msra.mxu0 0.0
    %2803 = vmatprep.subr.mxu0 0.0
    %2804 = vmatpush1.msra.mxu0 0.0
    %2805 = vmatprep.subr.mxu0 0.0
    %2806 = vmatpush1.msra.mxu0 0.0
    %2807 = vmatprep.subr.mxu0 0.0
    %2808 = vmatpush1.msra.mxu0 0.0
    %2809 = vmatprep.subr.mxu0 0.0
    %2810 = vmatpush1.msra.mxu0 0.0
    %2811 = vmatprep.subr.mxu0 0.0
    %2812 = vmatpush1.msra.mxu0 0.0
    %2813 = vmatprep.mubr.f32.mxu0 0.0
    %2814 = vmatmul.mubr.f32.gmra.mrb[0].mxu0 %v2747
    %v2815 = vpop.f32.mrb[0].mxu0
    %v2816 = vadd.f32 0.0, %v2815
    %v2817 = vpop.f32.mrb[0].mxu0
    %2818 = vdwg.mxu0
    %v2820 = vsel %vm1157, %v2599, 0
    %2822 = vmatprep.subr.mxu0 0.0
    %2823 = vmatpush1.msra.mxu0 %v1082
    %2824 = vmatprep.subr.mxu0 0.0
    %2825 = vmatpush1.msra.mxu0 0.0
    %2826 = vmatprep.subr.mxu0 0.0
    %2827 = vmatpush1.msra.mxu0 0.0
    %2828 = vmatprep.subr.mxu0 0.0
    %2829 = vmatpush1.msra.mxu0 0.0
    %2830 = vmatprep.subr.mxu0 0.0
    %2831 = vmatpush1.msra.mxu0 0.0
    %2832 = vmatprep.subr.mxu0 0.0
    %2833 = vmatpush1.msra.mxu0 0.0
    %2834 = vmatprep.subr.mxu0 0.0
    %2835 = vmatpush1.msra.mxu0 0.0
    %2836 = vmatprep.subr.mxu0 0.0
    %2837 = vmatpush1.msra.mxu0 0.0
    %2838 = vmatprep.subr.mxu0 0.0
    %2839 = vmatpush1.msra.mxu0 0.0
    %2840 = vmatprep.subr.mxu0 0.0
    %2841 = vmatpush1.msra.mxu0 0.0
    %2842 = vmatprep.subr.mxu0 0.0
    %2843 = vmatpush1.msra.mxu0 0.0
    %2844 = vmatprep.subr.mxu0 0.0
    %2845 = vmatpush1.msra.mxu0 0.0
    %2846 = vmatprep.subr.mxu0 0.0
    %2847 = vmatpush1.msra.mxu0 0.0
    %2848 = vmatprep.subr.mxu0 0.0
    %2849 = vmatpush1.msra.mxu0 0.0
    %2850 = vmatprep.subr.mxu0 0.0
    %2851 = vmatpush1.msra.mxu0 0.0
    %2852 = vmatprep.subr.mxu0 0.0
    %2853 = vmatpush1.msra.mxu0 0.0
    %2854 = vmatprep.subr.mxu0 0.0
    %2855 = vmatpush1.msra.mxu0 0.0
    %2856 = vmatprep.subr.mxu0 0.0
    %2857 = vmatpush1.msra.mxu0 0.0
    %2858 = vmatprep.subr.mxu0 0.0
    %2859 = vmatpush1.msra.mxu0 0.0
    %2860 = vmatprep.subr.mxu0 0.0
    %2861 = vmatpush1.msra.mxu0 0.0
    %2862 = vmatprep.subr.mxu0 0.0
    %2863 = vmatpush1.msra.mxu0 0.0
    %2864 = vmatprep.subr.mxu0 0.0
    %2865 = vmatpush1.msra.mxu0 0.0
    %2866 = vmatprep.subr.mxu0 0.0
    %2867 = vmatpush1.msra.mxu0 0.0
    %2868 = vmatprep.subr.mxu0 0.0
    %2869 = vmatpush1.msra.mxu0 0.0
    %2870 = vmatprep.subr.mxu0 0.0
    %2871 = vmatpush1.msra.mxu0 0.0
    %2872 = vmatprep.subr.mxu0 0.0
    %2873 = vmatpush1.msra.mxu0 0.0
    %2874 = vmatprep.subr.mxu0 0.0
    %2875 = vmatpush1.msra.mxu0 0.0
    %2876 = vmatprep.subr.mxu0 0.0
    %2877 = vmatpush1.msra.mxu0 0.0
    %2878 = vmatprep.subr.mxu0 0.0
    %2879 = vmatpush1.msra.mxu0 0.0
    %2880 = vmatprep.subr.mxu0 0.0
    %2881 = vmatpush1.msra.mxu0 0.0
    %2882 = vmatprep.subr.mxu0 0.0
    %2883 = vmatpush1.msra.mxu0 0.0
    %2884 = vmatprep.subr.mxu0 0.0
    %2885 = vmatpush1.msra.mxu0 0.0
    %2886 = vmatprep.mubr.f32.mxu0 0.0
    %2887 = vmatmul.mubr.f32.gmra.mrb[0].mxu0 %v2820
    %v2888 = vpop.f32.mrb[0].mxu0
    %v2889 = vadd.f32 0.0, %v2888
    %v2890 = vpop.f32.mrb[0].mxu0
    %2891 = vdwg.mxu0
    %v2892 = vld [vmem:[%s7] sm:$0xff]
    %v2893 = vld [vmem:[%s7 + $0x8] sm:$0xff]
    %v2894 = vld [vmem:[%s7 + $0x10] sm:$0xff]
    %v2895 = vld [vmem:[%s7 + $0x18] sm:$0xff]
    %v2896 = vld [vmem:[%s7 + $0x20] sm:$0xff]
    %v2897 = vld [vmem:[%s7 + $0x28] sm:$0xff]
    %v2898 = vld [vmem:[%s7 + $0x30] sm:$0xff]
    %v2899 = vld [vmem:[%s7 + $0x38] sm:$0xff]
    %v2901 = vsel %vm1294, %v2670, 0
    %2903 = vmatprep.subr.mxu0 0.0
    %2904 = vmatpush1.msra.mxu0 %v2892
    %2905 = vmatprep.subr.mxu0 0.0
    %2906 = vmatpush1.msra.mxu0 %v2893
    %2907 = vmatprep.subr.mxu0 0.0
    %2908 = vmatpush1.msra.mxu0 0.0
    %2909 = vmatprep.subr.mxu0 0.0
    %2910 = vmatpush1.msra.mxu0 0.0
    %2911 = vmatprep.subr.mxu0 0.0
    %2912 = vmatpush1.msra.mxu0 0.0
    %2913 = vmatprep.subr.mxu0 0.0
    %2914 = vmatpush1.msra.mxu0 0.0
    %2915 = vmatprep.subr.mxu0 0.0
    %2916 = vmatpush1.msra.mxu0 0.0
    %2917 = vmatprep.subr.mxu0 0.0
    %2918 = vmatpush1.msra.mxu0 0.0
    %2919 = vmatprep.subr.mxu0 0.0
    %2920 = vmatpush1.msra.mxu0 0.0
    %2921 = vmatprep.subr.mxu0 0.0
    %2922 = vmatpush1.msra.mxu0 0.0
    %2923 = vmatprep.subr.mxu0 0.0
    %2924 = vmatpush1.msra.mxu0 0.0
    %2925 = vmatprep.subr.mxu0 0.0
    %2926 = vmatpush1.msra.mxu0 0.0
    %2927 = vmatprep.subr.mxu0 0.0
    %2928 = vmatpush1.msra.mxu0 0.0
    %2929 = vmatprep.subr.mxu0 0.0
    %2930 = vmatpush1.msra.mxu0 0.0
    %2931 = vmatprep.subr.mxu0 0.0
    %2932 = vmatpush1.msra.mxu0 0.0
    %2933 = vmatprep.subr.mxu0 0.0
    %2934 = vmatpush1.msra.mxu0 0.0
    %2935 = vmatprep.subr.mxu0 0.0
    %2936 = vmatpush1.msra.mxu0 0.0
    %2937 = vmatprep.subr.mxu0 0.0
    %2938 = vmatpush1.msra.mxu0 0.0
    %2939 = vmatprep.subr.mxu0 0.0
    %2940 = vmatpush1.msra.mxu0 0.0
    %2941 = vmatprep.subr.mxu0 0.0
    %2942 = vmatpush1.msra.mxu0 0.0
    %2943 = vmatprep.subr.mxu0 0.0
    %2944 = vmatpush1.msra.mxu0 0.0
    %2945 = vmatprep.subr.mxu0 0.0
    %2946 = vmatpush1.msra.mxu0 0.0
    %2947 = vmatprep.subr.mxu0 0.0
    %2948 = vmatpush1.msra.mxu0 0.0
    %2949 = vmatprep.subr.mxu0 0.0
    %2950 = vmatpush1.msra.mxu0 0.0
    %2951 = vmatprep.subr.mxu0 0.0
    %2952 = vmatpush1.msra.mxu0 0.0
    %2953 = vmatprep.subr.mxu0 0.0
    %2954 = vmatpush1.msra.mxu0 0.0
    %2955 = vmatprep.subr.mxu0 0.0
    %2956 = vmatpush1.msra.mxu0 0.0
    %2957 = vmatprep.subr.mxu0 0.0
    %2958 = vmatpush1.msra.mxu0 0.0
    %2959 = vmatprep.subr.mxu0 0.0
    %2960 = vmatpush1.msra.mxu0 0.0
    %2961 = vmatprep.subr.mxu0 0.0
    %2962 = vmatpush1.msra.mxu0 0.0
    %2963 = vmatprep.subr.mxu0 0.0
    %2964 = vmatpush1.msra.mxu0 0.0
    %2965 = vmatprep.subr.mxu0 0.0
    %2966 = vmatpush1.msra.mxu0 0.0
    %2967 = vmatprep.mubr.f32.mxu0 0.0
    %2968 = vmatmul.mubr.f32.gmra.mrb[0].mxu0 %v2901
    %v2969 = vpop.f32.mrb[0].mxu0
    %v2970 = vadd.f32 0.0, %v2969
    %v2971 = vpop.f32.mrb[0].mxu0
    %2972 = vdwg.mxu0
    %v2974 = vsel %vm1294, %v2743, 0
    %2976 = vmatprep.subr.mxu0 0.0
    %2977 = vmatpush1.msra.mxu0 %v2894
    %2978 = vmatprep.subr.mxu0 0.0
    %2979 = vmatpush1.msra.mxu0 %v2895
    %2980 = vmatprep.subr.mxu0 0.0
    %2981 = vmatpush1.msra.mxu0 0.0
    %2982 = vmatprep.subr.mxu0 0.0
    %2983 = vmatpush1.msra.mxu0 0.0
    %2984 = vmatprep.subr.mxu0 0.0
    %2985 = vmatpush1.msra.mxu0 0.0
    %2986 = vmatprep.subr.mxu0 0.0
    %2987 = vmatpush1.msra.mxu0 0.0
    %2988 = vmatprep.subr.mxu0 0.0
    %2989 = vmatpush1.msra.mxu0 0.0
    %2990 = vmatprep.subr.mxu0 0.0
    %2991 = vmatpush1.msra.mxu0 0.0
    %2992 = vmatprep.subr.mxu0 0.0
    %2993 = vmatpush1.msra.mxu0 0.0
    %2994 = vmatprep.subr.mxu0 0.0
    %2995 = vmatpush1.msra.mxu0 0.0
    %2996 = vmatprep.subr.mxu0 0.0
    %2997 = vmatpush1.msra.mxu0 0.0
    %2998 = vmatprep.subr.mxu0 0.0
    %2999 = vmatpush1.msra.mxu0 0.0
    %3000 = vmatprep.subr.mxu0 0.0
    %3001 = vmatpush1.msra.mxu0 0.0
    %3002 = vmatprep.subr.mxu0 0.0
    %3003 = vmatpush1.msra.mxu0 0.0
    %3004 = vmatprep.subr.mxu0 0.0
    %3005 = vmatpush1.msra.mxu0 0.0
    %3006 = vmatprep.subr.mxu0 0.0
    %3007 = vmatpush1.msra.mxu0 0.0
    %3008 = vmatprep.subr.mxu0 0.0
    %3009 = vmatpush1.msra.mxu0 0.0
    %3010 = vmatprep.subr.mxu0 0.0
    %3011 = vmatpush1.msra.mxu0 0.0
    %3012 = vmatprep.subr.mxu0 0.0
    %3013 = vmatpush1.msra.mxu0 0.0
    %3014 = vmatprep.subr.mxu0 0.0
    %3015 = vmatpush1.msra.mxu0 0.0
    %3016 = vmatprep.subr.mxu0 0.0
    %3017 = vmatpush1.msra.mxu0 0.0
    %3018 = vmatprep.subr.mxu0 0.0
    %3019 = vmatpush1.msra.mxu0 0.0
    %3020 = vmatprep.subr.mxu0 0.0
    %3021 = vmatpush1.msra.mxu0 0.0
    %3022 = vmatprep.subr.mxu0 0.0
    %3023 = vmatpush1.msra.mxu0 0.0
    %3024 = vmatprep.subr.mxu0 0.0
    %3025 = vmatpush1.msra.mxu0 0.0
    %3026 = vmatprep.subr.mxu0 0.0
    %3027 = vmatpush1.msra.mxu0 0.0
    %3028 = vmatprep.subr.mxu0 0.0
    %3029 = vmatpush1.msra.mxu0 0.0
    %3030 = vmatprep.subr.mxu0 0.0
    %3031 = vmatpush1.msra.mxu0 0.0
    %3032 = vmatprep.subr.mxu0 0.0
    %3033 = vmatpush1.msra.mxu0 0.0
    %3034 = vmatprep.subr.mxu0 0.0
    %3035 = vmatpush1.msra.mxu0 0.0
    %3036 = vmatprep.subr.mxu0 0.0
    %3037 = vmatpush1.msra.mxu0 0.0
    %3038 = vmatprep.subr.mxu0 0.0
    %3039 = vmatpush1.msra.mxu0 0.0
    %3040 = vmatprep.mubr.f32.mxu0 0.0
    %3041 = vmatmul.mubr.f32.gmra.mrb[0].mxu0 %v2974
    %v3042 = vpop.f32.mrb[0].mxu0
    %v3043 = vadd.f32 0.0, %v3042
    %v3044 = vpop.f32.mrb[0].mxu0
    %3045 = vdwg.mxu0
    %v3047 = vsel %vm1294, %v2816, 0
    %3049 = vmatprep.subr.mxu0 0.0
    %3050 = vmatpush1.msra.mxu0 %v2896
    %3051 = vmatprep.subr.mxu0 0.0
    %3052 = vmatpush1.msra.mxu0 %v2897
    %3053 = vmatprep.subr.mxu0 0.0
    %3054 = vmatpush1.msra.mxu0 0.0
    %3055 = vmatprep.subr.mxu0 0.0
    %3056 = vmatpush1.msra.mxu0 0.0
    %3057 = vmatprep.subr.mxu0 0.0
    %3058 = vmatpush1.msra.mxu0 0.0
    %3059 = vmatprep.subr.mxu0 0.0
    %3060 = vmatpush1.msra.mxu0 0.0
    %3061 = vmatprep.subr.mxu0 0.0
    %3062 = vmatpush1.msra.mxu0 0.0
    %3063 = vmatprep.subr.mxu0 0.0
    %3064 = vmatpush1.msra.mxu0 0.0
    %3065 = vmatprep.subr.mxu0 0.0
    %3066 = vmatpush1.msra.mxu0 0.0
    %3067 = vmatprep.subr.mxu0 0.0
    %3068 = vmatpush1.msra.mxu0 0.0
    %3069 = vmatprep.subr.mxu0 0.0
    %3070 = vmatpush1.msra.mxu0 0.0
    %3071 = vmatprep.subr.mxu0 0.0
    %3072 = vmatpush1.msra.mxu0 0.0
    %3073 = vmatprep.subr.mxu0 0.0
    %3074 = vmatpush1.msra.mxu0 0.0
    %3075 = vmatprep.subr.mxu0 0.0
    %3076 = vmatpush1.msra.mxu0 0.0
    %3077 = vmatprep.subr.mxu0 0.0
    %3078 = vmatpush1.msra.mxu0 0.0
    %3079 = vmatprep.subr.mxu0 0.0
    %3080 = vmatpush1.msra.mxu0 0.0
    %3081 = vmatprep.subr.mxu0 0.0
    %3082 = vmatpush1.msra.mxu0 0.0
    %3083 = vmatprep.subr.mxu0 0.0
    %3084 = vmatpush1.msra.mxu0 0.0
    %3085 = vmatprep.subr.mxu0 0.0
    %3086 = vmatpush1.msra.mxu0 0.0
    %3087 = vmatprep.subr.mxu0 0.0
    %3088 = vmatpush1.msra.mxu0 0.0
    %3089 = vmatprep.subr.mxu0 0.0
    %3090 = vmatpush1.msra.mxu0 0.0
    %3091 = vmatprep.subr.mxu0 0.0
    %3092 = vmatpush1.msra.mxu0 0.0
    %3093 = vmatprep.subr.mxu0 0.0
    %3094 = vmatpush1.msra.mxu0 0.0
    %3095 = vmatprep.subr.mxu0 0.0
    %3096 = vmatpush1.msra.mxu0 0.0
    %3097 = vmatprep.subr.mxu0 0.0
    %3098 = vmatpush1.msra.mxu0 0.0
    %3099 = vmatprep.subr.mxu0 0.0
    %3100 = vmatpush1.msra.mxu0 0.0
    %3101 = vmatprep.subr.mxu0 0.0
    %3102 = vmatpush1.msra.mxu0 0.0
    %3103 = vmatprep.subr.mxu0 0.0
    %3104 = vmatpush1.msra.mxu0 0.0
    %3105 = vmatprep.subr.mxu0 0.0
    %3106 = vmatpush1.msra.mxu0 0.0
    %3107 = vmatprep.subr.mxu0 0.0
    %3108 = vmatpush1.msra.mxu0 0.0
    %3109 = vmatprep.subr.mxu0 0.0
    %3110 = vmatpush1.msra.mxu0 0.0
    %3111 = vmatprep.subr.mxu0 0.0
    %3112 = vmatpush1.msra.mxu0 0.0
    %3113 = vmatprep.mubr.f32.mxu0 0.0
    %3114 = vmatmul.mubr.f32.gmra.mrb[0].mxu0 %v3047
    %v3115 = vpop.f32.mrb[0].mxu0
    %v3116 = vadd.f32 0.0, %v3115
    %v3117 = vpop.f32.mrb[0].mxu0
    %3118 = vdwg.mxu0
    %v3120 = vsel %vm1294, %v2889, 0
    %3122 = vmatprep.subr.mxu0 0.0
    %3123 = vmatpush1.msra.mxu0 %v2898
    %3124 = vmatprep.subr.mxu0 0.0
    %3125 = vmatpush1.msra.mxu0 %v2899
    %3126 = vmatprep.subr.mxu0 0.0
    %3127 = vmatpush1.msra.mxu0 0.0
    %3128 = vmatprep.subr.mxu0 0.0
    %3129 = vmatpush1.msra.mxu0 0.0
    %3130 = vmatprep.subr.mxu0 0.0
    %3131 = vmatpush1.msra.mxu0 0.0
    %3132 = vmatprep.subr.mxu0 0.0
    %3133 = vmatpush1.msra.mxu0 0.0
    %3134 = vmatprep.subr.mxu0 0.0
    %3135 = vmatpush1.msra.mxu0 0.0
    %3136 = vmatprep.subr.mxu0 0.0
    %3137 = vmatpush1.msra.mxu0 0.0
    %3138 = vmatprep.subr.mxu0 0.0
    %3139 = vmatpush1.msra.mxu0 0.0
    %3140 = vmatprep.subr.mxu0 0.0
    %3141 = vmatpush1.msra.mxu0 0.0
    %3142 = vmatprep.subr.mxu0 0.0
    %3143 = vmatpush1.msra.mxu0 0.0
    %3144 = vmatprep.subr.mxu0 0.0
    %3145 = vmatpush1.msra.mxu0 0.0
    %3146 = vmatprep.subr.mxu0 0.0
    %3147 = vmatpush1.msra.mxu0 0.0
    %3148 = vmatprep.subr.mxu0 0.0
    %3149 = vmatpush1.msra.mxu0 0.0
    %3150 = vmatprep.subr.mxu0 0.0
    %3151 = vmatpush1.msra.mxu0 0.0
    %3152 = vmatprep.subr.mxu0 0.0
    %3153 = vmatpush1.msra.mxu0 0.0
    %3154 = vmatprep.subr.mxu0 0.0
    %3155 = vmatpush1.msra.mxu0 0.0
    %3156 = vmatprep.subr.mxu0 0.0
    %3157 = vmatpush1.msra.mxu0 0.0
    %3158 = vmatprep.subr.mxu0 0.0
    %3159 = vmatpush1.msra.mxu0 0.0
    %3160 = vmatprep.subr.mxu0 0.0
    %3161 = vmatpush1.msra.mxu0 0.0
    %3162 = vmatprep.subr.mxu0 0.0
    %3163 = vmatpush1.msra.mxu0 0.0
    %3164 = vmatprep.subr.mxu0 0.0
    %3165 = vmatpush1.msra.mxu0 0.0
    %3166 = vmatprep.subr.mxu0 0.0
    %3167 = vmatpush1.msra.mxu0 0.0
    %3168 = vmatprep.subr.mxu0 0.0
    %3169 = vmatpush1.msra.mxu0 0.0
    %3170 = vmatprep.subr.mxu0 0.0
    %3171 = vmatpush1.msra.mxu0 0.0
    %3172 = vmatprep.subr.mxu0 0.0
    %3173 = vmatpush1.msra.mxu0 0.0
    %3174 = vmatprep.subr.mxu0 0.0
    %3175 = vmatpush1.msra.mxu0 0.0
    %3176 = vmatprep.subr.mxu0 0.0
    %3177 = vmatpush1.msra.mxu0 0.0
    %3178 = vmatprep.subr.mxu0 0.0
    %3179 = vmatpush1.msra.mxu0 0.0
    %3180 = vmatprep.subr.mxu0 0.0
    %3181 = vmatpush1.msra.mxu0 0.0
    %3182 = vmatprep.subr.mxu0 0.0
    %3183 = vmatpush1.msra.mxu0 0.0
    %3184 = vmatprep.subr.mxu0 0.0
    %3185 = vmatpush1.msra.mxu0 0.0
    %3186 = vmatprep.mubr.f32.mxu0 0.0
    %3187 = vmatmul.mubr.f32.gmra.mrb[0].mxu0 %v3120
    %v3188 = vpop.f32.mrb[0].mxu0
    %v3189 = vadd.f32 0.0, %v3188
    %v3190 = vpop.f32.mrb[0].mxu0
    %3191 = vdwg.mxu0
    %v3192 = vsel %vm59, %v2970, 0.0
    %v3193 = vsel %vm59, %v3043, 0.0
    %v3194 = vadd.f32 %v3192, %v3193
    %v3195 = vsel %vm59, %v3116, 0.0
    %v3196 = vadd.f32 %v3194, %v3195
    %v3197 = vsel %vm59, %v3189, 0.0
    %v3198 = vadd.f32 %v3196, %v3197
    %v3199 = vadd.f32 %v45, %v2247
    %v3200 = vadd.f32 %v46, %v3198
    %v3201 = vld [vmem:[%s8] sm:$0x1]
    %v3202 = vmul.f32 %v3199, %v3199
    %v3203 = vmul.f32 %v3200, %v3200
    %v3204 = vsel %vm59, %v3202, 0.0
    %3205 = vadd.xlane.f32.xlu0 %v3204
    %v3206 = vpop.xlane.xlu0 %3205
    %v3207 = vsel %vm59, %v3203, 0.0
    %3208 = vadd.xlane.f32.xlu0 %v3207
    %v3209 = vpop.xlane.xlu0 %3208
    %v3210 = vmul.f32 %v3206, %v66
    %v3211 = vmul.f32 %v3209, %v66
    %v3212 = vadd.f32 %v3210, 1e-05
    %v3213 = vadd.f32 %v3211, 1e-05
    %v3214 = vrsqrt.pop %v3212
    %v3215 = vrsqrt.pop %v3213
    %v3216 = vmul.f32 %v3199, %v3214
    %v3217 = vmul.f32 %v3200, %v3215
    %v3219 = vlaneseq
    %v3220 = vshrl.u32 %v3219, 7
    %v3221 = vsub.s32 0, %v3220
    %v3222 = vrot.slane %v3201, %v3221
    %v3224 = vmul.f32 %v3216, %v3222
    %v3225 = vmul.f32 %v3217, %v3222
    %v3226 = vld [vmem:[%s9] sm:$0xff]
    %v3227 = vld [vmem:[%s9 + $0x8] sm:$0xff]
    %v3228 = vld [vmem:[%s9 + $0x10] sm:$0xff]
    %v3229 = vld [vmem:[%s9 + $0x18] sm:$0xff]
    %v3230 = vld [vmem:[%s9 + $0x20] sm:$0xff]
    %v3231 = vld [vmem:[%s9 + $0x28] sm:$0xff]
    %v3232 = vld [vmem:[%s9 + $0x30] sm:$0xff]
    %v3233 = vld [vmem:[%s9 + $0x38] sm:$0xff]
    %v3234 = vld [vmem:[%s9 + $0x40] sm:$0xff]
    %v3235 = vld [vmem:[%s9 + $0x48] sm:$0xff]
    %v3236 = vld [vmem:[%s9 + $0x50] sm:$0xff]
    %v3237 = vld [vmem:[%s9 + $0x58] sm:$0xff]
    %v3238 = vld [vmem:[%s9 + $0x60] sm:$0xff]
    %v3239 = vld [vmem:[%s9 + $0x68] sm:$0xff]
    %v3240 = vld [vmem:[%s9 + $0x70] sm:$0xff]
    %v3241 = vld [vmem:[%s9 + $0x78] sm:$0xff]
    %v3243 = vsel %vm59, %v3224, 0
    %v3246 = vsel %vm59, %v3225, 0
    %3248 = vmatprep.subr.mxu0 %v3227
    %3249 = vmatpush1.msra.mxu0 %v3226
    %3250 = vmatprep.subr.mxu0 %v3229
    %3251 = vmatpush1.msra.mxu0 %v3228
    %3252 = vmatprep.subr.mxu0 %v3231
    %3253 = vmatpush1.msra.mxu0 %v3230
    %3254 = vmatprep.subr.mxu0 %v3233
    %3255 = vmatpush1.msra.mxu0 %v3232
    %3256 = vmatprep.subr.mxu0 %v3235
    %3257 = vmatpush1.msra.mxu0 %v3234
    %3258 = vmatprep.subr.mxu0 %v3237
    %3259 = vmatpush1.msra.mxu0 %v3236
    %3260 = vmatprep.subr.mxu0 %v3239
    %3261 = vmatpush1.msra.mxu0 %v3238
    %3262 = vmatprep.subr.mxu0 %v3241
    %3263 = vmatpush1.msra.mxu0 %v3240
    %3264 = vmatprep.subr.mxu0 0.0
    %3265 = vmatpush1.msra.mxu0 0.0
    %3266 = vmatprep.subr.mxu0 0.0
    %3267 = vmatpush1.msra.mxu0 0.0
    %3268 = vmatprep.subr.mxu0 0.0
    %3269 = vmatpush1.msra.mxu0 0.0
    %3270 = vmatprep.subr.mxu0 0.0
    %3271 = vmatpush1.msra.mxu0 0.0
    %3272 = vmatprep.subr.mxu0 0.0
    %3273 = vmatpush1.msra.mxu0 0.0
    %3274 = vmatprep.subr.mxu0 0.0
    %3275 = vmatpush1.msra.mxu0 0.0
    %3276 = vmatprep.subr.mxu0 0.0
    %3277 = vmatpush1.msra.mxu0 0.0
    %3278 = vmatprep.subr.mxu0 0.0
    %3279 = vmatpush1.msra.mxu0 0.0
    %3280 = vmatprep.subr.mxu0 0.0
    %3281 = vmatpush1.msra.mxu0 0.0
    %3282 = vmatprep.subr.mxu0 0.0
    %3283 = vmatpush1.msra.mxu0 0.0
    %3284 = vmatprep.subr.mxu0 0.0
    %3285 = vmatpush1.msra.mxu0 0.0
    %3286 = vmatprep.subr.mxu0 0.0
    %3287 = vmatpush1.msra.mxu0 0.0
    %3288 = vmatprep.subr.mxu0 0.0
    %3289 = vmatpush1.msra.mxu0 0.0
    %3290 = vmatprep.subr.mxu0 0.0
    %3291 = vmatpush1.msra.mxu0 0.0
    %3292 = vmatprep.subr.mxu0 0.0
    %3293 = vmatpush1.msra.mxu0 0.0
    %3294 = vmatprep.subr.mxu0 0.0
    %3295 = vmatpush1.msra.mxu0 0.0
    %3296 = vmatprep.subr.mxu0 0.0
    %3297 = vmatpush1.msra.mxu0 0.0
    %3298 = vmatprep.subr.mxu0 0.0
    %3299 = vmatpush1.msra.mxu0 0.0
    %3300 = vmatprep.subr.mxu0 0.0
    %3301 = vmatpush1.msra.mxu0 0.0
    %3302 = vmatprep.subr.mxu0 0.0
    %3303 = vmatpush1.msra.mxu0 0.0
    %3304 = vmatprep.subr.mxu0 0.0
    %3305 = vmatpush1.msra.mxu0 0.0
    %3306 = vmatprep.subr.mxu0 0.0
    %3307 = vmatpush1.msra.mxu0 0.0
    %3308 = vmatprep.subr.mxu0 0.0
    %3309 = vmatpush1.msra.mxu0 0.0
    %3310 = vmatprep.subr.mxu0 0.0
    %3311 = vmatpush1.msra.mxu0 0.0
    %3312 = vmatprep.mubr.f32.mxu0 0.0
    %3313 = vmatmul.mubr.f32.gmra.mrb[0].mxu0 %v3243
    %v3314 = vpop.f32.mrb[0].mxu0
    %v3315 = vadd.f32 0.0, %v3314
    %v3316 = vpop.f32.mrb[0].mxu0
    %v3317 = vadd.f32 0.0, %v3316
    %3318 = vmatprep.mubr.f32.mxu0 0.0
    %3319 = vmatmul.mubr.f32.gmra.mrb[0].mxu0 %v3246
    %v3320 = vpop.f32.mrb[0].mxu0
    %v3321 = vadd.f32 0.0, %v3320
    %v3322 = vpop.f32.mrb[0].mxu0
    %v3323 = vadd.f32 0.0, %v3322
    %3324 = vdwg.mxu0
    %v3325 = vmul.f32 %v3317, %v3315
    %v3326 = vmul.f32 %v3323, %v3321
    %v3327 = vxor.u32 %v3315, 2147483648
    %v3328 = vxor.u32 %v3321, 2147483648
    %v3329 = vmul.f32 %v3327, 1.442695
    %v3330 = vpow.pop %v3329
    %v3331 = vmul.f32 %v3328, 1.442695
    %v3332 = vpow.pop %v3331
    %v3333 = vadd.f32 %v3330, 1.0
    %v3334 = vadd.f32 %v3332, 1.0
    %v3335 = vrcp.pop %v3333
    %v3336 = vmul.f32 1.0, %v3335
    %v3337 = vrcp.pop %v3334
    %v3338 = vmul.f32 1.0, %v3337
    %v3339 = vmul.f32 %v3325, %v3336
    %v3340 = vmul.f32 %v3326, %v3338
    %v3341 = vld [vmem:[%s10] sm:$0xff]
    %v3342 = vld [vmem:[%s10 + $0x8] sm:$0xff]
    %v3343 = vld [vmem:[%s10 + $0x10] sm:$0xff]
    %v3344 = vld [vmem:[%s10 + $0x18] sm:$0xff]
    %v3345 = vld [vmem:[%s10 + $0x20] sm:$0xff]
    %v3346 = vld [vmem:[%s10 + $0x28] sm:$0xff]
    %v3347 = vld [vmem:[%s10 + $0x30] sm:$0xff]
    %v3348 = vld [vmem:[%s10 + $0x38] sm:$0xff]
    %v3349 = vld [vmem:[%s10 + $0x40] sm:$0xff]
    %v3350 = vld [vmem:[%s10 + $0x48] sm:$0xff]
    %v3351 = vld [vmem:[%s10 + $0x50] sm:$0xff]
    %v3352 = vld [vmem:[%s10 + $0x58] sm:$0xff]
    %v3353 = vld [vmem:[%s10 + $0x60] sm:$0xff]
    %v3354 = vld [vmem:[%s10 + $0x68] sm:$0xff]
    %v3355 = vld [vmem:[%s10 + $0x70] sm:$0xff]
    %v3356 = vld [vmem:[%s10 + $0x78] sm:$0xff]
    %3357 = vmatprep.subr.mxu0 0.0
    %3358 = vmatpush1.msra.mxu0 %v3341
    %3359 = vmatprep.subr.mxu0 0.0
    %3360 = vmatpush1.msra.mxu0 %v3342
    %3361 = vmatprep.subr.mxu0 0.0
    %3362 = vmatpush1.msra.mxu0 %v3343
    %3363 = vmatprep.subr.mxu0 0.0
    %3364 = vmatpush1.msra.mxu0 %v3344
    %3365 = vmatprep.subr.mxu0 0.0
    %3366 = vmatpush1.msra.mxu0 %v3345
    %3367 = vmatprep.subr.mxu0 0.0
    %3368 = vmatpush1.msra.mxu0 %v3346
    %3369 = vmatprep.subr.mxu0 0.0
    %3370 = vmatpush1.msra.mxu0 %v3347
    %3371 = vmatprep.subr.mxu0 0.0
    %3372 = vmatpush1.msra.mxu0 %v3348
    %3373 = vmatprep.subr.mxu0 0.0
    %3374 = vmatpush1.msra.mxu0 %v3349
    %3375 = vmatprep.subr.mxu0 0.0
    %3376 = vmatpush1.msra.mxu0 %v3350
    %3377 = vmatprep.subr.mxu0 0.0
    %3378 = vmatpush1.msra.mxu0 %v3351
    %3379 = vmatprep.subr.mxu0 0.0
    %3380 = vmatpush1.msra.mxu0 %v3352
    %3381 = vmatprep.subr.mxu0 0.0
    %3382 = vmatpush1.msra.mxu0 %v3353
    %3383 = vmatprep.subr.mxu0 0.0
    %3384 = vmatpush1.msra.mxu0 %v3354
    %3385 = vmatprep.subr.mxu0 0.0
    %3386 = vmatpush1.msra.mxu0 %v3355
    %3387 = vmatprep.subr.mxu0 0.0
    %3388 = vmatpush1.msra.mxu0 %v3356
    %3389 = vmatprep.subr.mxu0 0.0
    %3390 = vmatpush1.msra.mxu0 0.0
    %3391 = vmatprep.subr.mxu0 0.0
    %3392 = vmatpush1.msra.mxu0 0.0
    %3393 = vmatprep.subr.mxu0 0.0
    %3394 = vmatpush1.msra.mxu0 0.0
    %3395 = vmatprep.subr.mxu0 0.0
    %3396 = vmatpush1.msra.mxu0 0.0
    %3397 = vmatprep.subr.mxu0 0.0
    %3398 = vmatpush1.msra.mxu0 0.0
    %3399 = vmatprep.subr.mxu0 0.0
    %3400 = vmatpush1.msra.mxu0 0.0
    %3401 = vmatprep.subr.mxu0 0.0
    %3402 = vmatpush1.msra.mxu0 0.0
    %3403 = vmatprep.subr.mxu0 0.0
    %3404 = vmatpush1.msra.mxu0 0.0
    %3405 = vmatprep.subr.mxu0 0.0
    %3406 = vmatpush1.msra.mxu0 0.0
    %3407 = vmatprep.subr.mxu0 0.0
    %3408 = vmatpush1.msra.mxu0 0.0
    %3409 = vmatprep.subr.mxu0 0.0
    %3410 = vmatpush1.msra.mxu0 0.0
    %3411 = vmatprep.subr.mxu0 0.0
    %3412 = vmatpush1.msra.mxu0 0.0
    %3413 = vmatprep.subr.mxu0 0.0
    %3414 = vmatpush1.msra.mxu0 0.0
    %3415 = vmatprep.subr.mxu0 0.0
    %3416 = vmatpush1.msra.mxu0 0.0
    %3417 = vmatprep.subr.mxu0 0.0
    %3418 = vmatpush1.msra.mxu0 0.0
    %3419 = vmatprep.subr.mxu0 0.0
    %3420 = vmatpush1.msra.mxu0 0.0
    %3421 = vmatprep.mubr.f32.mxu0 0.0
    %3422 = vmatmul.mubr.f32.gmra.mrb[0].mxu0 %v3339
    %v3423 = vpop.f32.mrb[0].mxu0
    %v3424 = vadd.f32 0.0, %v3423
    %v3425 = vpop.f32.mrb[0].mxu0
    %3426 = vmatprep.mubr.f32.mxu0 0.0
    %3427 = vmatmul.mubr.f32.gmra.mrb[0].mxu0 %v3340
    %v3428 = vpop.f32.mrb[0].mxu0
    %v3429 = vadd.f32 0.0, %v3428
    %v3430 = vpop.f32.mrb[0].mxu0
    %3431 = vdwg.mxu0
    %v3432 = vadd.f32 %v3199, %v3424
    %v3433 = vadd.f32 %v3200, %v3429
    %s3434 = scalar_lea.vmem %s3, 1
    %v3435 = vld [vmem:[%s3434] sm:$0x1]
    %v3436 = vmul.f32 %v3432, %v3432
    %v3437 = vmul.f32 %v3433, %v3433
    %v3438 = vsel %vm59, %v3436, 0.0
    %3439 = vadd.xlane.f32.xlu0 %v3438
    %v3440 = vpop.xlane.xlu0 %3439
    %v3441 = vsel %vm59, %v3437, 0.0
    %3442 = vadd.xlane.f32.xlu0 %v3441
    %v3443 = vpop.xlane.xlu0 %3442
    %v3444 = vmul.f32 %v3440, %v66
    %v3445 = vmul.f32 %v3443, %v66
    %v3446 = vadd.f32 %v3444, 1e-05
    %v3447 = vadd.f32 %v3445, 1e-05
    %v3448 = vrsqrt.pop %v3446
    %v3449 = vrsqrt.pop %v3447
    %v3450 = vmul.f32 %v3432, %v3448
    %v3451 = vmul.f32 %v3433, %v3449
    %v3453 = vlaneseq
    %v3454 = vshrl.u32 %v3453, 7
    %v3455 = vsub.s32 0, %v3454
    %v3456 = vrot.slane %v3435, %v3455
    %v3458 = vmul.f32 %v3450, %v3456
    %v3459 = vmul.f32 %v3451, %v3456
    %s3460 = scalar_lea.vmem %s4, 256
    %v3461 = vld [vmem:[%s3460] sm:$0xff]
    %v3462 = vld [vmem:[%s3460 + $0x8] sm:$0xff]
    %v3463 = vld [vmem:[%s3460 + $0x10] sm:$0xff]
    %v3464 = vld [vmem:[%s3460 + $0x18] sm:$0xff]
    %v3465 = vld [vmem:[%s3460 + $0x20] sm:$0xff]
    %v3466 = vld [vmem:[%s3460 + $0x28] sm:$0xff]
    %v3467 = vld [vmem:[%s3460 + $0x30] sm:$0xff]
    %v3468 = vld [vmem:[%s3460 + $0x38] sm:$0xff]
    %v3469 = vld [vmem:[%s3460 + $0x40] sm:$0xff]
    %v3470 = vld [vmem:[%s3460 + $0x48] sm:$0xff]
    %v3471 = vld [vmem:[%s3460 + $0x50] sm:$0xff]
    %v3472 = vld [vmem:[%s3460 + $0x58] sm:$0xff]
    %v3473 = vld [vmem:[%s3460 + $0x60] sm:$0xff]
    %v3474 = vld [vmem:[%s3460 + $0x68] sm:$0xff]
    %v3475 = vld [vmem:[%s3460 + $0x70] sm:$0xff]
    %v3476 = vld [vmem:[%s3460 + $0x78] sm:$0xff]
    %v3477 = vld [vmem:[%s3460 + $0x80] sm:$0xff]
    %v3478 = vld [vmem:[%s3460 + $0x88] sm:$0xff]
    %v3479 = vld [vmem:[%s3460 + $0x90] sm:$0xff]
    %v3480 = vld [vmem:[%s3460 + $0x98] sm:$0xff]
    %v3481 = vld [vmem:[%s3460 + $0xa0] sm:$0xff]
    %v3482 = vld [vmem:[%s3460 + $0xa8] sm:$0xff]
    %v3483 = vld [vmem:[%s3460 + $0xb0] sm:$0xff]
    %v3484 = vld [vmem:[%s3460 + $0xb8] sm:$0xff]
    %v3485 = vld [vmem:[%s3460 + $0xc0] sm:$0xff]
    %v3486 = vld [vmem:[%s3460 + $0xc8] sm:$0xff]
    %v3487 = vld [vmem:[%s3460 + $0xd0] sm:$0xff]
    %v3488 = vld [vmem:[%s3460 + $0xd8] sm:$0xff]
    %v3489 = vld [vmem:[%s3460 + $0xe0] sm:$0xff]
    %v3490 = vld [vmem:[%s3460 + $0xe8] sm:$0xff]
    %v3491 = vld [vmem:[%s3460 + $0xf0] sm:$0xff]
    %v3492 = vld [vmem:[%s3460 + $0xf8] sm:$0xff]
    %v3494 = vsel %vm59, %v3458, 0
    %v3497 = vsel %vm59, %v3459, 0
    %3499 = vmatprep.subr.mxu0 0.0
    %3500 = vmatpush1.msra.mxu0 %v3461
    %3501 = vmatprep.subr.mxu0 0.0
    %3502 = vmatpush1.msra.mxu0 %v3462
    %3503 = vmatprep.subr.mxu0 0.0
    %3504 = vmatpush1.msra.mxu0 %v3463
    %3505 = vmatprep.subr.mxu0 0.0
    %3506 = vmatpush1.msra.mxu0 %v3464
    %3507 = vmatprep.subr.mxu0 0.0
    %3508 = vmatpush1.msra.mxu0 %v3465
    %3509 = vmatprep.subr.mxu0 0.0
    %3510 = vmatpush1.msra.mxu0 %v3466
    %3511 = vmatprep.subr.mxu0 0.0
    %3512 = vmatpush1.msra.mxu0 %v3467
    %3513 = vmatprep.subr.mxu0 0.0
    %3514 = vmatpush1.msra.mxu0 %v3468
    %3515 = vmatprep.subr.mxu0 0.0
    %3516 = vmatpush1.msra.mxu0 0.0
    %3517 = vmatprep.subr.mxu0 0.0
    %3518 = vmatpush1.msra.mxu0 0.0
    %3519 = vmatprep.subr.mxu0 0.0
    %3520 = vmatpush1.msra.mxu0 0.0
    %3521 = vmatprep.subr.mxu0 0.0
    %3522 = vmatpush1.msra.mxu0 0.0
    %3523 = vmatprep.subr.mxu0 0.0
    %3524 = vmatpush1.msra.mxu0 0.0
    %3525 = vmatprep.subr.mxu0 0.0
    %3526 = vmatpush1.msra.mxu0 0.0
    %3527 = vmatprep.subr.mxu0 0.0
    %3528 = vmatpush1.msra.mxu0 0.0
    %3529 = vmatprep.subr.mxu0 0.0
    %3530 = vmatpush1.msra.mxu0 0.0
    %3531 = vmatprep.subr.mxu0 0.0
    %3532 = vmatpush1.msra.mxu0 0.0
    %3533 = vmatprep.subr.mxu0 0.0
    %3534 = vmatpush1.msra.mxu0 0.0
    %3535 = vmatprep.subr.mxu0 0.0
    %3536 = vmatpush1.msra.mxu0 0.0
    %3537 = vmatprep.subr.mxu0 0.0
    %3538 = vmatpush1.msra.mxu0 0.0
    %3539 = vmatprep.subr.mxu0 0.0
    %3540 = vmatpush1.msra.mxu0 0.0
    %3541 = vmatprep.subr.mxu0 0.0
    %3542 = vmatpush1.msra.mxu0 0.0
    %3543 = vmatprep.subr.mxu0 0.0
    %3544 = vmatpush1.msra.mxu0 0.0
    %3545 = vmatprep.subr.mxu0 0.0
    %3546 = vmatpush1.msra.mxu0 0.0
    %3547 = vmatprep.subr.mxu0 0.0
    %3548 = vmatpush1.msra.mxu0 0.0
    %3549 = vmatprep.subr.mxu0 0.0
    %3550 = vmatpush1.msra.mxu0 0.0
    %3551 = vmatprep.subr.mxu0 0.0
    %3552 = vmatpush1.msra.mxu0 0.0
    %3553 = vmatprep.subr.mxu0 0.0
    %3554 = vmatpush1.msra.mxu0 0.0
    %3555 = vmatprep.subr.mxu0 0.0
    %3556 = vmatpush1.msra.mxu0 0.0
    %3557 = vmatprep.subr.mxu0 0.0
    %3558 = vmatpush1.msra.mxu0 0.0
    %3559 = vmatprep.subr.mxu0 0.0
    %3560 = vmatpush1.msra.mxu0 0.0
    %3561 = vmatprep.subr.mxu0 0.0
    %3562 = vmatpush1.msra.mxu0 0.0
    %3563 = vmatprep.mubr.f32.mxu0 0.0
    %3564 = vmatmul.mubr.f32.gmra.mrb[0].mxu0 %v3494
    %v3565 = vpop.f32.mrb[0].mxu0
    %v3566 = vadd.f32 0.0, %v3565
    %v3567 = vpop.f32.mrb[0].mxu0
    %3568 = vmatprep.mubr.f32.mxu0 0.0
    %3569 = vmatmul.mubr.f32.gmra.mrb[0].mxu0 %v3497
    %v3570 = vpop.f32.mrb[0].mxu0
    %v3571 = vadd.f32 0.0, %v3570
    %v3572 = vpop.f32.mrb[0].mxu0
    %3573 = vdwg.mxu0
    %3574 = vmatprep.subr.mxu0 0.0
    %3575 = vmatpush1.msra.mxu0 %v3469
    %3576 = vmatprep.subr.mxu0 0.0
    %3577 = vmatpush1.msra.mxu0 %v3470
    %3578 = vmatprep.subr.mxu0 0.0
    %3579 = vmatpush1.msra.mxu0 %v3471
    %3580 = vmatprep.subr.mxu0 0.0
    %3581 = vmatpush1.msra.mxu0 %v3472
    %3582 = vmatprep.subr.mxu0 0.0
    %3583 = vmatpush1.msra.mxu0 %v3473
    %3584 = vmatprep.subr.mxu0 0.0
    %3585 = vmatpush1.msra.mxu0 %v3474
    %3586 = vmatprep.subr.mxu0 0.0
    %3587 = vmatpush1.msra.mxu0 %v3475
    %3588 = vmatprep.subr.mxu0 0.0
    %3589 = vmatpush1.msra.mxu0 %v3476
    %3590 = vmatprep.subr.mxu0 0.0
    %3591 = vmatpush1.msra.mxu0 0.0
    %3592 = vmatprep.subr.mxu0 0.0
    %3593 = vmatpush1.msra.mxu0 0.0
    %3594 = vmatprep.subr.mxu0 0.0
    %3595 = vmatpush1.msra.mxu0 0.0
    %3596 = vmatprep.subr.mxu0 0.0
    %3597 = vmatpush1.msra.mxu0 0.0
    %3598 = vmatprep.subr.mxu0 0.0
    %3599 = vmatpush1.msra.mxu0 0.0
    %3600 = vmatprep.subr.mxu0 0.0
    %3601 = vmatpush1.msra.mxu0 0.0
    %3602 = vmatprep.subr.mxu0 0.0
    %3603 = vmatpush1.msra.mxu0 0.0
    %3604 = vmatprep.subr.mxu0 0.0
    %3605 = vmatpush1.msra.mxu0 0.0
    %3606 = vmatprep.subr.mxu0 0.0
    %3607 = vmatpush1.msra.mxu0 0.0
    %3608 = vmatprep.subr.mxu0 0.0
    %3609 = vmatpush1.msra.mxu0 0.0
    %3610 = vmatprep.subr.mxu0 0.0
    %3611 = vmatpush1.msra.mxu0 0.0
    %3612 = vmatprep.subr.mxu0 0.0
    %3613 = vmatpush1.msra.mxu0 0.0
    %3614 = vmatprep.subr.mxu0 0.0
    %3615 = vmatpush1.msra.mxu0 0.0
    %3616 = vmatprep.subr.mxu0 0.0
    %3617 = vmatpush1.msra.mxu0 0.0
    %3618 = vmatprep.subr.mxu0 0.0
    %3619 = vmatpush1.msra.mxu0 0.0
    %3620 = vmatprep.subr.mxu0 0.0
    %3621 = vmatpush1.msra.mxu0 0.0
    %3622 = vmatprep.subr.mxu0 0.0
    %3623 = vmatpush1.msra.mxu0 0.0
    %3624 = vmatprep.subr.mxu0 0.0
    %3625 = vmatpush1.msra.mxu0 0.0
    %3626 = vmatprep.subr.mxu0 0.0
    %3627 = vmatpush1.msra.mxu0 0.0
    %3628 = vmatprep.subr.mxu0 0.0
    %3629 = vmatpush1.msra.mxu0 0.0
    %3630 = vmatprep.subr.mxu0 0.0
    %3631 = vmatpush1.msra.mxu0 0.0
    %3632 = vmatprep.subr.mxu0 0.0
    %3633 = vmatpush1.msra.mxu0 0.0
    %3634 = vmatprep.subr.mxu0 0.0
    %3635 = vmatpush1.msra.mxu0 0.0
    %3636 = vmatprep.subr.mxu0 0.0
    %3637 = vmatpush1.msra.mxu0 0.0
    %3638 = vmatprep.mubr.f32.mxu0 0.0
    %3639 = vmatmul.mubr.f32.gmra.mrb[0].mxu0 %v3494
    %v3640 = vpop.f32.mrb[0].mxu0
    %v3641 = vadd.f32 0.0, %v3640
    %v3642 = vpop.f32.mrb[0].mxu0
    %3643 = vmatprep.mubr.f32.mxu0 0.0
    %3644 = vmatmul.mubr.f32.gmra.mrb[0].mxu0 %v3497
    %v3645 = vpop.f32.mrb[0].mxu0
    %v3646 = vadd.f32 0.0, %v3645
    %v3647 = vpop.f32.mrb[0].mxu0
    %3648 = vdwg.mxu0
    %3649 = vmatprep.subr.mxu0 0.0
    %3650 = vmatpush1.msra.mxu0 %v3477
    %3651 = vmatprep.subr.mxu0 0.0
    %3652 = vmatpush1.msra.mxu0 %v3478
    %3653 = vmatprep.subr.mxu0 0.0
    %3654 = vmatpush1.msra.mxu0 %v3479
    %3655 = vmatprep.subr.mxu0 0.0
    %3656 = vmatpush1.msra.mxu0 %v3480
    %3657 = vmatprep.subr.mxu0 0.0
    %3658 = vmatpush1.msra.mxu0 %v3481
    %3659 = vmatprep.subr.mxu0 0.0
    %3660 = vmatpush1.msra.mxu0 %v3482
    %3661 = vmatprep.subr.mxu0 0.0
    %3662 = vmatpush1.msra.mxu0 %v3483
    %3663 = vmatprep.subr.mxu0 0.0
    %3664 = vmatpush1.msra.mxu0 %v3484
    %3665 = vmatprep.subr.mxu0 0.0
    %3666 = vmatpush1.msra.mxu0 0.0
    %3667 = vmatprep.subr.mxu0 0.0
    %3668 = vmatpush1.msra.mxu0 0.0
    %3669 = vmatprep.subr.mxu0 0.0
    %3670 = vmatpush1.msra.mxu0 0.0
    %3671 = vmatprep.subr.mxu0 0.0
    %3672 = vmatpush1.msra.mxu0 0.0
    %3673 = vmatprep.subr.mxu0 0.0
    %3674 = vmatpush1.msra.mxu0 0.0
    %3675 = vmatprep.subr.mxu0 0.0
    %3676 = vmatpush1.msra.mxu0 0.0
    %3677 = vmatprep.subr.mxu0 0.0
    %3678 = vmatpush1.msra.mxu0 0.0
    %3679 = vmatprep.subr.mxu0 0.0
    %3680 = vmatpush1.msra.mxu0 0.0
    %3681 = vmatprep.subr.mxu0 0.0
    %3682 = vmatpush1.msra.mxu0 0.0
    %3683 = vmatprep.subr.mxu0 0.0
    %3684 = vmatpush1.msra.mxu0 0.0
    %3685 = vmatprep.subr.mxu0 0.0
    %3686 = vmatpush1.msra.mxu0 0.0
    %3687 = vmatprep.subr.mxu0 0.0
    %3688 = vmatpush1.msra.mxu0 0.0
    %3689 = vmatprep.subr.mxu0 0.0
    %3690 = vmatpush1.msra.mxu0 0.0
    %3691 = vmatprep.subr.mxu0 0.0
    %3692 = vmatpush1.msra.mxu0 0.0
    %3693 = vmatprep.subr.mxu0 0.0
    %3694 = vmatpush1.msra.mxu0 0.0
    %3695 = vmatprep.subr.mxu0 0.0
    %3696 = vmatpush1.msra.mxu0 0.0
    %3697 = vmatprep.subr.mxu0 0.0
    %3698 = vmatpush1.msra.mxu0 0.0
    %3699 = vmatprep.subr.mxu0 0.0
    %3700 = vmatpush1.msra.mxu0 0.0
    %3701 = vmatprep.subr.mxu0 0.0
    %3702 = vmatpush1.msra.mxu0 0.0
    %3703 = vmatprep.subr.mxu0 0.0
    %3704 = vmatpush1.msra.mxu0 0.0
    %3705 = vmatprep.subr.mxu0 0.0
    %3706 = vmatpush1.msra.mxu0 0.0
    %3707 = vmatprep.subr.mxu0 0.0
    %3708 = vmatpush1.msra.mxu0 0.0
    %3709 = vmatprep.subr.mxu0 0.0
    %3710 = vmatpush1.msra.mxu0 0.0
    %3711 = vmatprep.subr.mxu0 0.0
    %3712 = vmatpush1.msra.mxu0 0.0
    %3713 = vmatprep.mubr.f32.mxu0 0.0
    %3714 = vmatmul.mubr.f32.gmra.mrb[0].mxu0 %v3494
    %v3715 = vpop.f32.mrb[0].mxu0
    %v3716 = vadd.f32 0.0, %v3715
    %v3717 = vpop.f32.mrb[0].mxu0
    %3718 = vmatprep.mubr.f32.mxu0 0.0
    %3719 = vmatmul.mubr.f32.gmra.mrb[0].mxu0 %v3497
    %v3720 = vpop.f32.mrb[0].mxu0
    %v3721 = vadd.f32 0.0, %v3720
    %v3722 = vpop.f32.mrb[0].mxu0
    %3723 = vdwg.mxu0
    %3724 = vmatprep.subr.mxu0 0.0
    %3725 = vmatpush1.msra.mxu0 %v3485
    %3726 = vmatprep.subr.mxu0 0.0
    %3727 = vmatpush1.msra.mxu0 %v3486
    %3728 = vmatprep.subr.mxu0 0.0
    %3729 = vmatpush1.msra.mxu0 %v3487
    %3730 = vmatprep.subr.mxu0 0.0
    %3731 = vmatpush1.msra.mxu0 %v3488
    %3732 = vmatprep.subr.mxu0 0.0
    %3733 = vmatpush1.msra.mxu0 %v3489
    %3734 = vmatprep.subr.mxu0 0.0
    %3735 = vmatpush1.msra.mxu0 %v3490
    %3736 = vmatprep.subr.mxu0 0.0
    %3737 = vmatpush1.msra.mxu0 %v3491
    %3738 = vmatprep.subr.mxu0 0.0
    %3739 = vmatpush1.msra.mxu0 %v3492
    %3740 = vmatprep.subr.mxu0 0.0
    %3741 = vmatpush1.msra.mxu0 0.0
    %3742 = vmatprep.subr.mxu0 0.0
    %3743 = vmatpush1.msra.mxu0 0.0
    %3744 = vmatprep.subr.mxu0 0.0
    %3745 = vmatpush1.msra.mxu0 0.0
    %3746 = vmatprep.subr.mxu0 0.0
    %3747 = vmatpush1.msra.mxu0 0.0
    %3748 = vmatprep.subr.mxu0 0.0
    %3749 = vmatpush1.msra.mxu0 0.0
    %3750 = vmatprep.subr.mxu0 0.0
    %3751 = vmatpush1.msra.mxu0 0.0
    %3752 = vmatprep.subr.mxu0 0.0
    %3753 = vmatpush1.msra.mxu0 0.0
    %3754 = vmatprep.subr.mxu0 0.0
    %3755 = vmatpush1.msra.mxu0 0.0
    %3756 = vmatprep.subr.mxu0 0.0
    %3757 = vmatpush1.msra.mxu0 0.0
    %3758 = vmatprep.subr.mxu0 0.0
    %3759 = vmatpush1.msra.mxu0 0.0
    %3760 = vmatprep.subr.mxu0 0.0
    %3761 = vmatpush1.msra.mxu0 0.0
    %3762 = vmatprep.subr.mxu0 0.0
    %3763 = vmatpush1.msra.mxu0 0.0
    %3764 = vmatprep.subr.mxu0 0.0
    %3765 = vmatpush1.msra.mxu0 0.0
    %3766 = vmatprep.subr.mxu0 0.0
    %3767 = vmatpush1.msra.mxu0 0.0
    %3768 = vmatprep.subr.mxu0 0.0
    %3769 = vmatpush1.msra.mxu0 0.0
    %3770 = vmatprep.subr.mxu0 0.0
    %3771 = vmatpush1.msra.mxu0 0.0
    %3772 = vmatprep.subr.mxu0 0.0
    %3773 = vmatpush1.msra.mxu0 0.0
    %3774 = vmatprep.subr.mxu0 0.0
    %3775 = vmatpush1.msra.mxu0 0.0
    %3776 = vmatprep.subr.mxu0 0.0
    %3777 = vmatpush1.msra.mxu0 0.0
    %3778 = vmatprep.subr.mxu0 0.0
    %3779 = vmatpush1.msra.mxu0 0.0
    %3780 = vmatprep.subr.mxu0 0.0
    %3781 = vmatpush1.msra.mxu0 0.0
    %3782 = vmatprep.subr.mxu0 0.0
    %3783 = vmatpush1.msra.mxu0 0.0
    %3784 = vmatprep.subr.mxu0 0.0
    %3785 = vmatpush1.msra.mxu0 0.0
    %3786 = vmatprep.subr.mxu0 0.0
    %3787 = vmatpush1.msra.mxu0 0.0
    %3788 = vmatprep.mubr.f32.mxu0 0.0
    %3789 = vmatmul.mubr.f32.gmra.mrb[0].mxu0 %v3494
    %v3790 = vpop.f32.mrb[0].mxu0
    %v3791 = vadd.f32 0.0, %v3790
    %v3792 = vpop.f32.mrb[0].mxu0
    %3793 = vmatprep.mubr.f32.mxu0 0.0
    %3794 = vmatmul.mubr.f32.gmra.mrb[0].mxu0 %v3497
    %v3795 = vpop.f32.mrb[0].mxu0
    %v3796 = vadd.f32 0.0, %v3795
    %v3797 = vpop.f32.mrb[0].mxu0
    %3798 = vdwg.mxu0
    %s3799 = scalar_lea.vmem %s5, 256
    %v3800 = vld [vmem:[%s3799] sm:$0xff]
    %v3801 = vld [vmem:[%s3799 + $0x8] sm:$0xff]
    %v3802 = vld [vmem:[%s3799 + $0x10] sm:$0xff]
    %v3803 = vld [vmem:[%s3799 + $0x18] sm:$0xff]
    %v3804 = vld [vmem:[%s3799 + $0x20] sm:$0xff]
    %v3805 = vld [vmem:[%s3799 + $0x28] sm:$0xff]
    %v3806 = vld [vmem:[%s3799 + $0x30] sm:$0xff]
    %v3807 = vld [vmem:[%s3799 + $0x38] sm:$0xff]
    %v3808 = vld [vmem:[%s3799 + $0x40] sm:$0xff]
    %v3809 = vld [vmem:[%s3799 + $0x48] sm:$0xff]
    %v3810 = vld [vmem:[%s3799 + $0x50] sm:$0xff]
    %v3811 = vld [vmem:[%s3799 + $0x58] sm:$0xff]
    %v3812 = vld [vmem:[%s3799 + $0x60] sm:$0xff]
    %v3813 = vld [vmem:[%s3799 + $0x68] sm:$0xff]
    %v3814 = vld [vmem:[%s3799 + $0x70] sm:$0xff]
    %v3815 = vld [vmem:[%s3799 + $0x78] sm:$0xff]
    %v3816 = vld [vmem:[%s3799 + $0x80] sm:$0xff]
    %v3817 = vld [vmem:[%s3799 + $0x88] sm:$0xff]
    %v3818 = vld [vmem:[%s3799 + $0x90] sm:$0xff]
    %v3819 = vld [vmem:[%s3799 + $0x98] sm:$0xff]
    %v3820 = vld [vmem:[%s3799 + $0xa0] sm:$0xff]
    %v3821 = vld [vmem:[%s3799 + $0xa8] sm:$0xff]
    %v3822 = vld [vmem:[%s3799 + $0xb0] sm:$0xff]
    %v3823 = vld [vmem:[%s3799 + $0xb8] sm:$0xff]
    %v3824 = vld [vmem:[%s3799 + $0xc0] sm:$0xff]
    %v3825 = vld [vmem:[%s3799 + $0xc8] sm:$0xff]
    %v3826 = vld [vmem:[%s3799 + $0xd0] sm:$0xff]
    %v3827 = vld [vmem:[%s3799 + $0xd8] sm:$0xff]
    %v3828 = vld [vmem:[%s3799 + $0xe0] sm:$0xff]
    %v3829 = vld [vmem:[%s3799 + $0xe8] sm:$0xff]
    %v3830 = vld [vmem:[%s3799 + $0xf0] sm:$0xff]
    %v3831 = vld [vmem:[%s3799 + $0xf8] sm:$0xff]
    %3832 = vmatprep.subr.mxu0 0.0
    %3833 = vmatpush1.msra.mxu0 %v3800
    %3834 = vmatprep.subr.mxu0 0.0
    %3835 = vmatpush1.msra.mxu0 %v3801
    %3836 = vmatprep.subr.mxu0 0.0
    %3837 = vmatpush1.msra.mxu0 %v3802
    %3838 = vmatprep.subr.mxu0 0.0
    %3839 = vmatpush1.msra.mxu0 %v3803
    %3840 = vmatprep.subr.mxu0 0.0
    %3841 = vmatpush1.msra.mxu0 %v3804
    %3842 = vmatprep.subr.mxu0 0.0
    %3843 = vmatpush1.msra.mxu0 %v3805
    %3844 = vmatprep.subr.mxu0 0.0
    %3845 = vmatpush1.msra.mxu0 %v3806
    %3846 = vmatprep.subr.mxu0 0.0
    %3847 = vmatpush1.msra.mxu0 %v3807
    %3848 = vmatprep.subr.mxu0 0.0
    %3849 = vmatpush1.msra.mxu0 0.0
    %3850 = vmatprep.subr.mxu0 0.0
    %3851 = vmatpush1.msra.mxu0 0.0
    %3852 = vmatprep.subr.mxu0 0.0
    %3853 = vmatpush1.msra.mxu0 0.0
    %3854 = vmatprep.subr.mxu0 0.0
    %3855 = vmatpush1.msra.mxu0 0.0
    %3856 = vmatprep.subr.mxu0 0.0
    %3857 = vmatpush1.msra.mxu0 0.0
    %3858 = vmatprep.subr.mxu0 0.0
    %3859 = vmatpush1.msra.mxu0 0.0
    %3860 = vmatprep.subr.mxu0 0.0
    %3861 = vmatpush1.msra.mxu0 0.0
    %3862 = vmatprep.subr.mxu0 0.0
    %3863 = vmatpush1.msra.mxu0 0.0
    %3864 = vmatprep.subr.mxu0 0.0
    %3865 = vmatpush1.msra.mxu0 0.0
    %3866 = vmatprep.subr.mxu0 0.0
    %3867 = vmatpush1.msra.mxu0 0.0
    %3868 = vmatprep.subr.mxu0 0.0
    %3869 = vmatpush1.msra.mxu0 0.0
    %3870 = vmatprep.subr.mxu0 0.0
    %3871 = vmatpush1.msra.mxu0 0.0
    %3872 = vmatprep.subr.mxu0 0.0
    %3873 = vmatpush1.msra.mxu0 0.0
    %3874 = vmatprep.subr.mxu0 0.0
    %3875 = vmatpush1.msra.mxu0 0.0
    %3876 = vmatprep.subr.mxu0 0.0
    %3877 = vmatpush1.msra.mxu0 0.0
    %3878 = vmatprep.subr.mxu0 0.0
    %3879 = vmatpush1.msra.mxu0 0.0
    %3880 = vmatprep.subr.mxu0 0.0
    %3881 = vmatpush1.msra.mxu0 0.0
    %3882 = vmatprep.subr.mxu0 0.0
    %3883 = vmatpush1.msra.mxu0 0.0
    %3884 = vmatprep.subr.mxu0 0.0
    %3885 = vmatpush1.msra.mxu0 0.0
    %3886 = vmatprep.subr.mxu0 0.0
    %3887 = vmatpush1.msra.mxu0 0.0
    %3888 = vmatprep.subr.mxu0 0.0
    %3889 = vmatpush1.msra.mxu0 0.0
    %3890 = vmatprep.subr.mxu0 0.0
    %3891 = vmatpush1.msra.mxu0 0.0
    %3892 = vmatprep.subr.mxu0 0.0
    %3893 = vmatpush1.msra.mxu0 0.0
    %3894 = vmatprep.subr.mxu0 0.0
    %3895 = vmatpush1.msra.mxu0 0.0
    %3896 = vmatprep.mubr.f32.mxu0 0.0
    %3897 = vmatmul.mubr.f32.gmra.mrb[0].mxu0 %v3494
    %v3898 = vpop.f32.mrb[0].mxu0
    %v3899 = vadd.f32 0.0, %v3898
    %v3900 = vpop.f32.mrb[0].mxu0
    %3901 = vmatprep.mubr.f32.mxu0 0.0
    %3902 = vmatmul.mubr.f32.gmra.mrb[0].mxu0 %v3497
    %v3903 = vpop.f32.mrb[0].mxu0
    %v3904 = vadd.f32 0.0, %v3903
    %v3905 = vpop.f32.mrb[0].mxu0
    %3906 = vdwg.mxu0
    %3907 = vmatprep.subr.mxu0 0.0
    %3908 = vmatpush1.msra.mxu0 %v3808
    %3909 = vmatprep.subr.mxu0 0.0
    %3910 = vmatpush1.msra.mxu0 %v3809
    %3911 = vmatprep.subr.mxu0 0.0
    %3912 = vmatpush1.msra.mxu0 %v3810
    %3913 = vmatprep.subr.mxu0 0.0
    %3914 = vmatpush1.msra.mxu0 %v3811
    %3915 = vmatprep.subr.mxu0 0.0
    %3916 = vmatpush1.msra.mxu0 %v3812
    %3917 = vmatprep.subr.mxu0 0.0
    %3918 = vmatpush1.msra.mxu0 %v3813
    %3919 = vmatprep.subr.mxu0 0.0
    %3920 = vmatpush1.msra.mxu0 %v3814
    %3921 = vmatprep.subr.mxu0 0.0
    %3922 = vmatpush1.msra.mxu0 %v3815
    %3923 = vmatprep.subr.mxu0 0.0
    %3924 = vmatpush1.msra.mxu0 0.0
    %3925 = vmatprep.subr.mxu0 0.0
    %3926 = vmatpush1.msra.mxu0 0.0
    %3927 = vmatprep.subr.mxu0 0.0
    %3928 = vmatpush1.msra.mxu0 0.0
    %3929 = vmatprep.subr.mxu0 0.0
    %3930 = vmatpush1.msra.mxu0 0.0
    %3931 = vmatprep.subr.mxu0 0.0
    %3932 = vmatpush1.msra.mxu0 0.0
    %3933 = vmatprep.subr.mxu0 0.0
    %3934 = vmatpush1.msra.mxu0 0.0
    %3935 = vmatprep.subr.mxu0 0.0
    %3936 = vmatpush1.msra.mxu0 0.0
    %3937 = vmatprep.subr.mxu0 0.0
    %3938 = vmatpush1.msra.mxu0 0.0
    %3939 = vmatprep.subr.mxu0 0.0
    %3940 = vmatpush1.msra.mxu0 0.0
    %3941 = vmatprep.subr.mxu0 0.0
    %3942 = vmatpush1.msra.mxu0 0.0
    %3943 = vmatprep.subr.mxu0 0.0
    %3944 = vmatpush1.msra.mxu0 0.0
    %3945 = vmatprep.subr.mxu0 0.0
    %3946 = vmatpush1.msra.mxu0 0.0
    %3947 = vmatprep.subr.mxu0 0.0
    %3948 = vmatpush1.msra.mxu0 0.0
    %3949 = vmatprep.subr.mxu0 0.0
    %3950 = vmatpush1.msra.mxu0 0.0
    %3951 = vmatprep.subr.mxu0 0.0
    %3952 = vmatpush1.msra.mxu0 0.0
    %3953 = vmatprep.subr.mxu0 0.0
    %3954 = vmatpush1.msra.mxu0 0.0
    %3955 = vmatprep.subr.mxu0 0.0
    %3956 = vmatpush1.msra.mxu0 0.0
    %3957 = vmatprep.subr.mxu0 0.0
    %3958 = vmatpush1.msra.mxu0 0.0
    %3959 = vmatprep.subr.mxu0 0.0
    %3960 = vmatpush1.msra.mxu0 0.0
    %3961 = vmatprep.subr.mxu0 0.0
    %3962 = vmatpush1.msra.mxu0 0.0
    %3963 = vmatprep.subr.mxu0 0.0
    %3964 = vmatpush1.msra.mxu0 0.0
    %3965 = vmatprep.subr.mxu0 0.0
    %3966 = vmatpush1.msra.mxu0 0.0
    %3967 = vmatprep.subr.mxu0 0.0
    %3968 = vmatpush1.msra.mxu0 0.0
    %3969 = vmatprep.subr.mxu0 0.0
    %3970 = vmatpush1.msra.mxu0 0.0
    %3971 = vmatprep.mubr.f32.mxu0 0.0
    %3972 = vmatmul.mubr.f32.gmra.mrb[0].mxu0 %v3494
    %v3973 = vpop.f32.mrb[0].mxu0
    %v3974 = vadd.f32 0.0, %v3973
    %v3975 = vpop.f32.mrb[0].mxu0
    %3976 = vmatprep.mubr.f32.mxu0 0.0
    %3977 = vmatmul.mubr.f32.gmra.mrb[0].mxu0 %v3497
    %v3978 = vpop.f32.mrb[0].mxu0
    %v3979 = vadd.f32 0.0, %v3978
    %v3980 = vpop.f32.mrb[0].mxu0
    %3981 = vdwg.mxu0
    %3982 = vmatprep.subr.mxu0 0.0
    %3983 = vmatpush1.msra.mxu0 %v3816
    %3984 = vmatprep.subr.mxu0 0.0
    %3985 = vmatpush1.msra.mxu0 %v3817
    %3986 = vmatprep.subr.mxu0 0.0
    %3987 = vmatpush1.msra.mxu0 %v3818
    %3988 = vmatprep.subr.mxu0 0.0
    %3989 = vmatpush1.msra.mxu0 %v3819
    %3990 = vmatprep.subr.mxu0 0.0
    %3991 = vmatpush1.msra.mxu0 %v3820
    %3992 = vmatprep.subr.mxu0 0.0
    %3993 = vmatpush1.msra.mxu0 %v3821
    %3994 = vmatprep.subr.mxu0 0.0
    %3995 = vmatpush1.msra.mxu0 %v3822
    %3996 = vmatprep.subr.mxu0 0.0
    %3997 = vmatpush1.msra.mxu0 %v3823
    %3998 = vmatprep.subr.mxu0 0.0
    %3999 = vmatpush1.msra.mxu0 0.0
    %4000 = vmatprep.subr.mxu0 0.0
    %4001 = vmatpush1.msra.mxu0 0.0
    %4002 = vmatprep.subr.mxu0 0.0
    %4003 = vmatpush1.msra.mxu0 0.0
    %4004 = vmatprep.subr.mxu0 0.0
    %4005 = vmatpush1.msra.mxu0 0.0
    %4006 = vmatprep.subr.mxu0 0.0
    %4007 = vmatpush1.msra.mxu0 0.0
    %4008 = vmatprep.subr.mxu0 0.0
    %4009 = vmatpush1.msra.mxu0 0.0
    %4010 = vmatprep.subr.mxu0 0.0
    %4011 = vmatpush1.msra.mxu0 0.0
    %4012 = vmatprep.subr.mxu0 0.0
    %4013 = vmatpush1.msra.mxu0 0.0
    %4014 = vmatprep.subr.mxu0 0.0
    %4015 = vmatpush1.msra.mxu0 0.0
    %4016 = vmatprep.subr.mxu0 0.0
    %4017 = vmatpush1.msra.mxu0 0.0
    %4018 = vmatprep.subr.mxu0 0.0
    %4019 = vmatpush1.msra.mxu0 0.0
    %4020 = vmatprep.subr.mxu0 0.0
    %4021 = vmatpush1.msra.mxu0 0.0
    %4022 = vmatprep.subr.mxu0 0.0
    %4023 = vmatpush1.msra.mxu0 0.0
    %4024 = vmatprep.subr.mxu0 0.0
    %4025 = vmatpush1.msra.mxu0 0.0
    %4026 = vmatprep.subr.mxu0 0.0
    %4027 = vmatpush1.msra.mxu0 0.0
    %4028 = vmatprep.subr.mxu0 0.0
    %4029 = vmatpush1.msra.mxu0 0.0
    %4030 = vmatprep.subr.mxu0 0.0
    %4031 = vmatpush1.msra.mxu0 0.0
    %4032 = vmatprep.subr.mxu0 0.0
    %4033 = vmatpush1.msra.mxu0 0.0
    %4034 = vmatprep.subr.mxu0 0.0
    %4035 = vmatpush1.msra.mxu0 0.0
    %4036 = vmatprep.subr.mxu0 0.0
    %4037 = vmatpush1.msra.mxu0 0.0
    %4038 = vmatprep.subr.mxu0 0.0
    %4039 = vmatpush1.msra.mxu0 0.0
    %4040 = vmatprep.subr.mxu0 0.0
    %4041 = vmatpush1.msra.mxu0 0.0
    %4042 = vmatprep.subr.mxu0 0.0
    %4043 = vmatpush1.msra.mxu0 0.0
    %4044 = vmatprep.subr.mxu0 0.0
    %4045 = vmatpush1.msra.mxu0 0.0
    %4046 = vmatprep.mubr.f32.mxu0 0.0
    %4047 = vmatmul.mubr.f32.gmra.mrb[0].mxu0 %v3494
    %v4048 = vpop.f32.mrb[0].mxu0
    %v4049 = vadd.f32 0.0, %v4048
    %v4050 = vpop.f32.mrb[0].mxu0
    %4051 = vmatprep.mubr.f32.mxu0 0.0
    %4052 = vmatmul.mubr.f32.gmra.mrb[0].mxu0 %v3497
    %v4053 = vpop.f32.mrb[0].mxu0
    %v4054 = vadd.f32 0.0, %v4053
    %v4055 = vpop.f32.mrb[0].mxu0
    %4056 = vdwg.mxu0
    %4057 = vmatprep.subr.mxu0 0.0
    %4058 = vmatpush1.msra.mxu0 %v3824
    %4059 = vmatprep.subr.mxu0 0.0
    %4060 = vmatpush1.msra.mxu0 %v3825
    %4061 = vmatprep.subr.mxu0 0.0
    %4062 = vmatpush1.msra.mxu0 %v3826
    %4063 = vmatprep.subr.mxu0 0.0
    %4064 = vmatpush1.msra.mxu0 %v3827
    %4065 = vmatprep.subr.mxu0 0.0
    %4066 = vmatpush1.msra.mxu0 %v3828
    %4067 = vmatprep.subr.mxu0 0.0
    %4068 = vmatpush1.msra.mxu0 %v3829
    %4069 = vmatprep.subr.mxu0 0.0
    %4070 = vmatpush1.msra.mxu0 %v3830
    %4071 = vmatprep.subr.mxu0 0.0
    %4072 = vmatpush1.msra.mxu0 %v3831
    %4073 = vmatprep.subr.mxu0 0.0
    %4074 = vmatpush1.msra.mxu0 0.0
    %4075 = vmatprep.subr.mxu0 0.0
    %4076 = vmatpush1.msra.mxu0 0.0
    %4077 = vmatprep.subr.mxu0 0.0
    %4078 = vmatpush1.msra.mxu0 0.0
    %4079 = vmatprep.subr.mxu0 0.0
    %4080 = vmatpush1.msra.mxu0 0.0
    %4081 = vmatprep.subr.mxu0 0.0
    %4082 = vmatpush1.msra.mxu0 0.0
    %4083 = vmatprep.subr.mxu0 0.0
    %4084 = vmatpush1.msra.mxu0 0.0
    %4085 = vmatprep.subr.mxu0 0.0
    %4086 = vmatpush1.msra.mxu0 0.0
    %4087 = vmatprep.subr.mxu0 0.0
    %4088 = vmatpush1.msra.mxu0 0.0
    %4089 = vmatprep.subr.mxu0 0.0
    %4090 = vmatpush1.msra.mxu0 0.0
    %4091 = vmatprep.subr.mxu0 0.0
    %4092 = vmatpush1.msra.mxu0 0.0
    %4093 = vmatprep.subr.mxu0 0.0
    %4094 = vmatpush1.msra.mxu0 0.0
    %4095 = vmatprep.subr.mxu0 0.0
    %4096 = vmatpush1.msra.mxu0 0.0
    %4097 = vmatprep.subr.mxu0 0.0
    %4098 = vmatpush1.msra.mxu0 0.0
    %4099 = vmatprep.subr.mxu0 0.0
    %4100 = vmatpush1.msra.mxu0 0.0
    %4101 = vmatprep.subr.mxu0 0.0
    %4102 = vmatpush1.msra.mxu0 0.0
    %4103 = vmatprep.subr.mxu0 0.0
    %4104 = vmatpush1.msra.mxu0 0.0
    %4105 = vmatprep.subr.mxu0 0.0
    %4106 = vmatpush1.msra.mxu0 0.0
    %4107 = vmatprep.subr.mxu0 0.0
    %4108 = vmatpush1.msra.mxu0 0.0
    %4109 = vmatprep.subr.mxu0 0.0
    %4110 = vmatpush1.msra.mxu0 0.0
    %4111 = vmatprep.subr.mxu0 0.0
    %4112 = vmatpush1.msra.mxu0 0.0
    %4113 = vmatprep.subr.mxu0 0.0
    %4114 = vmatpush1.msra.mxu0 0.0
    %4115 = vmatprep.subr.mxu0 0.0
    %4116 = vmatpush1.msra.mxu0 0.0
    %4117 = vmatprep.subr.mxu0 0.0
    %4118 = vmatpush1.msra.mxu0 0.0
    %4119 = vmatprep.subr.mxu0 0.0
    %4120 = vmatpush1.msra.mxu0 0.0
    %4121 = vmatprep.mubr.f32.mxu0 0.0
    %4122 = vmatmul.mubr.f32.gmra.mrb[0].mxu0 %v3494
    %v4123 = vpop.f32.mrb[0].mxu0
    %v4124 = vadd.f32 0.0, %v4123
    %v4125 = vpop.f32.mrb[0].mxu0
    %4126 = vmatprep.mubr.f32.mxu0 0.0
    %4127 = vmatmul.mubr.f32.gmra.mrb[0].mxu0 %v3497
    %v4128 = vpop.f32.mrb[0].mxu0
    %v4129 = vadd.f32 0.0, %v4128
    %v4130 = vpop.f32.mrb[0].mxu0
    %4131 = vdwg.mxu0
    %s4132 = scalar_lea.vmem %s6, 256
    %v4133 = vld [vmem:[%s4132] sm:$0xff]
    %v4134 = vld [vmem:[%s4132 + $0x8] sm:$0xff]
    %v4135 = vld [vmem:[%s4132 + $0x10] sm:$0xff]
    %v4136 = vld [vmem:[%s4132 + $0x18] sm:$0xff]
    %v4137 = vld [vmem:[%s4132 + $0x20] sm:$0xff]
    %v4138 = vld [vmem:[%s4132 + $0x28] sm:$0xff]
    %v4139 = vld [vmem:[%s4132 + $0x30] sm:$0xff]
    %v4140 = vld [vmem:[%s4132 + $0x38] sm:$0xff]
    %v4141 = vld [vmem:[%s4132 + $0x40] sm:$0xff]
    %v4142 = vld [vmem:[%s4132 + $0x48] sm:$0xff]
    %v4143 = vld [vmem:[%s4132 + $0x50] sm:$0xff]
    %v4144 = vld [vmem:[%s4132 + $0x58] sm:$0xff]
    %v4145 = vld [vmem:[%s4132 + $0x60] sm:$0xff]
    %v4146 = vld [vmem:[%s4132 + $0x68] sm:$0xff]
    %v4147 = vld [vmem:[%s4132 + $0x70] sm:$0xff]
    %v4148 = vld [vmem:[%s4132 + $0x78] sm:$0xff]
    %v4149 = vld [vmem:[%s4132 + $0x80] sm:$0xff]
    %v4150 = vld [vmem:[%s4132 + $0x88] sm:$0xff]
    %v4151 = vld [vmem:[%s4132 + $0x90] sm:$0xff]
    %v4152 = vld [vmem:[%s4132 + $0x98] sm:$0xff]
    %v4153 = vld [vmem:[%s4132 + $0xa0] sm:$0xff]
    %v4154 = vld [vmem:[%s4132 + $0xa8] sm:$0xff]
    %v4155 = vld [vmem:[%s4132 + $0xb0] sm:$0xff]
    %v4156 = vld [vmem:[%s4132 + $0xb8] sm:$0xff]
    %v4157 = vld [vmem:[%s4132 + $0xc0] sm:$0xff]
    %v4158 = vld [vmem:[%s4132 + $0xc8] sm:$0xff]
    %v4159 = vld [vmem:[%s4132 + $0xd0] sm:$0xff]
    %v4160 = vld [vmem:[%s4132 + $0xd8] sm:$0xff]
    %v4161 = vld [vmem:[%s4132 + $0xe0] sm:$0xff]
    %v4162 = vld [vmem:[%s4132 + $0xe8] sm:$0xff]
    %v4163 = vld [vmem:[%s4132 + $0xf0] sm:$0xff]
    %v4164 = vld [vmem:[%s4132 + $0xf8] sm:$0xff]
    %4165 = vmatprep.subr.mxu0 0.0
    %4166 = vmatpush1.msra.mxu0 %v4133
    %4167 = vmatprep.subr.mxu0 0.0
    %4168 = vmatpush1.msra.mxu0 %v4134
    %4169 = vmatprep.subr.mxu0 0.0
    %4170 = vmatpush1.msra.mxu0 %v4135
    %4171 = vmatprep.subr.mxu0 0.0
    %4172 = vmatpush1.msra.mxu0 %v4136
    %4173 = vmatprep.subr.mxu0 0.0
    %4174 = vmatpush1.msra.mxu0 %v4137
    %4175 = vmatprep.subr.mxu0 0.0
    %4176 = vmatpush1.msra.mxu0 %v4138
    %4177 = vmatprep.subr.mxu0 0.0
    %4178 = vmatpush1.msra.mxu0 %v4139
    %4179 = vmatprep.subr.mxu0 0.0
    %4180 = vmatpush1.msra.mxu0 %v4140
    %4181 = vmatprep.subr.mxu0 0.0
    %4182 = vmatpush1.msra.mxu0 0.0
    %4183 = vmatprep.subr.mxu0 0.0
    %4184 = vmatpush1.msra.mxu0 0.0
    %4185 = vmatprep.subr.mxu0 0.0
    %4186 = vmatpush1.msra.mxu0 0.0
    %4187 = vmatprep.subr.mxu0 0.0
    %4188 = vmatpush1.msra.mxu0 0.0
    %4189 = vmatprep.subr.mxu0 0.0
    %4190 = vmatpush1.msra.mxu0 0.0
    %4191 = vmatprep.subr.mxu0 0.0
    %4192 = vmatpush1.msra.mxu0 0.0
    %4193 = vmatprep.subr.mxu0 0.0
    %4194 = vmatpush1.msra.mxu0 0.0
    %4195 = vmatprep.subr.mxu0 0.0
    %4196 = vmatpush1.msra.mxu0 0.0
    %4197 = vmatprep.subr.mxu0 0.0
    %4198 = vmatpush1.msra.mxu0 0.0
    %4199 = vmatprep.subr.mxu0 0.0
    %4200 = vmatpush1.msra.mxu0 0.0
    %4201 = vmatprep.subr.mxu0 0.0
    %4202 = vmatpush1.msra.mxu0 0.0
    %4203 = vmatprep.subr.mxu0 0.0
    %4204 = vmatpush1.msra.mxu0 0.0
    %4205 = vmatprep.subr.mxu0 0.0
    %4206 = vmatpush1.msra.mxu0 0.0
    %4207 = vmatprep.subr.mxu0 0.0
    %4208 = vmatpush1.msra.mxu0 0.0
    %4209 = vmatprep.subr.mxu0 0.0
    %4210 = vmatpush1.msra.mxu0 0.0
    %4211 = vmatprep.subr.mxu0 0.0
    %4212 = vmatpush1.msra.mxu0 0.0
    %4213 = vmatprep.subr.mxu0 0.0
    %4214 = vmatpush1.msra.mxu0 0.0
    %4215 = vmatprep.subr.mxu0 0.0
    %4216 = vmatpush1.msra.mxu0 0.0
    %4217 = vmatprep.subr.mxu0 0.0
    %4218 = vmatpush1.msra.mxu0 0.0
    %4219 = vmatprep.subr.mxu0 0.0
    %4220 = vmatpush1.msra.mxu0 0.0
    %4221 = vmatprep.subr.mxu0 0.0
    %4222 = vmatpush1.msra.mxu0 0.0
    %4223 = vmatprep.subr.mxu0 0.0
    %4224 = vmatpush1.msra.mxu0 0.0
    %4225 = vmatprep.subr.mxu0 0.0
    %4226 = vmatpush1.msra.mxu0 0.0
    %4227 = vmatprep.subr.mxu0 0.0
    %4228 = vmatpush1.msra.mxu0 0.0
    %4229 = vmatprep.mubr.f32.mxu0 0.0
    %4230 = vmatmul.mubr.f32.gmra.mrb[0].mxu0 %v3494
    %v4231 = vpop.f32.mrb[0].mxu0
    %v4232 = vadd.f32 0.0, %v4231
    %v4233 = vpop.f32.mrb[0].mxu0
    %4234 = vmatprep.mubr.f32.mxu0 0.0
    %4235 = vmatmul.mubr.f32.gmra.mrb[0].mxu0 %v3497
    %v4236 = vpop.f32.mrb[0].mxu0
    %v4237 = vadd.f32 0.0, %v4236
    %v4238 = vpop.f32.mrb[0].mxu0
    %4239 = vdwg.mxu0
    %4240 = vmatprep.subr.mxu0 0.0
    %4241 = vmatpush1.msra.mxu0 %v4141
    %4242 = vmatprep.subr.mxu0 0.0
    %4243 = vmatpush1.msra.mxu0 %v4142
    %4244 = vmatprep.subr.mxu0 0.0
    %4245 = vmatpush1.msra.mxu0 %v4143
    %4246 = vmatprep.subr.mxu0 0.0
    %4247 = vmatpush1.msra.mxu0 %v4144
    %4248 = vmatprep.subr.mxu0 0.0
    %4249 = vmatpush1.msra.mxu0 %v4145
    %4250 = vmatprep.subr.mxu0 0.0
    %4251 = vmatpush1.msra.mxu0 %v4146
    %4252 = vmatprep.subr.mxu0 0.0
    %4253 = vmatpush1.msra.mxu0 %v4147
    %4254 = vmatprep.subr.mxu0 0.0
    %4255 = vmatpush1.msra.mxu0 %v4148
    %4256 = vmatprep.subr.mxu0 0.0
    %4257 = vmatpush1.msra.mxu0 0.0
    %4258 = vmatprep.subr.mxu0 0.0
    %4259 = vmatpush1.msra.mxu0 0.0
    %4260 = vmatprep.subr.mxu0 0.0
    %4261 = vmatpush1.msra.mxu0 0.0
    %4262 = vmatprep.subr.mxu0 0.0
    %4263 = vmatpush1.msra.mxu0 0.0
    %4264 = vmatprep.subr.mxu0 0.0
    %4265 = vmatpush1.msra.mxu0 0.0
    %4266 = vmatprep.subr.mxu0 0.0
    %4267 = vmatpush1.msra.mxu0 0.0
    %4268 = vmatprep.subr.mxu0 0.0
    %4269 = vmatpush1.msra.mxu0 0.0
    %4270 = vmatprep.subr.mxu0 0.0
    %4271 = vmatpush1.msra.mxu0 0.0
    %4272 = vmatprep.subr.mxu0 0.0
    %4273 = vmatpush1.msra.mxu0 0.0
    %4274 = vmatprep.subr.mxu0 0.0
    %4275 = vmatpush1.msra.mxu0 0.0
    %4276 = vmatprep.subr.mxu0 0.0
    %4277 = vmatpush1.msra.mxu0 0.0
    %4278 = vmatprep.subr.mxu0 0.0
    %4279 = vmatpush1.msra.mxu0 0.0
    %4280 = vmatprep.subr.mxu0 0.0
    %4281 = vmatpush1.msra.mxu0 0.0
    %4282 = vmatprep.subr.mxu0 0.0
    %4283 = vmatpush1.msra.mxu0 0.0
    %4284 = vmatprep.subr.mxu0 0.0
    %4285 = vmatpush1.msra.mxu0 0.0
    %4286 = vmatprep.subr.mxu0 0.0
    %4287 = vmatpush1.msra.mxu0 0.0
    %4288 = vmatprep.subr.mxu0 0.0
    %4289 = vmatpush1.msra.mxu0 0.0
    %4290 = vmatprep.subr.mxu0 0.0
    %4291 = vmatpush1.msra.mxu0 0.0
    %4292 = vmatprep.subr.mxu0 0.0
    %4293 = vmatpush1.msra.mxu0 0.0
    %4294 = vmatprep.subr.mxu0 0.0
    %4295 = vmatpush1.msra.mxu0 0.0
    %4296 = vmatprep.subr.mxu0 0.0
    %4297 = vmatpush1.msra.mxu0 0.0
    %4298 = vmatprep.subr.mxu0 0.0
    %4299 = vmatpush1.msra.mxu0 0.0
    %4300 = vmatprep.subr.mxu0 0.0
    %4301 = vmatpush1.msra.mxu0 0.0
    %4302 = vmatprep.subr.mxu0 0.0
    %4303 = vmatpush1.msra.mxu0 0.0
    %4304 = vmatprep.mubr.f32.mxu0 0.0
    %4305 = vmatmul.mubr.f32.gmra.mrb[0].mxu0 %v3494
    %v4306 = vpop.f32.mrb[0].mxu0
    %v4307 = vadd.f32 0.0, %v4306
    %v4308 = vpop.f32.mrb[0].mxu0
    %4309 = vmatprep.mubr.f32.mxu0 0.0
    %4310 = vmatmul.mubr.f32.gmra.mrb[0].mxu0 %v3497
    %v4311 = vpop.f32.mrb[0].mxu0
    %v4312 = vadd.f32 0.0, %v4311
    %v4313 = vpop.f32.mrb[0].mxu0
    %4314 = vdwg.mxu0
    %4315 = vmatprep.subr.mxu0 0.0
    %4316 = vmatpush1.msra.mxu0 %v4149
    %4317 = vmatprep.subr.mxu0 0.0
    %4318 = vmatpush1.msra.mxu0 %v4150
    %4319 = vmatprep.subr.mxu0 0.0
    %4320 = vmatpush1.msra.mxu0 %v4151
    %4321 = vmatprep.subr.mxu0 0.0
    %4322 = vmatpush1.msra.mxu0 %v4152
    %4323 = vmatprep.subr.mxu0 0.0
    %4324 = vmatpush1.msra.mxu0 %v4153
    %4325 = vmatprep.subr.mxu0 0.0
    %4326 = vmatpush1.msra.mxu0 %v4154
    %4327 = vmatprep.subr.mxu0 0.0
    %4328 = vmatpush1.msra.mxu0 %v4155
    %4329 = vmatprep.subr.mxu0 0.0
    %4330 = vmatpush1.msra.mxu0 %v4156
    %4331 = vmatprep.subr.mxu0 0.0
    %4332 = vmatpush1.msra.mxu0 0.0
    %4333 = vmatprep.subr.mxu0 0.0
    %4334 = vmatpush1.msra.mxu0 0.0
    %4335 = vmatprep.subr.mxu0 0.0
    %4336 = vmatpush1.msra.mxu0 0.0
    %4337 = vmatprep.subr.mxu0 0.0
    %4338 = vmatpush1.msra.mxu0 0.0
    %4339 = vmatprep.subr.mxu0 0.0
    %4340 = vmatpush1.msra.mxu0 0.0
    %4341 = vmatprep.subr.mxu0 0.0
    %4342 = vmatpush1.msra.mxu0 0.0
    %4343 = vmatprep.subr.mxu0 0.0
    %4344 = vmatpush1.msra.mxu0 0.0
    %4345 = vmatprep.subr.mxu0 0.0
    %4346 = vmatpush1.msra.mxu0 0.0
    %4347 = vmatprep.subr.mxu0 0.0
    %4348 = vmatpush1.msra.mxu0 0.0
    %4349 = vmatprep.subr.mxu0 0.0
    %4350 = vmatpush1.msra.mxu0 0.0
    %4351 = vmatprep.subr.mxu0 0.0
    %4352 = vmatpush1.msra.mxu0 0.0
    %4353 = vmatprep.subr.mxu0 0.0
    %4354 = vmatpush1.msra.mxu0 0.0
    %4355 = vmatprep.subr.mxu0 0.0
    %4356 = vmatpush1.msra.mxu0 0.0
    %4357 = vmatprep.subr.mxu0 0.0
    %4358 = vmatpush1.msra.mxu0 0.0
    %4359 = vmatprep.subr.mxu0 0.0
    %4360 = vmatpush1.msra.mxu0 0.0
    %4361 = vmatprep.subr.mxu0 0.0
    %4362 = vmatpush1.msra.mxu0 0.0
    %4363 = vmatprep.subr.mxu0 0.0
    %4364 = vmatpush1.msra.mxu0 0.0
    %4365 = vmatprep.subr.mxu0 0.0
    %4366 = vmatpush1.msra.mxu0 0.0
    %4367 = vmatprep.subr.mxu0 0.0
    %4368 = vmatpush1.msra.mxu0 0.0
    %4369 = vmatprep.subr.mxu0 0.0
    %4370 = vmatpush1.msra.mxu0 0.0
    %4371 = vmatprep.subr.mxu0 0.0
    %4372 = vmatpush1.msra.mxu0 0.0
    %4373 = vmatprep.subr.mxu0 0.0
    %4374 = vmatpush1.msra.mxu0 0.0
    %4375 = vmatprep.subr.mxu0 0.0
    %4376 = vmatpush1.msra.mxu0 0.0
    %4377 = vmatprep.subr.mxu0 0.0
    %4378 = vmatpush1.msra.mxu0 0.0
    %4379 = vmatprep.mubr.f32.mxu0 0.0
    %4380 = vmatmul.mubr.f32.gmra.mrb[0].mxu0 %v3494
    %v4381 = vpop.f32.mrb[0].mxu0
    %v4382 = vadd.f32 0.0, %v4381
    %v4383 = vpop.f32.mrb[0].mxu0
    %4384 = vmatprep.mubr.f32.mxu0 0.0
    %4385 = vmatmul.mubr.f32.gmra.mrb[0].mxu0 %v3497
    %v4386 = vpop.f32.mrb[0].mxu0
    %v4387 = vadd.f32 0.0, %v4386
    %v4388 = vpop.f32.mrb[0].mxu0
    %4389 = vdwg.mxu0
    %4390 = vmatprep.subr.mxu0 0.0
    %4391 = vmatpush1.msra.mxu0 %v4157
    %4392 = vmatprep.subr.mxu0 0.0
    %4393 = vmatpush1.msra.mxu0 %v4158
    %4394 = vmatprep.subr.mxu0 0.0
    %4395 = vmatpush1.msra.mxu0 %v4159
    %4396 = vmatprep.subr.mxu0 0.0
    %4397 = vmatpush1.msra.mxu0 %v4160
    %4398 = vmatprep.subr.mxu0 0.0
    %4399 = vmatpush1.msra.mxu0 %v4161
    %4400 = vmatprep.subr.mxu0 0.0
    %4401 = vmatpush1.msra.mxu0 %v4162
    %4402 = vmatprep.subr.mxu0 0.0
    %4403 = vmatpush1.msra.mxu0 %v4163
    %4404 = vmatprep.subr.mxu0 0.0
    %4405 = vmatpush1.msra.mxu0 %v4164
    %4406 = vmatprep.subr.mxu0 0.0
    %4407 = vmatpush1.msra.mxu0 0.0
    %4408 = vmatprep.subr.mxu0 0.0
    %4409 = vmatpush1.msra.mxu0 0.0
    %4410 = vmatprep.subr.mxu0 0.0
    %4411 = vmatpush1.msra.mxu0 0.0
    %4412 = vmatprep.subr.mxu0 0.0
    %4413 = vmatpush1.msra.mxu0 0.0
    %4414 = vmatprep.subr.mxu0 0.0
    %4415 = vmatpush1.msra.mxu0 0.0
    %4416 = vmatprep.subr.mxu0 0.0
    %4417 = vmatpush1.msra.mxu0 0.0
    %4418 = vmatprep.subr.mxu0 0.0
    %4419 = vmatpush1.msra.mxu0 0.0
    %4420 = vmatprep.subr.mxu0 0.0
    %4421 = vmatpush1.msra.mxu0 0.0
    %4422 = vmatprep.subr.mxu0 0.0
    %4423 = vmatpush1.msra.mxu0 0.0
    %4424 = vmatprep.subr.mxu0 0.0
    %4425 = vmatpush1.msra.mxu0 0.0
    %4426 = vmatprep.subr.mxu0 0.0
    %4427 = vmatpush1.msra.mxu0 0.0
    %4428 = vmatprep.subr.mxu0 0.0
    %4429 = vmatpush1.msra.mxu0 0.0
    %4430 = vmatprep.subr.mxu0 0.0
    %4431 = vmatpush1.msra.mxu0 0.0
    %4432 = vmatprep.subr.mxu0 0.0
    %4433 = vmatpush1.msra.mxu0 0.0
    %4434 = vmatprep.subr.mxu0 0.0
    %4435 = vmatpush1.msra.mxu0 0.0
    %4436 = vmatprep.subr.mxu0 0.0
    %4437 = vmatpush1.msra.mxu0 0.0
    %4438 = vmatprep.subr.mxu0 0.0
    %4439 = vmatpush1.msra.mxu0 0.0
    %4440 = vmatprep.subr.mxu0 0.0
    %4441 = vmatpush1.msra.mxu0 0.0
    %4442 = vmatprep.subr.mxu0 0.0
    %4443 = vmatpush1.msra.mxu0 0.0
    %4444 = vmatprep.subr.mxu0 0.0
    %4445 = vmatpush1.msra.mxu0 0.0
    %4446 = vmatprep.subr.mxu0 0.0
    %4447 = vmatpush1.msra.mxu0 0.0
    %4448 = vmatprep.subr.mxu0 0.0
    %4449 = vmatpush1.msra.mxu0 0.0
    %4450 = vmatprep.subr.mxu0 0.0
    %4451 = vmatpush1.msra.mxu0 0.0
    %4452 = vmatprep.subr.mxu0 0.0
    %4453 = vmatpush1.msra.mxu0 0.0
    %4454 = vmatprep.mubr.f32.mxu0 0.0
    %4455 = vmatmul.mubr.f32.gmra.mrb[0].mxu0 %v3494
    %v4456 = vpop.f32.mrb[0].mxu0
    %v4457 = vadd.f32 0.0, %v4456
    %v4458 = vpop.f32.mrb[0].mxu0
    %4459 = vmatprep.mubr.f32.mxu0 0.0
    %4460 = vmatmul.mubr.f32.gmra.mrb[0].mxu0 %v3497
    %v4461 = vpop.f32.mrb[0].mxu0
    %v4462 = vadd.f32 0.0, %v4461
    %v4463 = vpop.f32.mrb[0].mxu0
    %4464 = vdwg.mxu0
    %v4465 = vsub.f32 0.0, %v3566
    %v4466 = vsub.f32 0.0, %v3571
    %v4467 = vsub.f32 0.0, %v3641
    %v4468 = vsub.f32 0.0, %v3646
    %v4469 = vsub.f32 0.0, %v3716
    %v4470 = vsub.f32 0.0, %v3721
    %v4471 = vsub.f32 0.0, %v3791
    %v4472 = vsub.f32 0.0, %v3796
    %4481 = vrot.lane.b32.xlu0 %v4465, 120
    %v4482 = vpop.permute.xlu0 %4481
    %4483 = vrot.lane.b32.xlu0 %v4466, 120
    %v4484 = vpop.permute.xlu0 %4483
    %4485 = vrot.lane.b32.xlu0 %v4467, 120
    %v4486 = vpop.permute.xlu0 %4485
    %4487 = vrot.lane.b32.xlu0 %v4468, 120
    %v4488 = vpop.permute.xlu0 %4487
    %4489 = vrot.lane.b32.xlu0 %v4469, 120
    %v4490 = vpop.permute.xlu0 %4489
    %4491 = vrot.lane.b32.xlu0 %v4470, 120
    %v4492 = vpop.permute.xlu0 %4491
    %4493 = vrot.lane.b32.xlu0 %v4471, 120
    %v4494 = vpop.permute.xlu0 %4493
    %4495 = vrot.lane.b32.xlu0 %v4472, 120
    %v4496 = vpop.permute.xlu0 %4495
    %4513 = vrot.lane.b32.xlu0 %v3566, 8
    %v4514 = vpop.permute.xlu0 %4513
    %4515 = vrot.lane.b32.xlu0 %v3571, 8
    %v4516 = vpop.permute.xlu0 %4515
    %4517 = vrot.lane.b32.xlu0 %v3641, 8
    %v4518 = vpop.permute.xlu0 %4517
    %4519 = vrot.lane.b32.xlu0 %v3646, 8
    %v4520 = vpop.permute.xlu0 %4519
    %4521 = vrot.lane.b32.xlu0 %v3716, 8
    %v4522 = vpop.permute.xlu0 %4521
    %4523 = vrot.lane.b32.xlu0 %v3721, 8
    %v4524 = vpop.permute.xlu0 %4523
    %4525 = vrot.lane.b32.xlu0 %v3791, 8
    %v4526 = vpop.permute.xlu0 %4525
    %4527 = vrot.lane.b32.xlu0 %v3796, 8
    %v4528 = vpop.permute.xlu0 %4527
    %v4537 = vsel %vm1157, %v4482, %v4514
    %v4538 = vsel %vm1157, %v4484, %v4516
    %v4539 = vsel %vm1157, %v4486, %v4518
    %v4540 = vsel %vm1157, %v4488, %v4520
    %v4541 = vsel %vm1157, %v4490, %v4522
    %v4542 = vsel %vm1157, %v4492, %v4524
    %v4543 = vsel %vm1157, %v4494, %v4526
    %v4544 = vsel %vm1157, %v4496, %v4528
    %v4545 = vmul.f32 %v3566, %v47
    %v4546 = vmul.f32 %v3571, %v48
    %v4547 = vmul.f32 %v3641, %v47
    %v4548 = vmul.f32 %v3646, %v48
    %v4549 = vmul.f32 %v3716, %v47
    %v4550 = vmul.f32 %v3721, %v48
    %v4551 = vmul.f32 %v3791, %v47
    %v4552 = vmul.f32 %v3796, %v48
    %v4553 = vmul.f32 %v4537, %v49
    %v4554 = vmul.f32 %v4538, %v50
    %v4555 = vmul.f32 %v4539, %v49
    %v4556 = vmul.f32 %v4540, %v50
    %v4557 = vmul.f32 %v4541, %v49
    %v4558 = vmul.f32 %v4542, %v50
    %v4559 = vmul.f32 %v4543, %v49
    %v4560 = vmul.f32 %v4544, %v50
    %v4561 = vadd.f32 %v4545, %v4553
    %v4562 = vadd.f32 %v4546, %v4554
    %v4563 = vadd.f32 %v4547, %v4555
    %v4564 = vadd.f32 %v4548, %v4556
    %v4565 = vadd.f32 %v4549, %v4557
    %v4566 = vadd.f32 %v4550, %v4558
    %v4567 = vadd.f32 %v4551, %v4559
    %v4568 = vadd.f32 %v4552, %v4560
    %v4569 = vsub.f32 0.0, %v3899
    %v4570 = vsub.f32 0.0, %v3904
    %v4571 = vsub.f32 0.0, %v3974
    %v4572 = vsub.f32 0.0, %v3979
    %v4573 = vsub.f32 0.0, %v4049
    %v4574 = vsub.f32 0.0, %v4054
    %v4575 = vsub.f32 0.0, %v4124
    %v4576 = vsub.f32 0.0, %v4129
    %4585 = vrot.lane.b32.xlu0 %v4569, 120
    %v4586 = vpop.permute.xlu0 %4585
    %4587 = vrot.lane.b32.xlu0 %v4570, 120
    %v4588 = vpop.permute.xlu0 %4587
    %4589 = vrot.lane.b32.xlu0 %v4571, 120
    %v4590 = vpop.permute.xlu0 %4589
    %4591 = vrot.lane.b32.xlu0 %v4572, 120
    %v4592 = vpop.permute.xlu0 %4591
    %4593 = vrot.lane.b32.xlu0 %v4573, 120
    %v4594 = vpop.permute.xlu0 %4593
    %4595 = vrot.lane.b32.xlu0 %v4574, 120
    %v4596 = vpop.permute.xlu0 %4595
    %4597 = vrot.lane.b32.xlu0 %v4575, 120
    %v4598 = vpop.permute.xlu0 %4597
    %4599 = vrot.lane.b32.xlu0 %v4576, 120
    %v4600 = vpop.permute.xlu0 %4599
    %4617 = vrot.lane.b32.xlu0 %v3899, 8
    %v4618 = vpop.permute.xlu0 %4617
    %4619 = vrot.lane.b32.xlu0 %v3904, 8
    %v4620 = vpop.permute.xlu0 %4619
    %4621 = vrot.lane.b32.xlu0 %v3974, 8
    %v4622 = vpop.permute.xlu0 %4621
    %4623 = vrot.lane.b32.xlu0 %v3979, 8
    %v4624 = vpop.permute.xlu0 %4623
    %4625 = vrot.lane.b32.xlu0 %v4049, 8
    %v4626 = vpop.permute.xlu0 %4625
    %4627 = vrot.lane.b32.xlu0 %v4054, 8
    %v4628 = vpop.permute.xlu0 %4627
    %4629 = vrot.lane.b32.xlu0 %v4124, 8
    %v4630 = vpop.permute.xlu0 %4629
    %4631 = vrot.lane.b32.xlu0 %v4129, 8
    %v4632 = vpop.permute.xlu0 %4631
    %v4641 = vsel %vm1157, %v4586, %v4618
    %v4642 = vsel %vm1157, %v4588, %v4620
    %v4643 = vsel %vm1157, %v4590, %v4622
    %v4644 = vsel %vm1157, %v4592, %v4624
    %v4645 = vsel %vm1157, %v4594, %v4626
    %v4646 = vsel %vm1157, %v4596, %v4628
    %v4647 = vsel %vm1157, %v4598, %v4630
    %v4648 = vsel %vm1157, %v4600, %v4632
    %v4649 = vmul.f32 %v3899, %v47
    %v4650 = vmul.f32 %v3904, %v48
    %v4651 = vmul.f32 %v3974, %v47
    %v4652 = vmul.f32 %v3979, %v48
    %v4653 = vmul.f32 %v4049, %v47
    %v4654 = vmul.f32 %v4054, %v48
    %v4655 = vmul.f32 %v4124, %v47
    %v4656 = vmul.f32 %v4129, %v48
    %v4657 = vmul.f32 %v4641, %v49
    %v4658 = vmul.f32 %v4642, %v50
    %v4659 = vmul.f32 %v4643, %v49
    %v4660 = vmul.f32 %v4644, %v50
    %v4661 = vmul.f32 %v4645, %v49
    %v4662 = vmul.f32 %v4646, %v50
    %v4663 = vmul.f32 %v4647, %v49
    %v4664 = vmul.f32 %v4648, %v50
    %v4665 = vadd.f32 %v4649, %v4657
    %v4666 = vadd.f32 %v4650, %v4658
    %v4667 = vadd.f32 %v4651, %v4659
    %v4668 = vadd.f32 %v4652, %v4660
    %v4669 = vadd.f32 %v4653, %v4661
    %v4670 = vadd.f32 %v4654, %v4662
    %v4671 = vadd.f32 %v4655, %v4663
    %v4672 = vadd.f32 %v4656, %v4664
    %v4674 = vsel %vm1294, %v4561, 0
    %v4677 = vsel %vm1294, %v4665, 0
    %4679 = vmatprep.subr.mxu0 0.0
    %4680 = vmatpush1.xpose.msra.mxu0 %v4677
    %4681 = vmatprep.subr.mxu0 0.0
    %4682 = vmatpush1.xpose.msra.mxu0 0.0
    %4683 = vmatprep.subr.mxu0 0.0
    %4684 = vmatpush1.xpose.msra.mxu0 0.0
    %4685 = vmatprep.subr.mxu0 0.0
    %4686 = vmatpush1.xpose.msra.mxu0 0.0
    %4687 = vmatprep.subr.mxu0 0.0
    %4688 = vmatpush1.xpose.msra.mxu0 0.0
    %4689 = vmatprep.subr.mxu0 0.0
    %4690 = vmatpush1.xpose.msra.mxu0 0.0
    %4691 = vmatprep.subr.mxu0 0.0
    %4692 = vmatpush1.xpose.msra.mxu0 0.0
    %4693 = vmatprep.subr.mxu0 0.0
    %4694 = vmatpush1.xpose.msra.mxu0 0.0
    %4695 = vmatprep.subr.mxu0 0.0
    %4696 = vmatpush1.xpose.msra.mxu0 0.0
    %4697 = vmatprep.subr.mxu0 0.0
    %4698 = vmatpush1.xpose.msra.mxu0 0.0
    %4699 = vmatprep.subr.mxu0 0.0
    %4700 = vmatpush1.xpose.msra.mxu0 0.0
    %4701 = vmatprep.subr.mxu0 0.0
    %4702 = vmatpush1.xpose.msra.mxu0 0.0
    %4703 = vmatprep.subr.mxu0 0.0
    %4704 = vmatpush1.xpose.msra.mxu0 0.0
    %4705 = vmatprep.subr.mxu0 0.0
    %4706 = vmatpush1.xpose.msra.mxu0 0.0
    %4707 = vmatprep.subr.mxu0 0.0
    %4708 = vmatpush1.xpose.msra.mxu0 0.0
    %4709 = vmatprep.subr.mxu0 0.0
    %4710 = vmatpush1.xpose.msra.mxu0 0.0
    %4711 = vmatprep.subr.mxu0 0.0
    %4712 = vmatpush1.xpose.msra.mxu0 0.0
    %4713 = vmatprep.subr.mxu0 0.0
    %4714 = vmatpush1.xpose.msra.mxu0 0.0
    %4715 = vmatprep.subr.mxu0 0.0
    %4716 = vmatpush1.xpose.msra.mxu0 0.0
    %4717 = vmatprep.subr.mxu0 0.0
    %4718 = vmatpush1.xpose.msra.mxu0 0.0
    %4719 = vmatprep.subr.mxu0 0.0
    %4720 = vmatpush1.xpose.msra.mxu0 0.0
    %4721 = vmatprep.subr.mxu0 0.0
    %4722 = vmatpush1.xpose.msra.mxu0 0.0
    %4723 = vmatprep.subr.mxu0 0.0
    %4724 = vmatpush1.xpose.msra.mxu0 0.0
    %4725 = vmatprep.subr.mxu0 0.0
    %4726 = vmatpush1.xpose.msra.mxu0 0.0
    %4727 = vmatprep.subr.mxu0 0.0
    %4728 = vmatpush1.xpose.msra.mxu0 0.0
    %4729 = vmatprep.subr.mxu0 0.0
    %4730 = vmatpush1.xpose.msra.mxu0 0.0
    %4731 = vmatprep.subr.mxu0 0.0
    %4732 = vmatpush1.xpose.msra.mxu0 0.0
    %4733 = vmatprep.subr.mxu0 0.0
    %4734 = vmatpush1.xpose.msra.mxu0 0.0
    %4735 = vmatprep.subr.mxu0 0.0
    %4736 = vmatpush1.xpose.msra.mxu0 0.0
    %4737 = vmatprep.subr.mxu0 0.0
    %4738 = vmatpush1.xpose.msra.mxu0 0.0
    %4739 = vmatprep.subr.mxu0 0.0
    %4740 = vmatpush1.xpose.msra.mxu0 0.0
    %4741 = vmatprep.subr.mxu0 0.0
    %4742 = vmatpush1.xpose.msra.mxu0 0.0
    %4743 = vmatprep.mubr.f32.mxu0 0.0
    %4744 = vmatmul.mubr.f32.gmra.mrb[0].mxu0 %v4674
    %v4745 = vpop.f32.mrb[0].mxu0
    %v4746 = vadd.f32 0.0, %v4745
    %v4747 = vpop.f32.mrb[0].mxu0
    %4748 = vdwg.mxu0
    %v4750 = vsel %vm1294, %v4563, 0
    %v4753 = vsel %vm1294, %v4667, 0
    %4755 = vmatprep.subr.mxu0 0.0
    %4756 = vmatpush1.xpose.msra.mxu0 %v4753
    %4757 = vmatprep.subr.mxu0 0.0
    %4758 = vmatpush1.xpose.msra.mxu0 0.0
    %4759 = vmatprep.subr.mxu0 0.0
    %4760 = vmatpush1.xpose.msra.mxu0 0.0
    %4761 = vmatprep.subr.mxu0 0.0
    %4762 = vmatpush1.xpose.msra.mxu0 0.0
    %4763 = vmatprep.subr.mxu0 0.0
    %4764 = vmatpush1.xpose.msra.mxu0 0.0
    %4765 = vmatprep.subr.mxu0 0.0
    %4766 = vmatpush1.xpose.msra.mxu0 0.0
    %4767 = vmatprep.subr.mxu0 0.0
    %4768 = vmatpush1.xpose.msra.mxu0 0.0
    %4769 = vmatprep.subr.mxu0 0.0
    %4770 = vmatpush1.xpose.msra.mxu0 0.0
    %4771 = vmatprep.subr.mxu0 0.0
    %4772 = vmatpush1.xpose.msra.mxu0 0.0
    %4773 = vmatprep.subr.mxu0 0.0
    %4774 = vmatpush1.xpose.msra.mxu0 0.0
    %4775 = vmatprep.subr.mxu0 0.0
    %4776 = vmatpush1.xpose.msra.mxu0 0.0
    %4777 = vmatprep.subr.mxu0 0.0
    %4778 = vmatpush1.xpose.msra.mxu0 0.0
    %4779 = vmatprep.subr.mxu0 0.0
    %4780 = vmatpush1.xpose.msra.mxu0 0.0
    %4781 = vmatprep.subr.mxu0 0.0
    %4782 = vmatpush1.xpose.msra.mxu0 0.0
    %4783 = vmatprep.subr.mxu0 0.0
    %4784 = vmatpush1.xpose.msra.mxu0 0.0
    %4785 = vmatprep.subr.mxu0 0.0
    %4786 = vmatpush1.xpose.msra.mxu0 0.0
    %4787 = vmatprep.subr.mxu0 0.0
    %4788 = vmatpush1.xpose.msra.mxu0 0.0
    %4789 = vmatprep.subr.mxu0 0.0
    %4790 = vmatpush1.xpose.msra.mxu0 0.0
    %4791 = vmatprep.subr.mxu0 0.0
    %4792 = vmatpush1.xpose.msra.mxu0 0.0
    %4793 = vmatprep.subr.mxu0 0.0
    %4794 = vmatpush1.xpose.msra.mxu0 0.0
    %4795 = vmatprep.subr.mxu0 0.0
    %4796 = vmatpush1.xpose.msra.mxu0 0.0
    %4797 = vmatprep.subr.mxu0 0.0
    %4798 = vmatpush1.xpose.msra.mxu0 0.0
    %4799 = vmatprep.subr.mxu0 0.0
    %4800 = vmatpush1.xpose.msra.mxu0 0.0
    %4801 = vmatprep.subr.mxu0 0.0
    %4802 = vmatpush1.xpose.msra.mxu0 0.0
    %4803 = vmatprep.subr.mxu0 0.0
    %4804 = vmatpush1.xpose.msra.mxu0 0.0
    %4805 = vmatprep.subr.mxu0 0.0
    %4806 = vmatpush1.xpose.msra.mxu0 0.0
    %4807 = vmatprep.subr.mxu0 0.0
    %4808 = vmatpush1.xpose.msra.mxu0 0.0
    %4809 = vmatprep.subr.mxu0 0.0
    %4810 = vmatpush1.xpose.msra.mxu0 0.0
    %4811 = vmatprep.subr.mxu0 0.0
    %4812 = vmatpush1.xpose.msra.mxu0 0.0
    %4813 = vmatprep.subr.mxu0 0.0
    %4814 = vmatpush1.xpose.msra.mxu0 0.0
    %4815 = vmatprep.subr.mxu0 0.0
    %4816 = vmatpush1.xpose.msra.mxu0 0.0
    %4817 = vmatprep.subr.mxu0 0.0
    %4818 = vmatpush1.xpose.msra.mxu0 0.0
    %4819 = vmatprep.mubr.f32.mxu0 0.0
    %4820 = vmatmul.mubr.f32.gmra.mrb[0].mxu0 %v4750
    %v4821 = vpop.f32.mrb[0].mxu0
    %v4822 = vadd.f32 0.0, %v4821
    %v4823 = vpop.f32.mrb[0].mxu0
    %4824 = vdwg.mxu0
    %v4826 = vsel %vm1294, %v4565, 0
    %v4829 = vsel %vm1294, %v4669, 0
    %4831 = vmatprep.subr.mxu0 0.0
    %4832 = vmatpush1.xpose.msra.mxu0 %v4829
    %4833 = vmatprep.subr.mxu0 0.0
    %4834 = vmatpush1.xpose.msra.mxu0 0.0
    %4835 = vmatprep.subr.mxu0 0.0
    %4836 = vmatpush1.xpose.msra.mxu0 0.0
    %4837 = vmatprep.subr.mxu0 0.0
    %4838 = vmatpush1.xpose.msra.mxu0 0.0
    %4839 = vmatprep.subr.mxu0 0.0
    %4840 = vmatpush1.xpose.msra.mxu0 0.0
    %4841 = vmatprep.subr.mxu0 0.0
    %4842 = vmatpush1.xpose.msra.mxu0 0.0
    %4843 = vmatprep.subr.mxu0 0.0
    %4844 = vmatpush1.xpose.msra.mxu0 0.0
    %4845 = vmatprep.subr.mxu0 0.0
    %4846 = vmatpush1.xpose.msra.mxu0 0.0
    %4847 = vmatprep.subr.mxu0 0.0
    %4848 = vmatpush1.xpose.msra.mxu0 0.0
    %4849 = vmatprep.subr.mxu0 0.0
    %4850 = vmatpush1.xpose.msra.mxu0 0.0
    %4851 = vmatprep.subr.mxu0 0.0
    %4852 = vmatpush1.xpose.msra.mxu0 0.0
    %4853 = vmatprep.subr.mxu0 0.0
    %4854 = vmatpush1.xpose.msra.mxu0 0.0
    %4855 = vmatprep.subr.mxu0 0.0
    %4856 = vmatpush1.xpose.msra.mxu0 0.0
    %4857 = vmatprep.subr.mxu0 0.0
    %4858 = vmatpush1.xpose.msra.mxu0 0.0
    %4859 = vmatprep.subr.mxu0 0.0
    %4860 = vmatpush1.xpose.msra.mxu0 0.0
    %4861 = vmatprep.subr.mxu0 0.0
    %4862 = vmatpush1.xpose.msra.mxu0 0.0
    %4863 = vmatprep.subr.mxu0 0.0
    %4864 = vmatpush1.xpose.msra.mxu0 0.0
    %4865 = vmatprep.subr.mxu0 0.0
    %4866 = vmatpush1.xpose.msra.mxu0 0.0
    %4867 = vmatprep.subr.mxu0 0.0
    %4868 = vmatpush1.xpose.msra.mxu0 0.0
    %4869 = vmatprep.subr.mxu0 0.0
    %4870 = vmatpush1.xpose.msra.mxu0 0.0
    %4871 = vmatprep.subr.mxu0 0.0
    %4872 = vmatpush1.xpose.msra.mxu0 0.0
    %4873 = vmatprep.subr.mxu0 0.0
    %4874 = vmatpush1.xpose.msra.mxu0 0.0
    %4875 = vmatprep.subr.mxu0 0.0
    %4876 = vmatpush1.xpose.msra.mxu0 0.0
    %4877 = vmatprep.subr.mxu0 0.0
    %4878 = vmatpush1.xpose.msra.mxu0 0.0
    %4879 = vmatprep.subr.mxu0 0.0
    %4880 = vmatpush1.xpose.msra.mxu0 0.0
    %4881 = vmatprep.subr.mxu0 0.0
    %4882 = vmatpush1.xpose.msra.mxu0 0.0
    %4883 = vmatprep.subr.mxu0 0.0
    %4884 = vmatpush1.xpose.msra.mxu0 0.0
    %4885 = vmatprep.subr.mxu0 0.0
    %4886 = vmatpush1.xpose.msra.mxu0 0.0
    %4887 = vmatprep.subr.mxu0 0.0
    %4888 = vmatpush1.xpose.msra.mxu0 0.0
    %4889 = vmatprep.subr.mxu0 0.0
    %4890 = vmatpush1.xpose.msra.mxu0 0.0
    %4891 = vmatprep.subr.mxu0 0.0
    %4892 = vmatpush1.xpose.msra.mxu0 0.0
    %4893 = vmatprep.subr.mxu0 0.0
    %4894 = vmatpush1.xpose.msra.mxu0 0.0
    %4895 = vmatprep.mubr.f32.mxu0 0.0
    %4896 = vmatmul.mubr.f32.gmra.mrb[0].mxu0 %v4826
    %v4897 = vpop.f32.mrb[0].mxu0
    %v4898 = vadd.f32 0.0, %v4897
    %v4899 = vpop.f32.mrb[0].mxu0
    %4900 = vdwg.mxu0
    %v4902 = vsel %vm1294, %v4567, 0
    %v4905 = vsel %vm1294, %v4671, 0
    %4907 = vmatprep.subr.mxu0 0.0
    %4908 = vmatpush1.xpose.msra.mxu0 %v4905
    %4909 = vmatprep.subr.mxu0 0.0
    %4910 = vmatpush1.xpose.msra.mxu0 0.0
    %4911 = vmatprep.subr.mxu0 0.0
    %4912 = vmatpush1.xpose.msra.mxu0 0.0
    %4913 = vmatprep.subr.mxu0 0.0
    %4914 = vmatpush1.xpose.msra.mxu0 0.0
    %4915 = vmatprep.subr.mxu0 0.0
    %4916 = vmatpush1.xpose.msra.mxu0 0.0
    %4917 = vmatprep.subr.mxu0 0.0
    %4918 = vmatpush1.xpose.msra.mxu0 0.0
    %4919 = vmatprep.subr.mxu0 0.0
    %4920 = vmatpush1.xpose.msra.mxu0 0.0
    %4921 = vmatprep.subr.mxu0 0.0
    %4922 = vmatpush1.xpose.msra.mxu0 0.0
    %4923 = vmatprep.subr.mxu0 0.0
    %4924 = vmatpush1.xpose.msra.mxu0 0.0
    %4925 = vmatprep.subr.mxu0 0.0
    %4926 = vmatpush1.xpose.msra.mxu0 0.0
    %4927 = vmatprep.subr.mxu0 0.0
    %4928 = vmatpush1.xpose.msra.mxu0 0.0
    %4929 = vmatprep.subr.mxu0 0.0
    %4930 = vmatpush1.xpose.msra.mxu0 0.0
    %4931 = vmatprep.subr.mxu0 0.0
    %4932 = vmatpush1.xpose.msra.mxu0 0.0
    %4933 = vmatprep.subr.mxu0 0.0
    %4934 = vmatpush1.xpose.msra.mxu0 0.0
    %4935 = vmatprep.subr.mxu0 0.0
    %4936 = vmatpush1.xpose.msra.mxu0 0.0
    %4937 = vmatprep.subr.mxu0 0.0
    %4938 = vmatpush1.xpose.msra.mxu0 0.0
    %4939 = vmatprep.subr.mxu0 0.0
    %4940 = vmatpush1.xpose.msra.mxu0 0.0
    %4941 = vmatprep.subr.mxu0 0.0
    %4942 = vmatpush1.xpose.msra.mxu0 0.0
    %4943 = vmatprep.subr.mxu0 0.0
    %4944 = vmatpush1.xpose.msra.mxu0 0.0
    %4945 = vmatprep.subr.mxu0 0.0
    %4946 = vmatpush1.xpose.msra.mxu0 0.0
    %4947 = vmatprep.subr.mxu0 0.0
    %4948 = vmatpush1.xpose.msra.mxu0 0.0
    %4949 = vmatprep.subr.mxu0 0.0
    %4950 = vmatpush1.xpose.msra.mxu0 0.0
    %4951 = vmatprep.subr.mxu0 0.0
    %4952 = vmatpush1.xpose.msra.mxu0 0.0
    %4953 = vmatprep.subr.mxu0 0.0
    %4954 = vmatpush1.xpose.msra.mxu0 0.0
    %4955 = vmatprep.subr.mxu0 0.0
    %4956 = vmatpush1.xpose.msra.mxu0 0.0
    %4957 = vmatprep.subr.mxu0 0.0
    %4958 = vmatpush1.xpose.msra.mxu0 0.0
    %4959 = vmatprep.subr.mxu0 0.0
    %4960 = vmatpush1.xpose.msra.mxu0 0.0
    %4961 = vmatprep.subr.mxu0 0.0
    %4962 = vmatpush1.xpose.msra.mxu0 0.0
    %4963 = vmatprep.subr.mxu0 0.0
    %4964 = vmatpush1.xpose.msra.mxu0 0.0
    %4965 = vmatprep.subr.mxu0 0.0
    %4966 = vmatpush1.xpose.msra.mxu0 0.0
    %4967 = vmatprep.subr.mxu0 0.0
    %4968 = vmatpush1.xpose.msra.mxu0 0.0
    %4969 = vmatprep.subr.mxu0 0.0
    %4970 = vmatpush1.xpose.msra.mxu0 0.0
    %4971 = vmatprep.mubr.f32.mxu0 0.0
    %4972 = vmatmul.mubr.f32.gmra.mrb[0].mxu0 %v4902
    %v4973 = vpop.f32.mrb[0].mxu0
    %v4974 = vadd.f32 0.0, %v4973
    %v4975 = vpop.f32.mrb[0].mxu0
    %4976 = vdwg.mxu0
    %v4977 = vsel %vm1600, %v4746, -1e+30
    %v4978 = vsel %vm1600, %v4822, -1e+30
    %v4979 = vsel %vm1600, %v4898, -1e+30
    %v4980 = vsel %vm1600, %v4974, -1e+30
    %v4981 = vsel %vm1157, %v4977, -inf
    %4982 = vmax.xlane.f32.xlu0 %v4981
    %v4983 = vpop.xlane.xlu0 %4982
    %v4984 = vsel %vm1157, %v4978, -inf
    %4985 = vmax.xlane.f32.xlu0 %v4984
    %v4986 = vpop.xlane.xlu0 %4985
    %v4987 = vsel %vm1157, %v4979, -inf
    %4988 = vmax.xlane.f32.xlu0 %v4987
    %v4989 = vpop.xlane.xlu0 %4988
    %v4990 = vsel %vm1157, %v4980, -inf
    %4991 = vmax.xlane.f32.xlu0 %v4990
    %v4992 = vpop.xlane.xlu0 %4991
    %v4993 = vsub.f32 %v4977, %v4983
    %v4994 = vsub.f32 %v4978, %v4986
    %v4995 = vsub.f32 %v4979, %v4989
    %v4996 = vsub.f32 %v4980, %v4992
    %v4997 = vmul.f32 %v4993, 1.442695
    %v4998 = vpow.pop %v4997
    %v4999 = vmul.f32 %v4994, 1.442695
    %v5000 = vpow.pop %v4999
    %v5001 = vmul.f32 %v4995, 1.442695
    %v5002 = vpow.pop %v5001
    %v5003 = vmul.f32 %v4996, 1.442695
    %v5004 = vpow.pop %v5003
    %v5005 = vsel %vm1157, %v4998, 0.0
    %5006 = vadd.xlane.f32.xlu0 %v5005
    %v5007 = vpop.xlane.xlu0 %5006
    %v5008 = vsel %vm1157, %v5000, 0.0
    %5009 = vadd.xlane.f32.xlu0 %v5008
    %v5010 = vpop.xlane.xlu0 %5009
    %v5011 = vsel %vm1157, %v5002, 0.0
    %5012 = vadd.xlane.f32.xlu0 %v5011
    %v5013 = vpop.xlane.xlu0 %5012
    %v5014 = vsel %vm1157, %v5004, 0.0
    %5015 = vadd.xlane.f32.xlu0 %v5014
    %v5016 = vpop.xlane.xlu0 %5015
    %v5017 = vrcp.pop %v5007
    %v5018 = vrcp.pop %v5010
    %v5019 = vrcp.pop %v5013
    %v5020 = vrcp.pop %v5016
    %v5021 = vmul.f32 %v4998, %v5017
    %v5022 = vmul.f32 %v5000, %v5018
    %v5023 = vmul.f32 %v5002, %v5019
    %v5024 = vmul.f32 %v5004, %v5020
    %v5026 = vsel %vm1157, %v5021, 0
    %5028 = vmatprep.subr.mxu0 0.0
    %5029 = vmatpush1.msra.mxu0 %v4232
    %5030 = vmatprep.subr.mxu0 0.0
    %5031 = vmatpush1.msra.mxu0 0.0
    %5032 = vmatprep.subr.mxu0 0.0
    %5033 = vmatpush1.msra.mxu0 0.0
    %5034 = vmatprep.subr.mxu0 0.0
    %5035 = vmatpush1.msra.mxu0 0.0
    %5036 = vmatprep.subr.mxu0 0.0
    %5037 = vmatpush1.msra.mxu0 0.0
    %5038 = vmatprep.subr.mxu0 0.0
    %5039 = vmatpush1.msra.mxu0 0.0
    %5040 = vmatprep.subr.mxu0 0.0
    %5041 = vmatpush1.msra.mxu0 0.0
    %5042 = vmatprep.subr.mxu0 0.0
    %5043 = vmatpush1.msra.mxu0 0.0
    %5044 = vmatprep.subr.mxu0 0.0
    %5045 = vmatpush1.msra.mxu0 0.0
    %5046 = vmatprep.subr.mxu0 0.0
    %5047 = vmatpush1.msra.mxu0 0.0
    %5048 = vmatprep.subr.mxu0 0.0
    %5049 = vmatpush1.msra.mxu0 0.0
    %5050 = vmatprep.subr.mxu0 0.0
    %5051 = vmatpush1.msra.mxu0 0.0
    %5052 = vmatprep.subr.mxu0 0.0
    %5053 = vmatpush1.msra.mxu0 0.0
    %5054 = vmatprep.subr.mxu0 0.0
    %5055 = vmatpush1.msra.mxu0 0.0
    %5056 = vmatprep.subr.mxu0 0.0
    %5057 = vmatpush1.msra.mxu0 0.0
    %5058 = vmatprep.subr.mxu0 0.0
    %5059 = vmatpush1.msra.mxu0 0.0
    %5060 = vmatprep.subr.mxu0 0.0
    %5061 = vmatpush1.msra.mxu0 0.0
    %5062 = vmatprep.subr.mxu0 0.0
    %5063 = vmatpush1.msra.mxu0 0.0
    %5064 = vmatprep.subr.mxu0 0.0
    %5065 = vmatpush1.msra.mxu0 0.0
    %5066 = vmatprep.subr.mxu0 0.0
    %5067 = vmatpush1.msra.mxu0 0.0
    %5068 = vmatprep.subr.mxu0 0.0
    %5069 = vmatpush1.msra.mxu0 0.0
    %5070 = vmatprep.subr.mxu0 0.0
    %5071 = vmatpush1.msra.mxu0 0.0
    %5072 = vmatprep.subr.mxu0 0.0
    %5073 = vmatpush1.msra.mxu0 0.0
    %5074 = vmatprep.subr.mxu0 0.0
    %5075 = vmatpush1.msra.mxu0 0.0
    %5076 = vmatprep.subr.mxu0 0.0
    %5077 = vmatpush1.msra.mxu0 0.0
    %5078 = vmatprep.subr.mxu0 0.0
    %5079 = vmatpush1.msra.mxu0 0.0
    %5080 = vmatprep.subr.mxu0 0.0
    %5081 = vmatpush1.msra.mxu0 0.0
    %5082 = vmatprep.subr.mxu0 0.0
    %5083 = vmatpush1.msra.mxu0 0.0
    %5084 = vmatprep.subr.mxu0 0.0
    %5085 = vmatpush1.msra.mxu0 0.0
    %5086 = vmatprep.subr.mxu0 0.0
    %5087 = vmatpush1.msra.mxu0 0.0
    %5088 = vmatprep.subr.mxu0 0.0
    %5089 = vmatpush1.msra.mxu0 0.0
    %5090 = vmatprep.subr.mxu0 0.0
    %5091 = vmatpush1.msra.mxu0 0.0
    %5092 = vmatprep.mubr.f32.mxu0 0.0
    %5093 = vmatmul.mubr.f32.gmra.mrb[0].mxu0 %v5026
    %v5094 = vpop.f32.mrb[0].mxu0
    %v5095 = vadd.f32 0.0, %v5094
    %v5096 = vpop.f32.mrb[0].mxu0
    %5097 = vdwg.mxu0
    %v5099 = vsel %vm1157, %v5022, 0
    %5101 = vmatprep.subr.mxu0 0.0
    %5102 = vmatpush1.msra.mxu0 %v4307
    %5103 = vmatprep.subr.mxu0 0.0
    %5104 = vmatpush1.msra.mxu0 0.0
    %5105 = vmatprep.subr.mxu0 0.0
    %5106 = vmatpush1.msra.mxu0 0.0
    %5107 = vmatprep.subr.mxu0 0.0
    %5108 = vmatpush1.msra.mxu0 0.0
    %5109 = vmatprep.subr.mxu0 0.0
    %5110 = vmatpush1.msra.mxu0 0.0
    %5111 = vmatprep.subr.mxu0 0.0
    %5112 = vmatpush1.msra.mxu0 0.0
    %5113 = vmatprep.subr.mxu0 0.0
    %5114 = vmatpush1.msra.mxu0 0.0
    %5115 = vmatprep.subr.mxu0 0.0
    %5116 = vmatpush1.msra.mxu0 0.0
    %5117 = vmatprep.subr.mxu0 0.0
    %5118 = vmatpush1.msra.mxu0 0.0
    %5119 = vmatprep.subr.mxu0 0.0
    %5120 = vmatpush1.msra.mxu0 0.0
    %5121 = vmatprep.subr.mxu0 0.0
    %5122 = vmatpush1.msra.mxu0 0.0
    %5123 = vmatprep.subr.mxu0 0.0
    %5124 = vmatpush1.msra.mxu0 0.0
    %5125 = vmatprep.subr.mxu0 0.0
    %5126 = vmatpush1.msra.mxu0 0.0
    %5127 = vmatprep.subr.mxu0 0.0
    %5128 = vmatpush1.msra.mxu0 0.0
    %5129 = vmatprep.subr.mxu0 0.0
    %5130 = vmatpush1.msra.mxu0 0.0
    %5131 = vmatprep.subr.mxu0 0.0
    %5132 = vmatpush1.msra.mxu0 0.0
    %5133 = vmatprep.subr.mxu0 0.0
    %5134 = vmatpush1.msra.mxu0 0.0
    %5135 = vmatprep.subr.mxu0 0.0
    %5136 = vmatpush1.msra.mxu0 0.0
    %5137 = vmatprep.subr.mxu0 0.0
    %5138 = vmatpush1.msra.mxu0 0.0
    %5139 = vmatprep.subr.mxu0 0.0
    %5140 = vmatpush1.msra.mxu0 0.0
    %5141 = vmatprep.subr.mxu0 0.0
    %5142 = vmatpush1.msra.mxu0 0.0
    %5143 = vmatprep.subr.mxu0 0.0
    %5144 = vmatpush1.msra.mxu0 0.0
    %5145 = vmatprep.subr.mxu0 0.0
    %5146 = vmatpush1.msra.mxu0 0.0
    %5147 = vmatprep.subr.mxu0 0.0
    %5148 = vmatpush1.msra.mxu0 0.0
    %5149 = vmatprep.subr.mxu0 0.0
    %5150 = vmatpush1.msra.mxu0 0.0
    %5151 = vmatprep.subr.mxu0 0.0
    %5152 = vmatpush1.msra.mxu0 0.0
    %5153 = vmatprep.subr.mxu0 0.0
    %5154 = vmatpush1.msra.mxu0 0.0
    %5155 = vmatprep.subr.mxu0 0.0
    %5156 = vmatpush1.msra.mxu0 0.0
    %5157 = vmatprep.subr.mxu0 0.0
    %5158 = vmatpush1.msra.mxu0 0.0
    %5159 = vmatprep.subr.mxu0 0.0
    %5160 = vmatpush1.msra.mxu0 0.0
    %5161 = vmatprep.subr.mxu0 0.0
    %5162 = vmatpush1.msra.mxu0 0.0
    %5163 = vmatprep.subr.mxu0 0.0
    %5164 = vmatpush1.msra.mxu0 0.0
    %5165 = vmatprep.mubr.f32.mxu0 0.0
    %5166 = vmatmul.mubr.f32.gmra.mrb[0].mxu0 %v5099
    %v5167 = vpop.f32.mrb[0].mxu0
    %v5168 = vadd.f32 0.0, %v5167
    %v5169 = vpop.f32.mrb[0].mxu0
    %5170 = vdwg.mxu0
    %v5172 = vsel %vm1157, %v5023, 0
    %5174 = vmatprep.subr.mxu0 0.0
    %5175 = vmatpush1.msra.mxu0 %v4382
    %5176 = vmatprep.subr.mxu0 0.0
    %5177 = vmatpush1.msra.mxu0 0.0
    %5178 = vmatprep.subr.mxu0 0.0
    %5179 = vmatpush1.msra.mxu0 0.0
    %5180 = vmatprep.subr.mxu0 0.0
    %5181 = vmatpush1.msra.mxu0 0.0
    %5182 = vmatprep.subr.mxu0 0.0
    %5183 = vmatpush1.msra.mxu0 0.0
    %5184 = vmatprep.subr.mxu0 0.0
    %5185 = vmatpush1.msra.mxu0 0.0
    %5186 = vmatprep.subr.mxu0 0.0
    %5187 = vmatpush1.msra.mxu0 0.0
    %5188 = vmatprep.subr.mxu0 0.0
    %5189 = vmatpush1.msra.mxu0 0.0
    %5190 = vmatprep.subr.mxu0 0.0
    %5191 = vmatpush1.msra.mxu0 0.0
    %5192 = vmatprep.subr.mxu0 0.0
    %5193 = vmatpush1.msra.mxu0 0.0
    %5194 = vmatprep.subr.mxu0 0.0
    %5195 = vmatpush1.msra.mxu0 0.0
    %5196 = vmatprep.subr.mxu0 0.0
    %5197 = vmatpush1.msra.mxu0 0.0
    %5198 = vmatprep.subr.mxu0 0.0
    %5199 = vmatpush1.msra.mxu0 0.0
    %5200 = vmatprep.subr.mxu0 0.0
    %5201 = vmatpush1.msra.mxu0 0.0
    %5202 = vmatprep.subr.mxu0 0.0
    %5203 = vmatpush1.msra.mxu0 0.0
    %5204 = vmatprep.subr.mxu0 0.0
    %5205 = vmatpush1.msra.mxu0 0.0
    %5206 = vmatprep.subr.mxu0 0.0
    %5207 = vmatpush1.msra.mxu0 0.0
    %5208 = vmatprep.subr.mxu0 0.0
    %5209 = vmatpush1.msra.mxu0 0.0
    %5210 = vmatprep.subr.mxu0 0.0
    %5211 = vmatpush1.msra.mxu0 0.0
    %5212 = vmatprep.subr.mxu0 0.0
    %5213 = vmatpush1.msra.mxu0 0.0
    %5214 = vmatprep.subr.mxu0 0.0
    %5215 = vmatpush1.msra.mxu0 0.0
    %5216 = vmatprep.subr.mxu0 0.0
    %5217 = vmatpush1.msra.mxu0 0.0
    %5218 = vmatprep.subr.mxu0 0.0
    %5219 = vmatpush1.msra.mxu0 0.0
    %5220 = vmatprep.subr.mxu0 0.0
    %5221 = vmatpush1.msra.mxu0 0.0
    %5222 = vmatprep.subr.mxu0 0.0
    %5223 = vmatpush1.msra.mxu0 0.0
    %5224 = vmatprep.subr.mxu0 0.0
    %5225 = vmatpush1.msra.mxu0 0.0
    %5226 = vmatprep.subr.mxu0 0.0
    %5227 = vmatpush1.msra.mxu0 0.0
    %5228 = vmatprep.subr.mxu0 0.0
    %5229 = vmatpush1.msra.mxu0 0.0
    %5230 = vmatprep.subr.mxu0 0.0
    %5231 = vmatpush1.msra.mxu0 0.0
    %5232 = vmatprep.subr.mxu0 0.0
    %5233 = vmatpush1.msra.mxu0 0.0
    %5234 = vmatprep.subr.mxu0 0.0
    %5235 = vmatpush1.msra.mxu0 0.0
    %5236 = vmatprep.subr.mxu0 0.0
    %5237 = vmatpush1.msra.mxu0 0.0
    %5238 = vmatprep.mubr.f32.mxu0 0.0
    %5239 = vmatmul.mubr.f32.gmra.mrb[0].mxu0 %v5172
    %v5240 = vpop.f32.mrb[0].mxu0
    %v5241 = vadd.f32 0.0, %v5240
    %v5242 = vpop.f32.mrb[0].mxu0
    %5243 = vdwg.mxu0
    %v5245 = vsel %vm1157, %v5024, 0
    %5247 = vmatprep.subr.mxu0 0.0
    %5248 = vmatpush1.msra.mxu0 %v4457
    %5249 = vmatprep.subr.mxu0 0.0
    %5250 = vmatpush1.msra.mxu0 0.0
    %5251 = vmatprep.subr.mxu0 0.0
    %5252 = vmatpush1.msra.mxu0 0.0
    %5253 = vmatprep.subr.mxu0 0.0
    %5254 = vmatpush1.msra.mxu0 0.0
    %5255 = vmatprep.subr.mxu0 0.0
    %5256 = vmatpush1.msra.mxu0 0.0
    %5257 = vmatprep.subr.mxu0 0.0
    %5258 = vmatpush1.msra.mxu0 0.0
    %5259 = vmatprep.subr.mxu0 0.0
    %5260 = vmatpush1.msra.mxu0 0.0
    %5261 = vmatprep.subr.mxu0 0.0
    %5262 = vmatpush1.msra.mxu0 0.0
    %5263 = vmatprep.subr.mxu0 0.0
    %5264 = vmatpush1.msra.mxu0 0.0
    %5265 = vmatprep.subr.mxu0 0.0
    %5266 = vmatpush1.msra.mxu0 0.0
    %5267 = vmatprep.subr.mxu0 0.0
    %5268 = vmatpush1.msra.mxu0 0.0
    %5269 = vmatprep.subr.mxu0 0.0
    %5270 = vmatpush1.msra.mxu0 0.0
    %5271 = vmatprep.subr.mxu0 0.0
    %5272 = vmatpush1.msra.mxu0 0.0
    %5273 = vmatprep.subr.mxu0 0.0
    %5274 = vmatpush1.msra.mxu0 0.0
    %5275 = vmatprep.subr.mxu0 0.0
    %5276 = vmatpush1.msra.mxu0 0.0
    %5277 = vmatprep.subr.mxu0 0.0
    %5278 = vmatpush1.msra.mxu0 0.0
    %5279 = vmatprep.subr.mxu0 0.0
    %5280 = vmatpush1.msra.mxu0 0.0
    %5281 = vmatprep.subr.mxu0 0.0
    %5282 = vmatpush1.msra.mxu0 0.0
    %5283 = vmatprep.subr.mxu0 0.0
    %5284 = vmatpush1.msra.mxu0 0.0
    %5285 = vmatprep.subr.mxu0 0.0
    %5286 = vmatpush1.msra.mxu0 0.0
    %5287 = vmatprep.subr.mxu0 0.0
    %5288 = vmatpush1.msra.mxu0 0.0
    %5289 = vmatprep.subr.mxu0 0.0
    %5290 = vmatpush1.msra.mxu0 0.0
    %5291 = vmatprep.subr.mxu0 0.0
    %5292 = vmatpush1.msra.mxu0 0.0
    %5293 = vmatprep.subr.mxu0 0.0
    %5294 = vmatpush1.msra.mxu0 0.0
    %5295 = vmatprep.subr.mxu0 0.0
    %5296 = vmatpush1.msra.mxu0 0.0
    %5297 = vmatprep.subr.mxu0 0.0
    %5298 = vmatpush1.msra.mxu0 0.0
    %5299 = vmatprep.subr.mxu0 0.0
    %5300 = vmatpush1.msra.mxu0 0.0
    %5301 = vmatprep.subr.mxu0 0.0
    %5302 = vmatpush1.msra.mxu0 0.0
    %5303 = vmatprep.subr.mxu0 0.0
    %5304 = vmatpush1.msra.mxu0 0.0
    %5305 = vmatprep.subr.mxu0 0.0
    %5306 = vmatpush1.msra.mxu0 0.0
    %5307 = vmatprep.subr.mxu0 0.0
    %5308 = vmatpush1.msra.mxu0 0.0
    %5309 = vmatprep.subr.mxu0 0.0
    %5310 = vmatpush1.msra.mxu0 0.0
    %5311 = vmatprep.mubr.f32.mxu0 0.0
    %5312 = vmatmul.mubr.f32.gmra.mrb[0].mxu0 %v5245
    %v5313 = vpop.f32.mrb[0].mxu0
    %v5314 = vadd.f32 0.0, %v5313
    %v5315 = vpop.f32.mrb[0].mxu0
    %5316 = vdwg.mxu0
    %s5317 = scalar_lea.vmem %s7, 64
    %v5318 = vld [vmem:[%s5317] sm:$0xff]
    %v5319 = vld [vmem:[%s5317 + $0x8] sm:$0xff]
    %v5320 = vld [vmem:[%s5317 + $0x10] sm:$0xff]
    %v5321 = vld [vmem:[%s5317 + $0x18] sm:$0xff]
    %v5322 = vld [vmem:[%s5317 + $0x20] sm:$0xff]
    %v5323 = vld [vmem:[%s5317 + $0x28] sm:$0xff]
    %v5324 = vld [vmem:[%s5317 + $0x30] sm:$0xff]
    %v5325 = vld [vmem:[%s5317 + $0x38] sm:$0xff]
    %v5327 = vsel %vm1294, %v5095, 0
    %5329 = vmatprep.subr.mxu0 0.0
    %5330 = vmatpush1.msra.mxu0 %v5318
    %5331 = vmatprep.subr.mxu0 0.0
    %5332 = vmatpush1.msra.mxu0 %v5319
    %5333 = vmatprep.subr.mxu0 0.0
    %5334 = vmatpush1.msra.mxu0 0.0
    %5335 = vmatprep.subr.mxu0 0.0
    %5336 = vmatpush1.msra.mxu0 0.0
    %5337 = vmatprep.subr.mxu0 0.0
    %5338 = vmatpush1.msra.mxu0 0.0
    %5339 = vmatprep.subr.mxu0 0.0
    %5340 = vmatpush1.msra.mxu0 0.0
    %5341 = vmatprep.subr.mxu0 0.0
    %5342 = vmatpush1.msra.mxu0 0.0
    %5343 = vmatprep.subr.mxu0 0.0
    %5344 = vmatpush1.msra.mxu0 0.0
    %5345 = vmatprep.subr.mxu0 0.0
    %5346 = vmatpush1.msra.mxu0 0.0
    %5347 = vmatprep.subr.mxu0 0.0
    %5348 = vmatpush1.msra.mxu0 0.0
    %5349 = vmatprep.subr.mxu0 0.0
    %5350 = vmatpush1.msra.mxu0 0.0
    %5351 = vmatprep.subr.mxu0 0.0
    %5352 = vmatpush1.msra.mxu0 0.0
    %5353 = vmatprep.subr.mxu0 0.0
    %5354 = vmatpush1.msra.mxu0 0.0
    %5355 = vmatprep.subr.mxu0 0.0
    %5356 = vmatpush1.msra.mxu0 0.0
    %5357 = vmatprep.subr.mxu0 0.0
    %5358 = vmatpush1.msra.mxu0 0.0
    %5359 = vmatprep.subr.mxu0 0.0
    %5360 = vmatpush1.msra.mxu0 0.0
    %5361 = vmatprep.subr.mxu0 0.0
    %5362 = vmatpush1.msra.mxu0 0.0
    %5363 = vmatprep.subr.mxu0 0.0
    %5364 = vmatpush1.msra.mxu0 0.0
    %5365 = vmatprep.subr.mxu0 0.0
    %5366 = vmatpush1.msra.mxu0 0.0
    %5367 = vmatprep.subr.mxu0 0.0
    %5368 = vmatpush1.msra.mxu0 0.0
    %5369 = vmatprep.subr.mxu0 0.0
    %5370 = vmatpush1.msra.mxu0 0.0
    %5371 = vmatprep.subr.mxu0 0.0
    %5372 = vmatpush1.msra.mxu0 0.0
    %5373 = vmatprep.subr.mxu0 0.0
    %5374 = vmatpush1.msra.mxu0 0.0
    %5375 = vmatprep.subr.mxu0 0.0
    %5376 = vmatpush1.msra.mxu0 0.0
    %5377 = vmatprep.subr.mxu0 0.0
    %5378 = vmatpush1.msra.mxu0 0.0
    %5379 = vmatprep.subr.mxu0 0.0
    %5380 = vmatpush1.msra.mxu0 0.0
    %5381 = vmatprep.subr.mxu0 0.0
    %5382 = vmatpush1.msra.mxu0 0.0
    %5383 = vmatprep.subr.mxu0 0.0
    %5384 = vmatpush1.msra.mxu0 0.0
    %5385 = vmatprep.subr.mxu0 0.0
    %5386 = vmatpush1.msra.mxu0 0.0
    %5387 = vmatprep.subr.mxu0 0.0
    %5388 = vmatpush1.msra.mxu0 0.0
    %5389 = vmatprep.subr.mxu0 0.0
    %5390 = vmatpush1.msra.mxu0 0.0
    %5391 = vmatprep.subr.mxu0 0.0
    %5392 = vmatpush1.msra.mxu0 0.0
    %5393 = vmatprep.mubr.f32.mxu0 0.0
    %5394 = vmatmul.mubr.f32.gmra.mrb[0].mxu0 %v5327
    %v5395 = vpop.f32.mrb[0].mxu0
    %v5396 = vadd.f32 0.0, %v5395
    %v5397 = vpop.f32.mrb[0].mxu0
    %5398 = vdwg.mxu0
    %v5400 = vsel %vm1294, %v5168, 0
    %5402 = vmatprep.subr.mxu0 0.0
    %5403 = vmatpush1.msra.mxu0 %v5320
    %5404 = vmatprep.subr.mxu0 0.0
    %5405 = vmatpush1.msra.mxu0 %v5321
    %5406 = vmatprep.subr.mxu0 0.0
    %5407 = vmatpush1.msra.mxu0 0.0
    %5408 = vmatprep.subr.mxu0 0.0
    %5409 = vmatpush1.msra.mxu0 0.0
    %5410 = vmatprep.subr.mxu0 0.0
    %5411 = vmatpush1.msra.mxu0 0.0
    %5412 = vmatprep.subr.mxu0 0.0
    %5413 = vmatpush1.msra.mxu0 0.0
    %5414 = vmatprep.subr.mxu0 0.0
    %5415 = vmatpush1.msra.mxu0 0.0
    %5416 = vmatprep.subr.mxu0 0.0
    %5417 = vmatpush1.msra.mxu0 0.0
    %5418 = vmatprep.subr.mxu0 0.0
    %5419 = vmatpush1.msra.mxu0 0.0
    %5420 = vmatprep.subr.mxu0 0.0
    %5421 = vmatpush1.msra.mxu0 0.0
    %5422 = vmatprep.subr.mxu0 0.0
    %5423 = vmatpush1.msra.mxu0 0.0
    %5424 = vmatprep.subr.mxu0 0.0
    %5425 = vmatpush1.msra.mxu0 0.0
    %5426 = vmatprep.subr.mxu0 0.0
    %5427 = vmatpush1.msra.mxu0 0.0
    %5428 = vmatprep.subr.mxu0 0.0
    %5429 = vmatpush1.msra.mxu0 0.0
    %5430 = vmatprep.subr.mxu0 0.0
    %5431 = vmatpush1.msra.mxu0 0.0
    %5432 = vmatprep.subr.mxu0 0.0
    %5433 = vmatpush1.msra.mxu0 0.0
    %5434 = vmatprep.subr.mxu0 0.0
    %5435 = vmatpush1.msra.mxu0 0.0
    %5436 = vmatprep.subr.mxu0 0.0
    %5437 = vmatpush1.msra.mxu0 0.0
    %5438 = vmatprep.subr.mxu0 0.0
    %5439 = vmatpush1.msra.mxu0 0.0
    %5440 = vmatprep.subr.mxu0 0.0
    %5441 = vmatpush1.msra.mxu0 0.0
    %5442 = vmatprep.subr.mxu0 0.0
    %5443 = vmatpush1.msra.mxu0 0.0
    %5444 = vmatprep.subr.mxu0 0.0
    %5445 = vmatpush1.msra.mxu0 0.0
    %5446 = vmatprep.subr.mxu0 0.0
    %5447 = vmatpush1.msra.mxu0 0.0
    %5448 = vmatprep.subr.mxu0 0.0
    %5449 = vmatpush1.msra.mxu0 0.0
    %5450 = vmatprep.subr.mxu0 0.0
    %5451 = vmatpush1.msra.mxu0 0.0
    %5452 = vmatprep.subr.mxu0 0.0
    %5453 = vmatpush1.msra.mxu0 0.0
    %5454 = vmatprep.subr.mxu0 0.0
    %5455 = vmatpush1.msra.mxu0 0.0
    %5456 = vmatprep.subr.mxu0 0.0
    %5457 = vmatpush1.msra.mxu0 0.0
    %5458 = vmatprep.subr.mxu0 0.0
    %5459 = vmatpush1.msra.mxu0 0.0
    %5460 = vmatprep.subr.mxu0 0.0
    %5461 = vmatpush1.msra.mxu0 0.0
    %5462 = vmatprep.subr.mxu0 0.0
    %5463 = vmatpush1.msra.mxu0 0.0
    %5464 = vmatprep.subr.mxu0 0.0
    %5465 = vmatpush1.msra.mxu0 0.0
    %5466 = vmatprep.mubr.f32.mxu0 0.0
    %5467 = vmatmul.mubr.f32.gmra.mrb[0].mxu0 %v5400
    %v5468 = vpop.f32.mrb[0].mxu0
    %v5469 = vadd.f32 0.0, %v5468
    %v5470 = vpop.f32.mrb[0].mxu0
    %5471 = vdwg.mxu0
    %v5473 = vsel %vm1294, %v5241, 0
    %5475 = vmatprep.subr.mxu0 0.0
    %5476 = vmatpush1.msra.mxu0 %v5322
    %5477 = vmatprep.subr.mxu0 0.0
    %5478 = vmatpush1.msra.mxu0 %v5323
    %5479 = vmatprep.subr.mxu0 0.0
    %5480 = vmatpush1.msra.mxu0 0.0
    %5481 = vmatprep.subr.mxu0 0.0
    %5482 = vmatpush1.msra.mxu0 0.0
    %5483 = vmatprep.subr.mxu0 0.0
    %5484 = vmatpush1.msra.mxu0 0.0
    %5485 = vmatprep.subr.mxu0 0.0
    %5486 = vmatpush1.msra.mxu0 0.0
    %5487 = vmatprep.subr.mxu0 0.0
    %5488 = vmatpush1.msra.mxu0 0.0
    %5489 = vmatprep.subr.mxu0 0.0
    %5490 = vmatpush1.msra.mxu0 0.0
    %5491 = vmatprep.subr.mxu0 0.0
    %5492 = vmatpush1.msra.mxu0 0.0
    %5493 = vmatprep.subr.mxu0 0.0
    %5494 = vmatpush1.msra.mxu0 0.0
    %5495 = vmatprep.subr.mxu0 0.0
    %5496 = vmatpush1.msra.mxu0 0.0
    %5497 = vmatprep.subr.mxu0 0.0
    %5498 = vmatpush1.msra.mxu0 0.0
    %5499 = vmatprep.subr.mxu0 0.0
    %5500 = vmatpush1.msra.mxu0 0.0
    %5501 = vmatprep.subr.mxu0 0.0
    %5502 = vmatpush1.msra.mxu0 0.0
    %5503 = vmatprep.subr.mxu0 0.0
    %5504 = vmatpush1.msra.mxu0 0.0
    %5505 = vmatprep.subr.mxu0 0.0
    %5506 = vmatpush1.msra.mxu0 0.0
    %5507 = vmatprep.subr.mxu0 0.0
    %5508 = vmatpush1.msra.mxu0 0.0
    %5509 = vmatprep.subr.mxu0 0.0
    %5510 = vmatpush1.msra.mxu0 0.0
    %5511 = vmatprep.subr.mxu0 0.0
    %5512 = vmatpush1.msra.mxu0 0.0
    %5513 = vmatprep.subr.mxu0 0.0
    %5514 = vmatpush1.msra.mxu0 0.0
    %5515 = vmatprep.subr.mxu0 0.0
    %5516 = vmatpush1.msra.mxu0 0.0
    %5517 = vmatprep.subr.mxu0 0.0
    %5518 = vmatpush1.msra.mxu0 0.0
    %5519 = vmatprep.subr.mxu0 0.0
    %5520 = vmatpush1.msra.mxu0 0.0
    %5521 = vmatprep.subr.mxu0 0.0
    %5522 = vmatpush1.msra.mxu0 0.0
    %5523 = vmatprep.subr.mxu0 0.0
    %5524 = vmatpush1.msra.mxu0 0.0
    %5525 = vmatprep.subr.mxu0 0.0
    %5526 = vmatpush1.msra.mxu0 0.0
    %5527 = vmatprep.subr.mxu0 0.0
    %5528 = vmatpush1.msra.mxu0 0.0
    %5529 = vmatprep.subr.mxu0 0.0
    %5530 = vmatpush1.msra.mxu0 0.0
    %5531 = vmatprep.subr.mxu0 0.0
    %5532 = vmatpush1.msra.mxu0 0.0
    %5533 = vmatprep.subr.mxu0 0.0
    %5534 = vmatpush1.msra.mxu0 0.0
    %5535 = vmatprep.subr.mxu0 0.0
    %5536 = vmatpush1.msra.mxu0 0.0
    %5537 = vmatprep.subr.mxu0 0.0
    %5538 = vmatpush1.msra.mxu0 0.0
    %5539 = vmatprep.mubr.f32.mxu0 0.0
    %5540 = vmatmul.mubr.f32.gmra.mrb[0].mxu0 %v5473
    %v5541 = vpop.f32.mrb[0].mxu0
    %v5542 = vadd.f32 0.0, %v5541
    %v5543 = vpop.f32.mrb[0].mxu0
    %5544 = vdwg.mxu0
    %v5546 = vsel %vm1294, %v5314, 0
    %5548 = vmatprep.subr.mxu0 0.0
    %5549 = vmatpush1.msra.mxu0 %v5324
    %5550 = vmatprep.subr.mxu0 0.0
    %5551 = vmatpush1.msra.mxu0 %v5325
    %5552 = vmatprep.subr.mxu0 0.0
    %5553 = vmatpush1.msra.mxu0 0.0
    %5554 = vmatprep.subr.mxu0 0.0
    %5555 = vmatpush1.msra.mxu0 0.0
    %5556 = vmatprep.subr.mxu0 0.0
    %5557 = vmatpush1.msra.mxu0 0.0
    %5558 = vmatprep.subr.mxu0 0.0
    %5559 = vmatpush1.msra.mxu0 0.0
    %5560 = vmatprep.subr.mxu0 0.0
    %5561 = vmatpush1.msra.mxu0 0.0
    %5562 = vmatprep.subr.mxu0 0.0
    %5563 = vmatpush1.msra.mxu0 0.0
    %5564 = vmatprep.subr.mxu0 0.0
    %5565 = vmatpush1.msra.mxu0 0.0
    %5566 = vmatprep.subr.mxu0 0.0
    %5567 = vmatpush1.msra.mxu0 0.0
    %5568 = vmatprep.subr.mxu0 0.0
    %5569 = vmatpush1.msra.mxu0 0.0
    %5570 = vmatprep.subr.mxu0 0.0
    %5571 = vmatpush1.msra.mxu0 0.0
    %5572 = vmatprep.subr.mxu0 0.0
    %5573 = vmatpush1.msra.mxu0 0.0
    %5574 = vmatprep.subr.mxu0 0.0
    %5575 = vmatpush1.msra.mxu0 0.0
    %5576 = vmatprep.subr.mxu0 0.0
    %5577 = vmatpush1.msra.mxu0 0.0
    %5578 = vmatprep.subr.mxu0 0.0
    %5579 = vmatpush1.msra.mxu0 0.0
    %5580 = vmatprep.subr.mxu0 0.0
    %5581 = vmatpush1.msra.mxu0 0.0
    %5582 = vmatprep.subr.mxu0 0.0
    %5583 = vmatpush1.msra.mxu0 0.0
    %5584 = vmatprep.subr.mxu0 0.0
    %5585 = vmatpush1.msra.mxu0 0.0
    %5586 = vmatprep.subr.mxu0 0.0
    %5587 = vmatpush1.msra.mxu0 0.0
    %5588 = vmatprep.subr.mxu0 0.0
    %5589 = vmatpush1.msra.mxu0 0.0
    %5590 = vmatprep.subr.mxu0 0.0
    %5591 = vmatpush1.msra.mxu0 0.0
    %5592 = vmatprep.subr.mxu0 0.0
    %5593 = vmatpush1.msra.mxu0 0.0
    %5594 = vmatprep.subr.mxu0 0.0
    %5595 = vmatpush1.msra.mxu0 0.0
    %5596 = vmatprep.subr.mxu0 0.0
    %5597 = vmatpush1.msra.mxu0 0.0
    %5598 = vmatprep.subr.mxu0 0.0
    %5599 = vmatpush1.msra.mxu0 0.0
    %5600 = vmatprep.subr.mxu0 0.0
    %5601 = vmatpush1.msra.mxu0 0.0
    %5602 = vmatprep.subr.mxu0 0.0
    %5603 = vmatpush1.msra.mxu0 0.0
    %5604 = vmatprep.subr.mxu0 0.0
    %5605 = vmatpush1.msra.mxu0 0.0
    %5606 = vmatprep.subr.mxu0 0.0
    %5607 = vmatpush1.msra.mxu0 0.0
    %5608 = vmatprep.subr.mxu0 0.0
    %5609 = vmatpush1.msra.mxu0 0.0
    %5610 = vmatprep.subr.mxu0 0.0
    %5611 = vmatpush1.msra.mxu0 0.0
    %5612 = vmatprep.mubr.f32.mxu0 0.0
    %5613 = vmatmul.mubr.f32.gmra.mrb[0].mxu0 %v5546
    %v5614 = vpop.f32.mrb[0].mxu0
    %v5615 = vadd.f32 0.0, %v5614
    %v5616 = vpop.f32.mrb[0].mxu0
    %5617 = vdwg.mxu0
    %v5618 = vsel %vm59, %v5396, 0.0
    %v5619 = vsel %vm59, %v5469, 0.0
    %v5620 = vadd.f32 %v5618, %v5619
    %v5621 = vsel %vm59, %v5542, 0.0
    %v5622 = vadd.f32 %v5620, %v5621
    %v5623 = vsel %vm59, %v5615, 0.0
    %v5624 = vadd.f32 %v5622, %v5623
    %v5626 = vsel %vm1294, %v4562, 0
    %v5629 = vsel %vm1294, %v4666, 0
    %5631 = vmatprep.subr.mxu0 0.0
    %5632 = vmatpush1.xpose.msra.mxu0 %v5629
    %5633 = vmatprep.subr.mxu0 0.0
    %5634 = vmatpush1.xpose.msra.mxu0 0.0
    %5635 = vmatprep.subr.mxu0 0.0
    %5636 = vmatpush1.xpose.msra.mxu0 0.0
    %5637 = vmatprep.subr.mxu0 0.0
    %5638 = vmatpush1.xpose.msra.mxu0 0.0
    %5639 = vmatprep.subr.mxu0 0.0
    %5640 = vmatpush1.xpose.msra.mxu0 0.0
    %5641 = vmatprep.subr.mxu0 0.0
    %5642 = vmatpush1.xpose.msra.mxu0 0.0
    %5643 = vmatprep.subr.mxu0 0.0
    %5644 = vmatpush1.xpose.msra.mxu0 0.0
    %5645 = vmatprep.subr.mxu0 0.0
    %5646 = vmatpush1.xpose.msra.mxu0 0.0
    %5647 = vmatprep.subr.mxu0 0.0
    %5648 = vmatpush1.xpose.msra.mxu0 0.0
    %5649 = vmatprep.subr.mxu0 0.0
    %5650 = vmatpush1.xpose.msra.mxu0 0.0
    %5651 = vmatprep.subr.mxu0 0.0
    %5652 = vmatpush1.xpose.msra.mxu0 0.0
    %5653 = vmatprep.subr.mxu0 0.0
    %5654 = vmatpush1.xpose.msra.mxu0 0.0
    %5655 = vmatprep.subr.mxu0 0.0
    %5656 = vmatpush1.xpose.msra.mxu0 0.0
    %5657 = vmatprep.subr.mxu0 0.0
    %5658 = vmatpush1.xpose.msra.mxu0 0.0
    %5659 = vmatprep.subr.mxu0 0.0
    %5660 = vmatpush1.xpose.msra.mxu0 0.0
    %5661 = vmatprep.subr.mxu0 0.0
    %5662 = vmatpush1.xpose.msra.mxu0 0.0
    %5663 = vmatprep.subr.mxu0 0.0
    %5664 = vmatpush1.xpose.msra.mxu0 0.0
    %5665 = vmatprep.subr.mxu0 0.0
    %5666 = vmatpush1.xpose.msra.mxu0 0.0
    %5667 = vmatprep.subr.mxu0 0.0
    %5668 = vmatpush1.xpose.msra.mxu0 0.0
    %5669 = vmatprep.subr.mxu0 0.0
    %5670 = vmatpush1.xpose.msra.mxu0 0.0
    %5671 = vmatprep.subr.mxu0 0.0
    %5672 = vmatpush1.xpose.msra.mxu0 0.0
    %5673 = vmatprep.subr.mxu0 0.0
    %5674 = vmatpush1.xpose.msra.mxu0 0.0
    %5675 = vmatprep.subr.mxu0 0.0
    %5676 = vmatpush1.xpose.msra.mxu0 0.0
    %5677 = vmatprep.subr.mxu0 0.0
    %5678 = vmatpush1.xpose.msra.mxu0 0.0
    %5679 = vmatprep.subr.mxu0 0.0
    %5680 = vmatpush1.xpose.msra.mxu0 0.0
    %5681 = vmatprep.subr.mxu0 0.0
    %5682 = vmatpush1.xpose.msra.mxu0 0.0
    %5683 = vmatprep.subr.mxu0 0.0
    %5684 = vmatpush1.xpose.msra.mxu0 0.0
    %5685 = vmatprep.subr.mxu0 0.0
    %5686 = vmatpush1.xpose.msra.mxu0 0.0
    %5687 = vmatprep.subr.mxu0 0.0
    %5688 = vmatpush1.xpose.msra.mxu0 0.0
    %5689 = vmatprep.subr.mxu0 0.0
    %5690 = vmatpush1.xpose.msra.mxu0 0.0
    %5691 = vmatprep.subr.mxu0 0.0
    %5692 = vmatpush1.xpose.msra.mxu0 0.0
    %5693 = vmatprep.subr.mxu0 0.0
    %5694 = vmatpush1.xpose.msra.mxu0 0.0
    %5695 = vmatprep.mubr.f32.mxu0 0.0
    %5696 = vmatmul.mubr.f32.gmra.mrb[0].mxu0 %v5626
    %v5697 = vpop.f32.mrb[0].mxu0
    %v5698 = vadd.f32 0.0, %v5697
    %v5699 = vpop.f32.mrb[0].mxu0
    %5700 = vdwg.mxu0
    %v5702 = vsel %vm1294, %v4564, 0
    %v5705 = vsel %vm1294, %v4668, 0
    %5707 = vmatprep.subr.mxu0 0.0
    %5708 = vmatpush1.xpose.msra.mxu0 %v5705
    %5709 = vmatprep.subr.mxu0 0.0
    %5710 = vmatpush1.xpose.msra.mxu0 0.0
    %5711 = vmatprep.subr.mxu0 0.0
    %5712 = vmatpush1.xpose.msra.mxu0 0.0
    %5713 = vmatprep.subr.mxu0 0.0
    %5714 = vmatpush1.xpose.msra.mxu0 0.0
    %5715 = vmatprep.subr.mxu0 0.0
    %5716 = vmatpush1.xpose.msra.mxu0 0.0
    %5717 = vmatprep.subr.mxu0 0.0
    %5718 = vmatpush1.xpose.msra.mxu0 0.0
    %5719 = vmatprep.subr.mxu0 0.0
    %5720 = vmatpush1.xpose.msra.mxu0 0.0
    %5721 = vmatprep.subr.mxu0 0.0
    %5722 = vmatpush1.xpose.msra.mxu0 0.0
    %5723 = vmatprep.subr.mxu0 0.0
    %5724 = vmatpush1.xpose.msra.mxu0 0.0
    %5725 = vmatprep.subr.mxu0 0.0
    %5726 = vmatpush1.xpose.msra.mxu0 0.0
    %5727 = vmatprep.subr.mxu0 0.0
    %5728 = vmatpush1.xpose.msra.mxu0 0.0
    %5729 = vmatprep.subr.mxu0 0.0
    %5730 = vmatpush1.xpose.msra.mxu0 0.0
    %5731 = vmatprep.subr.mxu0 0.0
    %5732 = vmatpush1.xpose.msra.mxu0 0.0
    %5733 = vmatprep.subr.mxu0 0.0
    %5734 = vmatpush1.xpose.msra.mxu0 0.0
    %5735 = vmatprep.subr.mxu0 0.0
    %5736 = vmatpush1.xpose.msra.mxu0 0.0
    %5737 = vmatprep.subr.mxu0 0.0
    %5738 = vmatpush1.xpose.msra.mxu0 0.0
    %5739 = vmatprep.subr.mxu0 0.0
    %5740 = vmatpush1.xpose.msra.mxu0 0.0
    %5741 = vmatprep.subr.mxu0 0.0
    %5742 = vmatpush1.xpose.msra.mxu0 0.0
    %5743 = vmatprep.subr.mxu0 0.0
    %5744 = vmatpush1.xpose.msra.mxu0 0.0
    %5745 = vmatprep.subr.mxu0 0.0
    %5746 = vmatpush1.xpose.msra.mxu0 0.0
    %5747 = vmatprep.subr.mxu0 0.0
    %5748 = vmatpush1.xpose.msra.mxu0 0.0
    %5749 = vmatprep.subr.mxu0 0.0
    %5750 = vmatpush1.xpose.msra.mxu0 0.0
    %5751 = vmatprep.subr.mxu0 0.0
    %5752 = vmatpush1.xpose.msra.mxu0 0.0
    %5753 = vmatprep.subr.mxu0 0.0
    %5754 = vmatpush1.xpose.msra.mxu0 0.0
    %5755 = vmatprep.subr.mxu0 0.0
    %5756 = vmatpush1.xpose.msra.mxu0 0.0
    %5757 = vmatprep.subr.mxu0 0.0
    %5758 = vmatpush1.xpose.msra.mxu0 0.0
    %5759 = vmatprep.subr.mxu0 0.0
    %5760 = vmatpush1.xpose.msra.mxu0 0.0
    %5761 = vmatprep.subr.mxu0 0.0
    %5762 = vmatpush1.xpose.msra.mxu0 0.0
    %5763 = vmatprep.subr.mxu0 0.0
    %5764 = vmatpush1.xpose.msra.mxu0 0.0
    %5765 = vmatprep.subr.mxu0 0.0
    %5766 = vmatpush1.xpose.msra.mxu0 0.0
    %5767 = vmatprep.subr.mxu0 0.0
    %5768 = vmatpush1.xpose.msra.mxu0 0.0
    %5769 = vmatprep.subr.mxu0 0.0
    %5770 = vmatpush1.xpose.msra.mxu0 0.0
    %5771 = vmatprep.mubr.f32.mxu0 0.0
    %5772 = vmatmul.mubr.f32.gmra.mrb[0].mxu0 %v5702
    %v5773 = vpop.f32.mrb[0].mxu0
    %v5774 = vadd.f32 0.0, %v5773
    %v5775 = vpop.f32.mrb[0].mxu0
    %5776 = vdwg.mxu0
    %v5778 = vsel %vm1294, %v4566, 0
    %v5781 = vsel %vm1294, %v4670, 0
    %5783 = vmatprep.subr.mxu0 0.0
    %5784 = vmatpush1.xpose.msra.mxu0 %v5781
    %5785 = vmatprep.subr.mxu0 0.0
    %5786 = vmatpush1.xpose.msra.mxu0 0.0
    %5787 = vmatprep.subr.mxu0 0.0
    %5788 = vmatpush1.xpose.msra.mxu0 0.0
    %5789 = vmatprep.subr.mxu0 0.0
    %5790 = vmatpush1.xpose.msra.mxu0 0.0
    %5791 = vmatprep.subr.mxu0 0.0
    %5792 = vmatpush1.xpose.msra.mxu0 0.0
    %5793 = vmatprep.subr.mxu0 0.0
    %5794 = vmatpush1.xpose.msra.mxu0 0.0
    %5795 = vmatprep.subr.mxu0 0.0
    %5796 = vmatpush1.xpose.msra.mxu0 0.0
    %5797 = vmatprep.subr.mxu0 0.0
    %5798 = vmatpush1.xpose.msra.mxu0 0.0
    %5799 = vmatprep.subr.mxu0 0.0
    %5800 = vmatpush1.xpose.msra.mxu0 0.0
    %5801 = vmatprep.subr.mxu0 0.0
    %5802 = vmatpush1.xpose.msra.mxu0 0.0
    %5803 = vmatprep.subr.mxu0 0.0
    %5804 = vmatpush1.xpose.msra.mxu0 0.0
    %5805 = vmatprep.subr.mxu0 0.0
    %5806 = vmatpush1.xpose.msra.mxu0 0.0
    %5807 = vmatprep.subr.mxu0 0.0
    %5808 = vmatpush1.xpose.msra.mxu0 0.0
    %5809 = vmatprep.subr.mxu0 0.0
    %5810 = vmatpush1.xpose.msra.mxu0 0.0
    %5811 = vmatprep.subr.mxu0 0.0
    %5812 = vmatpush1.xpose.msra.mxu0 0.0
    %5813 = vmatprep.subr.mxu0 0.0
    %5814 = vmatpush1.xpose.msra.mxu0 0.0
    %5815 = vmatprep.subr.mxu0 0.0
    %5816 = vmatpush1.xpose.msra.mxu0 0.0
    %5817 = vmatprep.subr.mxu0 0.0
    %5818 = vmatpush1.xpose.msra.mxu0 0.0
    %5819 = vmatprep.subr.mxu0 0.0
    %5820 = vmatpush1.xpose.msra.mxu0 0.0
    %5821 = vmatprep.subr.mxu0 0.0
    %5822 = vmatpush1.xpose.msra.mxu0 0.0
    %5823 = vmatprep.subr.mxu0 0.0
    %5824 = vmatpush1.xpose.msra.mxu0 0.0
    %5825 = vmatprep.subr.mxu0 0.0
    %5826 = vmatpush1.xpose.msra.mxu0 0.0
    %5827 = vmatprep.subr.mxu0 0.0
    %5828 = vmatpush1.xpose.msra.mxu0 0.0
    %5829 = vmatprep.subr.mxu0 0.0
    %5830 = vmatpush1.xpose.msra.mxu0 0.0
    %5831 = vmatprep.subr.mxu0 0.0
    %5832 = vmatpush1.xpose.msra.mxu0 0.0
    %5833 = vmatprep.subr.mxu0 0.0
    %5834 = vmatpush1.xpose.msra.mxu0 0.0
    %5835 = vmatprep.subr.mxu0 0.0
    %5836 = vmatpush1.xpose.msra.mxu0 0.0
    %5837 = vmatprep.subr.mxu0 0.0
    %5838 = vmatpush1.xpose.msra.mxu0 0.0
    %5839 = vmatprep.subr.mxu0 0.0
    %5840 = vmatpush1.xpose.msra.mxu0 0.0
    %5841 = vmatprep.subr.mxu0 0.0
    %5842 = vmatpush1.xpose.msra.mxu0 0.0
    %5843 = vmatprep.subr.mxu0 0.0
    %5844 = vmatpush1.xpose.msra.mxu0 0.0
    %5845 = vmatprep.subr.mxu0 0.0
    %5846 = vmatpush1.xpose.msra.mxu0 0.0
    %5847 = vmatprep.mubr.f32.mxu0 0.0
    %5848 = vmatmul.mubr.f32.gmra.mrb[0].mxu0 %v5778
    %v5849 = vpop.f32.mrb[0].mxu0
    %v5850 = vadd.f32 0.0, %v5849
    %v5851 = vpop.f32.mrb[0].mxu0
    %5852 = vdwg.mxu0
    %v5854 = vsel %vm1294, %v4568, 0
    %v5857 = vsel %vm1294, %v4672, 0
    %5859 = vmatprep.subr.mxu0 0.0
    %5860 = vmatpush1.xpose.msra.mxu0 %v5857
    %5861 = vmatprep.subr.mxu0 0.0
    %5862 = vmatpush1.xpose.msra.mxu0 0.0
    %5863 = vmatprep.subr.mxu0 0.0
    %5864 = vmatpush1.xpose.msra.mxu0 0.0
    %5865 = vmatprep.subr.mxu0 0.0
    %5866 = vmatpush1.xpose.msra.mxu0 0.0
    %5867 = vmatprep.subr.mxu0 0.0
    %5868 = vmatpush1.xpose.msra.mxu0 0.0
    %5869 = vmatprep.subr.mxu0 0.0
    %5870 = vmatpush1.xpose.msra.mxu0 0.0
    %5871 = vmatprep.subr.mxu0 0.0
    %5872 = vmatpush1.xpose.msra.mxu0 0.0
    %5873 = vmatprep.subr.mxu0 0.0
    %5874 = vmatpush1.xpose.msra.mxu0 0.0
    %5875 = vmatprep.subr.mxu0 0.0
    %5876 = vmatpush1.xpose.msra.mxu0 0.0
    %5877 = vmatprep.subr.mxu0 0.0
    %5878 = vmatpush1.xpose.msra.mxu0 0.0
    %5879 = vmatprep.subr.mxu0 0.0
    %5880 = vmatpush1.xpose.msra.mxu0 0.0
    %5881 = vmatprep.subr.mxu0 0.0
    %5882 = vmatpush1.xpose.msra.mxu0 0.0
    %5883 = vmatprep.subr.mxu0 0.0
    %5884 = vmatpush1.xpose.msra.mxu0 0.0
    %5885 = vmatprep.subr.mxu0 0.0
    %5886 = vmatpush1.xpose.msra.mxu0 0.0
    %5887 = vmatprep.subr.mxu0 0.0
    %5888 = vmatpush1.xpose.msra.mxu0 0.0
    %5889 = vmatprep.subr.mxu0 0.0
    %5890 = vmatpush1.xpose.msra.mxu0 0.0
    %5891 = vmatprep.subr.mxu0 0.0
    %5892 = vmatpush1.xpose.msra.mxu0 0.0
    %5893 = vmatprep.subr.mxu0 0.0
    %5894 = vmatpush1.xpose.msra.mxu0 0.0
    %5895 = vmatprep.subr.mxu0 0.0
    %5896 = vmatpush1.xpose.msra.mxu0 0.0
    %5897 = vmatprep.subr.mxu0 0.0
    %5898 = vmatpush1.xpose.msra.mxu0 0.0
    %5899 = vmatprep.subr.mxu0 0.0
    %5900 = vmatpush1.xpose.msra.mxu0 0.0
    %5901 = vmatprep.subr.mxu0 0.0
    %5902 = vmatpush1.xpose.msra.mxu0 0.0
    %5903 = vmatprep.subr.mxu0 0.0
    %5904 = vmatpush1.xpose.msra.mxu0 0.0
    %5905 = vmatprep.subr.mxu0 0.0
    %5906 = vmatpush1.xpose.msra.mxu0 0.0
    %5907 = vmatprep.subr.mxu0 0.0
    %5908 = vmatpush1.xpose.msra.mxu0 0.0
    %5909 = vmatprep.subr.mxu0 0.0
    %5910 = vmatpush1.xpose.msra.mxu0 0.0
    %5911 = vmatprep.subr.mxu0 0.0
    %5912 = vmatpush1.xpose.msra.mxu0 0.0
    %5913 = vmatprep.subr.mxu0 0.0
    %5914 = vmatpush1.xpose.msra.mxu0 0.0
    %5915 = vmatprep.subr.mxu0 0.0
    %5916 = vmatpush1.xpose.msra.mxu0 0.0
    %5917 = vmatprep.subr.mxu0 0.0
    %5918 = vmatpush1.xpose.msra.mxu0 0.0
    %5919 = vmatprep.subr.mxu0 0.0
    %5920 = vmatpush1.xpose.msra.mxu0 0.0
    %5921 = vmatprep.subr.mxu0 0.0
    %5922 = vmatpush1.xpose.msra.mxu0 0.0
    %5923 = vmatprep.mubr.f32.mxu0 0.0
    %5924 = vmatmul.mubr.f32.gmra.mrb[0].mxu0 %v5854
    %v5925 = vpop.f32.mrb[0].mxu0
    %v5926 = vadd.f32 0.0, %v5925
    %v5927 = vpop.f32.mrb[0].mxu0
    %5928 = vdwg.mxu0
    %v5929 = vsel %vm1600, %v5698, -1e+30
    %v5930 = vsel %vm1600, %v5774, -1e+30
    %v5931 = vsel %vm1600, %v5850, -1e+30
    %v5932 = vsel %vm1600, %v5926, -1e+30
    %v5933 = vsel %vm1157, %v5929, -inf
    %5934 = vmax.xlane.f32.xlu0 %v5933
    %v5935 = vpop.xlane.xlu0 %5934
    %v5936 = vsel %vm1157, %v5930, -inf
    %5937 = vmax.xlane.f32.xlu0 %v5936
    %v5938 = vpop.xlane.xlu0 %5937
    %v5939 = vsel %vm1157, %v5931, -inf
    %5940 = vmax.xlane.f32.xlu0 %v5939
    %v5941 = vpop.xlane.xlu0 %5940
    %v5942 = vsel %vm1157, %v5932, -inf
    %5943 = vmax.xlane.f32.xlu0 %v5942
    %v5944 = vpop.xlane.xlu0 %5943
    %v5945 = vsub.f32 %v5929, %v5935
    %v5946 = vsub.f32 %v5930, %v5938
    %v5947 = vsub.f32 %v5931, %v5941
    %v5948 = vsub.f32 %v5932, %v5944
    %v5949 = vmul.f32 %v5945, 1.442695
    %v5950 = vpow.pop %v5949
    %v5951 = vmul.f32 %v5946, 1.442695
    %v5952 = vpow.pop %v5951
    %v5953 = vmul.f32 %v5947, 1.442695
    %v5954 = vpow.pop %v5953
    %v5955 = vmul.f32 %v5948, 1.442695
    %v5956 = vpow.pop %v5955
    %v5957 = vsel %vm1157, %v5950, 0.0
    %5958 = vadd.xlane.f32.xlu0 %v5957
    %v5959 = vpop.xlane.xlu0 %5958
    %v5960 = vsel %vm1157, %v5952, 0.0
    %5961 = vadd.xlane.f32.xlu0 %v5960
    %v5962 = vpop.xlane.xlu0 %5961
    %v5963 = vsel %vm1157, %v5954, 0.0
    %5964 = vadd.xlane.f32.xlu0 %v5963
    %v5965 = vpop.xlane.xlu0 %5964
    %v5966 = vsel %vm1157, %v5956, 0.0
    %5967 = vadd.xlane.f32.xlu0 %v5966
    %v5968 = vpop.xlane.xlu0 %5967
    %v5969 = vrcp.pop %v5959
    %v5970 = vrcp.pop %v5962
    %v5971 = vrcp.pop %v5965
    %v5972 = vrcp.pop %v5968
    %v5973 = vmul.f32 %v5950, %v5969
    %v5974 = vmul.f32 %v5952, %v5970
    %v5975 = vmul.f32 %v5954, %v5971
    %v5976 = vmul.f32 %v5956, %v5972
    %v5978 = vsel %vm1157, %v5973, 0
    %5980 = vmatprep.subr.mxu0 0.0
    %5981 = vmatpush1.msra.mxu0 %v4237
    %5982 = vmatprep.subr.mxu0 0.0
    %5983 = vmatpush1.msra.mxu0 0.0
    %5984 = vmatprep.subr.mxu0 0.0
    %5985 = vmatpush1.msra.mxu0 0.0
    %5986 = vmatprep.subr.mxu0 0.0
    %5987 = vmatpush1.msra.mxu0 0.0
    %5988 = vmatprep.subr.mxu0 0.0
    %5989 = vmatpush1.msra.mxu0 0.0
    %5990 = vmatprep.subr.mxu0 0.0
    %5991 = vmatpush1.msra.mxu0 0.0
    %5992 = vmatprep.subr.mxu0 0.0
    %5993 = vmatpush1.msra.mxu0 0.0
    %5994 = vmatprep.subr.mxu0 0.0
    %5995 = vmatpush1.msra.mxu0 0.0
    %5996 = vmatprep.subr.mxu0 0.0
    %5997 = vmatpush1.msra.mxu0 0.0
    %5998 = vmatprep.subr.mxu0 0.0
    %5999 = vmatpush1.msra.mxu0 0.0
    %6000 = vmatprep.subr.mxu0 0.0
    %6001 = vmatpush1.msra.mxu0 0.0
    %6002 = vmatprep.subr.mxu0 0.0
    %6003 = vmatpush1.msra.mxu0 0.0
    %6004 = vmatprep.subr.mxu0 0.0
    %6005 = vmatpush1.msra.mxu0 0.0
    %6006 = vmatprep.subr.mxu0 0.0
    %6007 = vmatpush1.msra.mxu0 0.0
    %6008 = vmatprep.subr.mxu0 0.0
    %6009 = vmatpush1.msra.mxu0 0.0
    %6010 = vmatprep.subr.mxu0 0.0
    %6011 = vmatpush1.msra.mxu0 0.0
    %6012 = vmatprep.subr.mxu0 0.0
    %6013 = vmatpush1.msra.mxu0 0.0
    %6014 = vmatprep.subr.mxu0 0.0
    %6015 = vmatpush1.msra.mxu0 0.0
    %6016 = vmatprep.subr.mxu0 0.0
    %6017 = vmatpush1.msra.mxu0 0.0
    %6018 = vmatprep.subr.mxu0 0.0
    %6019 = vmatpush1.msra.mxu0 0.0
    %6020 = vmatprep.subr.mxu0 0.0
    %6021 = vmatpush1.msra.mxu0 0.0
    %6022 = vmatprep.subr.mxu0 0.0
    %6023 = vmatpush1.msra.mxu0 0.0
    %6024 = vmatprep.subr.mxu0 0.0
    %6025 = vmatpush1.msra.mxu0 0.0
    %6026 = vmatprep.subr.mxu0 0.0
    %6027 = vmatpush1.msra.mxu0 0.0
    %6028 = vmatprep.subr.mxu0 0.0
    %6029 = vmatpush1.msra.mxu0 0.0
    %6030 = vmatprep.subr.mxu0 0.0
    %6031 = vmatpush1.msra.mxu0 0.0
    %6032 = vmatprep.subr.mxu0 0.0
    %6033 = vmatpush1.msra.mxu0 0.0
    %6034 = vmatprep.subr.mxu0 0.0
    %6035 = vmatpush1.msra.mxu0 0.0
    %6036 = vmatprep.subr.mxu0 0.0
    %6037 = vmatpush1.msra.mxu0 0.0
    %6038 = vmatprep.subr.mxu0 0.0
    %6039 = vmatpush1.msra.mxu0 0.0
    %6040 = vmatprep.subr.mxu0 0.0
    %6041 = vmatpush1.msra.mxu0 0.0
    %6042 = vmatprep.subr.mxu0 0.0
    %6043 = vmatpush1.msra.mxu0 0.0
    %6044 = vmatprep.mubr.f32.mxu0 0.0
    %6045 = vmatmul.mubr.f32.gmra.mrb[0].mxu0 %v5978
    %v6046 = vpop.f32.mrb[0].mxu0
    %v6047 = vadd.f32 0.0, %v6046
    %v6048 = vpop.f32.mrb[0].mxu0
    %6049 = vdwg.mxu0
    %v6051 = vsel %vm1157, %v5974, 0
    %6053 = vmatprep.subr.mxu0 0.0
    %6054 = vmatpush1.msra.mxu0 %v4312
    %6055 = vmatprep.subr.mxu0 0.0
    %6056 = vmatpush1.msra.mxu0 0.0
    %6057 = vmatprep.subr.mxu0 0.0
    %6058 = vmatpush1.msra.mxu0 0.0
    %6059 = vmatprep.subr.mxu0 0.0
    %6060 = vmatpush1.msra.mxu0 0.0
    %6061 = vmatprep.subr.mxu0 0.0
    %6062 = vmatpush1.msra.mxu0 0.0
    %6063 = vmatprep.subr.mxu0 0.0
    %6064 = vmatpush1.msra.mxu0 0.0
    %6065 = vmatprep.subr.mxu0 0.0
    %6066 = vmatpush1.msra.mxu0 0.0
    %6067 = vmatprep.subr.mxu0 0.0
    %6068 = vmatpush1.msra.mxu0 0.0
    %6069 = vmatprep.subr.mxu0 0.0
    %6070 = vmatpush1.msra.mxu0 0.0
    %6071 = vmatprep.subr.mxu0 0.0
    %6072 = vmatpush1.msra.mxu0 0.0
    %6073 = vmatprep.subr.mxu0 0.0
    %6074 = vmatpush1.msra.mxu0 0.0
    %6075 = vmatprep.subr.mxu0 0.0
    %6076 = vmatpush1.msra.mxu0 0.0
    %6077 = vmatprep.subr.mxu0 0.0
    %6078 = vmatpush1.msra.mxu0 0.0
    %6079 = vmatprep.subr.mxu0 0.0
    %6080 = vmatpush1.msra.mxu0 0.0
    %6081 = vmatprep.subr.mxu0 0.0
    %6082 = vmatpush1.msra.mxu0 0.0
    %6083 = vmatprep.subr.mxu0 0.0
    %6084 = vmatpush1.msra.mxu0 0.0
    %6085 = vmatprep.subr.mxu0 0.0
    %6086 = vmatpush1.msra.mxu0 0.0
    %6087 = vmatprep.subr.mxu0 0.0
    %6088 = vmatpush1.msra.mxu0 0.0
    %6089 = vmatprep.subr.mxu0 0.0
    %6090 = vmatpush1.msra.mxu0 0.0
    %6091 = vmatprep.subr.mxu0 0.0
    %6092 = vmatpush1.msra.mxu0 0.0
    %6093 = vmatprep.subr.mxu0 0.0
    %6094 = vmatpush1.msra.mxu0 0.0
    %6095 = vmatprep.subr.mxu0 0.0
    %6096 = vmatpush1.msra.mxu0 0.0
    %6097 = vmatprep.subr.mxu0 0.0
    %6098 = vmatpush1.msra.mxu0 0.0
    %6099 = vmatprep.subr.mxu0 0.0
    %6100 = vmatpush1.msra.mxu0 0.0
    %6101 = vmatprep.subr.mxu0 0.0
    %6102 = vmatpush1.msra.mxu0 0.0
    %6103 = vmatprep.subr.mxu0 0.0
    %6104 = vmatpush1.msra.mxu0 0.0
    %6105 = vmatprep.subr.mxu0 0.0
    %6106 = vmatpush1.msra.mxu0 0.0
    %6107 = vmatprep.subr.mxu0 0.0
    %6108 = vmatpush1.msra.mxu0 0.0
    %6109 = vmatprep.subr.mxu0 0.0
    %6110 = vmatpush1.msra.mxu0 0.0
    %6111 = vmatprep.subr.mxu0 0.0
    %6112 = vmatpush1.msra.mxu0 0.0
    %6113 = vmatprep.subr.mxu0 0.0
    %6114 = vmatpush1.msra.mxu0 0.0
    %6115 = vmatprep.subr.mxu0 0.0
    %6116 = vmatpush1.msra.mxu0 0.0
    %6117 = vmatprep.mubr.f32.mxu0 0.0
    %6118 = vmatmul.mubr.f32.gmra.mrb[0].mxu0 %v6051
    %v6119 = vpop.f32.mrb[0].mxu0
    %v6120 = vadd.f32 0.0, %v6119
    %v6121 = vpop.f32.mrb[0].mxu0
    %6122 = vdwg.mxu0
    %v6124 = vsel %vm1157, %v5975, 0
    %6126 = vmatprep.subr.mxu0 0.0
    %6127 = vmatpush1.msra.mxu0 %v4387
    %6128 = vmatprep.subr.mxu0 0.0
    %6129 = vmatpush1.msra.mxu0 0.0
    %6130 = vmatprep.subr.mxu0 0.0
    %6131 = vmatpush1.msra.mxu0 0.0
    %6132 = vmatprep.subr.mxu0 0.0
    %6133 = vmatpush1.msra.mxu0 0.0
    %6134 = vmatprep.subr.mxu0 0.0
    %6135 = vmatpush1.msra.mxu0 0.0
    %6136 = vmatprep.subr.mxu0 0.0
    %6137 = vmatpush1.msra.mxu0 0.0
    %6138 = vmatprep.subr.mxu0 0.0
    %6139 = vmatpush1.msra.mxu0 0.0
    %6140 = vmatprep.subr.mxu0 0.0
    %6141 = vmatpush1.msra.mxu0 0.0
    %6142 = vmatprep.subr.mxu0 0.0
    %6143 = vmatpush1.msra.mxu0 0.0
    %6144 = vmatprep.subr.mxu0 0.0
    %6145 = vmatpush1.msra.mxu0 0.0
    %6146 = vmatprep.subr.mxu0 0.0
    %6147 = vmatpush1.msra.mxu0 0.0
    %6148 = vmatprep.subr.mxu0 0.0
    %6149 = vmatpush1.msra.mxu0 0.0
    %6150 = vmatprep.subr.mxu0 0.0
    %6151 = vmatpush1.msra.mxu0 0.0
    %6152 = vmatprep.subr.mxu0 0.0
    %6153 = vmatpush1.msra.mxu0 0.0
    %6154 = vmatprep.subr.mxu0 0.0
    %6155 = vmatpush1.msra.mxu0 0.0
    %6156 = vmatprep.subr.mxu0 0.0
    %6157 = vmatpush1.msra.mxu0 0.0
    %6158 = vmatprep.subr.mxu0 0.0
    %6159 = vmatpush1.msra.mxu0 0.0
    %6160 = vmatprep.subr.mxu0 0.0
    %6161 = vmatpush1.msra.mxu0 0.0
    %6162 = vmatprep.subr.mxu0 0.0
    %6163 = vmatpush1.msra.mxu0 0.0
    %6164 = vmatprep.subr.mxu0 0.0
    %6165 = vmatpush1.msra.mxu0 0.0
    %6166 = vmatprep.subr.mxu0 0.0
    %6167 = vmatpush1.msra.mxu0 0.0
    %6168 = vmatprep.subr.mxu0 0.0
    %6169 = vmatpush1.msra.mxu0 0.0
    %6170 = vmatprep.subr.mxu0 0.0
    %6171 = vmatpush1.msra.mxu0 0.0
    %6172 = vmatprep.subr.mxu0 0.0
    %6173 = vmatpush1.msra.mxu0 0.0
    %6174 = vmatprep.subr.mxu0 0.0
    %6175 = vmatpush1.msra.mxu0 0.0
    %6176 = vmatprep.subr.mxu0 0.0
    %6177 = vmatpush1.msra.mxu0 0.0
    %6178 = vmatprep.subr.mxu0 0.0
    %6179 = vmatpush1.msra.mxu0 0.0
    %6180 = vmatprep.subr.mxu0 0.0
    %6181 = vmatpush1.msra.mxu0 0.0
    %6182 = vmatprep.subr.mxu0 0.0
    %6183 = vmatpush1.msra.mxu0 0.0
    %6184 = vmatprep.subr.mxu0 0.0
    %6185 = vmatpush1.msra.mxu0 0.0
    %6186 = vmatprep.subr.mxu0 0.0
    %6187 = vmatpush1.msra.mxu0 0.0
    %6188 = vmatprep.subr.mxu0 0.0
    %6189 = vmatpush1.msra.mxu0 0.0
    %6190 = vmatprep.mubr.f32.mxu0 0.0
    %6191 = vmatmul.mubr.f32.gmra.mrb[0].mxu0 %v6124
    %v6192 = vpop.f32.mrb[0].mxu0
    %v6193 = vadd.f32 0.0, %v6192
    %v6194 = vpop.f32.mrb[0].mxu0
    %6195 = vdwg.mxu0
    %v6197 = vsel %vm1157, %v5976, 0
    %6199 = vmatprep.subr.mxu0 0.0
    %6200 = vmatpush1.msra.mxu0 %v4462
    %6201 = vmatprep.subr.mxu0 0.0
    %6202 = vmatpush1.msra.mxu0 0.0
    %6203 = vmatprep.subr.mxu0 0.0
    %6204 = vmatpush1.msra.mxu0 0.0
    %6205 = vmatprep.subr.mxu0 0.0
    %6206 = vmatpush1.msra.mxu0 0.0
    %6207 = vmatprep.subr.mxu0 0.0
    %6208 = vmatpush1.msra.mxu0 0.0
    %6209 = vmatprep.subr.mxu0 0.0
    %6210 = vmatpush1.msra.mxu0 0.0
    %6211 = vmatprep.subr.mxu0 0.0
    %6212 = vmatpush1.msra.mxu0 0.0
    %6213 = vmatprep.subr.mxu0 0.0
    %6214 = vmatpush1.msra.mxu0 0.0
    %6215 = vmatprep.subr.mxu0 0.0
    %6216 = vmatpush1.msra.mxu0 0.0
    %6217 = vmatprep.subr.mxu0 0.0
    %6218 = vmatpush1.msra.mxu0 0.0
    %6219 = vmatprep.subr.mxu0 0.0
    %6220 = vmatpush1.msra.mxu0 0.0
    %6221 = vmatprep.subr.mxu0 0.0
    %6222 = vmatpush1.msra.mxu0 0.0
    %6223 = vmatprep.subr.mxu0 0.0
    %6224 = vmatpush1.msra.mxu0 0.0
    %6225 = vmatprep.subr.mxu0 0.0
    %6226 = vmatpush1.msra.mxu0 0.0
    %6227 = vmatprep.subr.mxu0 0.0
    %6228 = vmatpush1.msra.mxu0 0.0
    %6229 = vmatprep.subr.mxu0 0.0
    %6230 = vmatpush1.msra.mxu0 0.0
    %6231 = vmatprep.subr.mxu0 0.0
    %6232 = vmatpush1.msra.mxu0 0.0
    %6233 = vmatprep.subr.mxu0 0.0
    %6234 = vmatpush1.msra.mxu0 0.0
    %6235 = vmatprep.subr.mxu0 0.0
    %6236 = vmatpush1.msra.mxu0 0.0
    %6237 = vmatprep.subr.mxu0 0.0
    %6238 = vmatpush1.msra.mxu0 0.0
    %6239 = vmatprep.subr.mxu0 0.0
    %6240 = vmatpush1.msra.mxu0 0.0
    %6241 = vmatprep.subr.mxu0 0.0
    %6242 = vmatpush1.msra.mxu0 0.0
    %6243 = vmatprep.subr.mxu0 0.0
    %6244 = vmatpush1.msra.mxu0 0.0
    %6245 = vmatprep.subr.mxu0 0.0
    %6246 = vmatpush1.msra.mxu0 0.0
    %6247 = vmatprep.subr.mxu0 0.0
    %6248 = vmatpush1.msra.mxu0 0.0
    %6249 = vmatprep.subr.mxu0 0.0
    %6250 = vmatpush1.msra.mxu0 0.0
    %6251 = vmatprep.subr.mxu0 0.0
    %6252 = vmatpush1.msra.mxu0 0.0
    %6253 = vmatprep.subr.mxu0 0.0
    %6254 = vmatpush1.msra.mxu0 0.0
    %6255 = vmatprep.subr.mxu0 0.0
    %6256 = vmatpush1.msra.mxu0 0.0
    %6257 = vmatprep.subr.mxu0 0.0
    %6258 = vmatpush1.msra.mxu0 0.0
    %6259 = vmatprep.subr.mxu0 0.0
    %6260 = vmatpush1.msra.mxu0 0.0
    %6261 = vmatprep.subr.mxu0 0.0
    %6262 = vmatpush1.msra.mxu0 0.0
    %6263 = vmatprep.mubr.f32.mxu0 0.0
    %6264 = vmatmul.mubr.f32.gmra.mrb[0].mxu0 %v6197
    %v6265 = vpop.f32.mrb[0].mxu0
    %v6266 = vadd.f32 0.0, %v6265
    %v6267 = vpop.f32.mrb[0].mxu0
    %6268 = vdwg.mxu0
    %v6269 = vld [vmem:[%s5317] sm:$0xff]
    %v6270 = vld [vmem:[%s5317 + $0x8] sm:$0xff]
    %v6271 = vld [vmem:[%s5317 + $0x10] sm:$0xff]
    %v6272 = vld [vmem:[%s5317 + $0x18] sm:$0xff]
    %v6273 = vld [vmem:[%s5317 + $0x20] sm:$0xff]
    %v6274 = vld [vmem:[%s5317 + $0x28] sm:$0xff]
    %v6275 = vld [vmem:[%s5317 + $0x30] sm:$0xff]
    %v6276 = vld [vmem:[%s5317 + $0x38] sm:$0xff]
    %v6278 = vsel %vm1294, %v6047, 0
    %6280 = vmatprep.subr.mxu0 0.0
    %6281 = vmatpush1.msra.mxu0 %v6269
    %6282 = vmatprep.subr.mxu0 0.0
    %6283 = vmatpush1.msra.mxu0 %v6270
    %6284 = vmatprep.subr.mxu0 0.0
    %6285 = vmatpush1.msra.mxu0 0.0
    %6286 = vmatprep.subr.mxu0 0.0
    %6287 = vmatpush1.msra.mxu0 0.0
    %6288 = vmatprep.subr.mxu0 0.0
    %6289 = vmatpush1.msra.mxu0 0.0
    %6290 = vmatprep.subr.mxu0 0.0
    %6291 = vmatpush1.msra.mxu0 0.0
    %6292 = vmatprep.subr.mxu0 0.0
    %6293 = vmatpush1.msra.mxu0 0.0
    %6294 = vmatprep.subr.mxu0 0.0
    %6295 = vmatpush1.msra.mxu0 0.0
    %6296 = vmatprep.subr.mxu0 0.0
    %6297 = vmatpush1.msra.mxu0 0.0
    %6298 = vmatprep.subr.mxu0 0.0
    %6299 = vmatpush1.msra.mxu0 0.0
    %6300 = vmatprep.subr.mxu0 0.0
    %6301 = vmatpush1.msra.mxu0 0.0
    %6302 = vmatprep.subr.mxu0 0.0
    %6303 = vmatpush1.msra.mxu0 0.0
    %6304 = vmatprep.subr.mxu0 0.0
    %6305 = vmatpush1.msra.mxu0 0.0
    %6306 = vmatprep.subr.mxu0 0.0
    %6307 = vmatpush1.msra.mxu0 0.0
    %6308 = vmatprep.subr.mxu0 0.0
    %6309 = vmatpush1.msra.mxu0 0.0
    %6310 = vmatprep.subr.mxu0 0.0
    %6311 = vmatpush1.msra.mxu0 0.0
    %6312 = vmatprep.subr.mxu0 0.0
    %6313 = vmatpush1.msra.mxu0 0.0
    %6314 = vmatprep.subr.mxu0 0.0
    %6315 = vmatpush1.msra.mxu0 0.0
    %6316 = vmatprep.subr.mxu0 0.0
    %6317 = vmatpush1.msra.mxu0 0.0
    %6318 = vmatprep.subr.mxu0 0.0
    %6319 = vmatpush1.msra.mxu0 0.0
    %6320 = vmatprep.subr.mxu0 0.0
    %6321 = vmatpush1.msra.mxu0 0.0
    %6322 = vmatprep.subr.mxu0 0.0
    %6323 = vmatpush1.msra.mxu0 0.0
    %6324 = vmatprep.subr.mxu0 0.0
    %6325 = vmatpush1.msra.mxu0 0.0
    %6326 = vmatprep.subr.mxu0 0.0
    %6327 = vmatpush1.msra.mxu0 0.0
    %6328 = vmatprep.subr.mxu0 0.0
    %6329 = vmatpush1.msra.mxu0 0.0
    %6330 = vmatprep.subr.mxu0 0.0
    %6331 = vmatpush1.msra.mxu0 0.0
    %6332 = vmatprep.subr.mxu0 0.0
    %6333 = vmatpush1.msra.mxu0 0.0
    %6334 = vmatprep.subr.mxu0 0.0
    %6335 = vmatpush1.msra.mxu0 0.0
    %6336 = vmatprep.subr.mxu0 0.0
    %6337 = vmatpush1.msra.mxu0 0.0
    %6338 = vmatprep.subr.mxu0 0.0
    %6339 = vmatpush1.msra.mxu0 0.0
    %6340 = vmatprep.subr.mxu0 0.0
    %6341 = vmatpush1.msra.mxu0 0.0
    %6342 = vmatprep.subr.mxu0 0.0
    %6343 = vmatpush1.msra.mxu0 0.0
    %6344 = vmatprep.mubr.f32.mxu0 0.0
    %6345 = vmatmul.mubr.f32.gmra.mrb[0].mxu0 %v6278
    %v6346 = vpop.f32.mrb[0].mxu0
    %v6347 = vadd.f32 0.0, %v6346
    %v6348 = vpop.f32.mrb[0].mxu0
    %6349 = vdwg.mxu0
    %v6351 = vsel %vm1294, %v6120, 0
    %6353 = vmatprep.subr.mxu0 0.0
    %6354 = vmatpush1.msra.mxu0 %v6271
    %6355 = vmatprep.subr.mxu0 0.0
    %6356 = vmatpush1.msra.mxu0 %v6272
    %6357 = vmatprep.subr.mxu0 0.0
    %6358 = vmatpush1.msra.mxu0 0.0
    %6359 = vmatprep.subr.mxu0 0.0
    %6360 = vmatpush1.msra.mxu0 0.0
    %6361 = vmatprep.subr.mxu0 0.0
    %6362 = vmatpush1.msra.mxu0 0.0
    %6363 = vmatprep.subr.mxu0 0.0
    %6364 = vmatpush1.msra.mxu0 0.0
    %6365 = vmatprep.subr.mxu0 0.0
    %6366 = vmatpush1.msra.mxu0 0.0
    %6367 = vmatprep.subr.mxu0 0.0
    %6368 = vmatpush1.msra.mxu0 0.0
    %6369 = vmatprep.subr.mxu0 0.0
    %6370 = vmatpush1.msra.mxu0 0.0
    %6371 = vmatprep.subr.mxu0 0.0
    %6372 = vmatpush1.msra.mxu0 0.0
    %6373 = vmatprep.subr.mxu0 0.0
    %6374 = vmatpush1.msra.mxu0 0.0
    %6375 = vmatprep.subr.mxu0 0.0
    %6376 = vmatpush1.msra.mxu0 0.0
    %6377 = vmatprep.subr.mxu0 0.0
    %6378 = vmatpush1.msra.mxu0 0.0
    %6379 = vmatprep.subr.mxu0 0.0
    %6380 = vmatpush1.msra.mxu0 0.0
    %6381 = vmatprep.subr.mxu0 0.0
    %6382 = vmatpush1.msra.mxu0 0.0
    %6383 = vmatprep.subr.mxu0 0.0
    %6384 = vmatpush1.msra.mxu0 0.0
    %6385 = vmatprep.subr.mxu0 0.0
    %6386 = vmatpush1.msra.mxu0 0.0
    %6387 = vmatprep.subr.mxu0 0.0
    %6388 = vmatpush1.msra.mxu0 0.0
    %6389 = vmatprep.subr.mxu0 0.0
    %6390 = vmatpush1.msra.mxu0 0.0
    %6391 = vmatprep.subr.mxu0 0.0
    %6392 = vmatpush1.msra.mxu0 0.0
    %6393 = vmatprep.subr.mxu0 0.0
    %6394 = vmatpush1.msra.mxu0 0.0
    %6395 = vmatprep.subr.mxu0 0.0
    %6396 = vmatpush1.msra.mxu0 0.0
    %6397 = vmatprep.subr.mxu0 0.0
    %6398 = vmatpush1.msra.mxu0 0.0
    %6399 = vmatprep.subr.mxu0 0.0
    %6400 = vmatpush1.msra.mxu0 0.0
    %6401 = vmatprep.subr.mxu0 0.0
    %6402 = vmatpush1.msra.mxu0 0.0
    %6403 = vmatprep.subr.mxu0 0.0
    %6404 = vmatpush1.msra.mxu0 0.0
    %6405 = vmatprep.subr.mxu0 0.0
    %6406 = vmatpush1.msra.mxu0 0.0
    %6407 = vmatprep.subr.mxu0 0.0
    %6408 = vmatpush1.msra.mxu0 0.0
    %6409 = vmatprep.subr.mxu0 0.0
    %6410 = vmatpush1.msra.mxu0 0.0
    %6411 = vmatprep.subr.mxu0 0.0
    %6412 = vmatpush1.msra.mxu0 0.0
    %6413 = vmatprep.subr.mxu0 0.0
    %6414 = vmatpush1.msra.mxu0 0.0
    %6415 = vmatprep.subr.mxu0 0.0
    %6416 = vmatpush1.msra.mxu0 0.0
    %6417 = vmatprep.mubr.f32.mxu0 0.0
    %6418 = vmatmul.mubr.f32.gmra.mrb[0].mxu0 %v6351
    %v6419 = vpop.f32.mrb[0].mxu0
    %v6420 = vadd.f32 0.0, %v6419
    %v6421 = vpop.f32.mrb[0].mxu0
    %6422 = vdwg.mxu0
    %v6424 = vsel %vm1294, %v6193, 0
    %6426 = vmatprep.subr.mxu0 0.0
    %6427 = vmatpush1.msra.mxu0 %v6273
    %6428 = vmatprep.subr.mxu0 0.0
    %6429 = vmatpush1.msra.mxu0 %v6274
    %6430 = vmatprep.subr.mxu0 0.0
    %6431 = vmatpush1.msra.mxu0 0.0
    %6432 = vmatprep.subr.mxu0 0.0
    %6433 = vmatpush1.msra.mxu0 0.0
    %6434 = vmatprep.subr.mxu0 0.0
    %6435 = vmatpush1.msra.mxu0 0.0
    %6436 = vmatprep.subr.mxu0 0.0
    %6437 = vmatpush1.msra.mxu0 0.0
    %6438 = vmatprep.subr.mxu0 0.0
    %6439 = vmatpush1.msra.mxu0 0.0
    %6440 = vmatprep.subr.mxu0 0.0
    %6441 = vmatpush1.msra.mxu0 0.0
    %6442 = vmatprep.subr.mxu0 0.0
    %6443 = vmatpush1.msra.mxu0 0.0
    %6444 = vmatprep.subr.mxu0 0.0
    %6445 = vmatpush1.msra.mxu0 0.0
    %6446 = vmatprep.subr.mxu0 0.0
    %6447 = vmatpush1.msra.mxu0 0.0
    %6448 = vmatprep.subr.mxu0 0.0
    %6449 = vmatpush1.msra.mxu0 0.0
    %6450 = vmatprep.subr.mxu0 0.0
    %6451 = vmatpush1.msra.mxu0 0.0
    %6452 = vmatprep.subr.mxu0 0.0
    %6453 = vmatpush1.msra.mxu0 0.0
    %6454 = vmatprep.subr.mxu0 0.0
    %6455 = vmatpush1.msra.mxu0 0.0
    %6456 = vmatprep.subr.mxu0 0.0
    %6457 = vmatpush1.msra.mxu0 0.0
    %6458 = vmatprep.subr.mxu0 0.0
    %6459 = vmatpush1.msra.mxu0 0.0
    %6460 = vmatprep.subr.mxu0 0.0
    %6461 = vmatpush1.msra.mxu0 0.0
    %6462 = vmatprep.subr.mxu0 0.0
    %6463 = vmatpush1.msra.mxu0 0.0
    %6464 = vmatprep.subr.mxu0 0.0
    %6465 = vmatpush1.msra.mxu0 0.0
    %6466 = vmatprep.subr.mxu0 0.0
    %6467 = vmatpush1.msra.mxu0 0.0
    %6468 = vmatprep.subr.mxu0 0.0
    %6469 = vmatpush1.msra.mxu0 0.0
    %6470 = vmatprep.subr.mxu0 0.0
    %6471 = vmatpush1.msra.mxu0 0.0
    %6472 = vmatprep.subr.mxu0 0.0
    %6473 = vmatpush1.msra.mxu0 0.0
    %6474 = vmatprep.subr.mxu0 0.0
    %6475 = vmatpush1.msra.mxu0 0.0
    %6476 = vmatprep.subr.mxu0 0.0
    %6477 = vmatpush1.msra.mxu0 0.0
    %6478 = vmatprep.subr.mxu0 0.0
    %6479 = vmatpush1.msra.mxu0 0.0
    %6480 = vmatprep.subr.mxu0 0.0
    %6481 = vmatpush1.msra.mxu0 0.0
    %6482 = vmatprep.subr.mxu0 0.0
    %6483 = vmatpush1.msra.mxu0 0.0
    %6484 = vmatprep.subr.mxu0 0.0
    %6485 = vmatpush1.msra.mxu0 0.0
    %6486 = vmatprep.subr.mxu0 0.0
    %6487 = vmatpush1.msra.mxu0 0.0
    %6488 = vmatprep.subr.mxu0 0.0
    %6489 = vmatpush1.msra.mxu0 0.0
    %6490 = vmatprep.mubr.f32.mxu0 0.0
    %6491 = vmatmul.mubr.f32.gmra.mrb[0].mxu0 %v6424
    %v6492 = vpop.f32.mrb[0].mxu0
    %v6493 = vadd.f32 0.0, %v6492
    %v6494 = vpop.f32.mrb[0].mxu0
    %6495 = vdwg.mxu0
    %v6497 = vsel %vm1294, %v6266, 0
    %6499 = vmatprep.subr.mxu0 0.0
    %6500 = vmatpush1.msra.mxu0 %v6275
    %6501 = vmatprep.subr.mxu0 0.0
    %6502 = vmatpush1.msra.mxu0 %v6276
    %6503 = vmatprep.subr.mxu0 0.0
    %6504 = vmatpush1.msra.mxu0 0.0
    %6505 = vmatprep.subr.mxu0 0.0
    %6506 = vmatpush1.msra.mxu0 0.0
    %6507 = vmatprep.subr.mxu0 0.0
    %6508 = vmatpush1.msra.mxu0 0.0
    %6509 = vmatprep.subr.mxu0 0.0
    %6510 = vmatpush1.msra.mxu0 0.0
    %6511 = vmatprep.subr.mxu0 0.0
    %6512 = vmatpush1.msra.mxu0 0.0
    %6513 = vmatprep.subr.mxu0 0.0
    %6514 = vmatpush1.msra.mxu0 0.0
    %6515 = vmatprep.subr.mxu0 0.0
    %6516 = vmatpush1.msra.mxu0 0.0
    %6517 = vmatprep.subr.mxu0 0.0
    %6518 = vmatpush1.msra.mxu0 0.0
    %6519 = vmatprep.subr.mxu0 0.0
    %6520 = vmatpush1.msra.mxu0 0.0
    %6521 = vmatprep.subr.mxu0 0.0
    %6522 = vmatpush1.msra.mxu0 0.0
    %6523 = vmatprep.subr.mxu0 0.0
    %6524 = vmatpush1.msra.mxu0 0.0
    %6525 = vmatprep.subr.mxu0 0.0
    %6526 = vmatpush1.msra.mxu0 0.0
    %6527 = vmatprep.subr.mxu0 0.0
    %6528 = vmatpush1.msra.mxu0 0.0
    %6529 = vmatprep.subr.mxu0 0.0
    %6530 = vmatpush1.msra.mxu0 0.0
    %6531 = vmatprep.subr.mxu0 0.0
    %6532 = vmatpush1.msra.mxu0 0.0
    %6533 = vmatprep.subr.mxu0 0.0
    %6534 = vmatpush1.msra.mxu0 0.0
    %6535 = vmatprep.subr.mxu0 0.0
    %6536 = vmatpush1.msra.mxu0 0.0
    %6537 = vmatprep.subr.mxu0 0.0
    %6538 = vmatpush1.msra.mxu0 0.0
    %6539 = vmatprep.subr.mxu0 0.0
    %6540 = vmatpush1.msra.mxu0 0.0
    %6541 = vmatprep.subr.mxu0 0.0
    %6542 = vmatpush1.msra.mxu0 0.0
    %6543 = vmatprep.subr.mxu0 0.0
    %6544 = vmatpush1.msra.mxu0 0.0
    %6545 = vmatprep.subr.mxu0 0.0
    %6546 = vmatpush1.msra.mxu0 0.0
    %6547 = vmatprep.subr.mxu0 0.0
    %6548 = vmatpush1.msra.mxu0 0.0
    %6549 = vmatprep.subr.mxu0 0.0
    %6550 = vmatpush1.msra.mxu0 0.0
    %6551 = vmatprep.subr.mxu0 0.0
    %6552 = vmatpush1.msra.mxu0 0.0
    %6553 = vmatprep.subr.mxu0 0.0
    %6554 = vmatpush1.msra.mxu0 0.0
    %6555 = vmatprep.subr.mxu0 0.0
    %6556 = vmatpush1.msra.mxu0 0.0
    %6557 = vmatprep.subr.mxu0 0.0
    %6558 = vmatpush1.msra.mxu0 0.0
    %6559 = vmatprep.subr.mxu0 0.0
    %6560 = vmatpush1.msra.mxu0 0.0
    %6561 = vmatprep.subr.mxu0 0.0
    %6562 = vmatpush1.msra.mxu0 0.0
    %6563 = vmatprep.mubr.f32.mxu0 0.0
    %6564 = vmatmul.mubr.f32.gmra.mrb[0].mxu0 %v6497
    %v6565 = vpop.f32.mrb[0].mxu0
    %v6566 = vadd.f32 0.0, %v6565
    %v6567 = vpop.f32.mrb[0].mxu0
    %6568 = vdwg.mxu0
    %v6569 = vsel %vm59, %v6347, 0.0
    %v6570 = vsel %vm59, %v6420, 0.0
    %v6571 = vadd.f32 %v6569, %v6570
    %v6572 = vsel %vm59, %v6493, 0.0
    %v6573 = vadd.f32 %v6571, %v6572
    %v6574 = vsel %vm59, %v6566, 0.0
    %v6575 = vadd.f32 %v6573, %v6574
    %v6576 = vadd.f32 %v3432, %v5624
    %v6577 = vadd.f32 %v3433, %v6575
    %s6578 = scalar_lea.vmem %s8, 1
    %v6579 = vld [vmem:[%s6578] sm:$0x1]
    %v6580 = vmul.f32 %v6576, %v6576
    %v6581 = vmul.f32 %v6577, %v6577
    %v6582 = vsel %vm59, %v6580, 0.0
    %6583 = vadd.xlane.f32.xlu0 %v6582
    %v6584 = vpop.xlane.xlu0 %6583
    %v6585 = vsel %vm59, %v6581, 0.0
    %6586 = vadd.xlane.f32.xlu0 %v6585
    %v6587 = vpop.xlane.xlu0 %6586
    %v6588 = vmul.f32 %v6584, %v66
    %v6589 = vmul.f32 %v6587, %v66
    %v6590 = vadd.f32 %v6588, 1e-05
    %v6591 = vadd.f32 %v6589, 1e-05
    %v6592 = vrsqrt.pop %v6590
    %v6593 = vrsqrt.pop %v6591
    %v6594 = vmul.f32 %v6576, %v6592
    %v6595 = vmul.f32 %v6577, %v6593
    %v6597 = vlaneseq
    %v6598 = vshrl.u32 %v6597, 7
    %v6599 = vsub.s32 0, %v6598
    %v6600 = vrot.slane %v6579, %v6599
    %v6602 = vmul.f32 %v6594, %v6600
    %v6603 = vmul.f32 %v6595, %v6600
    %s6604 = scalar_lea.vmem %s9, 128
    %v6605 = vld [vmem:[%s6604] sm:$0xff]
    %v6606 = vld [vmem:[%s6604 + $0x8] sm:$0xff]
    %v6607 = vld [vmem:[%s6604 + $0x10] sm:$0xff]
    %v6608 = vld [vmem:[%s6604 + $0x18] sm:$0xff]
    %v6609 = vld [vmem:[%s6604 + $0x20] sm:$0xff]
    %v6610 = vld [vmem:[%s6604 + $0x28] sm:$0xff]
    %v6611 = vld [vmem:[%s6604 + $0x30] sm:$0xff]
    %v6612 = vld [vmem:[%s6604 + $0x38] sm:$0xff]
    %v6613 = vld [vmem:[%s6604 + $0x40] sm:$0xff]
    %v6614 = vld [vmem:[%s6604 + $0x48] sm:$0xff]
    %v6615 = vld [vmem:[%s6604 + $0x50] sm:$0xff]
    %v6616 = vld [vmem:[%s6604 + $0x58] sm:$0xff]
    %v6617 = vld [vmem:[%s6604 + $0x60] sm:$0xff]
    %v6618 = vld [vmem:[%s6604 + $0x68] sm:$0xff]
    %v6619 = vld [vmem:[%s6604 + $0x70] sm:$0xff]
    %v6620 = vld [vmem:[%s6604 + $0x78] sm:$0xff]
    %v6622 = vsel %vm59, %v6602, 0
    %v6625 = vsel %vm59, %v6603, 0
    %6627 = vmatprep.subr.mxu0 %v6606
    %6628 = vmatpush1.msra.mxu0 %v6605
    %6629 = vmatprep.subr.mxu0 %v6608
    %6630 = vmatpush1.msra.mxu0 %v6607
    %6631 = vmatprep.subr.mxu0 %v6610
    %6632 = vmatpush1.msra.mxu0 %v6609
    %6633 = vmatprep.subr.mxu0 %v6612
    %6634 = vmatpush1.msra.mxu0 %v6611
    %6635 = vmatprep.subr.mxu0 %v6614
    %6636 = vmatpush1.msra.mxu0 %v6613
    %6637 = vmatprep.subr.mxu0 %v6616
    %6638 = vmatpush1.msra.mxu0 %v6615
    %6639 = vmatprep.subr.mxu0 %v6618
    %6640 = vmatpush1.msra.mxu0 %v6617
    %6641 = vmatprep.subr.mxu0 %v6620
    %6642 = vmatpush1.msra.mxu0 %v6619
    %6643 = vmatprep.subr.mxu0 0.0
    %6644 = vmatpush1.msra.mxu0 0.0
    %6645 = vmatprep.subr.mxu0 0.0
    %6646 = vmatpush1.msra.mxu0 0.0
    %6647 = vmatprep.subr.mxu0 0.0
    %6648 = vmatpush1.msra.mxu0 0.0
    %6649 = vmatprep.subr.mxu0 0.0
    %6650 = vmatpush1.msra.mxu0 0.0
    %6651 = vmatprep.subr.mxu0 0.0
    %6652 = vmatpush1.msra.mxu0 0.0
    %6653 = vmatprep.subr.mxu0 0.0
    %6654 = vmatpush1.msra.mxu0 0.0
    %6655 = vmatprep.subr.mxu0 0.0
    %6656 = vmatpush1.msra.mxu0 0.0
    %6657 = vmatprep.subr.mxu0 0.0
    %6658 = vmatpush1.msra.mxu0 0.0
    %6659 = vmatprep.subr.mxu0 0.0
    %6660 = vmatpush1.msra.mxu0 0.0
    %6661 = vmatprep.subr.mxu0 0.0
    %6662 = vmatpush1.msra.mxu0 0.0
    %6663 = vmatprep.subr.mxu0 0.0
    %6664 = vmatpush1.msra.mxu0 0.0
    %6665 = vmatprep.subr.mxu0 0.0
    %6666 = vmatpush1.msra.mxu0 0.0
    %6667 = vmatprep.subr.mxu0 0.0
    %6668 = vmatpush1.msra.mxu0 0.0
    %6669 = vmatprep.subr.mxu0 0.0
    %6670 = vmatpush1.msra.mxu0 0.0
    %6671 = vmatprep.subr.mxu0 0.0
    %6672 = vmatpush1.msra.mxu0 0.0
    %6673 = vmatprep.subr.mxu0 0.0
    %6674 = vmatpush1.msra.mxu0 0.0
    %6675 = vmatprep.subr.mxu0 0.0
    %6676 = vmatpush1.msra.mxu0 0.0
    %6677 = vmatprep.subr.mxu0 0.0
    %6678 = vmatpush1.msra.mxu0 0.0
    %6679 = vmatprep.subr.mxu0 0.0
    %6680 = vmatpush1.msra.mxu0 0.0
    %6681 = vmatprep.subr.mxu0 0.0
    %6682 = vmatpush1.msra.mxu0 0.0
    %6683 = vmatprep.subr.mxu0 0.0
    %6684 = vmatpush1.msra.mxu0 0.0
    %6685 = vmatprep.subr.mxu0 0.0
    %6686 = vmatpush1.msra.mxu0 0.0
    %6687 = vmatprep.subr.mxu0 0.0
    %6688 = vmatpush1.msra.mxu0 0.0
    %6689 = vmatprep.subr.mxu0 0.0
    %6690 = vmatpush1.msra.mxu0 0.0
    %6691 = vmatprep.mubr.f32.mxu0 0.0
    %6692 = vmatmul.mubr.f32.gmra.mrb[0].mxu0 %v6622
    %v6693 = vpop.f32.mrb[0].mxu0
    %v6694 = vadd.f32 0.0, %v6693
    %v6695 = vpop.f32.mrb[0].mxu0
    %v6696 = vadd.f32 0.0, %v6695
    %6697 = vmatprep.mubr.f32.mxu0 0.0
    %6698 = vmatmul.mubr.f32.gmra.mrb[0].mxu0 %v6625
    %v6699 = vpop.f32.mrb[0].mxu0
    %v6700 = vadd.f32 0.0, %v6699
    %v6701 = vpop.f32.mrb[0].mxu0
    %v6702 = vadd.f32 0.0, %v6701
    %6703 = vdwg.mxu0
    %v6704 = vmul.f32 %v6696, %v6694
    %v6705 = vmul.f32 %v6702, %v6700
    %v6706 = vxor.u32 %v6694, 2147483648
    %v6707 = vxor.u32 %v6700, 2147483648
    %v6708 = vmul.f32 %v6706, 1.442695
    %v6709 = vpow.pop %v6708
    %v6710 = vmul.f32 %v6707, 1.442695
    %v6711 = vpow.pop %v6710
    %v6712 = vadd.f32 %v6709, 1.0
    %v6713 = vadd.f32 %v6711, 1.0
    %v6714 = vrcp.pop %v6712
    %v6715 = vmul.f32 1.0, %v6714
    %v6716 = vrcp.pop %v6713
    %v6717 = vmul.f32 1.0, %v6716
    %v6718 = vmul.f32 %v6704, %v6715
    %v6719 = vmul.f32 %v6705, %v6717
    %s6720 = scalar_lea.vmem %s10, 128
    %v6721 = vld [vmem:[%s6720] sm:$0xff]
    %v6722 = vld [vmem:[%s6720 + $0x8] sm:$0xff]
    %v6723 = vld [vmem:[%s6720 + $0x10] sm:$0xff]
    %v6724 = vld [vmem:[%s6720 + $0x18] sm:$0xff]
    %v6725 = vld [vmem:[%s6720 + $0x20] sm:$0xff]
    %v6726 = vld [vmem:[%s6720 + $0x28] sm:$0xff]
    %v6727 = vld [vmem:[%s6720 + $0x30] sm:$0xff]
    %v6728 = vld [vmem:[%s6720 + $0x38] sm:$0xff]
    %v6729 = vld [vmem:[%s6720 + $0x40] sm:$0xff]
    %v6730 = vld [vmem:[%s6720 + $0x48] sm:$0xff]
    %v6731 = vld [vmem:[%s6720 + $0x50] sm:$0xff]
    %v6732 = vld [vmem:[%s6720 + $0x58] sm:$0xff]
    %v6733 = vld [vmem:[%s6720 + $0x60] sm:$0xff]
    %v6734 = vld [vmem:[%s6720 + $0x68] sm:$0xff]
    %v6735 = vld [vmem:[%s6720 + $0x70] sm:$0xff]
    %v6736 = vld [vmem:[%s6720 + $0x78] sm:$0xff]
    %6737 = vmatprep.subr.mxu0 0.0
    %6738 = vmatpush1.msra.mxu0 %v6721
    %6739 = vmatprep.subr.mxu0 0.0
    %6740 = vmatpush1.msra.mxu0 %v6722
    %6741 = vmatprep.subr.mxu0 0.0
    %6742 = vmatpush1.msra.mxu0 %v6723
    %6743 = vmatprep.subr.mxu0 0.0
    %6744 = vmatpush1.msra.mxu0 %v6724
    %6745 = vmatprep.subr.mxu0 0.0
    %6746 = vmatpush1.msra.mxu0 %v6725
    %6747 = vmatprep.subr.mxu0 0.0
    %6748 = vmatpush1.msra.mxu0 %v6726
    %6749 = vmatprep.subr.mxu0 0.0
    %6750 = vmatpush1.msra.mxu0 %v6727
    %6751 = vmatprep.subr.mxu0 0.0
    %6752 = vmatpush1.msra.mxu0 %v6728
    %6753 = vmatprep.subr.mxu0 0.0
    %6754 = vmatpush1.msra.mxu0 %v6729
    %6755 = vmatprep.subr.mxu0 0.0
    %6756 = vmatpush1.msra.mxu0 %v6730
    %6757 = vmatprep.subr.mxu0 0.0
    %6758 = vmatpush1.msra.mxu0 %v6731
    %6759 = vmatprep.subr.mxu0 0.0
    %6760 = vmatpush1.msra.mxu0 %v6732
    %6761 = vmatprep.subr.mxu0 0.0
    %6762 = vmatpush1.msra.mxu0 %v6733
    %6763 = vmatprep.subr.mxu0 0.0
    %6764 = vmatpush1.msra.mxu0 %v6734
    %6765 = vmatprep.subr.mxu0 0.0
    %6766 = vmatpush1.msra.mxu0 %v6735
    %6767 = vmatprep.subr.mxu0 0.0
    %6768 = vmatpush1.msra.mxu0 %v6736
    %6769 = vmatprep.subr.mxu0 0.0
    %6770 = vmatpush1.msra.mxu0 0.0
    %6771 = vmatprep.subr.mxu0 0.0
    %6772 = vmatpush1.msra.mxu0 0.0
    %6773 = vmatprep.subr.mxu0 0.0
    %6774 = vmatpush1.msra.mxu0 0.0
    %6775 = vmatprep.subr.mxu0 0.0
    %6776 = vmatpush1.msra.mxu0 0.0
    %6777 = vmatprep.subr.mxu0 0.0
    %6778 = vmatpush1.msra.mxu0 0.0
    %6779 = vmatprep.subr.mxu0 0.0
    %6780 = vmatpush1.msra.mxu0 0.0
    %6781 = vmatprep.subr.mxu0 0.0
    %6782 = vmatpush1.msra.mxu0 0.0
    %6783 = vmatprep.subr.mxu0 0.0
    %6784 = vmatpush1.msra.mxu0 0.0
    %6785 = vmatprep.subr.mxu0 0.0
    %6786 = vmatpush1.msra.mxu0 0.0
    %6787 = vmatprep.subr.mxu0 0.0
    %6788 = vmatpush1.msra.mxu0 0.0
    %6789 = vmatprep.subr.mxu0 0.0
    %6790 = vmatpush1.msra.mxu0 0.0
    %6791 = vmatprep.subr.mxu0 0.0
    %6792 = vmatpush1.msra.mxu0 0.0
    %6793 = vmatprep.subr.mxu0 0.0
    %6794 = vmatpush1.msra.mxu0 0.0
    %6795 = vmatprep.subr.mxu0 0.0
    %6796 = vmatpush1.msra.mxu0 0.0
    %6797 = vmatprep.subr.mxu0 0.0
    %6798 = vmatpush1.msra.mxu0 0.0
    %6799 = vmatprep.subr.mxu0 0.0
    %6800 = vmatpush1.msra.mxu0 0.0
    %6801 = vmatprep.mubr.f32.mxu0 0.0
    %6802 = vmatmul.mubr.f32.gmra.mrb[0].mxu0 %v6718
    %v6803 = vpop.f32.mrb[0].mxu0
    %v6804 = vadd.f32 0.0, %v6803
    %v6805 = vpop.f32.mrb[0].mxu0
    %6806 = vmatprep.mubr.f32.mxu0 0.0
    %6807 = vmatmul.mubr.f32.gmra.mrb[0].mxu0 %v6719
    %v6808 = vpop.f32.mrb[0].mxu0
    %v6809 = vadd.f32 0.0, %v6808
    %v6810 = vpop.f32.mrb[0].mxu0
    %6811 = vdwg.mxu0
    %v6812 = vadd.f32 %v6576, %v6804
    %v6813 = vadd.f32 %v6577, %v6809
    %v6815 = vrot.slane %v6812, 7
    %v6818 = vrot.slane %v6813, 6
    %vm6820 = vcmask 1040384
    %v6821 = vsel %vm6820, %v6815, %v6818
    %v6822 = vld [vmem:[%s11] sm:$0x1]
    %v6823 = vmul.f32 %v6821, %v6821
    %vm6824 = vcmask 517120
    %v6825 = vsel %vm6824, %v6823, 0.0
    %6826 = vadd.xlane.f32.xlu0 %v6825
    %v6827 = vpop.xlane.xlu0 %6826
    %v6828 = vmul.f32 %v6827, %v66
    %v6829 = vadd.f32 %v6828, 1e-05
    %v6830 = vrsqrt.pop %v6829
    %v6831 = vmul.f32 %v6821, %v6830
    %v6833 = vlaneseq
    %v6834 = vshrl.u32 %v6833, 7
    %v6835 = vsub.s32 0, %v6834
    %v6836 = vrot.slane %v6822, %v6835
    %v6838 = vmul.f32 %v6831, %v6836
    %v6839 = vld [vmem:[%s12] sm:$0xff]
    %v6840 = vld [vmem:[%s12 + $0x8] sm:$0xff]
    %v6841 = vld [vmem:[%s12 + $0x10] sm:$0xff]
    %v6842 = vld [vmem:[%s12 + $0x18] sm:$0xff]
    %v6843 = vld [vmem:[%s12 + $0x20] sm:$0xff]
    %v6844 = vld [vmem:[%s12 + $0x28] sm:$0xff]
    %v6845 = vld [vmem:[%s12 + $0x30] sm:$0xff]
    %v6846 = vld [vmem:[%s12 + $0x38] sm:$0xff]
    %v6847 = vld [vmem:[%s12 + $0x40] sm:$0xff]
    %v6848 = vld [vmem:[%s12 + $0x48] sm:$0xff]
    %v6849 = vld [vmem:[%s12 + $0x50] sm:$0xff]
    %v6850 = vld [vmem:[%s12 + $0x58] sm:$0xff]
    %v6851 = vld [vmem:[%s12 + $0x60] sm:$0xff]
    %v6852 = vld [vmem:[%s12 + $0x68] sm:$0xff]
    %v6853 = vld [vmem:[%s12 + $0x70] sm:$0xff]
    %v6854 = vld [vmem:[%s12 + $0x78] sm:$0xff]
    %v6856 = vsel %vm59, %v6838, 0
    %6858 = vmatprep.subr.mxu0 %v6840
    %6859 = vmatpush1.msra.mxu0 %v6839
    %6860 = vmatprep.subr.mxu0 %v6842
    %6861 = vmatpush1.msra.mxu0 %v6841
    %6862 = vmatprep.subr.mxu0 %v6844
    %6863 = vmatpush1.msra.mxu0 %v6843
    %6864 = vmatprep.subr.mxu0 %v6846
    %6865 = vmatpush1.msra.mxu0 %v6845
    %6866 = vmatprep.subr.mxu0 %v6848
    %6867 = vmatpush1.msra.mxu0 %v6847
    %6868 = vmatprep.subr.mxu0 %v6850
    %6869 = vmatpush1.msra.mxu0 %v6849
    %6870 = vmatprep.subr.mxu0 %v6852
    %6871 = vmatpush1.msra.mxu0 %v6851
    %6872 = vmatprep.subr.mxu0 %v6854
    %6873 = vmatpush1.msra.mxu0 %v6853
    %6874 = vmatprep.subr.mxu0 0.0
    %6875 = vmatpush1.msra.mxu0 0.0
    %6876 = vmatprep.subr.mxu0 0.0
    %6877 = vmatpush1.msra.mxu0 0.0
    %6878 = vmatprep.subr.mxu0 0.0
    %6879 = vmatpush1.msra.mxu0 0.0
    %6880 = vmatprep.subr.mxu0 0.0
    %6881 = vmatpush1.msra.mxu0 0.0
    %6882 = vmatprep.subr.mxu0 0.0
    %6883 = vmatpush1.msra.mxu0 0.0
    %6884 = vmatprep.subr.mxu0 0.0
    %6885 = vmatpush1.msra.mxu0 0.0
    %6886 = vmatprep.subr.mxu0 0.0
    %6887 = vmatpush1.msra.mxu0 0.0
    %6888 = vmatprep.subr.mxu0 0.0
    %6889 = vmatpush1.msra.mxu0 0.0
    %6890 = vmatprep.subr.mxu0 0.0
    %6891 = vmatpush1.msra.mxu0 0.0
    %6892 = vmatprep.subr.mxu0 0.0
    %6893 = vmatpush1.msra.mxu0 0.0
    %6894 = vmatprep.subr.mxu0 0.0
    %6895 = vmatpush1.msra.mxu0 0.0
    %6896 = vmatprep.subr.mxu0 0.0
    %6897 = vmatpush1.msra.mxu0 0.0
    %6898 = vmatprep.subr.mxu0 0.0
    %6899 = vmatpush1.msra.mxu0 0.0
    %6900 = vmatprep.subr.mxu0 0.0
    %6901 = vmatpush1.msra.mxu0 0.0
    %6902 = vmatprep.subr.mxu0 0.0
    %6903 = vmatpush1.msra.mxu0 0.0
    %6904 = vmatprep.subr.mxu0 0.0
    %6905 = vmatpush1.msra.mxu0 0.0
    %6906 = vmatprep.subr.mxu0 0.0
    %6907 = vmatpush1.msra.mxu0 0.0
    %6908 = vmatprep.subr.mxu0 0.0
    %6909 = vmatpush1.msra.mxu0 0.0
    %6910 = vmatprep.subr.mxu0 0.0
    %6911 = vmatpush1.msra.mxu0 0.0
    %6912 = vmatprep.subr.mxu0 0.0
    %6913 = vmatpush1.msra.mxu0 0.0
    %6914 = vmatprep.subr.mxu0 0.0
    %6915 = vmatpush1.msra.mxu0 0.0
    %6916 = vmatprep.subr.mxu0 0.0
    %6917 = vmatpush1.msra.mxu0 0.0
    %6918 = vmatprep.subr.mxu0 0.0
    %6919 = vmatpush1.msra.mxu0 0.0
    %6920 = vmatprep.subr.mxu0 0.0
    %6921 = vmatpush1.msra.mxu0 0.0
    %6922 = vmatprep.mubr.f32.mxu0 0.0
    %6923 = vmatmul.mubr.f32.gmra.mrb[0].mxu0 %v6856
    %v6924 = vpop.f32.mrb[0].mxu0
    %v6925 = vadd.f32 0.0, %v6924
    %v6926 = vpop.f32.mrb[0].mxu0
    %v6927 = vadd.f32 0.0, %v6926
    %6928 = vdwg.mxu0
    %v6931 = vcombine.low %v6925, %v6927
    %v6933 = vunpack.c.l.s4 1983009808
    %v6934 = vunpack.c.0.s8 %v6933
    %v6935 = vlaneseq
    %v6936 = vshrl.u32 %v6935, 7
    %v6937 = vsub.s32 %v6934, %v6936
    %v6938 = vrot.slane %v6931, %v6937
    %6940 = vst [vmem:[#allocation2] sm:$0xf] %v6938
    // Predicated region
    $region54: #{phi3_forward.1} parent=1 // pred_check
      _
    $region55: #{phi3_forward.1} parent=1 // pred_check_branch
      %6942 = sbr.rel (0) target = $region57
    $region56: #{phi3_forward.1} parent=1 // pred_region
      %s6944 = ssub.s32 64, 64
      %6945 = vsyncadd [#allocation3], %s6944
      %s6947 = sshll.u32 [#allocation2], 4
      %s6948 = int_to_ptr.vmem [resolvable:$true] %s6947
      %6950 = dma.vmem_to_hbm [thread:$0]  %s6948, 64, %s13, [#allocation3]
    $region57: #{phi3_forward.1} parent=1 // pred_fallthru
      _
    // Predicated region
    $region58: #{phi3_forward.1} parent=1 // pred_check
      _
    $region59: #{phi3_forward.1} parent=1 // pred_check_branch
      %6952 = sbr.rel (0) target = $region61
    $region60: #{phi3_forward.1} parent=1 // pred_region
      %6953 = dma.done [#allocation3], 64
    $region61: #{phi3_forward.1} parent=1 // pred_fallthru
      _
    %6954 = vsyncpa [#allocation3], 1

</llo_original>
